<compile_context>
chip_gen: v7x
topology: tpu7x:2x2x1
jax: 0.10.0
libtpu: 0.0.40
codegen_flags: <defaults>
</compile_context>

<pallas_src>
import functools
import math

import jax
import jax.numpy as jnp
from jax import lax
from jax.experimental import pallas as pl
from jax.experimental.pallas import tpu as pltpu

LN_EPS = 1e-5
VPAD = 128  # lane-dense padded vocab width for the generator output


# ------------------------------ fused kernel --------------------------------
def fused_transformer_kernel(
    src_ref, tgt_ref,
    emb_ref, pe_ref,
    enc_qkv_w_ref, enc_qkv_b_ref, enc_o_w_ref, enc_o_b_ref,
    enc_w1_ref, enc_b1_ref, enc_w2_ref, enc_b2_ref, enc_ln_ref,
    dec_sqkv_w_ref, dec_sqkv_b_ref, dec_so_w_ref, dec_so_b_ref,
    dec_cq_w_ref, dec_cq_b_ref, dec_ckv_w_ref, dec_ckv_b_ref,
    dec_co_w_ref, dec_co_b_ref,
    dec_w1_ref, dec_b1_ref, dec_w2_ref, dec_b2_ref, dec_ln_ref,
    fin_ln_ref, gen_w_ref, gen_b_ref,
    out_ref,
    *, B, S_src, S_tgt, D, H, V, n_enc, n_dec):
  """Whole transformer forward (all batches, all layers) in one invocation."""
  f32 = jnp.float32
  bf16 = jnp.bfloat16
  dh = D // H
  emb_scale = math.sqrt(D)
  att_scale = 1.0 / math.sqrt(dh)

  # --------------------------- small helpers --------------------------------
  def mm(x, w):
    # bf16 MXU inputs, f32 accumulation.
    return jnp.dot(x.astype(bf16), w, preferred_element_type=f32)

  def layer_norm(x, gb):                      # x: (N, D) f32, gb: (2, D) f32
    g = gb[0:1, :]
    b = gb[1:2, :]
    mean = jnp.mean(x, axis=-1, keepdims=True)
    var = jnp.mean((x - mean) ** 2, axis=-1, keepdims=True)
    return (x - mean) * lax.rsqrt(var + LN_EPS) * g + b

  def softmax(s):                             # f32, exact denominator
    s = s - jnp.max(s, axis=-1, keepdims=True)
    p = jnp.exp(s)
    return p / jnp.sum(p, axis=-1, keepdims=True)

  def to_heads(x2, S):
    # (B*S, D) -> (B*H, dh, S), using only lane-preserving reshapes and a
    # last-two-dim transpose (layout-safe on Mosaic).
    x3 = x2.reshape(B, S, D)
    xT = jnp.swapaxes(x3, 1, 2)               # (B, D, S)
    return xT.reshape(B * H, dh, S)           # head-major, "transposed" layout

  def from_heads(ctxT, S):
    # (B*H, dh, S) -> (B*S, D)
    c = ctxT.reshape(B, D, S)
    c = jnp.swapaxes(c, 1, 2)                 # (B, S, D)
    return c.reshape(B * S, D)

  def attention(q2, k2, v2, Sq, Sk, wo, bo):
    # q2: (B*Sq, D) f32 (already scaled), k2/v2: (B*Sk, D) f32
    qh = to_heads(q2, Sq).astype(bf16)        # (B*H, dh, Sq)
    kh = to_heads(k2, Sk).astype(bf16)        # (B*H, dh, Sk)
    vh = to_heads(v2, Sk).astype(bf16)        # (B*H, dh, Sk)
    s = jnp.einsum('bdq,bdk->bqk', qh, kh,
                   preferred_element_type=f32)        # (B*H, Sq, Sk)
    p = softmax(s).astype(bf16)
    ctxT = jnp.einsum('bdk,bqk->bdq', vh, p,
                      preferred_element_type=f32)     # (B*H, dh, Sq)
    ctx = from_heads(ctxT, Sq)                         # (B*Sq, D)
    return mm(ctx, wo) + bo

  def self_attention(x2, S, wqkv, bqkv, wo, bo):
    qkv = mm(x2, wqkv) + bqkv                 # (B*S, 3D) fused QKV projection
    q = qkv[:, 0:D] * att_scale
    k = qkv[:, D:2 * D]
    v = qkv[:, 2 * D:3 * D]
    return attention(q, k, v, S, S, wo, bo)

  def cross_attention(t2, m2, wq, bq, wkv, bkv, wo, bo):
    q = (mm(t2, wq) + bq) * att_scale         # (B*S_tgt, D)
    kv = mm(m2, wkv) + bkv                    # (B*S_src, 2D) fused K/V
    k = kv[:, 0:D]
    v = kv[:, D:2 * D]
    return attention(q, k, v, S_tgt, S_src, wo, bo)

  def ffn(x2, w1, b1, w2, b2):
    h = jnp.maximum(mm(x2, w1) + b1, 0.0)
    return mm(h, w2) + b2

  def embed(ids_ref, S):
    # Embedding gather as an exact one-hot matmul (f32), + scale + PE.
    ids = ids_ref[...]                                        # (B*S, 1) int32
    onehot = (ids == lax.broadcasted_iota(jnp.int32, (B * S, V), 1)
              ).astype(f32)                                   # (B*S, V)
    x = jnp.dot(onehot, emb_ref[...],
                preferred_element_type=f32) * emb_scale       # (B*S, D)
    x = x.reshape(B, S, D) + pe_ref[0:S, :][None, :, :]
    return x.reshape(B * S, D)

  # ----------------------------- encoder ------------------------------------
  x = embed(src_ref, S_src)                                   # (B*S_src, D)
  for l in range(n_enc):
    a = self_attention(x, S_src,
                       enc_qkv_w_ref[l], enc_qkv_b_ref[l],
                       enc_o_w_ref[l], enc_o_b_ref[l])
    x = layer_norm(x + a, enc_ln_ref[l, 0])
    y = ffn(x, enc_w1_ref[l], enc_b1_ref[l], enc_w2_ref[l], enc_b2_ref[l])
    x = layer_norm(x + y, enc_ln_ref[l, 1])
  memory = layer_norm(x, fin_ln_ref[0])                       # encoder norm

  # ----------------------------- decoder ------------------------------------
  t = embed(tgt_ref, S_tgt)                                   # (B*S_tgt, D)
  for l in range(n_dec):
    a = self_attention(t, S_tgt,
                       dec_sqkv_w_ref[l], dec_sqkv_b_ref[l],
                       dec_so_w_ref[l], dec_so_b_ref[l])
    t = layer_norm(t + a, dec_ln_ref[l, 0])
    a = cross_attention(t, memory,
                        dec_cq_w_ref[l], dec_cq_b_ref[l],
                        dec_ckv_w_ref[l], dec_ckv_b_ref[l],
                        dec_co_w_ref[l], dec_co_b_ref[l])
    t = layer_norm(t + a, dec_ln_ref[l, 1])
    y = ffn(t, dec_w1_ref[l], dec_b1_ref[l], dec_w2_ref[l], dec_b2_ref[l])
    t = layer_norm(t + y, dec_ln_ref[l, 2])
  t = layer_norm(t, fin_ln_ref[1])                            # decoder norm

  # ----------------------------- generator ----------------------------------
  # Lane-dense (B*S_tgt, VPAD=128) output slab (vocab zero-padded).
  out_ref[...] = (mm(t, gen_w_ref[...]) + gen_b_ref[...]).astype(out_ref.dtype)


# ------------------------------ model forward --------------------------------
_WEIGHT_NAMES = (
    "emb", "pe",
    "enc_qkv_w", "enc_qkv_b", "enc_o_w", "enc_o_b",
    "enc_w1", "enc_b1", "enc_w2", "enc_b2", "enc_ln",
    "dec_sqkv_w", "dec_sqkv_b", "dec_so_w", "dec_so_b",
    "dec_cq_w", "dec_cq_b", "dec_ckv_w", "dec_ckv_b", "dec_co_w", "dec_co_b",
    "dec_w1", "dec_b1", "dec_w2", "dec_b2", "dec_ln",
    "fin_ln", "gen_w", "gen_b",
)


def transformer_forward(params, src, tgt, *, d_model, nhead, vocab_size):
  assert d_model % nhead == 0, "d_model must be divisible by nhead"
  B, S_src = src.shape
  _, S_tgt = tgt.shape

  # Only the int32 token ids enter the kernel; everything else is weights.
  src_ids = src.reshape(B * S_src, 1).astype(jnp.int32)
  tgt_ids = tgt.reshape(B * S_tgt, 1).astype(jnp.int32)

  weights = [params[name] for name in _WEIGHT_NAMES]
  vpad = params["gen_b"].shape[-1]
  n_enc = params["enc_qkv_w"].shape[0]
  n_dec = params["dec_sqkv_w"].shape[0]

  kernel = functools.partial(
      fused_transformer_kernel,
      B=B, S_src=S_src, S_tgt=S_tgt, D=d_model, H=nhead,
      V=params["emb"].shape[0], n_enc=n_enc, n_dec=n_dec)

  vmem = pl.BlockSpec(memory_space=pltpu.MemorySpace.VMEM)  # whole-array VMEM
  n_inputs = 2 + len(weights)

  out = pl.pallas_call(
      kernel,
      out_shape=jax.ShapeDtypeStruct((B * S_tgt, vpad), jnp.float32),
      in_specs=[vmem] * n_inputs,
      out_specs=vmem,
  )(src_ids, tgt_ids, *weights)

  return out[:, :vocab_size].reshape(B, S_tgt, vocab_size)


# ------------------------------ parameters ---------------------------------
def _make_pe(max_len, d_model):
  pos = jnp.arange(max_len, dtype=jnp.float32)[:, None]
  div = jnp.exp(jnp.arange(0, d_model, 2, dtype=jnp.float32)
                * (-math.log(10000.0) / d_model))
  pe = jnp.zeros((max_len, d_model), jnp.float32)
  pe = pe.at[:, 0::2].set(jnp.sin(pos * div))
  pe = pe.at[:, 1::2].set(jnp.cos(pos * div))
  return pe


def make_params(key, vocab_size, d_model, d_ff, n_enc, n_dec,
                max_len=64, vpad=VPAD):
  D, F = d_model, d_ff
  ks = iter(jax.random.split(key, 64))

  def xav(shape):
    fan_in, fan_out = shape[-2], shape[-1]
    limit = math.sqrt(6.0 / (fan_in + fan_out))
    return jax.random.uniform(next(ks), shape, jnp.float32, -limit, limit)

  def bf(x):                       # matmul weights live in bf16 (MXU inputs)
    return x.astype(jnp.bfloat16)

  ln = jnp.concatenate([jnp.ones((1, D), jnp.float32),
                        jnp.zeros((1, D), jnp.float32)], axis=0)   # (2, D)

  params = dict(
      emb=xav((vocab_size, D)),                       # f32 (exact gather)
      pe=_make_pe(max_len, D),                        # f32
      # ----- encoder (stacked over layers) -----
      enc_qkv_w=bf(jnp.concatenate([xav((n_enc, D, D)) for _ in range(3)], -1)),
      enc_qkv_b=jnp.zeros((n_enc, 1, 3 * D), jnp.float32),
      enc_o_w=bf(xav((n_enc, D, D))),
      enc_o_b=jnp.zeros((n_enc, 1, D), jnp.float32),
      enc_w1=bf(xav((n_enc, D, F))),
      enc_b1=jnp.zeros((n_enc, 1, F), jnp.float32),
      enc_w2=bf(xav((n_enc, F, D))),
      enc_b2=jnp.zeros((n_enc, 1, D), jnp.float32),
      enc_ln=jnp.tile(ln[None, None], (n_enc, 2, 1, 1)),          # [ln1, ln2]
      # ----- decoder (stacked over layers) -----
      dec_sqkv_w=bf(jnp.concatenate([xav((n_dec, D, D)) for _ in range(3)], -1)),
      dec_sqkv_b=jnp.zeros((n_dec, 1, 3 * D), jnp.float32),
      dec_so_w=bf(xav((n_dec, D, D))),
      dec_so_b=jnp.zeros((n_dec, 1, D), jnp.float32),
      dec_cq_w=bf(xav((n_dec, D, D))),
      dec_cq_b=jnp.zeros((n_dec, 1, D), jnp.float32),
      dec_ckv_w=bf(jnp.concatenate([xav((n_dec, D, D)) for _ in range(2)], -1)),
      dec_ckv_b=jnp.zeros((n_dec, 1, 2 * D), jnp.float32),
      dec_co_w=bf(xav((n_dec, D, D))),
      dec_co_b=jnp.zeros((n_dec, 1, D), jnp.float32),
      dec_w1=bf(xav((n_dec, D, F))),
      dec_b1=jnp.zeros((n_dec, 1, F), jnp.float32),
      dec_w2=bf(xav((n_dec, F, D))),
      dec_b2=jnp.zeros((n_dec, 1, D), jnp.float32),
      dec_ln=jnp.tile(ln[None, None], (n_dec, 3, 1, 1)),          # [sa, ca, ffn]
      # ----- final norms / generator (vocab padded to 128 lanes) -----
      fin_ln=jnp.tile(ln[None], (2, 1, 1)),                       # [enc, dec]
      gen_w=bf(jnp.zeros((D, vpad), jnp.float32).at[:, :vocab_size].set(
          xav((D, vocab_size)))),
      gen_b=jnp.zeros((1, vpad), jnp.float32),
  )
  return params


# ---------------------------------- main -------------------------------------
if __name__ == "__main__":
  vocab_size = 20
  d_model = 32
  nhead = 4
  dim_feedforward = 64
  num_encoder_layers = 2
  num_decoder_layers = 2
  B, S_src, S_tgt = 2, 8, 8

  key = jax.random.PRNGKey(0)
  k_par, k_src, k_tgt = jax.random.split(key, 3)
  params = make_params(k_par, vocab_size, d_model, dim_feedforward,
                       num_encoder_layers, num_decoder_layers)

  src = jax.random.randint(k_src, (B, S_src), 0, vocab_size, jnp.int32)
  tgt = jax.random.randint(k_tgt, (B, S_tgt), 0, vocab_size, jnp.int32)

  fwd = jax.jit(functools.partial(transformer_forward, d_model=d_model,
                                  nhead=nhead, vocab_size=vocab_size))
  logits = fwd(params, src, tgt)
  jax.block_until_ready(logits)

  assert logits.shape == (B, S_tgt, vocab_size)
  assert bool(jnp.all(jnp.isfinite(logits)))
  print("KERNEL_OK")
</pallas_src>

<mosaic_0001>
module attributes {stable_mosaic.version = 11 : i64} {
  func.func @fused_transformer_kernel(%arg0: memref<16x1xi32, #tpu.memory_space<vmem>>, %arg1: memref<16x1xi32, #tpu.memory_space<vmem>>, %arg2: memref<20x32xf32, #tpu.memory_space<vmem>>, %arg3: memref<64x32xf32, #tpu.memory_space<vmem>>, %arg4: memref<2x32x96xbf16, #tpu.memory_space<vmem>>, %arg5: memref<2x1x96xf32, #tpu.memory_space<vmem>>, %arg6: memref<2x32x32xbf16, #tpu.memory_space<vmem>>, %arg7: memref<2x1x32xf32, #tpu.memory_space<vmem>>, %arg8: memref<2x32x64xbf16, #tpu.memory_space<vmem>>, %arg9: memref<2x1x64xf32, #tpu.memory_space<vmem>>, %arg10: memref<2x64x32xbf16, #tpu.memory_space<vmem>>, %arg11: memref<2x1x32xf32, #tpu.memory_space<vmem>>, %arg12: memref<2x2x2x32xf32, #tpu.memory_space<vmem>>, %arg13: memref<2x32x96xbf16, #tpu.memory_space<vmem>>, %arg14: memref<2x1x96xf32, #tpu.memory_space<vmem>>, %arg15: memref<2x32x32xbf16, #tpu.memory_space<vmem>>, %arg16: memref<2x1x32xf32, #tpu.memory_space<vmem>>, %arg17: memref<2x32x32xbf16, #tpu.memory_space<vmem>>, %arg18: memref<2x1x32xf32, #tpu.memory_space<vmem>>, %arg19: memref<2x32x64xbf16, #tpu.memory_space<vmem>>, %arg20: memref<2x1x64xf32, #tpu.memory_space<vmem>>, %arg21: memref<2x32x32xbf16, #tpu.memory_space<vmem>>, %arg22: memref<2x1x32xf32, #tpu.memory_space<vmem>>, %arg23: memref<2x32x64xbf16, #tpu.memory_space<vmem>>, %arg24: memref<2x1x64xf32, #tpu.memory_space<vmem>>, %arg25: memref<2x64x32xbf16, #tpu.memory_space<vmem>>, %arg26: memref<2x1x32xf32, #tpu.memory_space<vmem>>, %arg27: memref<2x3x2x32xf32, #tpu.memory_space<vmem>>, %arg28: memref<2x2x32xf32, #tpu.memory_space<vmem>>, %arg29: memref<32x128xbf16, #tpu.memory_space<vmem>>, %arg30: memref<1x128xf32, #tpu.memory_space<vmem>>, %arg31: memref<16x128xf32, #tpu.memory_space<vmem>>) attributes {dimension_semantics = [], scalar_prefetch = 0 : i64, scratch_operands = 0 : i64, tpu.core_type = #tpu.core_type<tc>} {
    %c0 = arith.constant 0 : index
    %c0_0 = arith.constant 0 : index
    %0 = vector.load %arg0[%c0, %c0_0] : memref<16x1xi32, #tpu.memory_space<vmem>>, vector<16x1xi32>
    %1 = tpu.iota {dimensions = array<i32: 1>} : vector<16x20xi32>
    %2 = vector.broadcast %0 : vector<16x1xi32> to vector<16x20xi32>
    %3 = arith.cmpi eq, %2, %1 : vector<16x20xi32>
    %4 = arith.extui %3 : vector<16x20xi1> to vector<16x20xi32>
    %5 = arith.sitofp %4 : vector<16x20xi32> to vector<16x20xf32>
    %c0_1 = arith.constant 0 : index
    %c0_2 = arith.constant 0 : index
    %6 = vector.load %arg2[%c0_1, %c0_2] : memref<20x32xf32, #tpu.memory_space<vmem>>, vector<20x32xf32>
    %cst = arith.constant dense<0.000000e+00> : vector<16x32xf32>
    %7 = tpu.matmul %5, %6, %cst {dimension_numbers = #tpu.dot_dimension_numbers<[1], [0], [0], [1], [0, 0, 1, 1], [], []>} : vector<16x20xf32>, vector<20x32xf32>, vector<16x32xf32> -> vector<16x32xf32>
    %cst_3 = arith.constant 5.65685415 : f32
    %8 = vector.broadcast %cst_3 : f32 to vector<16x32xf32>
    %9 = arith.mulf %7, %8 : vector<16x32xf32>
    %10 = vector.shape_cast %9 : vector<16x32xf32> to vector<2x8x32xf32>
    %c0_4 = arith.constant 0 : index
    %c0_5 = arith.constant 0 : index
    %11 = vector.load %arg3[%c0_4, %c0_5] : memref<64x32xf32, #tpu.memory_space<vmem>>, vector<8x32xf32>
    %12 = vector.shape_cast %11 : vector<8x32xf32> to vector<1x8x32xf32>
    %13 = vector.broadcast %12 : vector<1x8x32xf32> to vector<2x8x32xf32>
    %14 = arith.addf %10, %13 : vector<2x8x32xf32>
    %15 = vector.shape_cast %14 : vector<2x8x32xf32> to vector<16x32xf32>
    %c0_6 = arith.constant 0 : index
    %c0_7 = arith.constant 0 : index
    %c0_8 = arith.constant 0 : index
    %16 = vector.load %arg4[%c0_6, %c0_7, %c0_8] : memref<2x32x96xbf16, #tpu.memory_space<vmem>>, vector<1x32x96xbf16>
    %17 = vector.shape_cast %16 : vector<1x32x96xbf16> to vector<32x96xbf16>
    %c0_9 = arith.constant 0 : index
    %c0_10 = arith.constant 0 : index
    %c0_11 = arith.constant 0 : index
    %18 = vector.load %arg5[%c0_9, %c0_10, %c0_11] : memref<2x1x96xf32, #tpu.memory_space<vmem>>, vector<1x1x96xf32>
    %19 = vector.shape_cast %18 : vector<1x1x96xf32> to vector<1x96xf32>
    %c0_12 = arith.constant 0 : index
    %c0_13 = arith.constant 0 : index
    %c0_14 = arith.constant 0 : index
    %20 = vector.load %arg6[%c0_12, %c0_13, %c0_14] : memref<2x32x32xbf16, #tpu.memory_space<vmem>>, vector<1x32x32xbf16>
    %21 = vector.shape_cast %20 : vector<1x32x32xbf16> to vector<32x32xbf16>
    %c0_15 = arith.constant 0 : index
    %c0_16 = arith.constant 0 : index
    %c0_17 = arith.constant 0 : index
    %22 = vector.load %arg7[%c0_15, %c0_16, %c0_17] : memref<2x1x32xf32, #tpu.memory_space<vmem>>, vector<1x1x32xf32>
    %23 = vector.shape_cast %22 : vector<1x1x32xf32> to vector<1x32xf32>
    %24 = arith.truncf %15 : vector<16x32xf32> to vector<16x32xbf16>
    %cst_18 = arith.constant dense<0.000000e+00> : vector<16x96xf32>
    %25 = tpu.matmul %24, %17, %cst_18 {dimension_numbers = #tpu.dot_dimension_numbers<[1], [0], [0], [1], [0, 0, 1, 1], [], []>} : vector<16x32xbf16>, vector<32x96xbf16>, vector<16x96xf32> -> vector<16x96xf32>
    %26 = vector.broadcast %19 : vector<1x96xf32> to vector<16x96xf32>
    %27 = arith.addf %25, %26 : vector<16x96xf32>
    %28 = vector.extract_strided_slice %27 {offsets = [0, 0], sizes = [16, 32], strides = [1, 1]} : vector<16x96xf32> to vector<16x32xf32>
    %cst_19 = arith.constant 0.353553385 : f32
    %29 = vector.broadcast %cst_19 : f32 to vector<16x32xf32>
    %30 = arith.mulf %28, %29 : vector<16x32xf32>
    %31 = vector.extract_strided_slice %27 {offsets = [0, 32], sizes = [16, 32], strides = [1, 1]} : vector<16x96xf32> to vector<16x32xf32>
    %32 = vector.extract_strided_slice %27 {offsets = [0, 64], sizes = [16, 32], strides = [1, 1]} : vector<16x96xf32> to vector<16x32xf32>
    %33 = vector.shape_cast %30 : vector<16x32xf32> to vector<2x8x32xf32>
    %34 = tpu.transpose %33, [0, 2, 1] : vector<2x8x32xf32> -> vector<2x32x8xf32>
    %35 = vector.shape_cast %34 : vector<2x32x8xf32> to vector<8x8x8xf32>
    %36 = arith.truncf %35 : vector<8x8x8xf32> to vector<8x8x8xbf16>
    %37 = vector.shape_cast %31 : vector<16x32xf32> to vector<2x8x32xf32>
    %38 = tpu.transpose %37, [0, 2, 1] : vector<2x8x32xf32> -> vector<2x32x8xf32>
    %39 = vector.shape_cast %38 : vector<2x32x8xf32> to vector<8x8x8xf32>
    %40 = arith.truncf %39 : vector<8x8x8xf32> to vector<8x8x8xbf16>
    %41 = vector.shape_cast %32 : vector<16x32xf32> to vector<2x8x32xf32>
    %42 = tpu.transpose %41, [0, 2, 1] : vector<2x8x32xf32> -> vector<2x32x8xf32>
    %43 = vector.shape_cast %42 : vector<2x32x8xf32> to vector<8x8x8xf32>
    %44 = arith.truncf %43 : vector<8x8x8xf32> to vector<8x8x8xbf16>
    "tpu.trace_start"() <{level = 10 : i32, message = "bdq,bdk->bqk"}> : () -> ()
    %cst_20 = arith.constant dense<0.000000e+00> : vector<8x8x8xf32>
    %45 = tpu.matmul %36, %40, %cst_20 {dimension_numbers = #tpu.dot_dimension_numbers<[1], [1], [2], [2], [0, 0, 0, 2, 1, 2], [0], [0]>} : vector<8x8x8xbf16>, vector<8x8x8xbf16>, vector<8x8x8xf32> -> vector<8x8x8xf32>
    "tpu.trace_stop"() : () -> ()
    %cst_21 = arith.constant dense<0xFF800000> : vector<8x8xf32>
    %46 = vector.multi_reduction <maximumf>, %45, %cst_21 [2] : vector<8x8x8xf32> to vector<8x8xf32>
    %47 = vector.shape_cast %46 : vector<8x8xf32> to vector<8x8x1xf32>
    %48 = vector.broadcast %47 : vector<8x8x1xf32> to vector<8x8x8xf32>
    %49 = arith.subf %45, %48 : vector<8x8x8xf32>
    %50 = math.exp %49 : vector<8x8x8xf32>
    %cst_22 = arith.constant dense<0.000000e+00> : vector<8x8xf32>
    %51 = vector.multi_reduction <add>, %50, %cst_22 [2] : vector<8x8x8xf32> to vector<8x8xf32>
    %52 = vector.shape_cast %51 : vector<8x8xf32> to vector<8x8x1xf32>
    %53 = vector.broadcast %52 : vector<8x8x1xf32> to vector<8x8x8xf32>
    %54 = arith.divf %50, %53 : vector<8x8x8xf32>
    %55 = arith.truncf %54 : vector<8x8x8xf32> to vector<8x8x8xbf16>
    "tpu.trace_start"() <{level = 10 : i32, message = "bdk,bqk->bdq"}> : () -> ()
    %cst_23 = arith.constant dense<0.000000e+00> : vector<8x8x8xf32>
    %56 = tpu.matmul %44, %55, %cst_23 {dimension_numbers = #tpu.dot_dimension_numbers<[2], [2], [1], [1], [0, 0, 0, 1, 1, 1], [0], [0]>} : vector<8x8x8xbf16>, vector<8x8x8xbf16>, vector<8x8x8xf32> -> vector<8x8x8xf32>
    "tpu.trace_stop"() : () -> ()
    %57 = vector.shape_cast %56 : vector<8x8x8xf32> to vector<2x32x8xf32>
    %58 = tpu.transpose %57, [0, 2, 1] : vector<2x32x8xf32> -> vector<2x8x32xf32>
    %59 = vector.shape_cast %58 : vector<2x8x32xf32> to vector<16x32xf32>
    %60 = arith.truncf %59 : vector<16x32xf32> to vector<16x32xbf16>
    %cst_24 = arith.constant dense<0.000000e+00> : vector<16x32xf32>
    %61 = tpu.matmul %60, %21, %cst_24 {dimension_numbers = #tpu.dot_dimension_numbers<[1], [0], [0], [1], [0, 0, 1, 1], [], []>} : vector<16x32xbf16>, vector<32x32xbf16>, vector<16x32xf32> -> vector<16x32xf32>
    %62 = vector.broadcast %23 : vector<1x32xf32> to vector<16x32xf32>
    %63 = arith.addf %61, %62 : vector<16x32xf32>
    %64 = arith.addf %15, %63 : vector<16x32xf32>
    %c0_25 = arith.constant 0 : index
    %c0_26 = arith.constant 0 : index
    %c0_27 = arith.constant 0 : index
    %c0_28 = arith.constant 0 : index
    %65 = vector.load %arg12[%c0_25, %c0_26, %c0_27, %c0_28] : memref<2x2x2x32xf32, #tpu.memory_space<vmem>>, vector<1x1x2x32xf32>
    %66 = vector.shape_cast %65 : vector<1x1x2x32xf32> to vector<2x32xf32>
    %67 = vector.extract_strided_slice %66 {offsets = [0, 0], sizes = [1, 32], strides = [1, 1]} : vector<2x32xf32> to vector<1x32xf32>
    %68 = vector.extract_strided_slice %66 {offsets = [1, 0], sizes = [1, 32], strides = [1, 1]} : vector<2x32xf32> to vector<1x32xf32>
    %cst_29 = arith.constant dense<0.000000e+00> : vector<16xf32>
    %69 = vector.multi_reduction <add>, %64, %cst_29 [1] : vector<16x32xf32> to vector<16xf32>
    %70 = vector.shape_cast %69 : vector<16xf32> to vector<16x1xf32>
    %cst_30 = arith.constant 3.200000e+01 : f32
    %71 = vector.broadcast %cst_30 : f32 to vector<16x1xf32>
    %72 = arith.divf %70, %71 : vector<16x1xf32>
    %73 = vector.broadcast %72 : vector<16x1xf32> to vector<16x32xf32>
    %74 = arith.subf %64, %73 : vector<16x32xf32>
    %75 = arith.mulf %74, %74 : vector<16x32xf32>
    %cst_31 = arith.constant dense<0.000000e+00> : vector<16xf32>
    %76 = vector.multi_reduction <add>, %75, %cst_31 [1] : vector<16x32xf32> to vector<16xf32>
    %77 = vector.shape_cast %76 : vector<16xf32> to vector<16x1xf32>
    %cst_32 = arith.constant 3.200000e+01 : f32
    %78 = vector.broadcast %cst_32 : f32 to vector<16x1xf32>
    %79 = arith.divf %77, %78 : vector<16x1xf32>
    %80 = vector.broadcast %72 : vector<16x1xf32> to vector<16x32xf32>
    %81 = arith.subf %64, %80 : vector<16x32xf32>
    %cst_33 = arith.constant 9.99999974E-6 : f32
    %82 = vector.broadcast %cst_33 : f32 to vector<16x1xf32>
    %83 = arith.addf %79, %82 : vector<16x1xf32>
    %84 = math.rsqrt %83 : vector<16x1xf32>
    %85 = vector.broadcast %84 : vector<16x1xf32> to vector<16x32xf32>
    %86 = arith.mulf %81, %85 : vector<16x32xf32>
    %87 = vector.broadcast %67 : vector<1x32xf32> to vector<16x32xf32>
    %88 = arith.mulf %86, %87 : vector<16x32xf32>
    %89 = vector.broadcast %68 : vector<1x32xf32> to vector<16x32xf32>
    %90 = arith.addf %88, %89 : vector<16x32xf32>
    %c0_34 = arith.constant 0 : index
    %c0_35 = arith.constant 0 : index
    %c0_36 = arith.constant 0 : index
    %91 = vector.load %arg8[%c0_34, %c0_35, %c0_36] : memref<2x32x64xbf16, #tpu.memory_space<vmem>>, vector<1x32x64xbf16>
    %92 = vector.shape_cast %91 : vector<1x32x64xbf16> to vector<32x64xbf16>
    %c0_37 = arith.constant 0 : index
    %c0_38 = arith.constant 0 : index
    %c0_39 = arith.constant 0 : index
    %93 = vector.load %arg9[%c0_37, %c0_38, %c0_39] : memref<2x1x64xf32, #tpu.memory_space<vmem>>, vector<1x1x64xf32>
    %94 = vector.shape_cast %93 : vector<1x1x64xf32> to vector<1x64xf32>
    %c0_40 = arith.constant 0 : index
    %c0_41 = arith.constant 0 : index
    %c0_42 = arith.constant 0 : index
    %95 = vector.load %arg10[%c0_40, %c0_41, %c0_42] : memref<2x64x32xbf16, #tpu.memory_space<vmem>>, vector<1x64x32xbf16>
    %96 = vector.shape_cast %95 : vector<1x64x32xbf16> to vector<64x32xbf16>
    %c0_43 = arith.constant 0 : index
    %c0_44 = arith.constant 0 : index
    %c0_45 = arith.constant 0 : index
    %97 = vector.load %arg11[%c0_43, %c0_44, %c0_45] : memref<2x1x32xf32, #tpu.memory_space<vmem>>, vector<1x1x32xf32>
    %98 = vector.shape_cast %97 : vector<1x1x32xf32> to vector<1x32xf32>
    %99 = arith.truncf %90 : vector<16x32xf32> to vector<16x32xbf16>
    %cst_46 = arith.constant dense<0.000000e+00> : vector<16x64xf32>
    %100 = tpu.matmul %99, %92, %cst_46 {dimension_numbers = #tpu.dot_dimension_numbers<[1], [0], [0], [1], [0, 0, 1, 1], [], []>} : vector<16x32xbf16>, vector<32x64xbf16>, vector<16x64xf32> -> vector<16x64xf32>
    %101 = vector.broadcast %94 : vector<1x64xf32> to vector<16x64xf32>
    %102 = arith.addf %100, %101 : vector<16x64xf32>
    %cst_47 = arith.constant 0.000000e+00 : f32
    %103 = vector.broadcast %cst_47 : f32 to vector<16x64xf32>
    %104 = arith.maximumf %102, %103 : vector<16x64xf32>
    %105 = arith.truncf %104 : vector<16x64xf32> to vector<16x64xbf16>
    %cst_48 = arith.constant dense<0.000000e+00> : vector<16x32xf32>
    %106 = tpu.matmul %105, %96, %cst_48 {dimension_numbers = #tpu.dot_dimension_numbers<[1], [0], [0], [1], [0, 0, 1, 1], [], []>} : vector<16x64xbf16>, vector<64x32xbf16>, vector<16x32xf32> -> vector<16x32xf32>
    %107 = vector.broadcast %98 : vector<1x32xf32> to vector<16x32xf32>
    %108 = arith.addf %106, %107 : vector<16x32xf32>
    %109 = arith.addf %90, %108 : vector<16x32xf32>
    %c0_49 = arith.constant 0 : index
    %c1 = arith.constant 1 : index
    %c0_50 = arith.constant 0 : index
    %c0_51 = arith.constant 0 : index
    %110 = vector.load %arg12[%c0_49, %c1, %c0_50, %c0_51] : memref<2x2x2x32xf32, #tpu.memory_space<vmem>>, vector<1x1x2x32xf32>
    %111 = vector.shape_cast %110 : vector<1x1x2x32xf32> to vector<2x32xf32>
    %112 = vector.extract_strided_slice %111 {offsets = [0, 0], sizes = [1, 32], strides = [1, 1]} : vector<2x32xf32> to vector<1x32xf32>
    %113 = vector.extract_strided_slice %111 {offsets = [1, 0], sizes = [1, 32], strides = [1, 1]} : vector<2x32xf32> to vector<1x32xf32>
    %cst_52 = arith.constant dense<0.000000e+00> : vector<16xf32>
    %114 = vector.multi_reduction <add>, %109, %cst_52 [1] : vector<16x32xf32> to vector<16xf32>
    %115 = vector.shape_cast %114 : vector<16xf32> to vector<16x1xf32>
    %cst_53 = arith.constant 3.200000e+01 : f32
    %116 = vector.broadcast %cst_53 : f32 to vector<16x1xf32>
    %117 = arith.divf %115, %116 : vector<16x1xf32>
    %118 = vector.broadcast %117 : vector<16x1xf32> to vector<16x32xf32>
    %119 = arith.subf %109, %118 : vector<16x32xf32>
    %120 = arith.mulf %119, %119 : vector<16x32xf32>
    %cst_54 = arith.constant dense<0.000000e+00> : vector<16xf32>
    %121 = vector.multi_reduction <add>, %120, %cst_54 [1] : vector<16x32xf32> to vector<16xf32>
    %122 = vector.shape_cast %121 : vector<16xf32> to vector<16x1xf32>
    %cst_55 = arith.constant 3.200000e+01 : f32
    %123 = vector.broadcast %cst_55 : f32 to vector<16x1xf32>
    %124 = arith.divf %122, %123 : vector<16x1xf32>
    %125 = vector.broadcast %117 : vector<16x1xf32> to vector<16x32xf32>
    %126 = arith.subf %109, %125 : vector<16x32xf32>
    %cst_56 = arith.constant 9.99999974E-6 : f32
    %127 = vector.broadcast %cst_56 : f32 to vector<16x1xf32>
    %128 = arith.addf %124, %127 : vector<16x1xf32>
    %129 = math.rsqrt %128 : vector<16x1xf32>
    %130 = vector.broadcast %129 : vector<16x1xf32> to vector<16x32xf32>
    %131 = arith.mulf %126, %130 : vector<16x32xf32>
    %132 = vector.broadcast %112 : vector<1x32xf32> to vector<16x32xf32>
    %133 = arith.mulf %131, %132 : vector<16x32xf32>
    %134 = vector.broadcast %113 : vector<1x32xf32> to vector<16x32xf32>
    %135 = arith.addf %133, %134 : vector<16x32xf32>
    %c1_57 = arith.constant 1 : index
    %c0_58 = arith.constant 0 : index
    %c0_59 = arith.constant 0 : index
    %136 = vector.load %arg4[%c1_57, %c0_58, %c0_59] : memref<2x32x96xbf16, #tpu.memory_space<vmem>>, vector<1x32x96xbf16>
    %137 = vector.shape_cast %136 : vector<1x32x96xbf16> to vector<32x96xbf16>
    %c1_60 = arith.constant 1 : index
    %c0_61 = arith.constant 0 : index
    %c0_62 = arith.constant 0 : index
    %138 = vector.load %arg5[%c1_60, %c0_61, %c0_62] : memref<2x1x96xf32, #tpu.memory_space<vmem>>, vector<1x1x96xf32>
    %139 = vector.shape_cast %138 : vector<1x1x96xf32> to vector<1x96xf32>
    %c1_63 = arith.constant 1 : index
    %c0_64 = arith.constant 0 : index
    %c0_65 = arith.constant 0 : index
    %140 = vector.load %arg6[%c1_63, %c0_64, %c0_65] : memref<2x32x32xbf16, #tpu.memory_space<vmem>>, vector<1x32x32xbf16>
    %141 = vector.shape_cast %140 : vector<1x32x32xbf16> to vector<32x32xbf16>
    %c1_66 = arith.constant 1 : index
    %c0_67 = arith.constant 0 : index
    %c0_68 = arith.constant 0 : index
    %142 = vector.load %arg7[%c1_66, %c0_67, %c0_68] : memref<2x1x32xf32, #tpu.memory_space<vmem>>, vector<1x1x32xf32>
    %143 = vector.shape_cast %142 : vector<1x1x32xf32> to vector<1x32xf32>
    %144 = arith.truncf %135 : vector<16x32xf32> to vector<16x32xbf16>
    %cst_69 = arith.constant dense<0.000000e+00> : vector<16x96xf32>
    %145 = tpu.matmul %144, %137, %cst_69 {dimension_numbers = #tpu.dot_dimension_numbers<[1], [0], [0], [1], [0, 0, 1, 1], [], []>} : vector<16x32xbf16>, vector<32x96xbf16>, vector<16x96xf32> -> vector<16x96xf32>
    %146 = vector.broadcast %139 : vector<1x96xf32> to vector<16x96xf32>
    %147 = arith.addf %145, %146 : vector<16x96xf32>
    %148 = vector.extract_strided_slice %147 {offsets = [0, 0], sizes = [16, 32], strides = [1, 1]} : vector<16x96xf32> to vector<16x32xf32>
    %cst_70 = arith.constant 0.353553385 : f32
    %149 = vector.broadcast %cst_70 : f32 to vector<16x32xf32>
    %150 = arith.mulf %148, %149 : vector<16x32xf32>
    %151 = vector.extract_strided_slice %147 {offsets = [0, 32], sizes = [16, 32], strides = [1, 1]} : vector<16x96xf32> to vector<16x32xf32>
    %152 = vector.extract_strided_slice %147 {offsets = [0, 64], sizes = [16, 32], strides = [1, 1]} : vector<16x96xf32> to vector<16x32xf32>
    %153 = vector.shape_cast %150 : vector<16x32xf32> to vector<2x8x32xf32>
    %154 = tpu.transpose %153, [0, 2, 1] : vector<2x8x32xf32> -> vector<2x32x8xf32>
    %155 = vector.shape_cast %154 : vector<2x32x8xf32> to vector<8x8x8xf32>
    %156 = arith.truncf %155 : vector<8x8x8xf32> to vector<8x8x8xbf16>
    %157 = vector.shape_cast %151 : vector<16x32xf32> to vector<2x8x32xf32>
    %158 = tpu.transpose %157, [0, 2, 1] : vector<2x8x32xf32> -> vector<2x32x8xf32>
    %159 = vector.shape_cast %158 : vector<2x32x8xf32> to vector<8x8x8xf32>
    %160 = arith.truncf %159 : vector<8x8x8xf32> to vector<8x8x8xbf16>
    %161 = vector.shape_cast %152 : vector<16x32xf32> to vector<2x8x32xf32>
    %162 = tpu.transpose %161, [0, 2, 1] : vector<2x8x32xf32> -> vector<2x32x8xf32>
    %163 = vector.shape_cast %162 : vector<2x32x8xf32> to vector<8x8x8xf32>
    %164 = arith.truncf %163 : vector<8x8x8xf32> to vector<8x8x8xbf16>
    "tpu.trace_start"() <{level = 10 : i32, message = "bdq,bdk->bqk"}> : () -> ()
    %cst_71 = arith.constant dense<0.000000e+00> : vector<8x8x8xf32>
    %165 = tpu.matmul %156, %160, %cst_71 {dimension_numbers = #tpu.dot_dimension_numbers<[1], [1], [2], [2], [0, 0, 0, 2, 1, 2], [0], [0]>} : vector<8x8x8xbf16>, vector<8x8x8xbf16>, vector<8x8x8xf32> -> vector<8x8x8xf32>
    "tpu.trace_stop"() : () -> ()
    %cst_72 = arith.constant dense<0xFF800000> : vector<8x8xf32>
    %166 = vector.multi_reduction <maximumf>, %165, %cst_72 [2] : vector<8x8x8xf32> to vector<8x8xf32>
    %167 = vector.shape_cast %166 : vector<8x8xf32> to vector<8x8x1xf32>
    %168 = vector.broadcast %167 : vector<8x8x1xf32> to vector<8x8x8xf32>
    %169 = arith.subf %165, %168 : vector<8x8x8xf32>
    %170 = math.exp %169 : vector<8x8x8xf32>
    %cst_73 = arith.constant dense<0.000000e+00> : vector<8x8xf32>
    %171 = vector.multi_reduction <add>, %170, %cst_73 [2] : vector<8x8x8xf32> to vector<8x8xf32>
    %172 = vector.shape_cast %171 : vector<8x8xf32> to vector<8x8x1xf32>
    %173 = vector.broadcast %172 : vector<8x8x1xf32> to vector<8x8x8xf32>
    %174 = arith.divf %170, %173 : vector<8x8x8xf32>
    %175 = arith.truncf %174 : vector<8x8x8xf32> to vector<8x8x8xbf16>
    "tpu.trace_start"() <{level = 10 : i32, message = "bdk,bqk->bdq"}> : () -> ()
    %cst_74 = arith.constant dense<0.000000e+00> : vector<8x8x8xf32>
    %176 = tpu.matmul %164, %175, %cst_74 {dimension_numbers = #tpu.dot_dimension_numbers<[2], [2], [1], [1], [0, 0, 0, 1, 1, 1], [0], [0]>} : vector<8x8x8xbf16>, vector<8x8x8xbf16>, vector<8x8x8xf32> -> vector<8x8x8xf32>
    "tpu.trace_stop"() : () -> ()
    %177 = vector.shape_cast %176 : vector<8x8x8xf32> to vector<2x32x8xf32>
    %178 = tpu.transpose %177, [0, 2, 1] : vector<2x32x8xf32> -> vector<2x8x32xf32>
    %179 = vector.shape_cast %178 : vector<2x8x32xf32> to vector<16x32xf32>
    %180 = arith.truncf %179 : vector<16x32xf32> to vector<16x32xbf16>
    %cst_75 = arith.constant dense<0.000000e+00> : vector<16x32xf32>
    %181 = tpu.matmul %180, %141, %cst_75 {dimension_numbers = #tpu.dot_dimension_numbers<[1], [0], [0], [1], [0, 0, 1, 1], [], []>} : vector<16x32xbf16>, vector<32x32xbf16>, vector<16x32xf32> -> vector<16x32xf32>
    %182 = vector.broadcast %143 : vector<1x32xf32> to vector<16x32xf32>
    %183 = arith.addf %181, %182 : vector<16x32xf32>
    %184 = arith.addf %135, %183 : vector<16x32xf32>
    %c1_76 = arith.constant 1 : index
    %c0_77 = arith.constant 0 : index
    %c0_78 = arith.constant 0 : index
    %c0_79 = arith.constant 0 : index
    %185 = vector.load %arg12[%c1_76, %c0_77, %c0_78, %c0_79] : memref<2x2x2x32xf32, #tpu.memory_space<vmem>>, vector<1x1x2x32xf32>
    %186 = vector.shape_cast %185 : vector<1x1x2x32xf32> to vector<2x32xf32>
    %187 = vector.extract_strided_slice %186 {offsets = [0, 0], sizes = [1, 32], strides = [1, 1]} : vector<2x32xf32> to vector<1x32xf32>
    %188 = vector.extract_strided_slice %186 {offsets = [1, 0], sizes = [1, 32], strides = [1, 1]} : vector<2x32xf32> to vector<1x32xf32>
    %cst_80 = arith.constant dense<0.000000e+00> : vector<16xf32>
    %189 = vector.multi_reduction <add>, %184, %cst_80 [1] : vector<16x32xf32> to vector<16xf32>
    %190 = vector.shape_cast %189 : vector<16xf32> to vector<16x1xf32>
    %cst_81 = arith.constant 3.200000e+01 : f32
    %191 = vector.broadcast %cst_81 : f32 to vector<16x1xf32>
    %192 = arith.divf %190, %191 : vector<16x1xf32>
    %193 = vector.broadcast %192 : vector<16x1xf32> to vector<16x32xf32>
    %194 = arith.subf %184, %193 : vector<16x32xf32>
    %195 = arith.mulf %194, %194 : vector<16x32xf32>
    %cst_82 = arith.constant dense<0.000000e+00> : vector<16xf32>
    %196 = vector.multi_reduction <add>, %195, %cst_82 [1] : vector<16x32xf32> to vector<16xf32>
    %197 = vector.shape_cast %196 : vector<16xf32> to vector<16x1xf32>
    %cst_83 = arith.constant 3.200000e+01 : f32
    %198 = vector.broadcast %cst_83 : f32 to vector<16x1xf32>
    %199 = arith.divf %197, %198 : vector<16x1xf32>
    %200 = vector.broadcast %192 : vector<16x1xf32> to vector<16x32xf32>
    %201 = arith.subf %184, %200 : vector<16x32xf32>
    %cst_84 = arith.constant 9.99999974E-6 : f32
    %202 = vector.broadcast %cst_84 : f32 to vector<16x1xf32>
    %203 = arith.addf %199, %202 : vector<16x1xf32>
    %204 = math.rsqrt %203 : vector<16x1xf32>
    %205 = vector.broadcast %204 : vector<16x1xf32> to vector<16x32xf32>
    %206 = arith.mulf %201, %205 : vector<16x32xf32>
    %207 = vector.broadcast %187 : vector<1x32xf32> to vector<16x32xf32>
    %208 = arith.mulf %206, %207 : vector<16x32xf32>
    %209 = vector.broadcast %188 : vector<1x32xf32> to vector<16x32xf32>
    %210 = arith.addf %208, %209 : vector<16x32xf32>
    %c1_85 = arith.constant 1 : index
    %c0_86 = arith.constant 0 : index
    %c0_87 = arith.constant 0 : index
    %211 = vector.load %arg8[%c1_85, %c0_86, %c0_87] : memref<2x32x64xbf16, #tpu.memory_space<vmem>>, vector<1x32x64xbf16>
    %212 = vector.shape_cast %211 : vector<1x32x64xbf16> to vector<32x64xbf16>
    %c1_88 = arith.constant 1 : index
    %c0_89 = arith.constant 0 : index
    %c0_90 = arith.constant 0 : index
    %213 = vector.load %arg9[%c1_88, %c0_89, %c0_90] : memref<2x1x64xf32, #tpu.memory_space<vmem>>, vector<1x1x64xf32>
    %214 = vector.shape_cast %213 : vector<1x1x64xf32> to vector<1x64xf32>
    %c1_91 = arith.constant 1 : index
    %c0_92 = arith.constant 0 : index
    %c0_93 = arith.constant 0 : index
    %215 = vector.load %arg10[%c1_91, %c0_92, %c0_93] : memref<2x64x32xbf16, #tpu.memory_space<vmem>>, vector<1x64x32xbf16>
    %216 = vector.shape_cast %215 : vector<1x64x32xbf16> to vector<64x32xbf16>
    %c1_94 = arith.constant 1 : index
    %c0_95 = arith.constant 0 : index
    %c0_96 = arith.constant 0 : index
    %217 = vector.load %arg11[%c1_94, %c0_95, %c0_96] : memref<2x1x32xf32, #tpu.memory_space<vmem>>, vector<1x1x32xf32>
    %218 = vector.shape_cast %217 : vector<1x1x32xf32> to vector<1x32xf32>
    %219 = arith.truncf %210 : vector<16x32xf32> to vector<16x32xbf16>
    %cst_97 = arith.constant dense<0.000000e+00> : vector<16x64xf32>
    %220 = tpu.matmul %219, %212, %cst_97 {dimension_numbers = #tpu.dot_dimension_numbers<[1], [0], [0], [1], [0, 0, 1, 1], [], []>} : vector<16x32xbf16>, vector<32x64xbf16>, vector<16x64xf32> -> vector<16x64xf32>
    %221 = vector.broadcast %214 : vector<1x64xf32> to vector<16x64xf32>
    %222 = arith.addf %220, %221 : vector<16x64xf32>
    %cst_98 = arith.constant 0.000000e+00 : f32
    %223 = vector.broadcast %cst_98 : f32 to vector<16x64xf32>
    %224 = arith.maximumf %222, %223 : vector<16x64xf32>
    %225 = arith.truncf %224 : vector<16x64xf32> to vector<16x64xbf16>
    %cst_99 = arith.constant dense<0.000000e+00> : vector<16x32xf32>
    %226 = tpu.matmul %225, %216, %cst_99 {dimension_numbers = #tpu.dot_dimension_numbers<[1], [0], [0], [1], [0, 0, 1, 1], [], []>} : vector<16x64xbf16>, vector<64x32xbf16>, vector<16x32xf32> -> vector<16x32xf32>
    %227 = vector.broadcast %218 : vector<1x32xf32> to vector<16x32xf32>
    %228 = arith.addf %226, %227 : vector<16x32xf32>
    %229 = arith.addf %210, %228 : vector<16x32xf32>
    %c1_100 = arith.constant 1 : index
    %c1_101 = arith.constant 1 : index
    %c0_102 = arith.constant 0 : index
    %c0_103 = arith.constant 0 : index
    %230 = vector.load %arg12[%c1_100, %c1_101, %c0_102, %c0_103] : memref<2x2x2x32xf32, #tpu.memory_space<vmem>>, vector<1x1x2x32xf32>
    %231 = vector.shape_cast %230 : vector<1x1x2x32xf32> to vector<2x32xf32>
    %232 = vector.extract_strided_slice %231 {offsets = [0, 0], sizes = [1, 32], strides = [1, 1]} : vector<2x32xf32> to vector<1x32xf32>
    %233 = vector.extract_strided_slice %231 {offsets = [1, 0], sizes = [1, 32], strides = [1, 1]} : vector<2x32xf32> to vector<1x32xf32>
    %cst_104 = arith.constant dense<0.000000e+00> : vector<16xf32>
    %234 = vector.multi_reduction <add>, %229, %cst_104 [1] : vector<16x32xf32> to vector<16xf32>
    %235 = vector.shape_cast %234 : vector<16xf32> to vector<16x1xf32>
    %cst_105 = arith.constant 3.200000e+01 : f32
    %236 = vector.broadcast %cst_105 : f32 to vector<16x1xf32>
    %237 = arith.divf %235, %236 : vector<16x1xf32>
    %238 = vector.broadcast %237 : vector<16x1xf32> to vector<16x32xf32>
    %239 = arith.subf %229, %238 : vector<16x32xf32>
    %240 = arith.mulf %239, %239 : vector<16x32xf32>
    %cst_106 = arith.constant dense<0.000000e+00> : vector<16xf32>
    %241 = vector.multi_reduction <add>, %240, %cst_106 [1] : vector<16x32xf32> to vector<16xf32>
    %242 = vector.shape_cast %241 : vector<16xf32> to vector<16x1xf32>
    %cst_107 = arith.constant 3.200000e+01 : f32
    %243 = vector.broadcast %cst_107 : f32 to vector<16x1xf32>
    %244 = arith.divf %242, %243 : vector<16x1xf32>
    %245 = vector.broadcast %237 : vector<16x1xf32> to vector<16x32xf32>
    %246 = arith.subf %229, %245 : vector<16x32xf32>
    %cst_108 = arith.constant 9.99999974E-6 : f32
    %247 = vector.broadcast %cst_108 : f32 to vector<16x1xf32>
    %248 = arith.addf %244, %247 : vector<16x1xf32>
    %249 = math.rsqrt %248 : vector<16x1xf32>
    %250 = vector.broadcast %249 : vector<16x1xf32> to vector<16x32xf32>
    %251 = arith.mulf %246, %250 : vector<16x32xf32>
    %252 = vector.broadcast %232 : vector<1x32xf32> to vector<16x32xf32>
    %253 = arith.mulf %251, %252 : vector<16x32xf32>
    %254 = vector.broadcast %233 : vector<1x32xf32> to vector<16x32xf32>
    %255 = arith.addf %253, %254 : vector<16x32xf32>
    %c0_109 = arith.constant 0 : index
    %c0_110 = arith.constant 0 : index
    %c0_111 = arith.constant 0 : index
    %256 = vector.load %arg28[%c0_109, %c0_110, %c0_111] : memref<2x2x32xf32, #tpu.memory_space<vmem>>, vector<1x2x32xf32>
    %257 = vector.shape_cast %256 : vector<1x2x32xf32> to vector<2x32xf32>
    %258 = vector.extract_strided_slice %257 {offsets = [0, 0], sizes = [1, 32], strides = [1, 1]} : vector<2x32xf32> to vector<1x32xf32>
    %259 = vector.extract_strided_slice %257 {offsets = [1, 0], sizes = [1, 32], strides = [1, 1]} : vector<2x32xf32> to vector<1x32xf32>
    %cst_112 = arith.constant dense<0.000000e+00> : vector<16xf32>
    %260 = vector.multi_reduction <add>, %255, %cst_112 [1] : vector<16x32xf32> to vector<16xf32>
    %261 = vector.shape_cast %260 : vector<16xf32> to vector<16x1xf32>
    %cst_113 = arith.constant 3.200000e+01 : f32
    %262 = vector.broadcast %cst_113 : f32 to vector<16x1xf32>
    %263 = arith.divf %261, %262 : vector<16x1xf32>
    %264 = vector.broadcast %263 : vector<16x1xf32> to vector<16x32xf32>
    %265 = arith.subf %255, %264 : vector<16x32xf32>
    %266 = arith.mulf %265, %265 : vector<16x32xf32>
    %cst_114 = arith.constant dense<0.000000e+00> : vector<16xf32>
    %267 = vector.multi_reduction <add>, %266, %cst_114 [1] : vector<16x32xf32> to vector<16xf32>
    %268 = vector.shape_cast %267 : vector<16xf32> to vector<16x1xf32>
    %cst_115 = arith.constant 3.200000e+01 : f32
    %269 = vector.broadcast %cst_115 : f32 to vector<16x1xf32>
    %270 = arith.divf %268, %269 : vector<16x1xf32>
    %271 = vector.broadcast %263 : vector<16x1xf32> to vector<16x32xf32>
    %272 = arith.subf %255, %271 : vector<16x32xf32>
    %cst_116 = arith.constant 9.99999974E-6 : f32
    %273 = vector.broadcast %cst_116 : f32 to vector<16x1xf32>
    %274 = arith.addf %270, %273 : vector<16x1xf32>
    %275 = math.rsqrt %274 : vector<16x1xf32>
    %276 = vector.broadcast %275 : vector<16x1xf32> to vector<16x32xf32>
    %277 = arith.mulf %272, %276 : vector<16x32xf32>
    %278 = vector.broadcast %258 : vector<1x32xf32> to vector<16x32xf32>
    %279 = arith.mulf %277, %278 : vector<16x32xf32>
    %280 = vector.broadcast %259 : vector<1x32xf32> to vector<16x32xf32>
    %281 = arith.addf %279, %280 : vector<16x32xf32>
    %c0_117 = arith.constant 0 : index
    %c0_118 = arith.constant 0 : index
    %282 = vector.load %arg1[%c0_117, %c0_118] : memref<16x1xi32, #tpu.memory_space<vmem>>, vector<16x1xi32>
    %283 = tpu.iota {dimensions = array<i32: 1>} : vector<16x20xi32>
    %284 = vector.broadcast %282 : vector<16x1xi32> to vector<16x20xi32>
    %285 = arith.cmpi eq, %284, %283 : vector<16x20xi32>
    %286 = arith.extui %285 : vector<16x20xi1> to vector<16x20xi32>
    %287 = arith.sitofp %286 : vector<16x20xi32> to vector<16x20xf32>
    %c0_119 = arith.constant 0 : index
    %c0_120 = arith.constant 0 : index
    %288 = vector.load %arg2[%c0_119, %c0_120] : memref<20x32xf32, #tpu.memory_space<vmem>>, vector<20x32xf32>
    %cst_121 = arith.constant dense<0.000000e+00> : vector<16x32xf32>
    %289 = tpu.matmul %287, %288, %cst_121 {dimension_numbers = #tpu.dot_dimension_numbers<[1], [0], [0], [1], [0, 0, 1, 1], [], []>} : vector<16x20xf32>, vector<20x32xf32>, vector<16x32xf32> -> vector<16x32xf32>
    %cst_122 = arith.constant 5.65685415 : f32
    %290 = vector.broadcast %cst_122 : f32 to vector<16x32xf32>
    %291 = arith.mulf %289, %290 : vector<16x32xf32>
    %292 = vector.shape_cast %291 : vector<16x32xf32> to vector<2x8x32xf32>
    %c0_123 = arith.constant 0 : index
    %c0_124 = arith.constant 0 : index
    %293 = vector.load %arg3[%c0_123, %c0_124] : memref<64x32xf32, #tpu.memory_space<vmem>>, vector<8x32xf32>
    %294 = vector.shape_cast %293 : vector<8x32xf32> to vector<1x8x32xf32>
    %295 = vector.broadcast %294 : vector<1x8x32xf32> to vector<2x8x32xf32>
    %296 = arith.addf %292, %295 : vector<2x8x32xf32>
    %297 = vector.shape_cast %296 : vector<2x8x32xf32> to vector<16x32xf32>
    %c0_125 = arith.constant 0 : index
    %c0_126 = arith.constant 0 : index
    %c0_127 = arith.constant 0 : index
    %298 = vector.load %arg13[%c0_125, %c0_126, %c0_127] : memref<2x32x96xbf16, #tpu.memory_space<vmem>>, vector<1x32x96xbf16>
    %299 = vector.shape_cast %298 : vector<1x32x96xbf16> to vector<32x96xbf16>
    %c0_128 = arith.constant 0 : index
    %c0_129 = arith.constant 0 : index
    %c0_130 = arith.constant 0 : index
    %300 = vector.load %arg14[%c0_128, %c0_129, %c0_130] : memref<2x1x96xf32, #tpu.memory_space<vmem>>, vector<1x1x96xf32>
    %301 = vector.shape_cast %300 : vector<1x1x96xf32> to vector<1x96xf32>
    %c0_131 = arith.constant 0 : index
    %c0_132 = arith.constant 0 : index
    %c0_133 = arith.constant 0 : index
    %302 = vector.load %arg15[%c0_131, %c0_132, %c0_133] : memref<2x32x32xbf16, #tpu.memory_space<vmem>>, vector<1x32x32xbf16>
    %303 = vector.shape_cast %302 : vector<1x32x32xbf16> to vector<32x32xbf16>
    %c0_134 = arith.constant 0 : index
    %c0_135 = arith.constant 0 : index
    %c0_136 = arith.constant 0 : index
    %304 = vector.load %arg16[%c0_134, %c0_135, %c0_136] : memref<2x1x32xf32, #tpu.memory_space<vmem>>, vector<1x1x32xf32>
    %305 = vector.shape_cast %304 : vector<1x1x32xf32> to vector<1x32xf32>
    %306 = arith.truncf %297 : vector<16x32xf32> to vector<16x32xbf16>
    %cst_137 = arith.constant dense<0.000000e+00> : vector<16x96xf32>
    %307 = tpu.matmul %306, %299, %cst_137 {dimension_numbers = #tpu.dot_dimension_numbers<[1], [0], [0], [1], [0, 0, 1, 1], [], []>} : vector<16x32xbf16>, vector<32x96xbf16>, vector<16x96xf32> -> vector<16x96xf32>
    %308 = vector.broadcast %301 : vector<1x96xf32> to vector<16x96xf32>
    %309 = arith.addf %307, %308 : vector<16x96xf32>
    %310 = vector.extract_strided_slice %309 {offsets = [0, 0], sizes = [16, 32], strides = [1, 1]} : vector<16x96xf32> to vector<16x32xf32>
    %cst_138 = arith.constant 0.353553385 : f32
    %311 = vector.broadcast %cst_138 : f32 to vector<16x32xf32>
    %312 = arith.mulf %310, %311 : vector<16x32xf32>
    %313 = vector.extract_strided_slice %309 {offsets = [0, 32], sizes = [16, 32], strides = [1, 1]} : vector<16x96xf32> to vector<16x32xf32>
    %314 = vector.extract_strided_slice %309 {offsets = [0, 64], sizes = [16, 32], strides = [1, 1]} : vector<16x96xf32> to vector<16x32xf32>
    %315 = vector.shape_cast %312 : vector<16x32xf32> to vector<2x8x32xf32>
    %316 = tpu.transpose %315, [0, 2, 1] : vector<2x8x32xf32> -> vector<2x32x8xf32>
    %317 = vector.shape_cast %316 : vector<2x32x8xf32> to vector<8x8x8xf32>
    %318 = arith.truncf %317 : vector<8x8x8xf32> to vector<8x8x8xbf16>
    %319 = vector.shape_cast %313 : vector<16x32xf32> to vector<2x8x32xf32>
    %320 = tpu.transpose %319, [0, 2, 1] : vector<2x8x32xf32> -> vector<2x32x8xf32>
    %321 = vector.shape_cast %320 : vector<2x32x8xf32> to vector<8x8x8xf32>
    %322 = arith.truncf %321 : vector<8x8x8xf32> to vector<8x8x8xbf16>
    %323 = vector.shape_cast %314 : vector<16x32xf32> to vector<2x8x32xf32>
    %324 = tpu.transpose %323, [0, 2, 1] : vector<2x8x32xf32> -> vector<2x32x8xf32>
    %325 = vector.shape_cast %324 : vector<2x32x8xf32> to vector<8x8x8xf32>
    %326 = arith.truncf %325 : vector<8x8x8xf32> to vector<8x8x8xbf16>
    "tpu.trace_start"() <{level = 10 : i32, message = "bdq,bdk->bqk"}> : () -> ()
    %cst_139 = arith.constant dense<0.000000e+00> : vector<8x8x8xf32>
    %327 = tpu.matmul %318, %322, %cst_139 {dimension_numbers = #tpu.dot_dimension_numbers<[1], [1], [2], [2], [0, 0, 0, 2, 1, 2], [0], [0]>} : vector<8x8x8xbf16>, vector<8x8x8xbf16>, vector<8x8x8xf32> -> vector<8x8x8xf32>
    "tpu.trace_stop"() : () -> ()
    %cst_140 = arith.constant dense<0xFF800000> : vector<8x8xf32>
    %328 = vector.multi_reduction <maximumf>, %327, %cst_140 [2] : vector<8x8x8xf32> to vector<8x8xf32>
    %329 = vector.shape_cast %328 : vector<8x8xf32> to vector<8x8x1xf32>
    %330 = vector.broadcast %329 : vector<8x8x1xf32> to vector<8x8x8xf32>
    %331 = arith.subf %327, %330 : vector<8x8x8xf32>
    %332 = math.exp %331 : vector<8x8x8xf32>
    %cst_141 = arith.constant dense<0.000000e+00> : vector<8x8xf32>
    %333 = vector.multi_reduction <add>, %332, %cst_141 [2] : vector<8x8x8xf32> to vector<8x8xf32>
    %334 = vector.shape_cast %333 : vector<8x8xf32> to vector<8x8x1xf32>
    %335 = vector.broadcast %334 : vector<8x8x1xf32> to vector<8x8x8xf32>
    %336 = arith.divf %332, %335 : vector<8x8x8xf32>
    %337 = arith.truncf %336 : vector<8x8x8xf32> to vector<8x8x8xbf16>
    "tpu.trace_start"() <{level = 10 : i32, message = "bdk,bqk->bdq"}> : () -> ()
    %cst_142 = arith.constant dense<0.000000e+00> : vector<8x8x8xf32>
    %338 = tpu.matmul %326, %337, %cst_142 {dimension_numbers = #tpu.dot_dimension_numbers<[2], [2], [1], [1], [0, 0, 0, 1, 1, 1], [0], [0]>} : vector<8x8x8xbf16>, vector<8x8x8xbf16>, vector<8x8x8xf32> -> vector<8x8x8xf32>
    "tpu.trace_stop"() : () -> ()
    %339 = vector.shape_cast %338 : vector<8x8x8xf32> to vector<2x32x8xf32>
    %340 = tpu.transpose %339, [0, 2, 1] : vector<2x32x8xf32> -> vector<2x8x32xf32>
    %341 = vector.shape_cast %340 : vector<2x8x32xf32> to vector<16x32xf32>
    %342 = arith.truncf %341 : vector<16x32xf32> to vector<16x32xbf16>
    %cst_143 = arith.constant dense<0.000000e+00> : vector<16x32xf32>
    %343 = tpu.matmul %342, %303, %cst_143 {dimension_numbers = #tpu.dot_dimension_numbers<[1], [0], [0], [1], [0, 0, 1, 1], [], []>} : vector<16x32xbf16>, vector<32x32xbf16>, vector<16x32xf32> -> vector<16x32xf32>
    %344 = vector.broadcast %305 : vector<1x32xf32> to vector<16x32xf32>
    %345 = arith.addf %343, %344 : vector<16x32xf32>
    %346 = arith.addf %297, %345 : vector<16x32xf32>
    %c0_144 = arith.constant 0 : index
    %c0_145 = arith.constant 0 : index
    %c0_146 = arith.constant 0 : index
    %c0_147 = arith.constant 0 : index
    %347 = vector.load %arg27[%c0_144, %c0_145, %c0_146, %c0_147] : memref<2x3x2x32xf32, #tpu.memory_space<vmem>>, vector<1x1x2x32xf32>
    %348 = vector.shape_cast %347 : vector<1x1x2x32xf32> to vector<2x32xf32>
    %349 = vector.extract_strided_slice %348 {offsets = [0, 0], sizes = [1, 32], strides = [1, 1]} : vector<2x32xf32> to vector<1x32xf32>
    %350 = vector.extract_strided_slice %348 {offsets = [1, 0], sizes = [1, 32], strides = [1, 1]} : vector<2x32xf32> to vector<1x32xf32>
    %cst_148 = arith.constant dense<0.000000e+00> : vector<16xf32>
    %351 = vector.multi_reduction <add>, %346, %cst_148 [1] : vector<16x32xf32> to vector<16xf32>
    %352 = vector.shape_cast %351 : vector<16xf32> to vector<16x1xf32>
    %cst_149 = arith.constant 3.200000e+01 : f32
    %353 = vector.broadcast %cst_149 : f32 to vector<16x1xf32>
    %354 = arith.divf %352, %353 : vector<16x1xf32>
    %355 = vector.broadcast %354 : vector<16x1xf32> to vector<16x32xf32>
    %356 = arith.subf %346, %355 : vector<16x32xf32>
    %357 = arith.mulf %356, %356 : vector<16x32xf32>
    %cst_150 = arith.constant dense<0.000000e+00> : vector<16xf32>
    %358 = vector.multi_reduction <add>, %357, %cst_150 [1] : vector<16x32xf32> to vector<16xf32>
    %359 = vector.shape_cast %358 : vector<16xf32> to vector<16x1xf32>
    %cst_151 = arith.constant 3.200000e+01 : f32
    %360 = vector.broadcast %cst_151 : f32 to vector<16x1xf32>
    %361 = arith.divf %359, %360 : vector<16x1xf32>
    %362 = vector.broadcast %354 : vector<16x1xf32> to vector<16x32xf32>
    %363 = arith.subf %346, %362 : vector<16x32xf32>
    %cst_152 = arith.constant 9.99999974E-6 : f32
    %364 = vector.broadcast %cst_152 : f32 to vector<16x1xf32>
    %365 = arith.addf %361, %364 : vector<16x1xf32>
    %366 = math.rsqrt %365 : vector<16x1xf32>
    %367 = vector.broadcast %366 : vector<16x1xf32> to vector<16x32xf32>
    %368 = arith.mulf %363, %367 : vector<16x32xf32>
    %369 = vector.broadcast %349 : vector<1x32xf32> to vector<16x32xf32>
    %370 = arith.mulf %368, %369 : vector<16x32xf32>
    %371 = vector.broadcast %350 : vector<1x32xf32> to vector<16x32xf32>
    %372 = arith.addf %370, %371 : vector<16x32xf32>
    %c0_153 = arith.constant 0 : index
    %c0_154 = arith.constant 0 : index
    %c0_155 = arith.constant 0 : index
    %373 = vector.load %arg17[%c0_153, %c0_154, %c0_155] : memref<2x32x32xbf16, #tpu.memory_space<vmem>>, vector<1x32x32xbf16>
    %374 = vector.shape_cast %373 : vector<1x32x32xbf16> to vector<32x32xbf16>
    %c0_156 = arith.constant 0 : index
    %c0_157 = arith.constant 0 : index
    %c0_158 = arith.constant 0 : index
    %375 = vector.load %arg18[%c0_156, %c0_157, %c0_158] : memref<2x1x32xf32, #tpu.memory_space<vmem>>, vector<1x1x32xf32>
    %376 = vector.shape_cast %375 : vector<1x1x32xf32> to vector<1x32xf32>
    %c0_159 = arith.constant 0 : index
    %c0_160 = arith.constant 0 : index
    %c0_161 = arith.constant 0 : index
    %377 = vector.load %arg19[%c0_159, %c0_160, %c0_161] : memref<2x32x64xbf16, #tpu.memory_space<vmem>>, vector<1x32x64xbf16>
    %378 = vector.shape_cast %377 : vector<1x32x64xbf16> to vector<32x64xbf16>
    %c0_162 = arith.constant 0 : index
    %c0_163 = arith.constant 0 : index
    %c0_164 = arith.constant 0 : index
    %379 = vector.load %arg20[%c0_162, %c0_163, %c0_164] : memref<2x1x64xf32, #tpu.memory_space<vmem>>, vector<1x1x64xf32>
    %380 = vector.shape_cast %379 : vector<1x1x64xf32> to vector<1x64xf32>
    %c0_165 = arith.constant 0 : index
    %c0_166 = arith.constant 0 : index
    %c0_167 = arith.constant 0 : index
    %381 = vector.load %arg21[%c0_165, %c0_166, %c0_167] : memref<2x32x32xbf16, #tpu.memory_space<vmem>>, vector<1x32x32xbf16>
    %382 = vector.shape_cast %381 : vector<1x32x32xbf16> to vector<32x32xbf16>
    %c0_168 = arith.constant 0 : index
    %c0_169 = arith.constant 0 : index
    %c0_170 = arith.constant 0 : index
    %383 = vector.load %arg22[%c0_168, %c0_169, %c0_170] : memref<2x1x32xf32, #tpu.memory_space<vmem>>, vector<1x1x32xf32>
    %384 = vector.shape_cast %383 : vector<1x1x32xf32> to vector<1x32xf32>
    %385 = arith.truncf %372 : vector<16x32xf32> to vector<16x32xbf16>
    %cst_171 = arith.constant dense<0.000000e+00> : vector<16x32xf32>
    %386 = tpu.matmul %385, %374, %cst_171 {dimension_numbers = #tpu.dot_dimension_numbers<[1], [0], [0], [1], [0, 0, 1, 1], [], []>} : vector<16x32xbf16>, vector<32x32xbf16>, vector<16x32xf32> -> vector<16x32xf32>
    %387 = vector.broadcast %376 : vector<1x32xf32> to vector<16x32xf32>
    %388 = arith.addf %386, %387 : vector<16x32xf32>
    %cst_172 = arith.constant 0.353553385 : f32
    %389 = vector.broadcast %cst_172 : f32 to vector<16x32xf32>
    %390 = arith.mulf %388, %389 : vector<16x32xf32>
    %391 = arith.truncf %281 : vector<16x32xf32> to vector<16x32xbf16>
    %cst_173 = arith.constant dense<0.000000e+00> : vector<16x64xf32>
    %392 = tpu.matmul %391, %378, %cst_173 {dimension_numbers = #tpu.dot_dimension_numbers<[1], [0], [0], [1], [0, 0, 1, 1], [], []>} : vector<16x32xbf16>, vector<32x64xbf16>, vector<16x64xf32> -> vector<16x64xf32>
    %393 = vector.broadcast %380 : vector<1x64xf32> to vector<16x64xf32>
    %394 = arith.addf %392, %393 : vector<16x64xf32>
    %395 = vector.extract_strided_slice %394 {offsets = [0, 0], sizes = [16, 32], strides = [1, 1]} : vector<16x64xf32> to vector<16x32xf32>
    %396 = vector.extract_strided_slice %394 {offsets = [0, 32], sizes = [16, 32], strides = [1, 1]} : vector<16x64xf32> to vector<16x32xf32>
    %397 = vector.shape_cast %390 : vector<16x32xf32> to vector<2x8x32xf32>
    %398 = tpu.transpose %397, [0, 2, 1] : vector<2x8x32xf32> -> vector<2x32x8xf32>
    %399 = vector.shape_cast %398 : vector<2x32x8xf32> to vector<8x8x8xf32>
    %400 = arith.truncf %399 : vector<8x8x8xf32> to vector<8x8x8xbf16>
    %401 = vector.shape_cast %395 : vector<16x32xf32> to vector<2x8x32xf32>
    %402 = tpu.transpose %401, [0, 2, 1] : vector<2x8x32xf32> -> vector<2x32x8xf32>
    %403 = vector.shape_cast %402 : vector<2x32x8xf32> to vector<8x8x8xf32>
    %404 = arith.truncf %403 : vector<8x8x8xf32> to vector<8x8x8xbf16>
    %405 = vector.shape_cast %396 : vector<16x32xf32> to vector<2x8x32xf32>
    %406 = tpu.transpose %405, [0, 2, 1] : vector<2x8x32xf32> -> vector<2x32x8xf32>
    %407 = vector.shape_cast %406 : vector<2x32x8xf32> to vector<8x8x8xf32>
    %408 = arith.truncf %407 : vector<8x8x8xf32> to vector<8x8x8xbf16>
    "tpu.trace_start"() <{level = 10 : i32, message = "bdq,bdk->bqk"}> : () -> ()
    %cst_174 = arith.constant dense<0.000000e+00> : vector<8x8x8xf32>
    %409 = tpu.matmul %400, %404, %cst_174 {dimension_numbers = #tpu.dot_dimension_numbers<[1], [1], [2], [2], [0, 0, 0, 2, 1, 2], [0], [0]>} : vector<8x8x8xbf16>, vector<8x8x8xbf16>, vector<8x8x8xf32> -> vector<8x8x8xf32>
    "tpu.trace_stop"() : () -> ()
    %cst_175 = arith.constant dense<0xFF800000> : vector<8x8xf32>
    %410 = vector.multi_reduction <maximumf>, %409, %cst_175 [2] : vector<8x8x8xf32> to vector<8x8xf32>
    %411 = vector.shape_cast %410 : vector<8x8xf32> to vector<8x8x1xf32>
    %412 = vector.broadcast %411 : vector<8x8x1xf32> to vector<8x8x8xf32>
    %413 = arith.subf %409, %412 : vector<8x8x8xf32>
    %414 = math.exp %413 : vector<8x8x8xf32>
    %cst_176 = arith.constant dense<0.000000e+00> : vector<8x8xf32>
    %415 = vector.multi_reduction <add>, %414, %cst_176 [2] : vector<8x8x8xf32> to vector<8x8xf32>
    %416 = vector.shape_cast %415 : vector<8x8xf32> to vector<8x8x1xf32>
    %417 = vector.broadcast %416 : vector<8x8x1xf32> to vector<8x8x8xf32>
    %418 = arith.divf %414, %417 : vector<8x8x8xf32>
    %419 = arith.truncf %418 : vector<8x8x8xf32> to vector<8x8x8xbf16>
    "tpu.trace_start"() <{level = 10 : i32, message = "bdk,bqk->bdq"}> : () -> ()
    %cst_177 = arith.constant dense<0.000000e+00> : vector<8x8x8xf32>
    %420 = tpu.matmul %408, %419, %cst_177 {dimension_numbers = #tpu.dot_dimension_numbers<[2], [2], [1], [1], [0, 0, 0, 1, 1, 1], [0], [0]>} : vector<8x8x8xbf16>, vector<8x8x8xbf16>, vector<8x8x8xf32> -> vector<8x8x8xf32>
    "tpu.trace_stop"() : () -> ()
    %421 = vector.shape_cast %420 : vector<8x8x8xf32> to vector<2x32x8xf32>
    %422 = tpu.transpose %421, [0, 2, 1] : vector<2x32x8xf32> -> vector<2x8x32xf32>
    %423 = vector.shape_cast %422 : vector<2x8x32xf32> to vector<16x32xf32>
    %424 = arith.truncf %423 : vector<16x32xf32> to vector<16x32xbf16>
    %cst_178 = arith.constant dense<0.000000e+00> : vector<16x32xf32>
    %425 = tpu.matmul %424, %382, %cst_178 {dimension_numbers = #tpu.dot_dimension_numbers<[1], [0], [0], [1], [0, 0, 1, 1], [], []>} : vector<16x32xbf16>, vector<32x32xbf16>, vector<16x32xf32> -> vector<16x32xf32>
    %426 = vector.broadcast %384 : vector<1x32xf32> to vector<16x32xf32>
    %427 = arith.addf %425, %426 : vector<16x32xf32>
    %428 = arith.addf %372, %427 : vector<16x32xf32>
    %c0_179 = arith.constant 0 : index
    %c1_180 = arith.constant 1 : index
    %c0_181 = arith.constant 0 : index
    %c0_182 = arith.constant 0 : index
    %429 = vector.load %arg27[%c0_179, %c1_180, %c0_181, %c0_182] : memref<2x3x2x32xf32, #tpu.memory_space<vmem>>, vector<1x1x2x32xf32>
    %430 = vector.shape_cast %429 : vector<1x1x2x32xf32> to vector<2x32xf32>
    %431 = vector.extract_strided_slice %430 {offsets = [0, 0], sizes = [1, 32], strides = [1, 1]} : vector<2x32xf32> to vector<1x32xf32>
    %432 = vector.extract_strided_slice %430 {offsets = [1, 0], sizes = [1, 32], strides = [1, 1]} : vector<2x32xf32> to vector<1x32xf32>
    %cst_183 = arith.constant dense<0.000000e+00> : vector<16xf32>
    %433 = vector.multi_reduction <add>, %428, %cst_183 [1] : vector<16x32xf32> to vector<16xf32>
    %434 = vector.shape_cast %433 : vector<16xf32> to vector<16x1xf32>
    %cst_184 = arith.constant 3.200000e+01 : f32
    %435 = vector.broadcast %cst_184 : f32 to vector<16x1xf32>
    %436 = arith.divf %434, %435 : vector<16x1xf32>
    %437 = vector.broadcast %436 : vector<16x1xf32> to vector<16x32xf32>
    %438 = arith.subf %428, %437 : vector<16x32xf32>
    %439 = arith.mulf %438, %438 : vector<16x32xf32>
    %cst_185 = arith.constant dense<0.000000e+00> : vector<16xf32>
    %440 = vector.multi_reduction <add>, %439, %cst_185 [1] : vector<16x32xf32> to vector<16xf32>
    %441 = vector.shape_cast %440 : vector<16xf32> to vector<16x1xf32>
    %cst_186 = arith.constant 3.200000e+01 : f32
    %442 = vector.broadcast %cst_186 : f32 to vector<16x1xf32>
    %443 = arith.divf %441, %442 : vector<16x1xf32>
    %444 = vector.broadcast %436 : vector<16x1xf32> to vector<16x32xf32>
    %445 = arith.subf %428, %444 : vector<16x32xf32>
    %cst_187 = arith.constant 9.99999974E-6 : f32
    %446 = vector.broadcast %cst_187 : f32 to vector<16x1xf32>
    %447 = arith.addf %443, %446 : vector<16x1xf32>
    %448 = math.rsqrt %447 : vector<16x1xf32>
    %449 = vector.broadcast %448 : vector<16x1xf32> to vector<16x32xf32>
    %450 = arith.mulf %445, %449 : vector<16x32xf32>
    %451 = vector.broadcast %431 : vector<1x32xf32> to vector<16x32xf32>
    %452 = arith.mulf %450, %451 : vector<16x32xf32>
    %453 = vector.broadcast %432 : vector<1x32xf32> to vector<16x32xf32>
    %454 = arith.addf %452, %453 : vector<16x32xf32>
    %c0_188 = arith.constant 0 : index
    %c0_189 = arith.constant 0 : index
    %c0_190 = arith.constant 0 : index
    %455 = vector.load %arg23[%c0_188, %c0_189, %c0_190] : memref<2x32x64xbf16, #tpu.memory_space<vmem>>, vector<1x32x64xbf16>
    %456 = vector.shape_cast %455 : vector<1x32x64xbf16> to vector<32x64xbf16>
    %c0_191 = arith.constant 0 : index
    %c0_192 = arith.constant 0 : index
    %c0_193 = arith.constant 0 : index
    %457 = vector.load %arg24[%c0_191, %c0_192, %c0_193] : memref<2x1x64xf32, #tpu.memory_space<vmem>>, vector<1x1x64xf32>
    %458 = vector.shape_cast %457 : vector<1x1x64xf32> to vector<1x64xf32>
    %c0_194 = arith.constant 0 : index
    %c0_195 = arith.constant 0 : index
    %c0_196 = arith.constant 0 : index
    %459 = vector.load %arg25[%c0_194, %c0_195, %c0_196] : memref<2x64x32xbf16, #tpu.memory_space<vmem>>, vector<1x64x32xbf16>
    %460 = vector.shape_cast %459 : vector<1x64x32xbf16> to vector<64x32xbf16>
    %c0_197 = arith.constant 0 : index
    %c0_198 = arith.constant 0 : index
    %c0_199 = arith.constant 0 : index
    %461 = vector.load %arg26[%c0_197, %c0_198, %c0_199] : memref<2x1x32xf32, #tpu.memory_space<vmem>>, vector<1x1x32xf32>
    %462 = vector.shape_cast %461 : vector<1x1x32xf32> to vector<1x32xf32>
    %463 = arith.truncf %454 : vector<16x32xf32> to vector<16x32xbf16>
    %cst_200 = arith.constant dense<0.000000e+00> : vector<16x64xf32>
    %464 = tpu.matmul %463, %456, %cst_200 {dimension_numbers = #tpu.dot_dimension_numbers<[1], [0], [0], [1], [0, 0, 1, 1], [], []>} : vector<16x32xbf16>, vector<32x64xbf16>, vector<16x64xf32> -> vector<16x64xf32>
    %465 = vector.broadcast %458 : vector<1x64xf32> to vector<16x64xf32>
    %466 = arith.addf %464, %465 : vector<16x64xf32>
    %cst_201 = arith.constant 0.000000e+00 : f32
    %467 = vector.broadcast %cst_201 : f32 to vector<16x64xf32>
    %468 = arith.maximumf %466, %467 : vector<16x64xf32>
    %469 = arith.truncf %468 : vector<16x64xf32> to vector<16x64xbf16>
    %cst_202 = arith.constant dense<0.000000e+00> : vector<16x32xf32>
    %470 = tpu.matmul %469, %460, %cst_202 {dimension_numbers = #tpu.dot_dimension_numbers<[1], [0], [0], [1], [0, 0, 1, 1], [], []>} : vector<16x64xbf16>, vector<64x32xbf16>, vector<16x32xf32> -> vector<16x32xf32>
    %471 = vector.broadcast %462 : vector<1x32xf32> to vector<16x32xf32>
    %472 = arith.addf %470, %471 : vector<16x32xf32>
    %473 = arith.addf %454, %472 : vector<16x32xf32>
    %c0_203 = arith.constant 0 : index
    %c2 = arith.constant 2 : index
    %c0_204 = arith.constant 0 : index
    %c0_205 = arith.constant 0 : index
    %474 = vector.load %arg27[%c0_203, %c2, %c0_204, %c0_205] : memref<2x3x2x32xf32, #tpu.memory_space<vmem>>, vector<1x1x2x32xf32>
    %475 = vector.shape_cast %474 : vector<1x1x2x32xf32> to vector<2x32xf32>
    %476 = vector.extract_strided_slice %475 {offsets = [0, 0], sizes = [1, 32], strides = [1, 1]} : vector<2x32xf32> to vector<1x32xf32>
    %477 = vector.extract_strided_slice %475 {offsets = [1, 0], sizes = [1, 32], strides = [1, 1]} : vector<2x32xf32> to vector<1x32xf32>
    %cst_206 = arith.constant dense<0.000000e+00> : vector<16xf32>
    %478 = vector.multi_reduction <add>, %473, %cst_206 [1] : vector<16x32xf32> to vector<16xf32>
    %479 = vector.shape_cast %478 : vector<16xf32> to vector<16x1xf32>
    %cst_207 = arith.constant 3.200000e+01 : f32
    %480 = vector.broadcast %cst_207 : f32 to vector<16x1xf32>
    %481 = arith.divf %479, %480 : vector<16x1xf32>
    %482 = vector.broadcast %481 : vector<16x1xf32> to vector<16x32xf32>
    %483 = arith.subf %473, %482 : vector<16x32xf32>
    %484 = arith.mulf %483, %483 : vector<16x32xf32>
    %cst_208 = arith.constant dense<0.000000e+00> : vector<16xf32>
    %485 = vector.multi_reduction <add>, %484, %cst_208 [1] : vector<16x32xf32> to vector<16xf32>
    %486 = vector.shape_cast %485 : vector<16xf32> to vector<16x1xf32>
    %cst_209 = arith.constant 3.200000e+01 : f32
    %487 = vector.broadcast %cst_209 : f32 to vector<16x1xf32>
    %488 = arith.divf %486, %487 : vector<16x1xf32>
    %489 = vector.broadcast %481 : vector<16x1xf32> to vector<16x32xf32>
    %490 = arith.subf %473, %489 : vector<16x32xf32>
    %cst_210 = arith.constant 9.99999974E-6 : f32
    %491 = vector.broadcast %cst_210 : f32 to vector<16x1xf32>
    %492 = arith.addf %488, %491 : vector<16x1xf32>
    %493 = math.rsqrt %492 : vector<16x1xf32>
    %494 = vector.broadcast %493 : vector<16x1xf32> to vector<16x32xf32>
    %495 = arith.mulf %490, %494 : vector<16x32xf32>
    %496 = vector.broadcast %476 : vector<1x32xf32> to vector<16x32xf32>
    %497 = arith.mulf %495, %496 : vector<16x32xf32>
    %498 = vector.broadcast %477 : vector<1x32xf32> to vector<16x32xf32>
    %499 = arith.addf %497, %498 : vector<16x32xf32>
    %c1_211 = arith.constant 1 : index
    %c0_212 = arith.constant 0 : index
    %c0_213 = arith.constant 0 : index
    %500 = vector.load %arg13[%c1_211, %c0_212, %c0_213] : memref<2x32x96xbf16, #tpu.memory_space<vmem>>, vector<1x32x96xbf16>
    %501 = vector.shape_cast %500 : vector<1x32x96xbf16> to vector<32x96xbf16>
    %c1_214 = arith.constant 1 : index
    %c0_215 = arith.constant 0 : index
    %c0_216 = arith.constant 0 : index
    %502 = vector.load %arg14[%c1_214, %c0_215, %c0_216] : memref<2x1x96xf32, #tpu.memory_space<vmem>>, vector<1x1x96xf32>
    %503 = vector.shape_cast %502 : vector<1x1x96xf32> to vector<1x96xf32>
    %c1_217 = arith.constant 1 : index
    %c0_218 = arith.constant 0 : index
    %c0_219 = arith.constant 0 : index
    %504 = vector.load %arg15[%c1_217, %c0_218, %c0_219] : memref<2x32x32xbf16, #tpu.memory_space<vmem>>, vector<1x32x32xbf16>
    %505 = vector.shape_cast %504 : vector<1x32x32xbf16> to vector<32x32xbf16>
    %c1_220 = arith.constant 1 : index
    %c0_221 = arith.constant 0 : index
    %c0_222 = arith.constant 0 : index
    %506 = vector.load %arg16[%c1_220, %c0_221, %c0_222] : memref<2x1x32xf32, #tpu.memory_space<vmem>>, vector<1x1x32xf32>
    %507 = vector.shape_cast %506 : vector<1x1x32xf32> to vector<1x32xf32>
    %508 = arith.truncf %499 : vector<16x32xf32> to vector<16x32xbf16>
    %cst_223 = arith.constant dense<0.000000e+00> : vector<16x96xf32>
    %509 = tpu.matmul %508, %501, %cst_223 {dimension_numbers = #tpu.dot_dimension_numbers<[1], [0], [0], [1], [0, 0, 1, 1], [], []>} : vector<16x32xbf16>, vector<32x96xbf16>, vector<16x96xf32> -> vector<16x96xf32>
    %510 = vector.broadcast %503 : vector<1x96xf32> to vector<16x96xf32>
    %511 = arith.addf %509, %510 : vector<16x96xf32>
    %512 = vector.extract_strided_slice %511 {offsets = [0, 0], sizes = [16, 32], strides = [1, 1]} : vector<16x96xf32> to vector<16x32xf32>
    %cst_224 = arith.constant 0.353553385 : f32
    %513 = vector.broadcast %cst_224 : f32 to vector<16x32xf32>
    %514 = arith.mulf %512, %513 : vector<16x32xf32>
    %515 = vector.extract_strided_slice %511 {offsets = [0, 32], sizes = [16, 32], strides = [1, 1]} : vector<16x96xf32> to vector<16x32xf32>
    %516 = vector.extract_strided_slice %511 {offsets = [0, 64], sizes = [16, 32], strides = [1, 1]} : vector<16x96xf32> to vector<16x32xf32>
    %517 = vector.shape_cast %514 : vector<16x32xf32> to vector<2x8x32xf32>
    %518 = tpu.transpose %517, [0, 2, 1] : vector<2x8x32xf32> -> vector<2x32x8xf32>
    %519 = vector.shape_cast %518 : vector<2x32x8xf32> to vector<8x8x8xf32>
    %520 = arith.truncf %519 : vector<8x8x8xf32> to vector<8x8x8xbf16>
    %521 = vector.shape_cast %515 : vector<16x32xf32> to vector<2x8x32xf32>
    %522 = tpu.transpose %521, [0, 2, 1] : vector<2x8x32xf32> -> vector<2x32x8xf32>
    %523 = vector.shape_cast %522 : vector<2x32x8xf32> to vector<8x8x8xf32>
    %524 = arith.truncf %523 : vector<8x8x8xf32> to vector<8x8x8xbf16>
    %525 = vector.shape_cast %516 : vector<16x32xf32> to vector<2x8x32xf32>
    %526 = tpu.transpose %525, [0, 2, 1] : vector<2x8x32xf32> -> vector<2x32x8xf32>
    %527 = vector.shape_cast %526 : vector<2x32x8xf32> to vector<8x8x8xf32>
    %528 = arith.truncf %527 : vector<8x8x8xf32> to vector<8x8x8xbf16>
    "tpu.trace_start"() <{level = 10 : i32, message = "bdq,bdk->bqk"}> : () -> ()
    %cst_225 = arith.constant dense<0.000000e+00> : vector<8x8x8xf32>
    %529 = tpu.matmul %520, %524, %cst_225 {dimension_numbers = #tpu.dot_dimension_numbers<[1], [1], [2], [2], [0, 0, 0, 2, 1, 2], [0], [0]>} : vector<8x8x8xbf16>, vector<8x8x8xbf16>, vector<8x8x8xf32> -> vector<8x8x8xf32>
    "tpu.trace_stop"() : () -> ()
    %cst_226 = arith.constant dense<0xFF800000> : vector<8x8xf32>
    %530 = vector.multi_reduction <maximumf>, %529, %cst_226 [2] : vector<8x8x8xf32> to vector<8x8xf32>
    %531 = vector.shape_cast %530 : vector<8x8xf32> to vector<8x8x1xf32>
    %532 = vector.broadcast %531 : vector<8x8x1xf32> to vector<8x8x8xf32>
    %533 = arith.subf %529, %532 : vector<8x8x8xf32>
    %534 = math.exp %533 : vector<8x8x8xf32>
    %cst_227 = arith.constant dense<0.000000e+00> : vector<8x8xf32>
    %535 = vector.multi_reduction <add>, %534, %cst_227 [2] : vector<8x8x8xf32> to vector<8x8xf32>
    %536 = vector.shape_cast %535 : vector<8x8xf32> to vector<8x8x1xf32>
    %537 = vector.broadcast %536 : vector<8x8x1xf32> to vector<8x8x8xf32>
    %538 = arith.divf %534, %537 : vector<8x8x8xf32>
    %539 = arith.truncf %538 : vector<8x8x8xf32> to vector<8x8x8xbf16>
    "tpu.trace_start"() <{level = 10 : i32, message = "bdk,bqk->bdq"}> : () -> ()
    %cst_228 = arith.constant dense<0.000000e+00> : vector<8x8x8xf32>
    %540 = tpu.matmul %528, %539, %cst_228 {dimension_numbers = #tpu.dot_dimension_numbers<[2], [2], [1], [1], [0, 0, 0, 1, 1, 1], [0], [0]>} : vector<8x8x8xbf16>, vector<8x8x8xbf16>, vector<8x8x8xf32> -> vector<8x8x8xf32>
    "tpu.trace_stop"() : () -> ()
    %541 = vector.shape_cast %540 : vector<8x8x8xf32> to vector<2x32x8xf32>
    %542 = tpu.transpose %541, [0, 2, 1] : vector<2x32x8xf32> -> vector<2x8x32xf32>
    %543 = vector.shape_cast %542 : vector<2x8x32xf32> to vector<16x32xf32>
    %544 = arith.truncf %543 : vector<16x32xf32> to vector<16x32xbf16>
    %cst_229 = arith.constant dense<0.000000e+00> : vector<16x32xf32>
    %545 = tpu.matmul %544, %505, %cst_229 {dimension_numbers = #tpu.dot_dimension_numbers<[1], [0], [0], [1], [0, 0, 1, 1], [], []>} : vector<16x32xbf16>, vector<32x32xbf16>, vector<16x32xf32> -> vector<16x32xf32>
    %546 = vector.broadcast %507 : vector<1x32xf32> to vector<16x32xf32>
    %547 = arith.addf %545, %546 : vector<16x32xf32>
    %548 = arith.addf %499, %547 : vector<16x32xf32>
    %c1_230 = arith.constant 1 : index
    %c0_231 = arith.constant 0 : index
    %c0_232 = arith.constant 0 : index
    %c0_233 = arith.constant 0 : index
    %549 = vector.load %arg27[%c1_230, %c0_231, %c0_232, %c0_233] : memref<2x3x2x32xf32, #tpu.memory_space<vmem>>, vector<1x1x2x32xf32>
    %550 = vector.shape_cast %549 : vector<1x1x2x32xf32> to vector<2x32xf32>
    %551 = vector.extract_strided_slice %550 {offsets = [0, 0], sizes = [1, 32], strides = [1, 1]} : vector<2x32xf32> to vector<1x32xf32>
    %552 = vector.extract_strided_slice %550 {offsets = [1, 0], sizes = [1, 32], strides = [1, 1]} : vector<2x32xf32> to vector<1x32xf32>
    %cst_234 = arith.constant dense<0.000000e+00> : vector<16xf32>
    %553 = vector.multi_reduction <add>, %548, %cst_234 [1] : vector<16x32xf32> to vector<16xf32>
    %554 = vector.shape_cast %553 : vector<16xf32> to vector<16x1xf32>
    %cst_235 = arith.constant 3.200000e+01 : f32
    %555 = vector.broadcast %cst_235 : f32 to vector<16x1xf32>
    %556 = arith.divf %554, %555 : vector<16x1xf32>
    %557 = vector.broadcast %556 : vector<16x1xf32> to vector<16x32xf32>
    %558 = arith.subf %548, %557 : vector<16x32xf32>
    %559 = arith.mulf %558, %558 : vector<16x32xf32>
    %cst_236 = arith.constant dense<0.000000e+00> : vector<16xf32>
    %560 = vector.multi_reduction <add>, %559, %cst_236 [1] : vector<16x32xf32> to vector<16xf32>
    %561 = vector.shape_cast %560 : vector<16xf32> to vector<16x1xf32>
    %cst_237 = arith.constant 3.200000e+01 : f32
    %562 = vector.broadcast %cst_237 : f32 to vector<16x1xf32>
    %563 = arith.divf %561, %562 : vector<16x1xf32>
    %564 = vector.broadcast %556 : vector<16x1xf32> to vector<16x32xf32>
    %565 = arith.subf %548, %564 : vector<16x32xf32>
    %cst_238 = arith.constant 9.99999974E-6 : f32
    %566 = vector.broadcast %cst_238 : f32 to vector<16x1xf32>
    %567 = arith.addf %563, %566 : vector<16x1xf32>
    %568 = math.rsqrt %567 : vector<16x1xf32>
    %569 = vector.broadcast %568 : vector<16x1xf32> to vector<16x32xf32>
    %570 = arith.mulf %565, %569 : vector<16x32xf32>
    %571 = vector.broadcast %551 : vector<1x32xf32> to vector<16x32xf32>
    %572 = arith.mulf %570, %571 : vector<16x32xf32>
    %573 = vector.broadcast %552 : vector<1x32xf32> to vector<16x32xf32>
    %574 = arith.addf %572, %573 : vector<16x32xf32>
    %c1_239 = arith.constant 1 : index
    %c0_240 = arith.constant 0 : index
    %c0_241 = arith.constant 0 : index
    %575 = vector.load %arg17[%c1_239, %c0_240, %c0_241] : memref<2x32x32xbf16, #tpu.memory_space<vmem>>, vector<1x32x32xbf16>
    %576 = vector.shape_cast %575 : vector<1x32x32xbf16> to vector<32x32xbf16>
    %c1_242 = arith.constant 1 : index
    %c0_243 = arith.constant 0 : index
    %c0_244 = arith.constant 0 : index
    %577 = vector.load %arg18[%c1_242, %c0_243, %c0_244] : memref<2x1x32xf32, #tpu.memory_space<vmem>>, vector<1x1x32xf32>
    %578 = vector.shape_cast %577 : vector<1x1x32xf32> to vector<1x32xf32>
    %c1_245 = arith.constant 1 : index
    %c0_246 = arith.constant 0 : index
    %c0_247 = arith.constant 0 : index
    %579 = vector.load %arg19[%c1_245, %c0_246, %c0_247] : memref<2x32x64xbf16, #tpu.memory_space<vmem>>, vector<1x32x64xbf16>
    %580 = vector.shape_cast %579 : vector<1x32x64xbf16> to vector<32x64xbf16>
    %c1_248 = arith.constant 1 : index
    %c0_249 = arith.constant 0 : index
    %c0_250 = arith.constant 0 : index
    %581 = vector.load %arg20[%c1_248, %c0_249, %c0_250] : memref<2x1x64xf32, #tpu.memory_space<vmem>>, vector<1x1x64xf32>
    %582 = vector.shape_cast %581 : vector<1x1x64xf32> to vector<1x64xf32>
    %c1_251 = arith.constant 1 : index
    %c0_252 = arith.constant 0 : index
    %c0_253 = arith.constant 0 : index
    %583 = vector.load %arg21[%c1_251, %c0_252, %c0_253] : memref<2x32x32xbf16, #tpu.memory_space<vmem>>, vector<1x32x32xbf16>
    %584 = vector.shape_cast %583 : vector<1x32x32xbf16> to vector<32x32xbf16>
    %c1_254 = arith.constant 1 : index
    %c0_255 = arith.constant 0 : index
    %c0_256 = arith.constant 0 : index
    %585 = vector.load %arg22[%c1_254, %c0_255, %c0_256] : memref<2x1x32xf32, #tpu.memory_space<vmem>>, vector<1x1x32xf32>
    %586 = vector.shape_cast %585 : vector<1x1x32xf32> to vector<1x32xf32>
    %587 = arith.truncf %574 : vector<16x32xf32> to vector<16x32xbf16>
    %cst_257 = arith.constant dense<0.000000e+00> : vector<16x32xf32>
    %588 = tpu.matmul %587, %576, %cst_257 {dimension_numbers = #tpu.dot_dimension_numbers<[1], [0], [0], [1], [0, 0, 1, 1], [], []>} : vector<16x32xbf16>, vector<32x32xbf16>, vector<16x32xf32> -> vector<16x32xf32>
    %589 = vector.broadcast %578 : vector<1x32xf32> to vector<16x32xf32>
    %590 = arith.addf %588, %589 : vector<16x32xf32>
    %cst_258 = arith.constant 0.353553385 : f32
    %591 = vector.broadcast %cst_258 : f32 to vector<16x32xf32>
    %592 = arith.mulf %590, %591 : vector<16x32xf32>
    %593 = arith.truncf %281 : vector<16x32xf32> to vector<16x32xbf16>
    %cst_259 = arith.constant dense<0.000000e+00> : vector<16x64xf32>
    %594 = tpu.matmul %593, %580, %cst_259 {dimension_numbers = #tpu.dot_dimension_numbers<[1], [0], [0], [1], [0, 0, 1, 1], [], []>} : vector<16x32xbf16>, vector<32x64xbf16>, vector<16x64xf32> -> vector<16x64xf32>
    %595 = vector.broadcast %582 : vector<1x64xf32> to vector<16x64xf32>
    %596 = arith.addf %594, %595 : vector<16x64xf32>
    %597 = vector.extract_strided_slice %596 {offsets = [0, 0], sizes = [16, 32], strides = [1, 1]} : vector<16x64xf32> to vector<16x32xf32>
    %598 = vector.extract_strided_slice %596 {offsets = [0, 32], sizes = [16, 32], strides = [1, 1]} : vector<16x64xf32> to vector<16x32xf32>
    %599 = vector.shape_cast %592 : vector<16x32xf32> to vector<2x8x32xf32>
    %600 = tpu.transpose %599, [0, 2, 1] : vector<2x8x32xf32> -> vector<2x32x8xf32>
    %601 = vector.shape_cast %600 : vector<2x32x8xf32> to vector<8x8x8xf32>
    %602 = arith.truncf %601 : vector<8x8x8xf32> to vector<8x8x8xbf16>
    %603 = vector.shape_cast %597 : vector<16x32xf32> to vector<2x8x32xf32>
    %604 = tpu.transpose %603, [0, 2, 1] : vector<2x8x32xf32> -> vector<2x32x8xf32>
    %605 = vector.shape_cast %604 : vector<2x32x8xf32> to vector<8x8x8xf32>
    %606 = arith.truncf %605 : vector<8x8x8xf32> to vector<8x8x8xbf16>
    %607 = vector.shape_cast %598 : vector<16x32xf32> to vector<2x8x32xf32>
    %608 = tpu.transpose %607, [0, 2, 1] : vector<2x8x32xf32> -> vector<2x32x8xf32>
    %609 = vector.shape_cast %608 : vector<2x32x8xf32> to vector<8x8x8xf32>
    %610 = arith.truncf %609 : vector<8x8x8xf32> to vector<8x8x8xbf16>
    "tpu.trace_start"() <{level = 10 : i32, message = "bdq,bdk->bqk"}> : () -> ()
    %cst_260 = arith.constant dense<0.000000e+00> : vector<8x8x8xf32>
    %611 = tpu.matmul %602, %606, %cst_260 {dimension_numbers = #tpu.dot_dimension_numbers<[1], [1], [2], [2], [0, 0, 0, 2, 1, 2], [0], [0]>} : vector<8x8x8xbf16>, vector<8x8x8xbf16>, vector<8x8x8xf32> -> vector<8x8x8xf32>
    "tpu.trace_stop"() : () -> ()
    %cst_261 = arith.constant dense<0xFF800000> : vector<8x8xf32>
    %612 = vector.multi_reduction <maximumf>, %611, %cst_261 [2] : vector<8x8x8xf32> to vector<8x8xf32>
    %613 = vector.shape_cast %612 : vector<8x8xf32> to vector<8x8x1xf32>
    %614 = vector.broadcast %613 : vector<8x8x1xf32> to vector<8x8x8xf32>
    %615 = arith.subf %611, %614 : vector<8x8x8xf32>
    %616 = math.exp %615 : vector<8x8x8xf32>
    %cst_262 = arith.constant dense<0.000000e+00> : vector<8x8xf32>
    %617 = vector.multi_reduction <add>, %616, %cst_262 [2] : vector<8x8x8xf32> to vector<8x8xf32>
    %618 = vector.shape_cast %617 : vector<8x8xf32> to vector<8x8x1xf32>
    %619 = vector.broadcast %618 : vector<8x8x1xf32> to vector<8x8x8xf32>
    %620 = arith.divf %616, %619 : vector<8x8x8xf32>
    %621 = arith.truncf %620 : vector<8x8x8xf32> to vector<8x8x8xbf16>
    "tpu.trace_start"() <{level = 10 : i32, message = "bdk,bqk->bdq"}> : () -> ()
    %cst_263 = arith.constant dense<0.000000e+00> : vector<8x8x8xf32>
    %622 = tpu.matmul %610, %621, %cst_263 {dimension_numbers = #tpu.dot_dimension_numbers<[2], [2], [1], [1], [0, 0, 0, 1, 1, 1], [0], [0]>} : vector<8x8x8xbf16>, vector<8x8x8xbf16>, vector<8x8x8xf32> -> vector<8x8x8xf32>
    "tpu.trace_stop"() : () -> ()
    %623 = vector.shape_cast %622 : vector<8x8x8xf32> to vector<2x32x8xf32>
    %624 = tpu.transpose %623, [0, 2, 1] : vector<2x32x8xf32> -> vector<2x8x32xf32>
    %625 = vector.shape_cast %624 : vector<2x8x32xf32> to vector<16x32xf32>
    %626 = arith.truncf %625 : vector<16x32xf32> to vector<16x32xbf16>
    %cst_264 = arith.constant dense<0.000000e+00> : vector<16x32xf32>
    %627 = tpu.matmul %626, %584, %cst_264 {dimension_numbers = #tpu.dot_dimension_numbers<[1], [0], [0], [1], [0, 0, 1, 1], [], []>} : vector<16x32xbf16>, vector<32x32xbf16>, vector<16x32xf32> -> vector<16x32xf32>
    %628 = vector.broadcast %586 : vector<1x32xf32> to vector<16x32xf32>
    %629 = arith.addf %627, %628 : vector<16x32xf32>
    %630 = arith.addf %574, %629 : vector<16x32xf32>
    %c1_265 = arith.constant 1 : index
    %c1_266 = arith.constant 1 : index
    %c0_267 = arith.constant 0 : index
    %c0_268 = arith.constant 0 : index
    %631 = vector.load %arg27[%c1_265, %c1_266, %c0_267, %c0_268] : memref<2x3x2x32xf32, #tpu.memory_space<vmem>>, vector<1x1x2x32xf32>
    %632 = vector.shape_cast %631 : vector<1x1x2x32xf32> to vector<2x32xf32>
    %633 = vector.extract_strided_slice %632 {offsets = [0, 0], sizes = [1, 32], strides = [1, 1]} : vector<2x32xf32> to vector<1x32xf32>
    %634 = vector.extract_strided_slice %632 {offsets = [1, 0], sizes = [1, 32], strides = [1, 1]} : vector<2x32xf32> to vector<1x32xf32>
    %cst_269 = arith.constant dense<0.000000e+00> : vector<16xf32>
    %635 = vector.multi_reduction <add>, %630, %cst_269 [1] : vector<16x32xf32> to vector<16xf32>
    %636 = vector.shape_cast %635 : vector<16xf32> to vector<16x1xf32>
    %cst_270 = arith.constant 3.200000e+01 : f32
    %637 = vector.broadcast %cst_270 : f32 to vector<16x1xf32>
    %638 = arith.divf %636, %637 : vector<16x1xf32>
    %639 = vector.broadcast %638 : vector<16x1xf32> to vector<16x32xf32>
    %640 = arith.subf %630, %639 : vector<16x32xf32>
    %641 = arith.mulf %640, %640 : vector<16x32xf32>
    %cst_271 = arith.constant dense<0.000000e+00> : vector<16xf32>
    %642 = vector.multi_reduction <add>, %641, %cst_271 [1] : vector<16x32xf32> to vector<16xf32>
    %643 = vector.shape_cast %642 : vector<16xf32> to vector<16x1xf32>
    %cst_272 = arith.constant 3.200000e+01 : f32
    %644 = vector.broadcast %cst_272 : f32 to vector<16x1xf32>
    %645 = arith.divf %643, %644 : vector<16x1xf32>
    %646 = vector.broadcast %638 : vector<16x1xf32> to vector<16x32xf32>
    %647 = arith.subf %630, %646 : vector<16x32xf32>
    %cst_273 = arith.constant 9.99999974E-6 : f32
    %648 = vector.broadcast %cst_273 : f32 to vector<16x1xf32>
    %649 = arith.addf %645, %648 : vector<16x1xf32>
    %650 = math.rsqrt %649 : vector<16x1xf32>
    %651 = vector.broadcast %650 : vector<16x1xf32> to vector<16x32xf32>
    %652 = arith.mulf %647, %651 : vector<16x32xf32>
    %653 = vector.broadcast %633 : vector<1x32xf32> to vector<16x32xf32>
    %654 = arith.mulf %652, %653 : vector<16x32xf32>
    %655 = vector.broadcast %634 : vector<1x32xf32> to vector<16x32xf32>
    %656 = arith.addf %654, %655 : vector<16x32xf32>
    %c1_274 = arith.constant 1 : index
    %c0_275 = arith.constant 0 : index
    %c0_276 = arith.constant 0 : index
    %657 = vector.load %arg23[%c1_274, %c0_275, %c0_276] : memref<2x32x64xbf16, #tpu.memory_space<vmem>>, vector<1x32x64xbf16>
    %658 = vector.shape_cast %657 : vector<1x32x64xbf16> to vector<32x64xbf16>
    %c1_277 = arith.constant 1 : index
    %c0_278 = arith.constant 0 : index
    %c0_279 = arith.constant 0 : index
    %659 = vector.load %arg24[%c1_277, %c0_278, %c0_279] : memref<2x1x64xf32, #tpu.memory_space<vmem>>, vector<1x1x64xf32>
    %660 = vector.shape_cast %659 : vector<1x1x64xf32> to vector<1x64xf32>
    %c1_280 = arith.constant 1 : index
    %c0_281 = arith.constant 0 : index
    %c0_282 = arith.constant 0 : index
    %661 = vector.load %arg25[%c1_280, %c0_281, %c0_282] : memref<2x64x32xbf16, #tpu.memory_space<vmem>>, vector<1x64x32xbf16>
    %662 = vector.shape_cast %661 : vector<1x64x32xbf16> to vector<64x32xbf16>
    %c1_283 = arith.constant 1 : index
    %c0_284 = arith.constant 0 : index
    %c0_285 = arith.constant 0 : index
    %663 = vector.load %arg26[%c1_283, %c0_284, %c0_285] : memref<2x1x32xf32, #tpu.memory_space<vmem>>, vector<1x1x32xf32>
    %664 = vector.shape_cast %663 : vector<1x1x32xf32> to vector<1x32xf32>
    %665 = arith.truncf %656 : vector<16x32xf32> to vector<16x32xbf16>
    %cst_286 = arith.constant dense<0.000000e+00> : vector<16x64xf32>
    %666 = tpu.matmul %665, %658, %cst_286 {dimension_numbers = #tpu.dot_dimension_numbers<[1], [0], [0], [1], [0, 0, 1, 1], [], []>} : vector<16x32xbf16>, vector<32x64xbf16>, vector<16x64xf32> -> vector<16x64xf32>
    %667 = vector.broadcast %660 : vector<1x64xf32> to vector<16x64xf32>
    %668 = arith.addf %666, %667 : vector<16x64xf32>
    %cst_287 = arith.constant 0.000000e+00 : f32
    %669 = vector.broadcast %cst_287 : f32 to vector<16x64xf32>
    %670 = arith.maximumf %668, %669 : vector<16x64xf32>
    %671 = arith.truncf %670 : vector<16x64xf32> to vector<16x64xbf16>
    %cst_288 = arith.constant dense<0.000000e+00> : vector<16x32xf32>
    %672 = tpu.matmul %671, %662, %cst_288 {dimension_numbers = #tpu.dot_dimension_numbers<[1], [0], [0], [1], [0, 0, 1, 1], [], []>} : vector<16x64xbf16>, vector<64x32xbf16>, vector<16x32xf32> -> vector<16x32xf32>
    %673 = vector.broadcast %664 : vector<1x32xf32> to vector<16x32xf32>
    %674 = arith.addf %672, %673 : vector<16x32xf32>
    %675 = arith.addf %656, %674 : vector<16x32xf32>
    %c1_289 = arith.constant 1 : index
    %c2_290 = arith.constant 2 : index
    %c0_291 = arith.constant 0 : index
    %c0_292 = arith.constant 0 : index
    %676 = vector.load %arg27[%c1_289, %c2_290, %c0_291, %c0_292] : memref<2x3x2x32xf32, #tpu.memory_space<vmem>>, vector<1x1x2x32xf32>
    %677 = vector.shape_cast %676 : vector<1x1x2x32xf32> to vector<2x32xf32>
    %678 = vector.extract_strided_slice %677 {offsets = [0, 0], sizes = [1, 32], strides = [1, 1]} : vector<2x32xf32> to vector<1x32xf32>
    %679 = vector.extract_strided_slice %677 {offsets = [1, 0], sizes = [1, 32], strides = [1, 1]} : vector<2x32xf32> to vector<1x32xf32>
    %cst_293 = arith.constant dense<0.000000e+00> : vector<16xf32>
    %680 = vector.multi_reduction <add>, %675, %cst_293 [1] : vector<16x32xf32> to vector<16xf32>
    %681 = vector.shape_cast %680 : vector<16xf32> to vector<16x1xf32>
    %cst_294 = arith.constant 3.200000e+01 : f32
    %682 = vector.broadcast %cst_294 : f32 to vector<16x1xf32>
    %683 = arith.divf %681, %682 : vector<16x1xf32>
    %684 = vector.broadcast %683 : vector<16x1xf32> to vector<16x32xf32>
    %685 = arith.subf %675, %684 : vector<16x32xf32>
    %686 = arith.mulf %685, %685 : vector<16x32xf32>
    %cst_295 = arith.constant dense<0.000000e+00> : vector<16xf32>
    %687 = vector.multi_reduction <add>, %686, %cst_295 [1] : vector<16x32xf32> to vector<16xf32>
    %688 = vector.shape_cast %687 : vector<16xf32> to vector<16x1xf32>
    %cst_296 = arith.constant 3.200000e+01 : f32
    %689 = vector.broadcast %cst_296 : f32 to vector<16x1xf32>
    %690 = arith.divf %688, %689 : vector<16x1xf32>
    %691 = vector.broadcast %683 : vector<16x1xf32> to vector<16x32xf32>
    %692 = arith.subf %675, %691 : vector<16x32xf32>
    %cst_297 = arith.constant 9.99999974E-6 : f32
    %693 = vector.broadcast %cst_297 : f32 to vector<16x1xf32>
    %694 = arith.addf %690, %693 : vector<16x1xf32>
    %695 = math.rsqrt %694 : vector<16x1xf32>
    %696 = vector.broadcast %695 : vector<16x1xf32> to vector<16x32xf32>
    %697 = arith.mulf %692, %696 : vector<16x32xf32>
    %698 = vector.broadcast %678 : vector<1x32xf32> to vector<16x32xf32>
    %699 = arith.mulf %697, %698 : vector<16x32xf32>
    %700 = vector.broadcast %679 : vector<1x32xf32> to vector<16x32xf32>
    %701 = arith.addf %699, %700 : vector<16x32xf32>
    %c1_298 = arith.constant 1 : index
    %c0_299 = arith.constant 0 : index
    %c0_300 = arith.constant 0 : index
    %702 = vector.load %arg28[%c1_298, %c0_299, %c0_300] : memref<2x2x32xf32, #tpu.memory_space<vmem>>, vector<1x2x32xf32>
    %703 = vector.shape_cast %702 : vector<1x2x32xf32> to vector<2x32xf32>
    %704 = vector.extract_strided_slice %703 {offsets = [0, 0], sizes = [1, 32], strides = [1, 1]} : vector<2x32xf32> to vector<1x32xf32>
    %705 = vector.extract_strided_slice %703 {offsets = [1, 0], sizes = [1, 32], strides = [1, 1]} : vector<2x32xf32> to vector<1x32xf32>
    %cst_301 = arith.constant dense<0.000000e+00> : vector<16xf32>
    %706 = vector.multi_reduction <add>, %701, %cst_301 [1] : vector<16x32xf32> to vector<16xf32>
    %707 = vector.shape_cast %706 : vector<16xf32> to vector<16x1xf32>
    %cst_302 = arith.constant 3.200000e+01 : f32
    %708 = vector.broadcast %cst_302 : f32 to vector<16x1xf32>
    %709 = arith.divf %707, %708 : vector<16x1xf32>
    %710 = vector.broadcast %709 : vector<16x1xf32> to vector<16x32xf32>
    %711 = arith.subf %701, %710 : vector<16x32xf32>
    %712 = arith.mulf %711, %711 : vector<16x32xf32>
    %cst_303 = arith.constant dense<0.000000e+00> : vector<16xf32>
    %713 = vector.multi_reduction <add>, %712, %cst_303 [1] : vector<16x32xf32> to vector<16xf32>
    %714 = vector.shape_cast %713 : vector<16xf32> to vector<16x1xf32>
    %cst_304 = arith.constant 3.200000e+01 : f32
    %715 = vector.broadcast %cst_304 : f32 to vector<16x1xf32>
    %716 = arith.divf %714, %715 : vector<16x1xf32>
    %717 = vector.broadcast %709 : vector<16x1xf32> to vector<16x32xf32>
    %718 = arith.subf %701, %717 : vector<16x32xf32>
    %cst_305 = arith.constant 9.99999974E-6 : f32
    %719 = vector.broadcast %cst_305 : f32 to vector<16x1xf32>
    %720 = arith.addf %716, %719 : vector<16x1xf32>
    %721 = math.rsqrt %720 : vector<16x1xf32>
    %722 = vector.broadcast %721 : vector<16x1xf32> to vector<16x32xf32>
    %723 = arith.mulf %718, %722 : vector<16x32xf32>
    %724 = vector.broadcast %704 : vector<1x32xf32> to vector<16x32xf32>
    %725 = arith.mulf %723, %724 : vector<16x32xf32>
    %726 = vector.broadcast %705 : vector<1x32xf32> to vector<16x32xf32>
    %727 = arith.addf %725, %726 : vector<16x32xf32>
    %c0_306 = arith.constant 0 : index
    %c0_307 = arith.constant 0 : index
    %728 = vector.load %arg29[%c0_306, %c0_307] : memref<32x128xbf16, #tpu.memory_space<vmem>>, vector<32x128xbf16>
    %729 = arith.truncf %727 : vector<16x32xf32> to vector<16x32xbf16>
    %cst_308 = arith.constant dense<0.000000e+00> : vector<16x128xf32>
    %730 = tpu.matmul %729, %728, %cst_308 {dimension_numbers = #tpu.dot_dimension_numbers<[1], [0], [0], [1], [0, 0, 1, 1], [], []>} : vector<16x32xbf16>, vector<32x128xbf16>, vector<16x128xf32> -> vector<16x128xf32>
    %c0_309 = arith.constant 0 : index
    %c0_310 = arith.constant 0 : index
    %731 = vector.load %arg30[%c0_309, %c0_310] : memref<1x128xf32, #tpu.memory_space<vmem>>, vector<1x128xf32>
    %732 = vector.broadcast %731 : vector<1x128xf32> to vector<16x128xf32>
    %733 = arith.addf %730, %732 : vector<16x128xf32>
    %c0_311 = arith.constant 0 : index
    %c0_312 = arith.constant 0 : index
    %734 = vector.load %arg31[%c0_311, %c0_312] : memref<16x128xf32, #tpu.memory_space<vmem>>, vector<16x128xf32>
    tpu.vector_store %arg31[%c0_311, %c0_312], %733 {strides = array<i32>} : memref<16x128xf32, #tpu.memory_space<vmem>>, vector<16x128xf32>,
    return
  }
}

</mosaic_0001>

<llo_original>
// kernel: transformer_forward.1
$region0: #{transformer_forward.1}
  #allocation0 [shape = 'u32[]', space=smem, size = 0x4, offset = 0x4, fixed_abs, tag = 'smem constant byte address 0x4 - core index']
  #allocation1 [shape = 'u32[144,128]{1,0:T(1,128)}', space=vmem, size = 0x12000, scoped, tag = 'internal scratch']
  %s0 = inlined_call_operand.smem [shape: u32[32], index: -1, kind: input, shape index: {}]
  %s1 = sld [smem:[%s0]]
  %s2 = scalar_lea.smem %s0, 1
  %s3 = sld [smem:[%s2]]
  %s4 = scalar_lea.smem %s0, 2
  %s5 = sld [smem:[%s4]]
  %s6 = scalar_lea.smem %s0, 3
  %s7 = sld [smem:[%s6]]
  %s8 = scalar_lea.smem %s0, 4
  %s9 = sld [smem:[%s8]]
  %s10 = scalar_lea.smem %s0, 5
  %s11 = sld [smem:[%s10]]
  %s12 = scalar_lea.smem %s0, 6
  %s13 = sld [smem:[%s12]]
  %s14 = scalar_lea.smem %s0, 7
  %s15 = sld [smem:[%s14]]
  %s16 = scalar_lea.smem %s0, 8
  %s17 = sld [smem:[%s16]]
  %s18 = scalar_lea.smem %s0, 9
  %s19 = sld [smem:[%s18]]
  %s20 = scalar_lea.smem %s0, 10
  %s21 = sld [smem:[%s20]]
  %s22 = scalar_lea.smem %s0, 11
  %s23 = sld [smem:[%s22]]
  %s24 = scalar_lea.smem %s0, 12
  %s25 = sld [smem:[%s24]]
  %s26 = scalar_lea.smem %s0, 13
  %s27 = sld [smem:[%s26]]
  %s28 = scalar_lea.smem %s0, 14
  %s29 = sld [smem:[%s28]]
  %s30 = scalar_lea.smem %s0, 15
  %s31 = sld [smem:[%s30]]
  %s32 = scalar_lea.smem %s0, 16
  %s33 = sld [smem:[%s32]]
  %s34 = scalar_lea.smem %s0, 17
  %s35 = sld [smem:[%s34]]
  %s36 = scalar_lea.smem %s0, 18
  %s37 = sld [smem:[%s36]]
  %s38 = scalar_lea.smem %s0, 19
  %s39 = sld [smem:[%s38]]
  %s40 = scalar_lea.smem %s0, 20
  %s41 = sld [smem:[%s40]]
  %s42 = scalar_lea.smem %s0, 21
  %s43 = sld [smem:[%s42]]
  %s44 = scalar_lea.smem %s0, 22
  %s45 = sld [smem:[%s44]]
  %s46 = scalar_lea.smem %s0, 23
  %s47 = sld [smem:[%s46]]
  %s48 = scalar_lea.smem %s0, 24
  %s49 = sld [smem:[%s48]]
  %s50 = scalar_lea.smem %s0, 25
  %s51 = sld [smem:[%s50]]
  %s52 = scalar_lea.smem %s0, 26
  %s53 = sld [smem:[%s52]]
  %s54 = scalar_lea.smem %s0, 27
  %s55 = sld [smem:[%s54]]
  %s56 = scalar_lea.smem %s0, 28
  %s57 = sld [smem:[%s56]]
  %s58 = scalar_lea.smem %s0, 29
  %s59 = sld [smem:[%s58]]
  %s60 = scalar_lea.smem %s0, 30
  %s61 = sld [smem:[%s60]]
  %s62 = scalar_lea.smem %s0, 31
  %s63 = sld [smem:[%s62]]
  %s64 = sld [smem:[#allocation0]]
  $region186: #{transformer_forward.1} parent=0
    _
  %s66 = ssub.s32 1, %s64
  %s67 = scalar_select 0, %s66, %s64
  $region1: #{transformer_forward.1} parent=0
    #allocation2 [shape = 'u8[1024]{0}', space=vmem, size = 0x400, scoped, tag = 'input window, operand 7, single buffered']
    #allocation3 [shape = 's32[1]{0}', space=sflag, size = 0x4, scoped, tag = 'scoped memory for transformer_forward.1']
    #allocation4 [shape = 'u8[1024]{0}', space=vmem, size = 0x400, scoped, tag = 'input window, operand 9, single buffered']
    #allocation5 [shape = 's32[1]{0}', space=sflag, size = 0x4, scoped, tag = 'scoped memory for transformer_forward.1']
    #allocation6 [shape = 'u8[1024]{0}', space=vmem, size = 0x400, scoped, tag = 'input window, operand 11, single buffered']
    #allocation7 [shape = 'u8[4096]{0}', space=vmem, size = 0x1000, scoped, tag = 'input window, operand 12, single buffered']
    #allocation8 [shape = 's32[1]{0}', space=sflag, size = 0x4, scoped, tag = 'scoped memory for transformer_forward.1']
    #allocation9 [shape = 'u8[1024]{0}', space=vmem, size = 0x400, scoped, tag = 'input window, operand 14, single buffered']
    #allocation10 [shape = 'u8[1024]{0}', space=vmem, size = 0x400, scoped, tag = 'input window, operand 16, single buffered']
    #allocation11 [shape = 's32[1]{0}', space=sflag, size = 0x4, scoped, tag = 'scoped memory for transformer_forward.1']
    #allocation12 [shape = 'u8[1024]{0}', space=vmem, size = 0x400, scoped, tag = 'input window, operand 18, single buffered']
    #allocation13 [shape = 'u8[1024]{0}', space=vmem, size = 0x400, scoped, tag = 'input window, operand 20, single buffered']
    #allocation14 [shape = 's32[1]{0}', space=sflag, size = 0x4, scoped, tag = 'scoped memory for transformer_forward.1']
    #allocation15 [shape = 'u8[16384]{0}', space=vmem, size = 0x4000, scoped, tag = 'input window, operand 21, single buffered']
    #allocation16 [shape = 'u8[1024]{0}', space=vmem, size = 0x400, scoped, tag = 'input window, operand 22, single buffered']
    #allocation17 [shape = 's32[1]{0}', space=sflag, size = 0x4, scoped, tag = 'scoped memory for transformer_forward.1']
    #allocation18 [shape = 'u8[1024]{0}', space=vmem, size = 0x400, scoped, tag = 'input window, operand 24, single buffered']
    #allocation19 [shape = 'u8[1024]{0}', space=vmem, size = 0x400, scoped, tag = 'input window, operand 26, single buffered']
    #allocation20 [shape = 's32[1]{0}', space=sflag, size = 0x4, scoped, tag = 'scoped memory for transformer_forward.1']
    #allocation21 [shape = 'u8[6144]{0}', space=vmem, size = 0x1800, scoped, tag = 'input window, operand 27, single buffered']
    %68 = vsyncpa [#allocation3], 0
    %69 = vsyncpa [#allocation5], 0
    %70 = vsyncpa [#allocation8], 0
    %71 = vsyncpa [#allocation11], 0
    %72 = vsyncpa [#allocation14], 0
    %73 = vsyncpa [#allocation17], 0
    %74 = vsyncpa [#allocation20], 0
    // Predicated region
    $region2: #{transformer_forward.1} parent=1 // pred_check
      _
    $region3: #{transformer_forward.1} parent=1 // pred_check_branch
      %76 = sbr.rel (0) target = $region5
    $region4: #{transformer_forward.1} parent=1 // pred_region
      _
    $region5: #{transformer_forward.1} parent=1 // pred_fallthru
      _
    // Predicated region
    $region6: #{transformer_forward.1} parent=1 // pred_check
      _
    $region7: #{transformer_forward.1} parent=1 // pred_check_branch
      %78 = sbr.rel (0) target = $region9
    $region8: #{transformer_forward.1} parent=1 // pred_region
      _
    $region9: #{transformer_forward.1} parent=1 // pred_fallthru
      _
    // Predicated region
    $region10: #{transformer_forward.1} parent=1 // pred_check
      _
    $region11: #{transformer_forward.1} parent=1 // pred_check_branch
      %80 = sbr.rel (0) target = $region13
    $region12: #{transformer_forward.1} parent=1 // pred_region
      _
    $region13: #{transformer_forward.1} parent=1 // pred_fallthru
      _
    // Predicated region
    $region14: #{transformer_forward.1} parent=1 // pred_check
      _
    $region15: #{transformer_forward.1} parent=1 // pred_check_branch
      %82 = sbr.rel (0) target = $region17
    $region16: #{transformer_forward.1} parent=1 // pred_region
      _
    $region17: #{transformer_forward.1} parent=1 // pred_fallthru
      _
    // Predicated region
    $region18: #{transformer_forward.1} parent=1 // pred_check
      _
    $region19: #{transformer_forward.1} parent=1 // pred_check_branch
      %84 = sbr.rel (0) target = $region21
    $region20: #{transformer_forward.1} parent=1 // pred_region
      _
    $region21: #{transformer_forward.1} parent=1 // pred_fallthru
      _
    // Predicated region
    $region22: #{transformer_forward.1} parent=1 // pred_check
      _
    $region23: #{transformer_forward.1} parent=1 // pred_check_branch
      %86 = sbr.rel (0) target = $region25
    $region24: #{transformer_forward.1} parent=1 // pred_region
      _
    $region25: #{transformer_forward.1} parent=1 // pred_fallthru
      _
    // Predicated region
    $region26: #{transformer_forward.1} parent=1 // pred_check
      _
    $region27: #{transformer_forward.1} parent=1 // pred_check_branch
      %88 = sbr.rel (0) target = $region29
    $region28: #{transformer_forward.1} parent=1 // pred_region
      _
    $region29: #{transformer_forward.1} parent=1 // pred_fallthru
      _
    // Predicated region
    $region30: #{transformer_forward.1} parent=1 // pred_check
      _
    $region31: #{transformer_forward.1} parent=1 // pred_check_branch
      %90 = sbr.rel (0) target = $region33
    $region32: #{transformer_forward.1} parent=1 // pred_region
      %s92 = ssub.s32 32, 32
      %93 = vsyncadd [#allocation3], %s92
      %s94 = sshll.u32 [#allocation2], 4
      %s95 = int_to_ptr.vmem [resolvable:$true] %s94
      %100 = dma.hbm_to_vmem [thread:$0]  %s15, 32, %s95, [#allocation3], 16, 16, 1
    $region33: #{transformer_forward.1} parent=1 // pred_fallthru
      _
    // Predicated region
    $region34: #{transformer_forward.1} parent=1 // pred_check
      _
    $region35: #{transformer_forward.1} parent=1 // pred_check_branch
      %102 = sbr.rel (0) target = $region37
    $region36: #{transformer_forward.1} parent=1 // pred_region
      _
    $region37: #{transformer_forward.1} parent=1 // pred_fallthru
      _
    // Predicated region
    $region38: #{transformer_forward.1} parent=1 // pred_check
      _
    $region39: #{transformer_forward.1} parent=1 // pred_check_branch
      %104 = sbr.rel (0) target = $region41
    $region40: #{transformer_forward.1} parent=1 // pred_region
      %s106 = ssub.s32 32, 32
      %107 = vsyncadd [#allocation5], %s106
      %s108 = sshll.u32 [#allocation4], 4
      %s109 = int_to_ptr.vmem [resolvable:$true] %s108
      %114 = dma.hbm_to_vmem [thread:$0]  %s19, 32, %s109, [#allocation5], 16, 16, 1
    $region41: #{transformer_forward.1} parent=1 // pred_fallthru
      _
    // Predicated region
    $region42: #{transformer_forward.1} parent=1 // pred_check
      _
    $region43: #{transformer_forward.1} parent=1 // pred_check_branch
      %116 = sbr.rel (0) target = $region45
    $region44: #{transformer_forward.1} parent=1 // pred_region
      _
    $region45: #{transformer_forward.1} parent=1 // pred_fallthru
      _
    // Predicated region
    $region46: #{transformer_forward.1} parent=1 // pred_check
      _
    $region47: #{transformer_forward.1} parent=1 // pred_check_branch
      %118 = sbr.rel (0) target = $region49
    $region48: #{transformer_forward.1} parent=1 // pred_region
      %s120 = ssub.s32 32, 32
      %121 = vsyncadd [#allocation5], %s120
      %s122 = sshll.u32 [#allocation6], 4
      %s123 = int_to_ptr.vmem [resolvable:$true] %s122
      %128 = dma.hbm_to_vmem [thread:$0]  %s23, 32, %s123, [#allocation5], 16, 16, 1
    $region49: #{transformer_forward.1} parent=1 // pred_fallthru
      _
    // Predicated region
    $region50: #{transformer_forward.1} parent=1 // pred_check
      _
    $region51: #{transformer_forward.1} parent=1 // pred_check_branch
      %130 = sbr.rel (0) target = $region53
    $region52: #{transformer_forward.1} parent=1 // pred_region
      %s132 = ssub.s32 128, 128
      %133 = vsyncadd [#allocation8], %s132
      %s134 = sshll.u32 [#allocation7], 4
      %s135 = int_to_ptr.vmem [resolvable:$true] %s134
      %140 = dma.hbm_to_vmem [thread:$0]  %s25, 128, %s135, [#allocation8], 32, 32, 2
    $region53: #{transformer_forward.1} parent=1 // pred_fallthru
      _
    // Predicated region
    $region54: #{transformer_forward.1} parent=1 // pred_check
      _
    $region55: #{transformer_forward.1} parent=1 // pred_check_branch
      %142 = sbr.rel (0) target = $region57
    $region56: #{transformer_forward.1} parent=1 // pred_region
      _
    $region57: #{transformer_forward.1} parent=1 // pred_fallthru
      _
    // Predicated region
    $region58: #{transformer_forward.1} parent=1 // pred_check
      _
    $region59: #{transformer_forward.1} parent=1 // pred_check_branch
      %144 = sbr.rel (0) target = $region61
    $region60: #{transformer_forward.1} parent=1 // pred_region
      %s146 = ssub.s32 32, 32
      %147 = vsyncadd [#allocation8], %s146
      %s148 = sshll.u32 [#allocation9], 4
      %s149 = int_to_ptr.vmem [resolvable:$true] %s148
      %154 = dma.hbm_to_vmem [thread:$0]  %s29, 32, %s149, [#allocation8], 16, 16, 1
    $region61: #{transformer_forward.1} parent=1 // pred_fallthru
      _
    // Predicated region
    $region62: #{transformer_forward.1} parent=1 // pred_check
      _
    $region63: #{transformer_forward.1} parent=1 // pred_check_branch
      %156 = sbr.rel (0) target = $region65
    $region64: #{transformer_forward.1} parent=1 // pred_region
      _
    $region65: #{transformer_forward.1} parent=1 // pred_fallthru
      _
    // Predicated region
    $region66: #{transformer_forward.1} parent=1 // pred_check
      _
    $region67: #{transformer_forward.1} parent=1 // pred_check_branch
      %158 = sbr.rel (0) target = $region69
    $region68: #{transformer_forward.1} parent=1 // pred_region
      %s160 = ssub.s32 32, 32
      %161 = vsyncadd [#allocation11], %s160
      %s162 = sshll.u32 [#allocation10], 4
      %s163 = int_to_ptr.vmem [resolvable:$true] %s162
      %168 = dma.hbm_to_vmem [thread:$0]  %s33, 32, %s163, [#allocation11], 16, 16, 1
    $region69: #{transformer_forward.1} parent=1 // pred_fallthru
      _
    // Predicated region
    $region70: #{transformer_forward.1} parent=1 // pred_check
      _
    $region71: #{transformer_forward.1} parent=1 // pred_check_branch
      %170 = sbr.rel (0) target = $region73
    $region72: #{transformer_forward.1} parent=1 // pred_region
      _
    $region73: #{transformer_forward.1} parent=1 // pred_fallthru
      _
    // Predicated region
    $region74: #{transformer_forward.1} parent=1 // pred_check
      _
    $region75: #{transformer_forward.1} parent=1 // pred_check_branch
      %172 = sbr.rel (0) target = $region77
    $region76: #{transformer_forward.1} parent=1 // pred_region
      %s174 = ssub.s32 32, 32
      %175 = vsyncadd [#allocation11], %s174
      %s176 = sshll.u32 [#allocation12], 4
      %s177 = int_to_ptr.vmem [resolvable:$true] %s176
      %182 = dma.hbm_to_vmem [thread:$0]  %s37, 32, %s177, [#allocation11], 16, 16, 1
    $region77: #{transformer_forward.1} parent=1 // pred_fallthru
      _
    // Predicated region
    $region78: #{transformer_forward.1} parent=1 // pred_check
      _
    $region79: #{transformer_forward.1} parent=1 // pred_check_branch
      %184 = sbr.rel (0) target = $region81
    $region80: #{transformer_forward.1} parent=1 // pred_region
      _
    $region81: #{transformer_forward.1} parent=1 // pred_fallthru
      _
    // Predicated region
    $region82: #{transformer_forward.1} parent=1 // pred_check
      _
    $region83: #{transformer_forward.1} parent=1 // pred_check_branch
      %186 = sbr.rel (0) target = $region85
    $region84: #{transformer_forward.1} parent=1 // pred_region
      %s188 = ssub.s32 32, 32
      %189 = vsyncadd [#allocation14], %s188
      %s190 = sshll.u32 [#allocation13], 4
      %s191 = int_to_ptr.vmem [resolvable:$true] %s190
      %196 = dma.hbm_to_vmem [thread:$0]  %s41, 32, %s191, [#allocation14], 16, 16, 1
    $region85: #{transformer_forward.1} parent=1 // pred_fallthru
      _
    // Predicated region
    $region86: #{transformer_forward.1} parent=1 // pred_check
      _
    $region87: #{transformer_forward.1} parent=1 // pred_check_branch
      %198 = sbr.rel (0) target = $region89
    $region88: #{transformer_forward.1} parent=1 // pred_region
      %s200 = ssub.s32 512, 512
      %201 = vsyncadd [#allocation14], %s200
      %s202 = sshll.u32 [#allocation15], 4
      %s203 = int_to_ptr.vmem [resolvable:$true] %s202
      %208 = dma.hbm_to_vmem [thread:$0]  %s43, 512, %s203, [#allocation14], 64, 64, 4
    $region89: #{transformer_forward.1} parent=1 // pred_fallthru
      _
    // Predicated region
    $region90: #{transformer_forward.1} parent=1 // pred_check
      _
    $region91: #{transformer_forward.1} parent=1 // pred_check_branch
      %210 = sbr.rel (0) target = $region93
    $region92: #{transformer_forward.1} parent=1 // pred_region
      %s212 = ssub.s32 32, 32
      %213 = vsyncadd [#allocation17], %s212
      %s214 = sshll.u32 [#allocation16], 4
      %s215 = int_to_ptr.vmem [resolvable:$true] %s214
      %220 = dma.hbm_to_vmem [thread:$0]  %s45, 32, %s215, [#allocation17], 16, 16, 1
    $region93: #{transformer_forward.1} parent=1 // pred_fallthru
      _
    // Predicated region
    $region94: #{transformer_forward.1} parent=1 // pred_check
      _
    $region95: #{transformer_forward.1} parent=1 // pred_check_branch
      %222 = sbr.rel (0) target = $region97
    $region96: #{transformer_forward.1} parent=1 // pred_region
      _
    $region97: #{transformer_forward.1} parent=1 // pred_fallthru
      _
    // Predicated region
    $region98: #{transformer_forward.1} parent=1 // pred_check
      _
    $region99: #{transformer_forward.1} parent=1 // pred_check_branch
      %224 = sbr.rel (0) target = $region101
    $region100: #{transformer_forward.1} parent=1 // pred_region
      %s226 = ssub.s32 32, 32
      %227 = vsyncadd [#allocation17], %s226
      %s228 = sshll.u32 [#allocation18], 4
      %s229 = int_to_ptr.vmem [resolvable:$true] %s228
      %234 = dma.hbm_to_vmem [thread:$0]  %s49, 32, %s229, [#allocation17], 16, 16, 1
    $region101: #{transformer_forward.1} parent=1 // pred_fallthru
      _
    // Predicated region
    $region102: #{transformer_forward.1} parent=1 // pred_check
      _
    $region103: #{transformer_forward.1} parent=1 // pred_check_branch
      %236 = sbr.rel (0) target = $region105
    $region104: #{transformer_forward.1} parent=1 // pred_region
      _
    $region105: #{transformer_forward.1} parent=1 // pred_fallthru
      _
    // Predicated region
    $region106: #{transformer_forward.1} parent=1 // pred_check
      _
    $region107: #{transformer_forward.1} parent=1 // pred_check_branch
      %238 = sbr.rel (0) target = $region109
    $region108: #{transformer_forward.1} parent=1 // pred_region
      %s240 = ssub.s32 32, 32
      %241 = vsyncadd [#allocation20], %s240
      %s242 = sshll.u32 [#allocation19], 4
      %s243 = int_to_ptr.vmem [resolvable:$true] %s242
      %248 = dma.hbm_to_vmem [thread:$0]  %s53, 32, %s243, [#allocation20], 16, 16, 1
    $region109: #{transformer_forward.1} parent=1 // pred_fallthru
      _
    // Predicated region
    $region110: #{transformer_forward.1} parent=1 // pred_check
      _
    $region111: #{transformer_forward.1} parent=1 // pred_check_branch
      %250 = sbr.rel (0) target = $region113
    $region112: #{transformer_forward.1} parent=1 // pred_region
      %s252 = ssub.s32 192, 192
      %253 = vsyncadd [#allocation20], %s252
      %s254 = sshll.u32 [#allocation21], 4
      %s255 = int_to_ptr.vmem [resolvable:$true] %s254
      %260 = dma.hbm_to_vmem [thread:$0]  %s55, 192, %s255, [#allocation20], 32, 32, 2
    $region113: #{transformer_forward.1} parent=1 // pred_fallthru
      _
    // Predicated region
    $region114: #{transformer_forward.1} parent=1 // pred_check
      _
    $region115: #{transformer_forward.1} parent=1 // pred_check_branch
      %262 = sbr.rel (0) target = $region117
    $region116: #{transformer_forward.1} parent=1 // pred_region
      _
    $region117: #{transformer_forward.1} parent=1 // pred_fallthru
      _
    // Predicated region
    $region118: #{transformer_forward.1} parent=1 // pred_check
      _
    $region119: #{transformer_forward.1} parent=1 // pred_check_branch
      %264 = sbr.rel (0) target = $region121
    $region120: #{transformer_forward.1} parent=1 // pred_region
      _
    $region121: #{transformer_forward.1} parent=1 // pred_fallthru
      _
    // Predicated region
    $region122: #{transformer_forward.1} parent=1 // pred_check
      _
    $region123: #{transformer_forward.1} parent=1 // pred_check_branch
      %266 = sbr.rel (0) target = $region125
    $region124: #{transformer_forward.1} parent=1 // pred_region
      _
    $region125: #{transformer_forward.1} parent=1 // pred_fallthru
      _
    // Predicated region
    $region126: #{transformer_forward.1} parent=1 // pred_check
      _
    $region127: #{transformer_forward.1} parent=1 // pred_check_branch
      %268 = sbr.rel (0) target = $region129
    $region128: #{transformer_forward.1} parent=1 // pred_region
      %269 = dma.done [#allocation3], 32
    $region129: #{transformer_forward.1} parent=1 // pred_fallthru
      _
    // Predicated region
    $region130: #{transformer_forward.1} parent=1 // pred_check
      _
    $region131: #{transformer_forward.1} parent=1 // pred_check_branch
      %271 = sbr.rel (0) target = $region133
    $region132: #{transformer_forward.1} parent=1 // pred_region
      %272 = dma.done [#allocation5], 32
    $region133: #{transformer_forward.1} parent=1 // pred_fallthru
      _
    // Predicated region
    $region134: #{transformer_forward.1} parent=1 // pred_check
      _
    $region135: #{transformer_forward.1} parent=1 // pred_check_branch
      %274 = sbr.rel (0) target = $region137
    $region136: #{transformer_forward.1} parent=1 // pred_region
      %275 = dma.done [#allocation5], 32
    $region137: #{transformer_forward.1} parent=1 // pred_fallthru
      _
    // Predicated region
    $region138: #{transformer_forward.1} parent=1 // pred_check
      _
    $region139: #{transformer_forward.1} parent=1 // pred_check_branch
      %277 = sbr.rel (0) target = $region141
    $region140: #{transformer_forward.1} parent=1 // pred_region
      %278 = dma.done [#allocation8], 128
    $region141: #{transformer_forward.1} parent=1 // pred_fallthru
      _
    // Predicated region
    $region142: #{transformer_forward.1} parent=1 // pred_check
      _
    $region143: #{transformer_forward.1} parent=1 // pred_check_branch
      %280 = sbr.rel (0) target = $region145
    $region144: #{transformer_forward.1} parent=1 // pred_region
      %281 = dma.done [#allocation8], 32
    $region145: #{transformer_forward.1} parent=1 // pred_fallthru
      _
    // Predicated region
    $region146: #{transformer_forward.1} parent=1 // pred_check
      _
    $region147: #{transformer_forward.1} parent=1 // pred_check_branch
      %283 = sbr.rel (0) target = $region149
    $region148: #{transformer_forward.1} parent=1 // pred_region
      %284 = dma.done [#allocation11], 32
    $region149: #{transformer_forward.1} parent=1 // pred_fallthru
      _
    // Predicated region
    $region150: #{transformer_forward.1} parent=1 // pred_check
      _
    $region151: #{transformer_forward.1} parent=1 // pred_check_branch
      %286 = sbr.rel (0) target = $region153
    $region152: #{transformer_forward.1} parent=1 // pred_region
      %287 = dma.done [#allocation11], 32
    $region153: #{transformer_forward.1} parent=1 // pred_fallthru
      _
    // Predicated region
    $region154: #{transformer_forward.1} parent=1 // pred_check
      _
    $region155: #{transformer_forward.1} parent=1 // pred_check_branch
      %289 = sbr.rel (0) target = $region157
    $region156: #{transformer_forward.1} parent=1 // pred_region
      %290 = dma.done [#allocation14], 32
    $region157: #{transformer_forward.1} parent=1 // pred_fallthru
      _
    // Predicated region
    $region158: #{transformer_forward.1} parent=1 // pred_check
      _
    $region159: #{transformer_forward.1} parent=1 // pred_check_branch
      %292 = sbr.rel (0) target = $region161
    $region160: #{transformer_forward.1} parent=1 // pred_region
      %293 = dma.done [#allocation14], 512
    $region161: #{transformer_forward.1} parent=1 // pred_fallthru
      _
    // Predicated region
    $region162: #{transformer_forward.1} parent=1 // pred_check
      _
    $region163: #{transformer_forward.1} parent=1 // pred_check_branch
      %295 = sbr.rel (0) target = $region165
    $region164: #{transformer_forward.1} parent=1 // pred_region
      %296 = dma.done [#allocation17], 32
    $region165: #{transformer_forward.1} parent=1 // pred_fallthru
      _
    // Predicated region
    $region166: #{transformer_forward.1} parent=1 // pred_check
      _
    $region167: #{transformer_forward.1} parent=1 // pred_check_branch
      %298 = sbr.rel (0) target = $region169
    $region168: #{transformer_forward.1} parent=1 // pred_region
      %299 = dma.done [#allocation17], 32
    $region169: #{transformer_forward.1} parent=1 // pred_fallthru
      _
    // Predicated region
    $region170: #{transformer_forward.1} parent=1 // pred_check
      _
    $region171: #{transformer_forward.1} parent=1 // pred_check_branch
      %301 = sbr.rel (0) target = $region173
    $region172: #{transformer_forward.1} parent=1 // pred_region
      %302 = dma.done [#allocation20], 32
    $region173: #{transformer_forward.1} parent=1 // pred_fallthru
      _
    // Predicated region
    $region174: #{transformer_forward.1} parent=1 // pred_check
      _
    $region175: #{transformer_forward.1} parent=1 // pred_check_branch
      %304 = sbr.rel (0) target = $region177
    $region176: #{transformer_forward.1} parent=1 // pred_region
      %305 = dma.done [#allocation20], 192
    $region177: #{transformer_forward.1} parent=1 // pred_fallthru
      _
    %v307 = vld [vmem:[%s1] sm:$0xff]
    %v308 = vld [vmem:[%s1 + $0x8] sm:$0xff]
    %v309 = vlaneseq
    %v310 = vand.u32 %v309, 127
    %311 = vset.pattern.permute.xlu0 0
    %312 = vperm.xlu0 %311, %v307
    %v313 = vpop.permute.xlu0 %312
    %314 = vset.pattern.permute.xlu0 0
    %315 = vperm.xlu0 %314, %v308
    %v316 = vpop.permute.xlu0 %315
    %vm317 = vcmp.eq.s32.totalorder %v313, %v310
    %vm318 = vcmp.eq.s32.totalorder %v316, %v310
    %v319 = vsel %vm317, 1, 0
    %v320 = vsel %vm318, 1, 0
    %v321 = vcvt.s32.f32 %v319
    %v322 = vcvt.s32.f32 %v320
    %v323 = vld [vmem:[%s5] sm:$0xff]
    %v324 = vld [vmem:[%s5 + $0x8] sm:$0xff]
    %v325 = vld [vmem:[%s5 + $0x10] sm:$0xf]
    %vm326 = vcmask 162816
    %v328 = vsel %vm326, %v321, 0
    %v331 = vsel %vm326, %v322, 0
    %vm333 = vcmask 1043456
    %v335 = vsel %vm333, %v325, 0
    %337 = vmatprep.subr.mxu0 0.0
    %338 = vmatpush1.msra.mxu0 %v323
    %339 = vmatprep.subr.mxu0 0.0
    %340 = vmatpush1.msra.mxu0 %v324
    %341 = vmatprep.subr.mxu0 0.0
    %342 = vmatpush1.msra.mxu0 %v335
    %343 = vmatprep.subr.mxu0 0.0
    %344 = vmatpush1.msra.mxu0 0.0
    %345 = vmatprep.subr.mxu0 0.0
    %346 = vmatpush1.msra.mxu0 0.0
    %347 = vmatprep.subr.mxu0 0.0
    %348 = vmatpush1.msra.mxu0 0.0
    %349 = vmatprep.subr.mxu0 0.0
    %350 = vmatpush1.msra.mxu0 0.0
    %351 = vmatprep.subr.mxu0 0.0
    %352 = vmatpush1.msra.mxu0 0.0
    %353 = vmatprep.subr.mxu0 0.0
    %354 = vmatpush1.msra.mxu0 0.0
    %355 = vmatprep.subr.mxu0 0.0
    %356 = vmatpush1.msra.mxu0 0.0
    %357 = vmatprep.subr.mxu0 0.0
    %358 = vmatpush1.msra.mxu0 0.0
    %359 = vmatprep.subr.mxu0 0.0
    %360 = vmatpush1.msra.mxu0 0.0
    %361 = vmatprep.subr.mxu0 0.0
    %362 = vmatpush1.msra.mxu0 0.0
    %363 = vmatprep.subr.mxu0 0.0
    %364 = vmatpush1.msra.mxu0 0.0
    %365 = vmatprep.subr.mxu0 0.0
    %366 = vmatpush1.msra.mxu0 0.0
    %367 = vmatprep.subr.mxu0 0.0
    %368 = vmatpush1.msra.mxu0 0.0
    %369 = vmatprep.subr.mxu0 0.0
    %370 = vmatpush1.msra.mxu0 0.0
    %371 = vmatprep.subr.mxu0 0.0
    %372 = vmatpush1.msra.mxu0 0.0
    %373 = vmatprep.subr.mxu0 0.0
    %374 = vmatpush1.msra.mxu0 0.0
    %375 = vmatprep.subr.mxu0 0.0
    %376 = vmatpush1.msra.mxu0 0.0
    %377 = vmatprep.subr.mxu0 0.0
    %378 = vmatpush1.msra.mxu0 0.0
    %379 = vmatprep.subr.mxu0 0.0
    %380 = vmatpush1.msra.mxu0 0.0
    %381 = vmatprep.subr.mxu0 0.0
    %382 = vmatpush1.msra.mxu0 0.0
    %383 = vmatprep.subr.mxu0 0.0
    %384 = vmatpush1.msra.mxu0 0.0
    %385 = vmatprep.subr.mxu0 0.0
    %386 = vmatpush1.msra.mxu0 0.0
    %387 = vmatprep.subr.mxu0 0.0
    %388 = vmatpush1.msra.mxu0 0.0
    %389 = vmatprep.subr.mxu0 0.0
    %390 = vmatpush1.msra.mxu0 0.0
    %391 = vmatprep.subr.mxu0 0.0
    %392 = vmatpush1.msra.mxu0 0.0
    %393 = vmatprep.subr.mxu0 0.0
    %394 = vmatpush1.msra.mxu0 0.0
    %395 = vmatprep.subr.mxu0 0.0
    %396 = vmatpush1.msra.mxu0 0.0
    %397 = vmatprep.subr.mxu0 0.0
    %398 = vmatpush1.msra.mxu0 0.0
    %399 = vmatprep.subr.mxu0 0.0
    %400 = vmatpush1.msra.mxu0 0.0
    %401 = vmatprep.mubr.f32.mxu0 0.0
    %402 = vmatmul.mubr.f32.gmra.mrb[0].mxu0 %v328
    %v403 = vpop.f32.mrb[0].mxu0
    %v404 = vadd.f32 0.0, %v403
    %v405 = vpop.f32.mrb[0].mxu0
    %406 = vmatprep.mubr.f32.mxu0 0.0
    %407 = vmatmul.mubr.f32.gmra.mrb[0].mxu0 %v331
    %v408 = vpop.f32.mrb[0].mxu0
    %v409 = vadd.f32 0.0, %v408
    %v410 = vpop.f32.mrb[0].mxu0
    %411 = vdwg.mxu0
    %v412 = vmul.f32 %v404, 5.656854
    %v413 = vmul.f32 %v409, 5.656854
    %v414 = vld [vmem:[%s7] sm:$0xff]
    %v415 = vadd.f32 %v412, %v414
    %v416 = vadd.f32 %v413, %v414
    %v417 = vld [vmem:[%s9] sm:$0xf]
    %v418 = vld [vmem:[%s9 + $0x4] sm:$0xf]
    %v419 = vld [vmem:[%s9 + $0x8] sm:$0xf]
    %v420 = vld [vmem:[%s9 + $0xc] sm:$0xf]
    %v421 = vld [vmem:[%s11] sm:$0x1]
    %v422 = vld [vmem:[%s13] sm:$0xf]
    %v423 = vld [vmem:[%s13 + $0x4] sm:$0xf]
    %v424 = vld [vmem:[%s13 + $0x8] sm:$0xf]
    %v425 = vld [vmem:[%s13 + $0xc] sm:$0xf]
    %v426 = vld [vmem:[#allocation2] sm:$0x1]
    %v427 = vpack.c.bf16 %v416, %v415
    %v429 = vlaneseq
    %v430 = vshrl.u32 %v429, 7
    %v431 = vsub.s32 0, %v430
    %v432 = vrot.slane %v421, %v431
    %v438 = vunpack.c.l.b16 %v417
    %v439 = vunpack.c.l.b16 %v418
    %v440 = vunpack.c.l.b16 %v419
    %v441 = vunpack.c.l.b16 %v420
    %v442 = vpack.c.b16 %v439, %v438
    %v443 = vpack.c.b16 %v441, %v440
    %vm446 = vcmask 261120
    %v448 = vsel %vm446, %v427, 0
    %450 = vmatprep.subr.bf16.mxu0 0
    %451 = vmatpush1.bf16.msra.mxu0 %v442
    %452 = vmatprep.subr.bf16.mxu0 0
    %453 = vmatpush1.bf16.msra.mxu0 %v443
    %454 = vmatprep.subr.bf16.mxu0 0
    %455 = vmatpush1.bf16.msra.mxu0 0
    %456 = vmatprep.subr.bf16.mxu0 0
    %457 = vmatpush1.bf16.msra.mxu0 0
    %458 = vmatprep.subr.bf16.mxu0 0
    %459 = vmatpush1.bf16.msra.mxu0 0
    %460 = vmatprep.subr.bf16.mxu0 0
    %461 = vmatpush1.bf16.msra.mxu0 0
    %462 = vmatprep.subr.bf16.mxu0 0
    %463 = vmatpush1.bf16.msra.mxu0 0
    %464 = vmatprep.subr.bf16.mxu0 0
    %465 = vmatpush1.bf16.msra.mxu0 0
    %466 = vmatprep.subr.bf16.mxu0 0
    %467 = vmatpush1.bf16.msra.mxu0 0
    %468 = vmatprep.subr.bf16.mxu0 0
    %469 = vmatpush1.bf16.msra.mxu0 0
    %470 = vmatprep.subr.bf16.mxu0 0
    %471 = vmatpush1.bf16.msra.mxu0 0
    %472 = vmatprep.subr.bf16.mxu0 0
    %473 = vmatpush1.bf16.msra.mxu0 0
    %474 = vmatprep.subr.bf16.mxu0 0
    %475 = vmatpush1.bf16.msra.mxu0 0
    %476 = vmatprep.subr.bf16.mxu0 0
    %477 = vmatpush1.bf16.msra.mxu0 0
    %478 = vmatprep.subr.bf16.mxu0 0
    %479 = vmatpush1.bf16.msra.mxu0 0
    %480 = vmatprep.subr.bf16.mxu0 0
    %481 = vmatpush1.bf16.msra.mxu0 0
    %482 = vmatprep.mubr.bf16.mxu0 0
    %483 = vmatmul.mubr.bf16.gmra.mrb[0].mxu0 %v448
    %v484 = vpop.f32.mrb[0].mxu0
    %v485 = vadd.f32 %v432, %v484
    %v486 = vpop.f32.mrb[0].mxu0
    %v487 = vpop.f32.mrb[0].mxu0
    %v488 = vadd.f32 %v432, %v487
    %v489 = vpop.f32.mrb[0].mxu0
    %490 = vdwg.mxu0
    %v491 = vmul.f32 %v485, 0.35355338
    %v492 = vmul.f32 %v488, 0.35355338
    %493 = vxpose.xlu0.b32.start [1/16] %v491, 128
    %494 = vxpose.xlu0.b32.cont [2/16] 0.0, 128
    %495 = vxpose.xlu0.b32.cont [3/16] 0.0, 128
    %496 = vxpose.xlu0.b32.cont [4/16] 0.0, 128
    %497 = vxpose.xlu0.b32.cont [5/16] 0.0, 128
    %498 = vxpose.xlu0.b32.cont [6/16] 0.0, 128
    %499 = vxpose.xlu0.b32.cont [7/16] 0.0, 128
    %500 = vxpose.xlu0.b32.cont [8/16] 0.0, 128
    %501 = vxpose.xlu0.b32.cont [9/16] 0.0, 128
    %502 = vxpose.xlu0.b32.cont [10/16] 0.0, 128
    %503 = vxpose.xlu0.b32.cont [11/16] 0.0, 128
    %504 = vxpose.xlu0.b32.cont [12/16] 0.0, 128
    %505 = vxpose.xlu0.b32.cont [13/16] 0.0, 128
    %506 = vxpose.xlu0.b32.cont [14/16] 0.0, 128
    %507 = vxpose.xlu0.b32.cont [15/16] 0.0, 128
    %508 = vxpose.xlu0.b32.end [16/16] 0.0, 128
    %v509 = vpop.trf.xlu0
    %v510 = vpop.trf.xlu0
    %v511 = vpop.trf.xlu0
    %v512 = vpop.trf.xlu0
    %v513 = vpop.trf.xlu0
    %v514 = vpop.trf.xlu0
    %v515 = vpop.trf.xlu0
    %v516 = vpop.trf.xlu0
    %v517 = vpop.trf.xlu0
    %v518 = vpop.trf.xlu0
    %v519 = vpop.trf.xlu0
    %v520 = vpop.trf.xlu0
    %v521 = vpop.trf.xlu0
    %v522 = vpop.trf.xlu0
    %v523 = vpop.trf.xlu0
    %v524 = vpop.trf.xlu0
    %525 = vxpose.xlu0.b32.start [1/16] %v492, 128
    %526 = vxpose.xlu0.b32.cont [2/16] 0.0, 128
    %527 = vxpose.xlu0.b32.cont [3/16] 0.0, 128
    %528 = vxpose.xlu0.b32.cont [4/16] 0.0, 128
    %529 = vxpose.xlu0.b32.cont [5/16] 0.0, 128
    %530 = vxpose.xlu0.b32.cont [6/16] 0.0, 128
    %531 = vxpose.xlu0.b32.cont [7/16] 0.0, 128
    %532 = vxpose.xlu0.b32.cont [8/16] 0.0, 128
    %533 = vxpose.xlu0.b32.cont [9/16] 0.0, 128
    %534 = vxpose.xlu0.b32.cont [10/16] 0.0, 128
    %535 = vxpose.xlu0.b32.cont [11/16] 0.0, 128
    %536 = vxpose.xlu0.b32.cont [12/16] 0.0, 128
    %537 = vxpose.xlu0.b32.cont [13/16] 0.0, 128
    %538 = vxpose.xlu0.b32.cont [14/16] 0.0, 128
    %539 = vxpose.xlu0.b32.cont [15/16] 0.0, 128
    %540 = vxpose.xlu0.b32.end [16/16] 0.0, 128
    %v541 = vpop.trf.xlu0
    %v542 = vpop.trf.xlu0
    %v543 = vpop.trf.xlu0
    %v544 = vpop.trf.xlu0
    %v545 = vpop.trf.xlu0
    %v546 = vpop.trf.xlu0
    %v547 = vpop.trf.xlu0
    %v548 = vpop.trf.xlu0
    %v549 = vpop.trf.xlu0
    %v550 = vpop.trf.xlu0
    %v551 = vpop.trf.xlu0
    %v552 = vpop.trf.xlu0
    %v553 = vpop.trf.xlu0
    %v554 = vpop.trf.xlu0
    %v555 = vpop.trf.xlu0
    %v556 = vpop.trf.xlu0
    %v557 = vpack.c.bf16 %v509, %v509
    %v558 = vpack.c.bf16 %v510, %v510
    %v559 = vpack.c.bf16 %v511, %v511
    %v560 = vpack.c.bf16 %v512, %v512
    %v561 = vpack.c.bf16 %v541, %v541
    %v562 = vpack.c.bf16 %v542, %v542
    %v563 = vpack.c.bf16 %v543, %v543
    %v564 = vpack.c.bf16 %v544, %v544
    %567 = vrot.lane.b32.xlu0 %v485, 96
    %v568 = vpop.permute.xlu0 %567
    %569 = vrot.lane.b32.xlu0 %v488, 96
    %v570 = vpop.permute.xlu0 %569
    %573 = vxpose.xlu0.b32.start [1/16] %v568, 128
    %574 = vxpose.xlu0.b32.cont [2/16] 0.0, 128
    %575 = vxpose.xlu0.b32.cont [3/16] 0.0, 128
    %576 = vxpose.xlu0.b32.cont [4/16] 0.0, 128
    %577 = vxpose.xlu0.b32.cont [5/16] 0.0, 128
    %578 = vxpose.xlu0.b32.cont [6/16] 0.0, 128
    %579 = vxpose.xlu0.b32.cont [7/16] 0.0, 128
    %580 = vxpose.xlu0.b32.cont [8/16] 0.0, 128
    %581 = vxpose.xlu0.b32.cont [9/16] 0.0, 128
    %582 = vxpose.xlu0.b32.cont [10/16] 0.0, 128
    %583 = vxpose.xlu0.b32.cont [11/16] 0.0, 128
    %584 = vxpose.xlu0.b32.cont [12/16] 0.0, 128
    %585 = vxpose.xlu0.b32.cont [13/16] 0.0, 128
    %586 = vxpose.xlu0.b32.cont [14/16] 0.0, 128
    %587 = vxpose.xlu0.b32.cont [15/16] 0.0, 128
    %588 = vxpose.xlu0.b32.end [16/16] 0.0, 128
    %v589 = vpop.trf.xlu0
    %v590 = vpop.trf.xlu0
    %v591 = vpop.trf.xlu0
    %v592 = vpop.trf.xlu0
    %v593 = vpop.trf.xlu0
    %v594 = vpop.trf.xlu0
    %v595 = vpop.trf.xlu0
    %v596 = vpop.trf.xlu0
    %v597 = vpop.trf.xlu0
    %v598 = vpop.trf.xlu0
    %v599 = vpop.trf.xlu0
    %v600 = vpop.trf.xlu0
    %v601 = vpop.trf.xlu0
    %v602 = vpop.trf.xlu0
    %v603 = vpop.trf.xlu0
    %v604 = vpop.trf.xlu0
    %605 = vxpose.xlu0.b32.start [1/16] %v570, 128
    %606 = vxpose.xlu0.b32.cont [2/16] 0.0, 128
    %607 = vxpose.xlu0.b32.cont [3/16] 0.0, 128
    %608 = vxpose.xlu0.b32.cont [4/16] 0.0, 128
    %609 = vxpose.xlu0.b32.cont [5/16] 0.0, 128
    %610 = vxpose.xlu0.b32.cont [6/16] 0.0, 128
    %611 = vxpose.xlu0.b32.cont [7/16] 0.0, 128
    %612 = vxpose.xlu0.b32.cont [8/16] 0.0, 128
    %613 = vxpose.xlu0.b32.cont [9/16] 0.0, 128
    %614 = vxpose.xlu0.b32.cont [10/16] 0.0, 128
    %615 = vxpose.xlu0.b32.cont [11/16] 0.0, 128
    %616 = vxpose.xlu0.b32.cont [12/16] 0.0, 128
    %617 = vxpose.xlu0.b32.cont [13/16] 0.0, 128
    %618 = vxpose.xlu0.b32.cont [14/16] 0.0, 128
    %619 = vxpose.xlu0.b32.cont [15/16] 0.0, 128
    %620 = vxpose.xlu0.b32.end [16/16] 0.0, 128
    %v621 = vpop.trf.xlu0
    %v622 = vpop.trf.xlu0
    %v623 = vpop.trf.xlu0
    %v624 = vpop.trf.xlu0
    %v625 = vpop.trf.xlu0
    %v626 = vpop.trf.xlu0
    %v627 = vpop.trf.xlu0
    %v628 = vpop.trf.xlu0
    %v629 = vpop.trf.xlu0
    %v630 = vpop.trf.xlu0
    %v631 = vpop.trf.xlu0
    %v632 = vpop.trf.xlu0
    %v633 = vpop.trf.xlu0
    %v634 = vpop.trf.xlu0
    %v635 = vpop.trf.xlu0
    %v636 = vpop.trf.xlu0
    %v637 = vpack.c.bf16 %v589, %v589
    %v638 = vpack.c.bf16 %v590, %v590
    %v639 = vpack.c.bf16 %v591, %v591
    %v640 = vpack.c.bf16 %v592, %v592
    %v641 = vpack.c.bf16 %v621, %v621
    %v642 = vpack.c.bf16 %v622, %v622
    %v643 = vpack.c.bf16 %v623, %v623
    %v644 = vpack.c.bf16 %v624, %v624
    %645 = vrot.lane.b32.xlu0 %v485, 64
    %v646 = vpop.permute.xlu0 %645
    %647 = vrot.lane.b32.xlu0 %v488, 64
    %v648 = vpop.permute.xlu0 %647
    %651 = vxpose.xlu0.b32.start [1/16] %v646, 128
    %652 = vxpose.xlu0.b32.cont [2/16] 0.0, 128
    %653 = vxpose.xlu0.b32.cont [3/16] 0.0, 128
    %654 = vxpose.xlu0.b32.cont [4/16] 0.0, 128
    %655 = vxpose.xlu0.b32.cont [5/16] 0.0, 128
    %656 = vxpose.xlu0.b32.cont [6/16] 0.0, 128
    %657 = vxpose.xlu0.b32.cont [7/16] 0.0, 128
    %658 = vxpose.xlu0.b32.cont [8/16] 0.0, 128
    %659 = vxpose.xlu0.b32.cont [9/16] 0.0, 128
    %660 = vxpose.xlu0.b32.cont [10/16] 0.0, 128
    %661 = vxpose.xlu0.b32.cont [11/16] 0.0, 128
    %662 = vxpose.xlu0.b32.cont [12/16] 0.0, 128
    %663 = vxpose.xlu0.b32.cont [13/16] 0.0, 128
    %664 = vxpose.xlu0.b32.cont [14/16] 0.0, 128
    %665 = vxpose.xlu0.b32.cont [15/16] 0.0, 128
    %666 = vxpose.xlu0.b32.end [16/16] 0.0, 128
    %v667 = vpop.trf.xlu0
    %v668 = vpop.trf.xlu0
    %v669 = vpop.trf.xlu0
    %v670 = vpop.trf.xlu0
    %v671 = vpop.trf.xlu0
    %v672 = vpop.trf.xlu0
    %v673 = vpop.trf.xlu0
    %v674 = vpop.trf.xlu0
    %v675 = vpop.trf.xlu0
    %v676 = vpop.trf.xlu0
    %v677 = vpop.trf.xlu0
    %v678 = vpop.trf.xlu0
    %v679 = vpop.trf.xlu0
    %v680 = vpop.trf.xlu0
    %v681 = vpop.trf.xlu0
    %v682 = vpop.trf.xlu0
    %683 = vxpose.xlu0.b32.start [1/16] %v648, 128
    %684 = vxpose.xlu0.b32.cont [2/16] 0.0, 128
    %685 = vxpose.xlu0.b32.cont [3/16] 0.0, 128
    %686 = vxpose.xlu0.b32.cont [4/16] 0.0, 128
    %687 = vxpose.xlu0.b32.cont [5/16] 0.0, 128
    %688 = vxpose.xlu0.b32.cont [6/16] 0.0, 128
    %689 = vxpose.xlu0.b32.cont [7/16] 0.0, 128
    %690 = vxpose.xlu0.b32.cont [8/16] 0.0, 128
    %691 = vxpose.xlu0.b32.cont [9/16] 0.0, 128
    %692 = vxpose.xlu0.b32.cont [10/16] 0.0, 128
    %693 = vxpose.xlu0.b32.cont [11/16] 0.0, 128
    %694 = vxpose.xlu0.b32.cont [12/16] 0.0, 128
    %695 = vxpose.xlu0.b32.cont [13/16] 0.0, 128
    %696 = vxpose.xlu0.b32.cont [14/16] 0.0, 128
    %697 = vxpose.xlu0.b32.cont [15/16] 0.0, 128
    %698 = vxpose.xlu0.b32.end [16/16] 0.0, 128
    %v699 = vpop.trf.xlu0
    %v700 = vpop.trf.xlu0
    %v701 = vpop.trf.xlu0
    %v702 = vpop.trf.xlu0
    %v703 = vpop.trf.xlu0
    %v704 = vpop.trf.xlu0
    %v705 = vpop.trf.xlu0
    %v706 = vpop.trf.xlu0
    %v707 = vpop.trf.xlu0
    %v708 = vpop.trf.xlu0
    %v709 = vpop.trf.xlu0
    %v710 = vpop.trf.xlu0
    %v711 = vpop.trf.xlu0
    %v712 = vpop.trf.xlu0
    %v713 = vpop.trf.xlu0
    %v714 = vpop.trf.xlu0
    %v715 = vpack.c.bf16 %v667, %v667
    %v716 = vpack.c.bf16 %v668, %v668
    %v717 = vpack.c.bf16 %v669, %v669
    %v718 = vpack.c.bf16 %v670, %v670
    %v719 = vpack.c.bf16 %v699, %v699
    %v720 = vpack.c.bf16 %v700, %v700
    %v721 = vpack.c.bf16 %v701, %v701
    %v722 = vpack.c.bf16 %v702, %v702
    %723 = vxpose.xlu0.c.b16.start [1/8] %v557, 128
    %724 = vxpose.xlu0.c.b16.cont [2/8] 0, 128
    %725 = vxpose.xlu0.c.b16.cont [3/8] 0, 128
    %726 = vxpose.xlu0.c.b16.cont [4/8] 0, 128
    %727 = vxpose.xlu0.c.b16.cont [5/8] 0, 128
    %728 = vxpose.xlu0.c.b16.cont [6/8] 0, 128
    %729 = vxpose.xlu0.c.b16.cont [7/8] 0, 128
    %730 = vxpose.xlu0.c.b16.end [8/8] 0, 128
    %v731 = vpop.trf.xlu0
    %v732 = vpop.trf.xlu0
    %v733 = vpop.trf.xlu0
    %v734 = vpop.trf.xlu0
    %v735 = vpop.trf.xlu0
    %v736 = vpop.trf.xlu0
    %v737 = vpop.trf.xlu0
    %v738 = vpop.trf.xlu0
    %vm739 = vcmask 64512
    %v741 = vsel %vm739, %v731, 0
    %v744 = vsel %vm333, %v637, 0
    %746 = vmatprep.subr.bf16.mxu0 0
    %747 = vmatpush1.bf16.msra.mxu0 %v744
    %748 = vmatprep.subr.bf16.mxu0 0
    %749 = vmatpush1.bf16.msra.mxu0 0
    %750 = vmatprep.subr.bf16.mxu0 0
    %751 = vmatpush1.bf16.msra.mxu0 0
    %752 = vmatprep.subr.bf16.mxu0 0
    %753 = vmatpush1.bf16.msra.mxu0 0
    %754 = vmatprep.subr.bf16.mxu0 0
    %755 = vmatpush1.bf16.msra.mxu0 0
    %756 = vmatprep.subr.bf16.mxu0 0
    %757 = vmatpush1.bf16.msra.mxu0 0
    %758 = vmatprep.subr.bf16.mxu0 0
    %759 = vmatpush1.bf16.msra.mxu0 0
    %760 = vmatprep.subr.bf16.mxu0 0
    %761 = vmatpush1.bf16.msra.mxu0 0
    %762 = vmatprep.subr.bf16.mxu0 0
    %763 = vmatpush1.bf16.msra.mxu0 0
    %764 = vmatprep.subr.bf16.mxu0 0
    %765 = vmatpush1.bf16.msra.mxu0 0
    %766 = vmatprep.subr.bf16.mxu0 0
    %767 = vmatpush1.bf16.msra.mxu0 0
    %768 = vmatprep.subr.bf16.mxu0 0
    %769 = vmatpush1.bf16.msra.mxu0 0
    %770 = vmatprep.subr.bf16.mxu0 0
    %771 = vmatpush1.bf16.msra.mxu0 0
    %772 = vmatprep.subr.bf16.mxu0 0
    %773 = vmatpush1.bf16.msra.mxu0 0
    %774 = vmatprep.subr.bf16.mxu0 0
    %775 = vmatpush1.bf16.msra.mxu0 0
    %776 = vmatprep.subr.bf16.mxu0 0
    %777 = vmatpush1.bf16.msra.mxu0 0
    %778 = vmatprep.mubr.bf16.mxu0 0
    %779 = vmatmul.mubr.bf16.gmra.mrb[0].mxu0 %v741
    %v780 = vpop.f32.mrb[0].mxu0
    %v781 = vadd.f32 0.0, %v780
    %v782 = vpop.f32.mrb[0].mxu0
    %v783 = vpop.f32.mrb[0].mxu0
    %v784 = vpop.f32.mrb[0].mxu0
    %785 = vdwg.mxu0
    %786 = vxpose.xlu0.c.b16.start [1/8] %v558, 128
    %787 = vxpose.xlu0.c.b16.cont [2/8] 0, 128
    %788 = vxpose.xlu0.c.b16.cont [3/8] 0, 128
    %789 = vxpose.xlu0.c.b16.cont [4/8] 0, 128
    %790 = vxpose.xlu0.c.b16.cont [5/8] 0, 128
    %791 = vxpose.xlu0.c.b16.cont [6/8] 0, 128
    %792 = vxpose.xlu0.c.b16.cont [7/8] 0, 128
    %793 = vxpose.xlu0.c.b16.end [8/8] 0, 128
    %v794 = vpop.trf.xlu0
    %v795 = vpop.trf.xlu0
    %v796 = vpop.trf.xlu0
    %v797 = vpop.trf.xlu0
    %v798 = vpop.trf.xlu0
    %v799 = vpop.trf.xlu0
    %v800 = vpop.trf.xlu0
    %v801 = vpop.trf.xlu0
    %v803 = vsel %vm739, %v794, 0
    %v806 = vsel %vm333, %v638, 0
    %808 = vmatprep.subr.bf16.mxu0 0
    %809 = vmatpush1.bf16.msra.mxu0 %v806
    %810 = vmatprep.subr.bf16.mxu0 0
    %811 = vmatpush1.bf16.msra.mxu0 0
    %812 = vmatprep.subr.bf16.mxu0 0
    %813 = vmatpush1.bf16.msra.mxu0 0
    %814 = vmatprep.subr.bf16.mxu0 0
    %815 = vmatpush1.bf16.msra.mxu0 0
    %816 = vmatprep.subr.bf16.mxu0 0
    %817 = vmatpush1.bf16.msra.mxu0 0
    %818 = vmatprep.subr.bf16.mxu0 0
    %819 = vmatpush1.bf16.msra.mxu0 0
    %820 = vmatprep.subr.bf16.mxu0 0
    %821 = vmatpush1.bf16.msra.mxu0 0
    %822 = vmatprep.subr.bf16.mxu0 0
    %823 = vmatpush1.bf16.msra.mxu0 0
    %824 = vmatprep.subr.bf16.mxu0 0
    %825 = vmatpush1.bf16.msra.mxu0 0
    %826 = vmatprep.subr.bf16.mxu0 0
    %827 = vmatpush1.bf16.msra.mxu0 0
    %828 = vmatprep.subr.bf16.mxu0 0
    %829 = vmatpush1.bf16.msra.mxu0 0
    %830 = vmatprep.subr.bf16.mxu0 0
    %831 = vmatpush1.bf16.msra.mxu0 0
    %832 = vmatprep.subr.bf16.mxu0 0
    %833 = vmatpush1.bf16.msra.mxu0 0
    %834 = vmatprep.subr.bf16.mxu0 0
    %835 = vmatpush1.bf16.msra.mxu0 0
    %836 = vmatprep.subr.bf16.mxu0 0
    %837 = vmatpush1.bf16.msra.mxu0 0
    %838 = vmatprep.subr.bf16.mxu0 0
    %839 = vmatpush1.bf16.msra.mxu0 0
    %840 = vmatprep.mubr.bf16.mxu0 0
    %841 = vmatmul.mubr.bf16.gmra.mrb[0].mxu0 %v803
    %v842 = vpop.f32.mrb[0].mxu0
    %v843 = vadd.f32 0.0, %v842
    %v844 = vpop.f32.mrb[0].mxu0
    %v845 = vpop.f32.mrb[0].mxu0
    %v846 = vpop.f32.mrb[0].mxu0
    %847 = vdwg.mxu0
    %848 = vxpose.xlu0.c.b16.start [1/8] %v559, 128
    %849 = vxpose.xlu0.c.b16.cont [2/8] 0, 128
    %850 = vxpose.xlu0.c.b16.cont [3/8] 0, 128
    %851 = vxpose.xlu0.c.b16.cont [4/8] 0, 128
    %852 = vxpose.xlu0.c.b16.cont [5/8] 0, 128
    %853 = vxpose.xlu0.c.b16.cont [6/8] 0, 128
    %854 = vxpose.xlu0.c.b16.cont [7/8] 0, 128
    %855 = vxpose.xlu0.c.b16.end [8/8] 0, 128
    %v856 = vpop.trf.xlu0
    %v857 = vpop.trf.xlu0
    %v858 = vpop.trf.xlu0
    %v859 = vpop.trf.xlu0
    %v860 = vpop.trf.xlu0
    %v861 = vpop.trf.xlu0
    %v862 = vpop.trf.xlu0
    %v863 = vpop.trf.xlu0
    %v865 = vsel %vm739, %v856, 0
    %v868 = vsel %vm333, %v639, 0
    %870 = vmatprep.subr.bf16.mxu0 0
    %871 = vmatpush1.bf16.msra.mxu0 %v868
    %872 = vmatprep.subr.bf16.mxu0 0
    %873 = vmatpush1.bf16.msra.mxu0 0
    %874 = vmatprep.subr.bf16.mxu0 0
    %875 = vmatpush1.bf16.msra.mxu0 0
    %876 = vmatprep.subr.bf16.mxu0 0
    %877 = vmatpush1.bf16.msra.mxu0 0
    %878 = vmatprep.subr.bf16.mxu0 0
    %879 = vmatpush1.bf16.msra.mxu0 0
    %880 = vmatprep.subr.bf16.mxu0 0
    %881 = vmatpush1.bf16.msra.mxu0 0
    %882 = vmatprep.subr.bf16.mxu0 0
    %883 = vmatpush1.bf16.msra.mxu0 0
    %884 = vmatprep.subr.bf16.mxu0 0
    %885 = vmatpush1.bf16.msra.mxu0 0
    %886 = vmatprep.subr.bf16.mxu0 0
    %887 = vmatpush1.bf16.msra.mxu0 0
    %888 = vmatprep.subr.bf16.mxu0 0
    %889 = vmatpush1.bf16.msra.mxu0 0
    %890 = vmatprep.subr.bf16.mxu0 0
    %891 = vmatpush1.bf16.msra.mxu0 0
    %892 = vmatprep.subr.bf16.mxu0 0
    %893 = vmatpush1.bf16.msra.mxu0 0
    %894 = vmatprep.subr.bf16.mxu0 0
    %895 = vmatpush1.bf16.msra.mxu0 0
    %896 = vmatprep.subr.bf16.mxu0 0
    %897 = vmatpush1.bf16.msra.mxu0 0
    %898 = vmatprep.subr.bf16.mxu0 0
    %899 = vmatpush1.bf16.msra.mxu0 0
    %900 = vmatprep.subr.bf16.mxu0 0
    %901 = vmatpush1.bf16.msra.mxu0 0
    %902 = vmatprep.mubr.bf16.mxu0 0
    %903 = vmatmul.mubr.bf16.gmra.mrb[0].mxu0 %v865
    %v904 = vpop.f32.mrb[0].mxu0
    %v905 = vadd.f32 0.0, %v904
    %v906 = vpop.f32.mrb[0].mxu0
    %v907 = vpop.f32.mrb[0].mxu0
    %v908 = vpop.f32.mrb[0].mxu0
    %909 = vdwg.mxu0
    %910 = vxpose.xlu0.c.b16.start [1/8] %v560, 128
    %911 = vxpose.xlu0.c.b16.cont [2/8] 0, 128
    %912 = vxpose.xlu0.c.b16.cont [3/8] 0, 128
    %913 = vxpose.xlu0.c.b16.cont [4/8] 0, 128
    %914 = vxpose.xlu0.c.b16.cont [5/8] 0, 128
    %915 = vxpose.xlu0.c.b16.cont [6/8] 0, 128
    %916 = vxpose.xlu0.c.b16.cont [7/8] 0, 128
    %917 = vxpose.xlu0.c.b16.end [8/8] 0, 128
    %v918 = vpop.trf.xlu0
    %v919 = vpop.trf.xlu0
    %v920 = vpop.trf.xlu0
    %v921 = vpop.trf.xlu0
    %v922 = vpop.trf.xlu0
    %v923 = vpop.trf.xlu0
    %v924 = vpop.trf.xlu0
    %v925 = vpop.trf.xlu0
    %v927 = vsel %vm739, %v918, 0
    %v930 = vsel %vm333, %v640, 0
    %932 = vmatprep.subr.bf16.mxu0 0
    %933 = vmatpush1.bf16.msra.mxu0 %v930
    %934 = vmatprep.subr.bf16.mxu0 0
    %935 = vmatpush1.bf16.msra.mxu0 0
    %936 = vmatprep.subr.bf16.mxu0 0
    %937 = vmatpush1.bf16.msra.mxu0 0
    %938 = vmatprep.subr.bf16.mxu0 0
    %939 = vmatpush1.bf16.msra.mxu0 0
    %940 = vmatprep.subr.bf16.mxu0 0
    %941 = vmatpush1.bf16.msra.mxu0 0
    %942 = vmatprep.subr.bf16.mxu0 0
    %943 = vmatpush1.bf16.msra.mxu0 0
    %944 = vmatprep.subr.bf16.mxu0 0
    %945 = vmatpush1.bf16.msra.mxu0 0
    %946 = vmatprep.subr.bf16.mxu0 0
    %947 = vmatpush1.bf16.msra.mxu0 0
    %948 = vmatprep.subr.bf16.mxu0 0
    %949 = vmatpush1.bf16.msra.mxu0 0
    %950 = vmatprep.subr.bf16.mxu0 0
    %951 = vmatpush1.bf16.msra.mxu0 0
    %952 = vmatprep.subr.bf16.mxu0 0
    %953 = vmatpush1.bf16.msra.mxu0 0
    %954 = vmatprep.subr.bf16.mxu0 0
    %955 = vmatpush1.bf16.msra.mxu0 0
    %956 = vmatprep.subr.bf16.mxu0 0
    %957 = vmatpush1.bf16.msra.mxu0 0
    %958 = vmatprep.subr.bf16.mxu0 0
    %959 = vmatpush1.bf16.msra.mxu0 0
    %960 = vmatprep.subr.bf16.mxu0 0
    %961 = vmatpush1.bf16.msra.mxu0 0
    %962 = vmatprep.subr.bf16.mxu0 0
    %963 = vmatpush1.bf16.msra.mxu0 0
    %964 = vmatprep.mubr.bf16.mxu0 0
    %965 = vmatmul.mubr.bf16.gmra.mrb[0].mxu0 %v927
    %v966 = vpop.f32.mrb[0].mxu0
    %v967 = vadd.f32 0.0, %v966
    %v968 = vpop.f32.mrb[0].mxu0
    %v969 = vpop.f32.mrb[0].mxu0
    %v970 = vpop.f32.mrb[0].mxu0
    %971 = vdwg.mxu0
    %972 = vxpose.xlu0.c.b16.start [1/8] %v561, 128
    %973 = vxpose.xlu0.c.b16.cont [2/8] 0, 128
    %974 = vxpose.xlu0.c.b16.cont [3/8] 0, 128
    %975 = vxpose.xlu0.c.b16.cont [4/8] 0, 128
    %976 = vxpose.xlu0.c.b16.cont [5/8] 0, 128
    %977 = vxpose.xlu0.c.b16.cont [6/8] 0, 128
    %978 = vxpose.xlu0.c.b16.cont [7/8] 0, 128
    %979 = vxpose.xlu0.c.b16.end [8/8] 0, 128
    %v980 = vpop.trf.xlu0
    %v981 = vpop.trf.xlu0
    %v982 = vpop.trf.xlu0
    %v983 = vpop.trf.xlu0
    %v984 = vpop.trf.xlu0
    %v985 = vpop.trf.xlu0
    %v986 = vpop.trf.xlu0
    %v987 = vpop.trf.xlu0
    %v989 = vsel %vm739, %v980, 0
    %v992 = vsel %vm333, %v641, 0
    %994 = vmatprep.subr.bf16.mxu0 0
    %995 = vmatpush1.bf16.msra.mxu0 %v992
    %996 = vmatprep.subr.bf16.mxu0 0
    %997 = vmatpush1.bf16.msra.mxu0 0
    %998 = vmatprep.subr.bf16.mxu0 0
    %999 = vmatpush1.bf16.msra.mxu0 0
    %1000 = vmatprep.subr.bf16.mxu0 0
    %1001 = vmatpush1.bf16.msra.mxu0 0
    %1002 = vmatprep.subr.bf16.mxu0 0
    %1003 = vmatpush1.bf16.msra.mxu0 0
    %1004 = vmatprep.subr.bf16.mxu0 0
    %1005 = vmatpush1.bf16.msra.mxu0 0
    %1006 = vmatprep.subr.bf16.mxu0 0
    %1007 = vmatpush1.bf16.msra.mxu0 0
    %1008 = vmatprep.subr.bf16.mxu0 0
    %1009 = vmatpush1.bf16.msra.mxu0 0
    %1010 = vmatprep.subr.bf16.mxu0 0
    %1011 = vmatpush1.bf16.msra.mxu0 0
    %1012 = vmatprep.subr.bf16.mxu0 0
    %1013 = vmatpush1.bf16.msra.mxu0 0
    %1014 = vmatprep.subr.bf16.mxu0 0
    %1015 = vmatpush1.bf16.msra.mxu0 0
    %1016 = vmatprep.subr.bf16.mxu0 0
    %1017 = vmatpush1.bf16.msra.mxu0 0
    %1018 = vmatprep.subr.bf16.mxu0 0
    %1019 = vmatpush1.bf16.msra.mxu0 0
    %1020 = vmatprep.subr.bf16.mxu0 0
    %1021 = vmatpush1.bf16.msra.mxu0 0
    %1022 = vmatprep.subr.bf16.mxu0 0
    %1023 = vmatpush1.bf16.msra.mxu0 0
    %1024 = vmatprep.subr.bf16.mxu0 0
    %1025 = vmatpush1.bf16.msra.mxu0 0
    %1026 = vmatprep.mubr.bf16.mxu0 0
    %1027 = vmatmul.mubr.bf16.gmra.mrb[0].mxu0 %v989
    %v1028 = vpop.f32.mrb[0].mxu0
    %v1029 = vadd.f32 0.0, %v1028
    %v1030 = vpop.f32.mrb[0].mxu0
    %v1031 = vpop.f32.mrb[0].mxu0
    %v1032 = vpop.f32.mrb[0].mxu0
    %1033 = vdwg.mxu0
    %1034 = vxpose.xlu0.c.b16.start [1/8] %v562, 128
    %1035 = vxpose.xlu0.c.b16.cont [2/8] 0, 128
    %1036 = vxpose.xlu0.c.b16.cont [3/8] 0, 128
    %1037 = vxpose.xlu0.c.b16.cont [4/8] 0, 128
    %1038 = vxpose.xlu0.c.b16.cont [5/8] 0, 128
    %1039 = vxpose.xlu0.c.b16.cont [6/8] 0, 128
    %1040 = vxpose.xlu0.c.b16.cont [7/8] 0, 128
    %1041 = vxpose.xlu0.c.b16.end [8/8] 0, 128
    %v1042 = vpop.trf.xlu0
    %v1043 = vpop.trf.xlu0
    %v1044 = vpop.trf.xlu0
    %v1045 = vpop.trf.xlu0
    %v1046 = vpop.trf.xlu0
    %v1047 = vpop.trf.xlu0
    %v1048 = vpop.trf.xlu0
    %v1049 = vpop.trf.xlu0
    %v1051 = vsel %vm739, %v1042, 0
    %v1054 = vsel %vm333, %v642, 0
    %1056 = vmatprep.subr.bf16.mxu0 0
    %1057 = vmatpush1.bf16.msra.mxu0 %v1054
    %1058 = vmatprep.subr.bf16.mxu0 0
    %1059 = vmatpush1.bf16.msra.mxu0 0
    %1060 = vmatprep.subr.bf16.mxu0 0
    %1061 = vmatpush1.bf16.msra.mxu0 0
    %1062 = vmatprep.subr.bf16.mxu0 0
    %1063 = vmatpush1.bf16.msra.mxu0 0
    %1064 = vmatprep.subr.bf16.mxu0 0
    %1065 = vmatpush1.bf16.msra.mxu0 0
    %1066 = vmatprep.subr.bf16.mxu0 0
    %1067 = vmatpush1.bf16.msra.mxu0 0
    %1068 = vmatprep.subr.bf16.mxu0 0
    %1069 = vmatpush1.bf16.msra.mxu0 0
    %1070 = vmatprep.subr.bf16.mxu0 0
    %1071 = vmatpush1.bf16.msra.mxu0 0
    %1072 = vmatprep.subr.bf16.mxu0 0
    %1073 = vmatpush1.bf16.msra.mxu0 0
    %1074 = vmatprep.subr.bf16.mxu0 0
    %1075 = vmatpush1.bf16.msra.mxu0 0
    %1076 = vmatprep.subr.bf16.mxu0 0
    %1077 = vmatpush1.bf16.msra.mxu0 0
    %1078 = vmatprep.subr.bf16.mxu0 0
    %1079 = vmatpush1.bf16.msra.mxu0 0
    %1080 = vmatprep.subr.bf16.mxu0 0
    %1081 = vmatpush1.bf16.msra.mxu0 0
    %1082 = vmatprep.subr.bf16.mxu0 0
    %1083 = vmatpush1.bf16.msra.mxu0 0
    %1084 = vmatprep.subr.bf16.mxu0 0
    %1085 = vmatpush1.bf16.msra.mxu0 0
    %1086 = vmatprep.subr.bf16.mxu0 0
    %1087 = vmatpush1.bf16.msra.mxu0 0
    %1088 = vmatprep.mubr.bf16.mxu0 0
    %1089 = vmatmul.mubr.bf16.gmra.mrb[0].mxu0 %v1051
    %v1090 = vpop.f32.mrb[0].mxu0
    %v1091 = vadd.f32 0.0, %v1090
    %v1092 = vpop.f32.mrb[0].mxu0
    %v1093 = vpop.f32.mrb[0].mxu0
    %v1094 = vpop.f32.mrb[0].mxu0
    %1095 = vdwg.mxu0
    %1096 = vxpose.xlu0.c.b16.start [1/8] %v563, 128
    %1097 = vxpose.xlu0.c.b16.cont [2/8] 0, 128
    %1098 = vxpose.xlu0.c.b16.cont [3/8] 0, 128
    %1099 = vxpose.xlu0.c.b16.cont [4/8] 0, 128
    %1100 = vxpose.xlu0.c.b16.cont [5/8] 0, 128
    %1101 = vxpose.xlu0.c.b16.cont [6/8] 0, 128
    %1102 = vxpose.xlu0.c.b16.cont [7/8] 0, 128
    %1103 = vxpose.xlu0.c.b16.end [8/8] 0, 128
    %v1104 = vpop.trf.xlu0
    %v1105 = vpop.trf.xlu0
    %v1106 = vpop.trf.xlu0
    %v1107 = vpop.trf.xlu0
    %v1108 = vpop.trf.xlu0
    %v1109 = vpop.trf.xlu0
    %v1110 = vpop.trf.xlu0
    %v1111 = vpop.trf.xlu0
    %v1113 = vsel %vm739, %v1104, 0
    %v1116 = vsel %vm333, %v643, 0
    %1118 = vmatprep.subr.bf16.mxu0 0
    %1119 = vmatpush1.bf16.msra.mxu0 %v1116
    %1120 = vmatprep.subr.bf16.mxu0 0
    %1121 = vmatpush1.bf16.msra.mxu0 0
    %1122 = vmatprep.subr.bf16.mxu0 0
    %1123 = vmatpush1.bf16.msra.mxu0 0
    %1124 = vmatprep.subr.bf16.mxu0 0
    %1125 = vmatpush1.bf16.msra.mxu0 0
    %1126 = vmatprep.subr.bf16.mxu0 0
    %1127 = vmatpush1.bf16.msra.mxu0 0
    %1128 = vmatprep.subr.bf16.mxu0 0
    %1129 = vmatpush1.bf16.msra.mxu0 0
    %1130 = vmatprep.subr.bf16.mxu0 0
    %1131 = vmatpush1.bf16.msra.mxu0 0
    %1132 = vmatprep.subr.bf16.mxu0 0
    %1133 = vmatpush1.bf16.msra.mxu0 0
    %1134 = vmatprep.subr.bf16.mxu0 0
    %1135 = vmatpush1.bf16.msra.mxu0 0
    %1136 = vmatprep.subr.bf16.mxu0 0
    %1137 = vmatpush1.bf16.msra.mxu0 0
    %1138 = vmatprep.subr.bf16.mxu0 0
    %1139 = vmatpush1.bf16.msra.mxu0 0
    %1140 = vmatprep.subr.bf16.mxu0 0
    %1141 = vmatpush1.bf16.msra.mxu0 0
    %1142 = vmatprep.subr.bf16.mxu0 0
    %1143 = vmatpush1.bf16.msra.mxu0 0
    %1144 = vmatprep.subr.bf16.mxu0 0
    %1145 = vmatpush1.bf16.msra.mxu0 0
    %1146 = vmatprep.subr.bf16.mxu0 0
    %1147 = vmatpush1.bf16.msra.mxu0 0
    %1148 = vmatprep.subr.bf16.mxu0 0
    %1149 = vmatpush1.bf16.msra.mxu0 0
    %1150 = vmatprep.mubr.bf16.mxu0 0
    %1151 = vmatmul.mubr.bf16.gmra.mrb[0].mxu0 %v1113
    %v1152 = vpop.f32.mrb[0].mxu0
    %v1153 = vadd.f32 0.0, %v1152
    %v1154 = vpop.f32.mrb[0].mxu0
    %v1155 = vpop.f32.mrb[0].mxu0
    %v1156 = vpop.f32.mrb[0].mxu0
    %1157 = vdwg.mxu0
    %1158 = vxpose.xlu0.c.b16.start [1/8] %v564, 128
    %1159 = vxpose.xlu0.c.b16.cont [2/8] 0, 128
    %1160 = vxpose.xlu0.c.b16.cont [3/8] 0, 128
    %1161 = vxpose.xlu0.c.b16.cont [4/8] 0, 128
    %1162 = vxpose.xlu0.c.b16.cont [5/8] 0, 128
    %1163 = vxpose.xlu0.c.b16.cont [6/8] 0, 128
    %1164 = vxpose.xlu0.c.b16.cont [7/8] 0, 128
    %1165 = vxpose.xlu0.c.b16.end [8/8] 0, 128
    %v1166 = vpop.trf.xlu0
    %v1167 = vpop.trf.xlu0
    %v1168 = vpop.trf.xlu0
    %v1169 = vpop.trf.xlu0
    %v1170 = vpop.trf.xlu0
    %v1171 = vpop.trf.xlu0
    %v1172 = vpop.trf.xlu0
    %v1173 = vpop.trf.xlu0
    %v1175 = vsel %vm739, %v1166, 0
    %v1178 = vsel %vm333, %v644, 0
    %1180 = vmatprep.subr.bf16.mxu0 0
    %1181 = vmatpush1.bf16.msra.mxu0 %v1178
    %1182 = vmatprep.subr.bf16.mxu0 0
    %1183 = vmatpush1.bf16.msra.mxu0 0
    %1184 = vmatprep.subr.bf16.mxu0 0
    %1185 = vmatpush1.bf16.msra.mxu0 0
    %1186 = vmatprep.subr.bf16.mxu0 0
    %1187 = vmatpush1.bf16.msra.mxu0 0
    %1188 = vmatprep.subr.bf16.mxu0 0
    %1189 = vmatpush1.bf16.msra.mxu0 0
    %1190 = vmatprep.subr.bf16.mxu0 0
    %1191 = vmatpush1.bf16.msra.mxu0 0
    %1192 = vmatprep.subr.bf16.mxu0 0
    %1193 = vmatpush1.bf16.msra.mxu0 0
    %1194 = vmatprep.subr.bf16.mxu0 0
    %1195 = vmatpush1.bf16.msra.mxu0 0
    %1196 = vmatprep.subr.bf16.mxu0 0
    %1197 = vmatpush1.bf16.msra.mxu0 0
    %1198 = vmatprep.subr.bf16.mxu0 0
    %1199 = vmatpush1.bf16.msra.mxu0 0
    %1200 = vmatprep.subr.bf16.mxu0 0
    %1201 = vmatpush1.bf16.msra.mxu0 0
    %1202 = vmatprep.subr.bf16.mxu0 0
    %1203 = vmatpush1.bf16.msra.mxu0 0
    %1204 = vmatprep.subr.bf16.mxu0 0
    %1205 = vmatpush1.bf16.msra.mxu0 0
    %1206 = vmatprep.subr.bf16.mxu0 0
    %1207 = vmatpush1.bf16.msra.mxu0 0
    %1208 = vmatprep.subr.bf16.mxu0 0
    %1209 = vmatpush1.bf16.msra.mxu0 0
    %1210 = vmatprep.subr.bf16.mxu0 0
    %1211 = vmatpush1.bf16.msra.mxu0 0
    %1212 = vmatprep.mubr.bf16.mxu0 0
    %1213 = vmatmul.mubr.bf16.gmra.mrb[0].mxu0 %v1175
    %v1214 = vpop.f32.mrb[0].mxu0
    %v1215 = vadd.f32 0.0, %v1214
    %v1216 = vpop.f32.mrb[0].mxu0
    %v1217 = vpop.f32.mrb[0].mxu0
    %v1218 = vpop.f32.mrb[0].mxu0
    %1219 = vdwg.mxu0
    %v1220 = vsel %vm739, %v781, -inf
    %1221 = vmax.xlane.f32.xlu0 %v1220
    %v1222 = vpop.xlane.xlu0 %1221
    %v1223 = vsel %vm739, %v843, -inf
    %1224 = vmax.xlane.f32.xlu0 %v1223
    %v1225 = vpop.xlane.xlu0 %1224
    %v1226 = vsel %vm739, %v905, -inf
    %1227 = vmax.xlane.f32.xlu0 %v1226
    %v1228 = vpop.xlane.xlu0 %1227
    %v1229 = vsel %vm739, %v967, -inf
    %1230 = vmax.xlane.f32.xlu0 %v1229
    %v1231 = vpop.xlane.xlu0 %1230
    %v1232 = vsel %vm739, %v1029, -inf
    %1233 = vmax.xlane.f32.xlu0 %v1232
    %v1234 = vpop.xlane.xlu0 %1233
    %v1235 = vsel %vm739, %v1091, -inf
    %1236 = vmax.xlane.f32.xlu0 %v1235
    %v1237 = vpop.xlane.xlu0 %1236
    %v1238 = vsel %vm739, %v1153, -inf
    %1239 = vmax.xlane.f32.xlu0 %v1238
    %v1240 = vpop.xlane.xlu0 %1239
    %v1241 = vsel %vm739, %v1215, -inf
    %1242 = vmax.xlane.f32.xlu0 %v1241
    %v1243 = vpop.xlane.xlu0 %1242
    %v1244 = vsub.f32 %v781, %v1222
    %v1245 = vsub.f32 %v843, %v1225
    %v1246 = vsub.f32 %v905, %v1228
    %v1247 = vsub.f32 %v967, %v1231
    %v1248 = vsub.f32 %v1029, %v1234
    %v1249 = vsub.f32 %v1091, %v1237
    %v1250 = vsub.f32 %v1153, %v1240
    %v1251 = vsub.f32 %v1215, %v1243
    %v1252 = vmul.f32 %v1244, 1.442695
    %v1253 = vpow.pop %v1252
    %v1254 = vmul.f32 %v1245, 1.442695
    %v1255 = vpow.pop %v1254
    %v1256 = vmul.f32 %v1246, 1.442695
    %v1257 = vpow.pop %v1256
    %v1258 = vmul.f32 %v1247, 1.442695
    %v1259 = vpow.pop %v1258
    %v1260 = vmul.f32 %v1248, 1.442695
    %v1261 = vpow.pop %v1260
    %v1262 = vmul.f32 %v1249, 1.442695
    %v1263 = vpow.pop %v1262
    %v1264 = vmul.f32 %v1250, 1.442695
    %v1265 = vpow.pop %v1264
    %v1266 = vmul.f32 %v1251, 1.442695
    %v1267 = vpow.pop %v1266
    %v1268 = vsel %vm739, %v1253, 0.0
    %1269 = vadd.xlane.f32.xlu0 %v1268
    %v1270 = vpop.xlane.xlu0 %1269
    %v1271 = vsel %vm739, %v1255, 0.0
    %1272 = vadd.xlane.f32.xlu0 %v1271
    %v1273 = vpop.xlane.xlu0 %1272
    %v1274 = vsel %vm739, %v1257, 0.0
    %1275 = vadd.xlane.f32.xlu0 %v1274
    %v1276 = vpop.xlane.xlu0 %1275
    %v1277 = vsel %vm739, %v1259, 0.0
    %1278 = vadd.xlane.f32.xlu0 %v1277
    %v1279 = vpop.xlane.xlu0 %1278
    %v1280 = vsel %vm739, %v1261, 0.0
    %1281 = vadd.xlane.f32.xlu0 %v1280
    %v1282 = vpop.xlane.xlu0 %1281
    %v1283 = vsel %vm739, %v1263, 0.0
    %1284 = vadd.xlane.f32.xlu0 %v1283
    %v1285 = vpop.xlane.xlu0 %1284
    %v1286 = vsel %vm739, %v1265, 0.0
    %1287 = vadd.xlane.f32.xlu0 %v1286
    %v1288 = vpop.xlane.xlu0 %1287
    %v1289 = vsel %vm739, %v1267, 0.0
    %1290 = vadd.xlane.f32.xlu0 %v1289
    %v1291 = vpop.xlane.xlu0 %1290
    %v1292 = vrcp.pop %v1270
    %v1293 = vmul.f32 %v1253, %v1292
    %v1294 = vrcp.pop %v1273
    %v1295 = vmul.f32 %v1255, %v1294
    %v1296 = vrcp.pop %v1276
    %v1297 = vmul.f32 %v1257, %v1296
    %v1298 = vrcp.pop %v1279
    %v1299 = vmul.f32 %v1259, %v1298
    %v1300 = vrcp.pop %v1282
    %v1301 = vmul.f32 %v1261, %v1300
    %v1302 = vrcp.pop %v1285
    %v1303 = vmul.f32 %v1263, %v1302
    %v1304 = vrcp.pop %v1288
    %v1305 = vmul.f32 %v1265, %v1304
    %v1306 = vrcp.pop %v1291
    %v1307 = vmul.f32 %v1267, %v1306
    %v1308 = vpack.c.bf16 %v1293, %v1293
    %v1309 = vpack.c.bf16 %v1295, %v1295
    %v1310 = vpack.c.bf16 %v1297, %v1297
    %v1311 = vpack.c.bf16 %v1299, %v1299
    %v1312 = vpack.c.bf16 %v1301, %v1301
    %v1313 = vpack.c.bf16 %v1303, %v1303
    %v1314 = vpack.c.bf16 %v1305, %v1305
    %v1315 = vpack.c.bf16 %v1307, %v1307
    %v1317 = vsel %vm739, %v715, 0
    %v1320 = vsel %vm739, %v1308, 0
    %1322 = vmatprep.subr.bf16.mxu0 0
    %1323 = vmatpush1.bf16.xpose.msra.mxu0 %v1320
    %1324 = vmatprep.subr.bf16.mxu0 0
    %1325 = vmatpush1.bf16.xpose.msra.mxu0 0
    %1326 = vmatprep.subr.bf16.mxu0 0
    %1327 = vmatpush1.bf16.xpose.msra.mxu0 0
    %1328 = vmatprep.subr.bf16.mxu0 0
    %1329 = vmatpush1.bf16.xpose.msra.mxu0 0
    %1330 = vmatprep.subr.bf16.mxu0 0
    %1331 = vmatpush1.bf16.xpose.msra.mxu0 0
    %1332 = vmatprep.subr.bf16.mxu0 0
    %1333 = vmatpush1.bf16.xpose.msra.mxu0 0
    %1334 = vmatprep.subr.bf16.mxu0 0
    %1335 = vmatpush1.bf16.xpose.msra.mxu0 0
    %1336 = vmatprep.subr.bf16.mxu0 0
    %1337 = vmatpush1.bf16.xpose.msra.mxu0 0
    %1338 = vmatprep.subr.bf16.mxu0 0
    %1339 = vmatpush1.bf16.xpose.msra.mxu0 0
    %1340 = vmatprep.subr.bf16.mxu0 0
    %1341 = vmatpush1.bf16.xpose.msra.mxu0 0
    %1342 = vmatprep.subr.bf16.mxu0 0
    %1343 = vmatpush1.bf16.xpose.msra.mxu0 0
    %1344 = vmatprep.subr.bf16.mxu0 0
    %1345 = vmatpush1.bf16.xpose.msra.mxu0 0
    %1346 = vmatprep.subr.bf16.mxu0 0
    %1347 = vmatpush1.bf16.xpose.msra.mxu0 0
    %1348 = vmatprep.subr.bf16.mxu0 0
    %1349 = vmatpush1.bf16.xpose.msra.mxu0 0
    %1350 = vmatprep.subr.bf16.mxu0 0
    %1351 = vmatpush1.bf16.xpose.msra.mxu0 0
    %1352 = vmatprep.subr.bf16.mxu0 0
    %1353 = vmatpush1.bf16.xpose.msra.mxu0 0
    %1354 = vmatprep.mubr.bf16.mxu0 0
    %1355 = vmatmul.mubr.bf16.gmra.mrb[0].mxu0 %v1317
    %v1356 = vpop.f32.mrb[0].mxu0
    %v1357 = vadd.f32 0.0, %v1356
    %v1358 = vpop.f32.mrb[0].mxu0
    %v1359 = vpop.f32.mrb[0].mxu0
    %v1360 = vpop.f32.mrb[0].mxu0
    %1361 = vdwg.mxu0
    %v1363 = vsel %vm739, %v716, 0
    %v1366 = vsel %vm739, %v1309, 0
    %1368 = vmatprep.subr.bf16.mxu0 0
    %1369 = vmatpush1.bf16.xpose.msra.mxu0 %v1366
    %1370 = vmatprep.subr.bf16.mxu0 0
    %1371 = vmatpush1.bf16.xpose.msra.mxu0 0
    %1372 = vmatprep.subr.bf16.mxu0 0
    %1373 = vmatpush1.bf16.xpose.msra.mxu0 0
    %1374 = vmatprep.subr.bf16.mxu0 0
    %1375 = vmatpush1.bf16.xpose.msra.mxu0 0
    %1376 = vmatprep.subr.bf16.mxu0 0
    %1377 = vmatpush1.bf16.xpose.msra.mxu0 0
    %1378 = vmatprep.subr.bf16.mxu0 0
    %1379 = vmatpush1.bf16.xpose.msra.mxu0 0
    %1380 = vmatprep.subr.bf16.mxu0 0
    %1381 = vmatpush1.bf16.xpose.msra.mxu0 0
    %1382 = vmatprep.subr.bf16.mxu0 0
    %1383 = vmatpush1.bf16.xpose.msra.mxu0 0
    %1384 = vmatprep.subr.bf16.mxu0 0
    %1385 = vmatpush1.bf16.xpose.msra.mxu0 0
    %1386 = vmatprep.subr.bf16.mxu0 0
    %1387 = vmatpush1.bf16.xpose.msra.mxu0 0
    %1388 = vmatprep.subr.bf16.mxu0 0
    %1389 = vmatpush1.bf16.xpose.msra.mxu0 0
    %1390 = vmatprep.subr.bf16.mxu0 0
    %1391 = vmatpush1.bf16.xpose.msra.mxu0 0
    %1392 = vmatprep.subr.bf16.mxu0 0
    %1393 = vmatpush1.bf16.xpose.msra.mxu0 0
    %1394 = vmatprep.subr.bf16.mxu0 0
    %1395 = vmatpush1.bf16.xpose.msra.mxu0 0
    %1396 = vmatprep.subr.bf16.mxu0 0
    %1397 = vmatpush1.bf16.xpose.msra.mxu0 0
    %1398 = vmatprep.subr.bf16.mxu0 0
    %1399 = vmatpush1.bf16.xpose.msra.mxu0 0
    %1400 = vmatprep.mubr.bf16.mxu0 0
    %1401 = vmatmul.mubr.bf16.gmra.mrb[0].mxu0 %v1363
    %v1402 = vpop.f32.mrb[0].mxu0
    %v1403 = vadd.f32 0.0, %v1402
    %v1404 = vpop.f32.mrb[0].mxu0
    %v1405 = vpop.f32.mrb[0].mxu0
    %v1406 = vpop.f32.mrb[0].mxu0
    %1407 = vdwg.mxu0
    %v1409 = vsel %vm739, %v717, 0
    %v1412 = vsel %vm739, %v1310, 0
    %1414 = vmatprep.subr.bf16.mxu0 0
    %1415 = vmatpush1.bf16.xpose.msra.mxu0 %v1412
    %1416 = vmatprep.subr.bf16.mxu0 0
    %1417 = vmatpush1.bf16.xpose.msra.mxu0 0
    %1418 = vmatprep.subr.bf16.mxu0 0
    %1419 = vmatpush1.bf16.xpose.msra.mxu0 0
    %1420 = vmatprep.subr.bf16.mxu0 0
    %1421 = vmatpush1.bf16.xpose.msra.mxu0 0
    %1422 = vmatprep.subr.bf16.mxu0 0
    %1423 = vmatpush1.bf16.xpose.msra.mxu0 0
    %1424 = vmatprep.subr.bf16.mxu0 0
    %1425 = vmatpush1.bf16.xpose.msra.mxu0 0
    %1426 = vmatprep.subr.bf16.mxu0 0
    %1427 = vmatpush1.bf16.xpose.msra.mxu0 0
    %1428 = vmatprep.subr.bf16.mxu0 0
    %1429 = vmatpush1.bf16.xpose.msra.mxu0 0
    %1430 = vmatprep.subr.bf16.mxu0 0
    %1431 = vmatpush1.bf16.xpose.msra.mxu0 0
    %1432 = vmatprep.subr.bf16.mxu0 0
    %1433 = vmatpush1.bf16.xpose.msra.mxu0 0
    %1434 = vmatprep.subr.bf16.mxu0 0
    %1435 = vmatpush1.bf16.xpose.msra.mxu0 0
    %1436 = vmatprep.subr.bf16.mxu0 0
    %1437 = vmatpush1.bf16.xpose.msra.mxu0 0
    %1438 = vmatprep.subr.bf16.mxu0 0
    %1439 = vmatpush1.bf16.xpose.msra.mxu0 0
    %1440 = vmatprep.subr.bf16.mxu0 0
    %1441 = vmatpush1.bf16.xpose.msra.mxu0 0
    %1442 = vmatprep.subr.bf16.mxu0 0
    %1443 = vmatpush1.bf16.xpose.msra.mxu0 0
    %1444 = vmatprep.subr.bf16.mxu0 0
    %1445 = vmatpush1.bf16.xpose.msra.mxu0 0
    %1446 = vmatprep.mubr.bf16.mxu0 0
    %1447 = vmatmul.mubr.bf16.gmra.mrb[0].mxu0 %v1409
    %v1448 = vpop.f32.mrb[0].mxu0
    %v1449 = vadd.f32 0.0, %v1448
    %v1450 = vpop.f32.mrb[0].mxu0
    %v1451 = vpop.f32.mrb[0].mxu0
    %v1452 = vpop.f32.mrb[0].mxu0
    %1453 = vdwg.mxu0
    %v1455 = vsel %vm739, %v718, 0
    %v1458 = vsel %vm739, %v1311, 0
    %1460 = vmatprep.subr.bf16.mxu0 0
    %1461 = vmatpush1.bf16.xpose.msra.mxu0 %v1458
    %1462 = vmatprep.subr.bf16.mxu0 0
    %1463 = vmatpush1.bf16.xpose.msra.mxu0 0
    %1464 = vmatprep.subr.bf16.mxu0 0
    %1465 = vmatpush1.bf16.xpose.msra.mxu0 0
    %1466 = vmatprep.subr.bf16.mxu0 0
    %1467 = vmatpush1.bf16.xpose.msra.mxu0 0
    %1468 = vmatprep.subr.bf16.mxu0 0
    %1469 = vmatpush1.bf16.xpose.msra.mxu0 0
    %1470 = vmatprep.subr.bf16.mxu0 0
    %1471 = vmatpush1.bf16.xpose.msra.mxu0 0
    %1472 = vmatprep.subr.bf16.mxu0 0
    %1473 = vmatpush1.bf16.xpose.msra.mxu0 0
    %1474 = vmatprep.subr.bf16.mxu0 0
    %1475 = vmatpush1.bf16.xpose.msra.mxu0 0
    %1476 = vmatprep.subr.bf16.mxu0 0
    %1477 = vmatpush1.bf16.xpose.msra.mxu0 0
    %1478 = vmatprep.subr.bf16.mxu0 0
    %1479 = vmatpush1.bf16.xpose.msra.mxu0 0
    %1480 = vmatprep.subr.bf16.mxu0 0
    %1481 = vmatpush1.bf16.xpose.msra.mxu0 0
    %1482 = vmatprep.subr.bf16.mxu0 0
    %1483 = vmatpush1.bf16.xpose.msra.mxu0 0
    %1484 = vmatprep.subr.bf16.mxu0 0
    %1485 = vmatpush1.bf16.xpose.msra.mxu0 0
    %1486 = vmatprep.subr.bf16.mxu0 0
    %1487 = vmatpush1.bf16.xpose.msra.mxu0 0
    %1488 = vmatprep.subr.bf16.mxu0 0
    %1489 = vmatpush1.bf16.xpose.msra.mxu0 0
    %1490 = vmatprep.subr.bf16.mxu0 0
    %1491 = vmatpush1.bf16.xpose.msra.mxu0 0
    %1492 = vmatprep.mubr.bf16.mxu0 0
    %1493 = vmatmul.mubr.bf16.gmra.mrb[0].mxu0 %v1455
    %v1494 = vpop.f32.mrb[0].mxu0
    %v1495 = vadd.f32 0.0, %v1494
    %v1496 = vpop.f32.mrb[0].mxu0
    %v1497 = vpop.f32.mrb[0].mxu0
    %v1498 = vpop.f32.mrb[0].mxu0
    %1499 = vdwg.mxu0
    %v1501 = vsel %vm739, %v719, 0
    %v1504 = vsel %vm739, %v1312, 0
    %1506 = vmatprep.subr.bf16.mxu0 0
    %1507 = vmatpush1.bf16.xpose.msra.mxu0 %v1504
    %1508 = vmatprep.subr.bf16.mxu0 0
    %1509 = vmatpush1.bf16.xpose.msra.mxu0 0
    %1510 = vmatprep.subr.bf16.mxu0 0
    %1511 = vmatpush1.bf16.xpose.msra.mxu0 0
    %1512 = vmatprep.subr.bf16.mxu0 0
    %1513 = vmatpush1.bf16.xpose.msra.mxu0 0
    %1514 = vmatprep.subr.bf16.mxu0 0
    %1515 = vmatpush1.bf16.xpose.msra.mxu0 0
    %1516 = vmatprep.subr.bf16.mxu0 0
    %1517 = vmatpush1.bf16.xpose.msra.mxu0 0
    %1518 = vmatprep.subr.bf16.mxu0 0
    %1519 = vmatpush1.bf16.xpose.msra.mxu0 0
    %1520 = vmatprep.subr.bf16.mxu0 0
    %1521 = vmatpush1.bf16.xpose.msra.mxu0 0
    %1522 = vmatprep.subr.bf16.mxu0 0
    %1523 = vmatpush1.bf16.xpose.msra.mxu0 0
    %1524 = vmatprep.subr.bf16.mxu0 0
    %1525 = vmatpush1.bf16.xpose.msra.mxu0 0
    %1526 = vmatprep.subr.bf16.mxu0 0
    %1527 = vmatpush1.bf16.xpose.msra.mxu0 0
    %1528 = vmatprep.subr.bf16.mxu0 0
    %1529 = vmatpush1.bf16.xpose.msra.mxu0 0
    %1530 = vmatprep.subr.bf16.mxu0 0
    %1531 = vmatpush1.bf16.xpose.msra.mxu0 0
    %1532 = vmatprep.subr.bf16.mxu0 0
    %1533 = vmatpush1.bf16.xpose.msra.mxu0 0
    %1534 = vmatprep.subr.bf16.mxu0 0
    %1535 = vmatpush1.bf16.xpose.msra.mxu0 0
    %1536 = vmatprep.subr.bf16.mxu0 0
    %1537 = vmatpush1.bf16.xpose.msra.mxu0 0
    %1538 = vmatprep.mubr.bf16.mxu0 0
    %1539 = vmatmul.mubr.bf16.gmra.mrb[0].mxu0 %v1501
    %v1540 = vpop.f32.mrb[0].mxu0
    %v1541 = vadd.f32 0.0, %v1540
    %v1542 = vpop.f32.mrb[0].mxu0
    %v1543 = vpop.f32.mrb[0].mxu0
    %v1544 = vpop.f32.mrb[0].mxu0
    %1545 = vdwg.mxu0
    %v1547 = vsel %vm739, %v720, 0
    %v1550 = vsel %vm739, %v1313, 0
    %1552 = vmatprep.subr.bf16.mxu0 0
    %1553 = vmatpush1.bf16.xpose.msra.mxu0 %v1550
    %1554 = vmatprep.subr.bf16.mxu0 0
    %1555 = vmatpush1.bf16.xpose.msra.mxu0 0
    %1556 = vmatprep.subr.bf16.mxu0 0
    %1557 = vmatpush1.bf16.xpose.msra.mxu0 0
    %1558 = vmatprep.subr.bf16.mxu0 0
    %1559 = vmatpush1.bf16.xpose.msra.mxu0 0
    %1560 = vmatprep.subr.bf16.mxu0 0
    %1561 = vmatpush1.bf16.xpose.msra.mxu0 0
    %1562 = vmatprep.subr.bf16.mxu0 0
    %1563 = vmatpush1.bf16.xpose.msra.mxu0 0
    %1564 = vmatprep.subr.bf16.mxu0 0
    %1565 = vmatpush1.bf16.xpose.msra.mxu0 0
    %1566 = vmatprep.subr.bf16.mxu0 0
    %1567 = vmatpush1.bf16.xpose.msra.mxu0 0
    %1568 = vmatprep.subr.bf16.mxu0 0
    %1569 = vmatpush1.bf16.xpose.msra.mxu0 0
    %1570 = vmatprep.subr.bf16.mxu0 0
    %1571 = vmatpush1.bf16.xpose.msra.mxu0 0
    %1572 = vmatprep.subr.bf16.mxu0 0
    %1573 = vmatpush1.bf16.xpose.msra.mxu0 0
    %1574 = vmatprep.subr.bf16.mxu0 0
    %1575 = vmatpush1.bf16.xpose.msra.mxu0 0
    %1576 = vmatprep.subr.bf16.mxu0 0
    %1577 = vmatpush1.bf16.xpose.msra.mxu0 0
    %1578 = vmatprep.subr.bf16.mxu0 0
    %1579 = vmatpush1.bf16.xpose.msra.mxu0 0
    %1580 = vmatprep.subr.bf16.mxu0 0
    %1581 = vmatpush1.bf16.xpose.msra.mxu0 0
    %1582 = vmatprep.subr.bf16.mxu0 0
    %1583 = vmatpush1.bf16.xpose.msra.mxu0 0
    %1584 = vmatprep.mubr.bf16.mxu0 0
    %1585 = vmatmul.mubr.bf16.gmra.mrb[0].mxu0 %v1547
    %v1586 = vpop.f32.mrb[0].mxu0
    %v1587 = vadd.f32 0.0, %v1586
    %v1588 = vpop.f32.mrb[0].mxu0
    %v1589 = vpop.f32.mrb[0].mxu0
    %v1590 = vpop.f32.mrb[0].mxu0
    %1591 = vdwg.mxu0
    %v1593 = vsel %vm739, %v721, 0
    %v1596 = vsel %vm739, %v1314, 0
    %1598 = vmatprep.subr.bf16.mxu0 0
    %1599 = vmatpush1.bf16.xpose.msra.mxu0 %v1596
    %1600 = vmatprep.subr.bf16.mxu0 0
    %1601 = vmatpush1.bf16.xpose.msra.mxu0 0
    %1602 = vmatprep.subr.bf16.mxu0 0
    %1603 = vmatpush1.bf16.xpose.msra.mxu0 0
    %1604 = vmatprep.subr.bf16.mxu0 0
    %1605 = vmatpush1.bf16.xpose.msra.mxu0 0
    %1606 = vmatprep.subr.bf16.mxu0 0
    %1607 = vmatpush1.bf16.xpose.msra.mxu0 0
    %1608 = vmatprep.subr.bf16.mxu0 0
    %1609 = vmatpush1.bf16.xpose.msra.mxu0 0
    %1610 = vmatprep.subr.bf16.mxu0 0
    %1611 = vmatpush1.bf16.xpose.msra.mxu0 0
    %1612 = vmatprep.subr.bf16.mxu0 0
    %1613 = vmatpush1.bf16.xpose.msra.mxu0 0
    %1614 = vmatprep.subr.bf16.mxu0 0
    %1615 = vmatpush1.bf16.xpose.msra.mxu0 0
    %1616 = vmatprep.subr.bf16.mxu0 0
    %1617 = vmatpush1.bf16.xpose.msra.mxu0 0
    %1618 = vmatprep.subr.bf16.mxu0 0
    %1619 = vmatpush1.bf16.xpose.msra.mxu0 0
    %1620 = vmatprep.subr.bf16.mxu0 0
    %1621 = vmatpush1.bf16.xpose.msra.mxu0 0
    %1622 = vmatprep.subr.bf16.mxu0 0
    %1623 = vmatpush1.bf16.xpose.msra.mxu0 0
    %1624 = vmatprep.subr.bf16.mxu0 0
    %1625 = vmatpush1.bf16.xpose.msra.mxu0 0
    %1626 = vmatprep.subr.bf16.mxu0 0
    %1627 = vmatpush1.bf16.xpose.msra.mxu0 0
    %1628 = vmatprep.subr.bf16.mxu0 0
    %1629 = vmatpush1.bf16.xpose.msra.mxu0 0
    %1630 = vmatprep.mubr.bf16.mxu0 0
    %1631 = vmatmul.mubr.bf16.gmra.mrb[0].mxu0 %v1593
    %v1632 = vpop.f32.mrb[0].mxu0
    %v1633 = vadd.f32 0.0, %v1632
    %v1634 = vpop.f32.mrb[0].mxu0
    %v1635 = vpop.f32.mrb[0].mxu0
    %v1636 = vpop.f32.mrb[0].mxu0
    %1637 = vdwg.mxu0
    %v1639 = vsel %vm739, %v722, 0
    %v1642 = vsel %vm739, %v1315, 0
    %1644 = vmatprep.subr.bf16.mxu0 0
    %1645 = vmatpush1.bf16.xpose.msra.mxu0 %v1642
    %1646 = vmatprep.subr.bf16.mxu0 0
    %1647 = vmatpush1.bf16.xpose.msra.mxu0 0
    %1648 = vmatprep.subr.bf16.mxu0 0
    %1649 = vmatpush1.bf16.xpose.msra.mxu0 0
    %1650 = vmatprep.subr.bf16.mxu0 0
    %1651 = vmatpush1.bf16.xpose.msra.mxu0 0
    %1652 = vmatprep.subr.bf16.mxu0 0
    %1653 = vmatpush1.bf16.xpose.msra.mxu0 0
    %1654 = vmatprep.subr.bf16.mxu0 0
    %1655 = vmatpush1.bf16.xpose.msra.mxu0 0
    %1656 = vmatprep.subr.bf16.mxu0 0
    %1657 = vmatpush1.bf16.xpose.msra.mxu0 0
    %1658 = vmatprep.subr.bf16.mxu0 0
    %1659 = vmatpush1.bf16.xpose.msra.mxu0 0
    %1660 = vmatprep.subr.bf16.mxu0 0
    %1661 = vmatpush1.bf16.xpose.msra.mxu0 0
    %1662 = vmatprep.subr.bf16.mxu0 0
    %1663 = vmatpush1.bf16.xpose.msra.mxu0 0
    %1664 = vmatprep.subr.bf16.mxu0 0
    %1665 = vmatpush1.bf16.xpose.msra.mxu0 0
    %1666 = vmatprep.subr.bf16.mxu0 0
    %1667 = vmatpush1.bf16.xpose.msra.mxu0 0
    %1668 = vmatprep.subr.bf16.mxu0 0
    %1669 = vmatpush1.bf16.xpose.msra.mxu0 0
    %1670 = vmatprep.subr.bf16.mxu0 0
    %1671 = vmatpush1.bf16.xpose.msra.mxu0 0
    %1672 = vmatprep.subr.bf16.mxu0 0
    %1673 = vmatpush1.bf16.xpose.msra.mxu0 0
    %1674 = vmatprep.subr.bf16.mxu0 0
    %1675 = vmatpush1.bf16.xpose.msra.mxu0 0
    %1676 = vmatprep.mubr.bf16.mxu0 0
    %1677 = vmatmul.mubr.bf16.gmra.mrb[0].mxu0 %v1639
    %v1678 = vpop.f32.mrb[0].mxu0
    %v1679 = vadd.f32 0.0, %v1678
    %v1680 = vpop.f32.mrb[0].mxu0
    %v1681 = vpop.f32.mrb[0].mxu0
    %v1682 = vpop.f32.mrb[0].mxu0
    %1683 = vdwg.mxu0
    %1684 = vxpose.xlu0.b32.start [1/16] %v1357, 128
    %1685 = vxpose.xlu0.b32.cont [2/16] %v1403, 128
    %1686 = vxpose.xlu0.b32.cont [3/16] %v1449, 128
    %1687 = vxpose.xlu0.b32.cont [4/16] %v1495, 128
    %1688 = vxpose.xlu0.b32.cont [5/16] 0.0, 128
    %1689 = vxpose.xlu0.b32.cont [6/16] 0.0, 128
    %1690 = vxpose.xlu0.b32.cont [7/16] 0.0, 128
    %1691 = vxpose.xlu0.b32.cont [8/16] 0.0, 128
    %1692 = vxpose.xlu0.b32.cont [9/16] 0.0, 128
    %1693 = vxpose.xlu0.b32.cont [10/16] 0.0, 128
    %1694 = vxpose.xlu0.b32.cont [11/16] 0.0, 128
    %1695 = vxpose.xlu0.b32.cont [12/16] 0.0, 128
    %1696 = vxpose.xlu0.b32.cont [13/16] 0.0, 128
    %1697 = vxpose.xlu0.b32.cont [14/16] 0.0, 128
    %1698 = vxpose.xlu0.b32.cont [15/16] 0.0, 128
    %1699 = vxpose.xlu0.b32.end [16/16] 0.0, 128
    %v1700 = vpop.trf.xlu0
    %v1701 = vpop.trf.xlu0
    %v1702 = vpop.trf.xlu0
    %v1703 = vpop.trf.xlu0
    %v1704 = vpop.trf.xlu0
    %v1705 = vpop.trf.xlu0
    %v1706 = vpop.trf.xlu0
    %v1707 = vpop.trf.xlu0
    %v1708 = vpop.trf.xlu0
    %v1709 = vpop.trf.xlu0
    %v1710 = vpop.trf.xlu0
    %v1711 = vpop.trf.xlu0
    %v1712 = vpop.trf.xlu0
    %v1713 = vpop.trf.xlu0
    %v1714 = vpop.trf.xlu0
    %v1715 = vpop.trf.xlu0
    %1716 = vxpose.xlu0.b32.start [1/16] %v1541, 128
    %1717 = vxpose.xlu0.b32.cont [2/16] %v1587, 128
    %1718 = vxpose.xlu0.b32.cont [3/16] %v1633, 128
    %1719 = vxpose.xlu0.b32.cont [4/16] %v1679, 128
    %1720 = vxpose.xlu0.b32.cont [5/16] 0.0, 128
    %1721 = vxpose.xlu0.b32.cont [6/16] 0.0, 128
    %1722 = vxpose.xlu0.b32.cont [7/16] 0.0, 128
    %1723 = vxpose.xlu0.b32.cont [8/16] 0.0, 128
    %1724 = vxpose.xlu0.b32.cont [9/16] 0.0, 128
    %1725 = vxpose.xlu0.b32.cont [10/16] 0.0, 128
    %1726 = vxpose.xlu0.b32.cont [11/16] 0.0, 128
    %1727 = vxpose.xlu0.b32.cont [12/16] 0.0, 128
    %1728 = vxpose.xlu0.b32.cont [13/16] 0.0, 128
    %1729 = vxpose.xlu0.b32.cont [14/16] 0.0, 128
    %1730 = vxpose.xlu0.b32.cont [15/16] 0.0, 128
    %1731 = vxpose.xlu0.b32.end [16/16] 0.0, 128
    %v1732 = vpop.trf.xlu0
    %v1733 = vpop.trf.xlu0
    %v1734 = vpop.trf.xlu0
    %v1735 = vpop.trf.xlu0
    %v1736 = vpop.trf.xlu0
    %v1737 = vpop.trf.xlu0
    %v1738 = vpop.trf.xlu0
    %v1739 = vpop.trf.xlu0
    %v1740 = vpop.trf.xlu0
    %v1741 = vpop.trf.xlu0
    %v1742 = vpop.trf.xlu0
    %v1743 = vpop.trf.xlu0
    %v1744 = vpop.trf.xlu0
    %v1745 = vpop.trf.xlu0
    %v1746 = vpop.trf.xlu0
    %v1747 = vpop.trf.xlu0
    %v1748 = vpack.c.bf16 %v1732, %v1700
    %v1750 = vlaneseq
    %v1751 = vshrl.u32 %v1750, 7
    %v1752 = vsub.s32 0, %v1751
    %v1753 = vrot.slane %v426, %v1752
    %v1759 = vunpack.c.l.b16 %v422
    %v1760 = vunpack.c.l.b16 %v423
    %v1761 = vunpack.c.l.b16 %v424
    %v1762 = vunpack.c.l.b16 %v425
    %v1763 = vpack.c.b16 %v1760, %v1759
    %v1764 = vpack.c.b16 %v1762, %v1761
    %v1768 = vsel %vm446, %v1748, 0
    %1770 = vmatprep.subr.bf16.mxu0 0
    %1771 = vmatpush1.bf16.msra.mxu0 %v1763
    %1772 = vmatprep.subr.bf16.mxu0 0
    %1773 = vmatpush1.bf16.msra.mxu0 %v1764
    %1774 = vmatprep.subr.bf16.mxu0 0
    %1775 = vmatpush1.bf16.msra.mxu0 0
    %1776 = vmatprep.subr.bf16.mxu0 0
    %1777 = vmatpush1.bf16.msra.mxu0 0
    %1778 = vmatprep.subr.bf16.mxu0 0
    %1779 = vmatpush1.bf16.msra.mxu0 0
    %1780 = vmatprep.subr.bf16.mxu0 0
    %1781 = vmatpush1.bf16.msra.mxu0 0
    %1782 = vmatprep.subr.bf16.mxu0 0
    %1783 = vmatpush1.bf16.msra.mxu0 0
    %1784 = vmatprep.subr.bf16.mxu0 0
    %1785 = vmatpush1.bf16.msra.mxu0 0
    %1786 = vmatprep.subr.bf16.mxu0 0
    %1787 = vmatpush1.bf16.msra.mxu0 0
    %1788 = vmatprep.subr.bf16.mxu0 0
    %1789 = vmatpush1.bf16.msra.mxu0 0
    %1790 = vmatprep.subr.bf16.mxu0 0
    %1791 = vmatpush1.bf16.msra.mxu0 0
    %1792 = vmatprep.subr.bf16.mxu0 0
    %1793 = vmatpush1.bf16.msra.mxu0 0
    %1794 = vmatprep.subr.bf16.mxu0 0
    %1795 = vmatpush1.bf16.msra.mxu0 0
    %1796 = vmatprep.subr.bf16.mxu0 0
    %1797 = vmatpush1.bf16.msra.mxu0 0
    %1798 = vmatprep.subr.bf16.mxu0 0
    %1799 = vmatpush1.bf16.msra.mxu0 0
    %1800 = vmatprep.subr.bf16.mxu0 0
    %1801 = vmatpush1.bf16.msra.mxu0 0
    %1802 = vmatprep.mubr.bf16.mxu0 0
    %1803 = vmatmul.mubr.bf16.gmra.mrb[0].mxu0 %v1768
    %v1804 = vpop.f32.mrb[0].mxu0
    %v1805 = vadd.f32 %v1753, %v1804
    %v1806 = vpop.f32.mrb[0].mxu0
    %v1807 = vpop.f32.mrb[0].mxu0
    %v1808 = vadd.f32 %v1753, %v1807
    %v1809 = vpop.f32.mrb[0].mxu0
    %1810 = vdwg.mxu0
    %v1811 = vadd.f32 %v415, %v1805
    %v1812 = vadd.f32 %v416, %v1808
    %v1813 = vld [vmem:[#allocation7] sm:$0x3]
    %v1814 = vsel %vm446, %v1811, 0.0
    %1815 = vadd.xlane.f32.xlu0 %v1814
    %v1816 = vpop.xlane.xlu0 %1815
    %v1817 = vsel %vm446, %v1812, 0.0
    %1818 = vadd.xlane.f32.xlu0 %v1817
    %v1819 = vpop.xlane.xlu0 %1818
    %v1820 = vrcp.pop 32.0
    %v1821 = vmul.f32 %v1816, %v1820
    %v1822 = vmul.f32 %v1819, %v1820
    %v1823 = vsub.f32 %v1811, %v1821
    %v1824 = vsub.f32 %v1812, %v1822
    %v1825 = vmul.f32 %v1823, %v1823
    %v1826 = vmul.f32 %v1824, %v1824
    %v1827 = vsel %vm446, %v1825, 0.0
    %1828 = vadd.xlane.f32.xlu0 %v1827
    %v1829 = vpop.xlane.xlu0 %1828
    %v1830 = vsel %vm446, %v1826, 0.0
    %1831 = vadd.xlane.f32.xlu0 %v1830
    %v1832 = vpop.xlane.xlu0 %1831
    %v1833 = vmul.f32 %v1829, %v1820
    %v1834 = vmul.f32 %v1832, %v1820
    %v1835 = vadd.f32 %v1833, 1e-05
    %v1836 = vadd.f32 %v1834, 1e-05
    %v1837 = vrsqrt.pop %v1835
    %v1838 = vrsqrt.pop %v1836
    %v1839 = vmul.f32 %v1823, %v1837
    %v1840 = vmul.f32 %v1824, %v1838
    %v1841 = vlaneseq
    %v1842 = vshrl.u32 %v1841, 7
    %v1843 = vsub.s32 0, %v1842
    %v1844 = vrot.slane %v1813, %v1843
    %v1845 = vmul.f32 %v1839, %v1844
    %v1846 = vmul.f32 %v1840, %v1844
    %v1847 = vlaneseq
    %v1848 = vshrl.u32 %v1847, 7
    %v1849 = vsub.s32 1, %v1848
    %v1850 = vrot.slane %v1813, %v1849
    %v1851 = vadd.f32 %v1845, %v1850
    %v1852 = vadd.f32 %v1846, %v1850
    %v1853 = vld [vmem:[%s17] sm:$0xf]
    %v1854 = vld [vmem:[%s17 + $0x4] sm:$0xf]
    %v1855 = vld [vmem:[%s17 + $0x8] sm:$0xf]
    %v1856 = vld [vmem:[%s17 + $0xc] sm:$0xf]
    %v1857 = vld [vmem:[#allocation4] sm:$0x1]
    %v1858 = vld [vmem:[%s21] sm:$0xf]
    %v1859 = vld [vmem:[%s21 + $0x4] sm:$0xf]
    %v1860 = vld [vmem:[%s21 + $0x8] sm:$0xf]
    %v1861 = vld [vmem:[%s21 + $0xc] sm:$0xf]
    %v1862 = vld [vmem:[%s21 + $0x10] sm:$0xf]
    %v1863 = vld [vmem:[%s21 + $0x14] sm:$0xf]
    %v1864 = vld [vmem:[%s21 + $0x18] sm:$0xf]
    %v1865 = vld [vmem:[%s21 + $0x1c] sm:$0xf]
    %v1866 = vld [vmem:[#allocation6] sm:$0x1]
    %v1867 = vpack.c.bf16 %v1852, %v1851
    %v1869 = vlaneseq
    %v1870 = vshrl.u32 %v1869, 7
    %v1871 = vsub.s32 0, %v1870
    %v1872 = vrot.slane %v1857, %v1871
    %v1878 = vunpack.c.l.b16 %v1853
    %v1879 = vunpack.c.l.b16 %v1854
    %v1880 = vunpack.c.l.b16 %v1855
    %v1881 = vunpack.c.l.b16 %v1856
    %v1882 = vpack.c.b16 %v1879, %v1878
    %v1883 = vpack.c.b16 %v1881, %v1880
    %v1887 = vsel %vm446, %v1867, 0
    %1889 = vmatprep.subr.bf16.mxu0 0
    %1890 = vmatpush1.bf16.msra.mxu0 %v1882
    %1891 = vmatprep.subr.bf16.mxu0 0
    %1892 = vmatpush1.bf16.msra.mxu0 %v1883
    %1893 = vmatprep.subr.bf16.mxu0 0
    %1894 = vmatpush1.bf16.msra.mxu0 0
    %1895 = vmatprep.subr.bf16.mxu0 0
    %1896 = vmatpush1.bf16.msra.mxu0 0
    %1897 = vmatprep.subr.bf16.mxu0 0
    %1898 = vmatpush1.bf16.msra.mxu0 0
    %1899 = vmatprep.subr.bf16.mxu0 0
    %1900 = vmatpush1.bf16.msra.mxu0 0
    %1901 = vmatprep.subr.bf16.mxu0 0
    %1902 = vmatpush1.bf16.msra.mxu0 0
    %1903 = vmatprep.subr.bf16.mxu0 0
    %1904 = vmatpush1.bf16.msra.mxu0 0
    %1905 = vmatprep.subr.bf16.mxu0 0
    %1906 = vmatpush1.bf16.msra.mxu0 0
    %1907 = vmatprep.subr.bf16.mxu0 0
    %1908 = vmatpush1.bf16.msra.mxu0 0
    %1909 = vmatprep.subr.bf16.mxu0 0
    %1910 = vmatpush1.bf16.msra.mxu0 0
    %1911 = vmatprep.subr.bf16.mxu0 0
    %1912 = vmatpush1.bf16.msra.mxu0 0
    %1913 = vmatprep.subr.bf16.mxu0 0
    %1914 = vmatpush1.bf16.msra.mxu0 0
    %1915 = vmatprep.subr.bf16.mxu0 0
    %1916 = vmatpush1.bf16.msra.mxu0 0
    %1917 = vmatprep.subr.bf16.mxu0 0
    %1918 = vmatpush1.bf16.msra.mxu0 0
    %1919 = vmatprep.subr.bf16.mxu0 0
    %1920 = vmatpush1.bf16.msra.mxu0 0
    %1921 = vmatprep.mubr.bf16.mxu0 0
    %1922 = vmatmul.mubr.bf16.gmra.mrb[0].mxu0 %v1887
    %v1923 = vpop.f32.mrb[0].mxu0
    %v1924 = vadd.f32 %v1872, %v1923
    %v1925 = vpop.f32.mrb[0].mxu0
    %v1926 = vpop.f32.mrb[0].mxu0
    %v1927 = vadd.f32 %v1872, %v1926
    %v1928 = vpop.f32.mrb[0].mxu0
    %1929 = vdwg.mxu0
    %v1930 = vmax.f32 %v1924, 0.0
    %v1931 = vmax.f32 %v1927, 0.0
    %v1932 = vpack.c.bf16 %v1931, %v1930
    %v1934 = vlaneseq
    %v1935 = vshrl.u32 %v1934, 7
    %v1936 = vsub.s32 0, %v1935
    %v1937 = vrot.slane %v1866, %v1936
    %v1947 = vunpack.c.l.b16 %v1858
    %v1948 = vunpack.c.l.b16 %v1859
    %v1949 = vunpack.c.l.b16 %v1860
    %v1950 = vunpack.c.l.b16 %v1861
    %v1951 = vunpack.c.l.b16 %v1862
    %v1952 = vunpack.c.l.b16 %v1863
    %v1953 = vunpack.c.l.b16 %v1864
    %v1954 = vunpack.c.l.b16 %v1865
    %v1955 = vpack.c.b16 %v1948, %v1947
    %v1956 = vpack.c.b16 %v1950, %v1949
    %v1957 = vpack.c.b16 %v1952, %v1951
    %v1958 = vpack.c.b16 %v1954, %v1953
    %vm1963 = vcmask 523264
    %v1965 = vsel %vm1963, %v1932, 0
    %1967 = vmatprep.subr.bf16.mxu0 0
    %1968 = vmatpush1.bf16.msra.mxu0 %v1955
    %1969 = vmatprep.subr.bf16.mxu0 0
    %1970 = vmatpush1.bf16.msra.mxu0 %v1956
    %1971 = vmatprep.subr.bf16.mxu0 0
    %1972 = vmatpush1.bf16.msra.mxu0 %v1957
    %1973 = vmatprep.subr.bf16.mxu0 0
    %1974 = vmatpush1.bf16.msra.mxu0 %v1958
    %1975 = vmatprep.subr.bf16.mxu0 0
    %1976 = vmatpush1.bf16.msra.mxu0 0
    %1977 = vmatprep.subr.bf16.mxu0 0
    %1978 = vmatpush1.bf16.msra.mxu0 0
    %1979 = vmatprep.subr.bf16.mxu0 0
    %1980 = vmatpush1.bf16.msra.mxu0 0
    %1981 = vmatprep.subr.bf16.mxu0 0
    %1982 = vmatpush1.bf16.msra.mxu0 0
    %1983 = vmatprep.subr.bf16.mxu0 0
    %1984 = vmatpush1.bf16.msra.mxu0 0
    %1985 = vmatprep.subr.bf16.mxu0 0
    %1986 = vmatpush1.bf16.msra.mxu0 0
    %1987 = vmatprep.subr.bf16.mxu0 0
    %1988 = vmatpush1.bf16.msra.mxu0 0
    %1989 = vmatprep.subr.bf16.mxu0 0
    %1990 = vmatpush1.bf16.msra.mxu0 0
    %1991 = vmatprep.subr.bf16.mxu0 0
    %1992 = vmatpush1.bf16.msra.mxu0 0
    %1993 = vmatprep.subr.bf16.mxu0 0
    %1994 = vmatpush1.bf16.msra.mxu0 0
    %1995 = vmatprep.subr.bf16.mxu0 0
    %1996 = vmatpush1.bf16.msra.mxu0 0
    %1997 = vmatprep.subr.bf16.mxu0 0
    %1998 = vmatpush1.bf16.msra.mxu0 0
    %1999 = vmatprep.mubr.bf16.mxu0 0
    %2000 = vmatmul.mubr.bf16.gmra.mrb[0].mxu0 %v1965
    %v2001 = vpop.f32.mrb[0].mxu0
    %v2002 = vadd.f32 %v1937, %v2001
    %v2003 = vpop.f32.mrb[0].mxu0
    %v2004 = vpop.f32.mrb[0].mxu0
    %v2005 = vadd.f32 %v1937, %v2004
    %v2006 = vpop.f32.mrb[0].mxu0
    %2007 = vdwg.mxu0
    %v2008 = vadd.f32 %v1851, %v2002
    %v2009 = vadd.f32 %v1852, %v2005
    %s2010 = scalar_lea.vmem [#allocation7], 2
    %v2011 = vld [vmem:[%s2010] sm:$0x3]
    %v2012 = vsel %vm446, %v2008, 0.0
    %2013 = vadd.xlane.f32.xlu0 %v2012
    %v2014 = vpop.xlane.xlu0 %2013
    %v2015 = vsel %vm446, %v2009, 0.0
    %2016 = vadd.xlane.f32.xlu0 %v2015
    %v2017 = vpop.xlane.xlu0 %2016
    %v2018 = vmul.f32 %v2014, %v1820
    %v2019 = vmul.f32 %v2017, %v1820
    %v2020 = vsub.f32 %v2008, %v2018
    %v2021 = vsub.f32 %v2009, %v2019
    %v2022 = vmul.f32 %v2020, %v2020
    %v2023 = vmul.f32 %v2021, %v2021
    %v2024 = vsel %vm446, %v2022, 0.0
    %2025 = vadd.xlane.f32.xlu0 %v2024
    %v2026 = vpop.xlane.xlu0 %2025
    %v2027 = vsel %vm446, %v2023, 0.0
    %2028 = vadd.xlane.f32.xlu0 %v2027
    %v2029 = vpop.xlane.xlu0 %2028
    %v2030 = vmul.f32 %v2026, %v1820
    %v2031 = vmul.f32 %v2029, %v1820
    %v2032 = vadd.f32 %v2030, 1e-05
    %v2033 = vadd.f32 %v2031, 1e-05
    %v2034 = vrsqrt.pop %v2032
    %v2035 = vrsqrt.pop %v2033
    %v2036 = vmul.f32 %v2020, %v2034
    %v2037 = vmul.f32 %v2021, %v2035
    %v2038 = vlaneseq
    %v2039 = vshrl.u32 %v2038, 7
    %v2040 = vsub.s32 0, %v2039
    %v2041 = vrot.slane %v2011, %v2040
    %v2042 = vmul.f32 %v2036, %v2041
    %v2043 = vmul.f32 %v2037, %v2041
    %v2044 = vlaneseq
    %v2045 = vshrl.u32 %v2044, 7
    %v2046 = vsub.s32 1, %v2045
    %v2047 = vrot.slane %v2011, %v2046
    %v2048 = vadd.f32 %v2042, %v2047
    %v2049 = vadd.f32 %v2043, %v2047
    %s2050 = scalar_lea.vmem %s9, 16
    %v2051 = vld [vmem:[%s2050] sm:$0xf]
    %v2052 = vld [vmem:[%s2050 + $0x4] sm:$0xf]
    %v2053 = vld [vmem:[%s2050 + $0x8] sm:$0xf]
    %v2054 = vld [vmem:[%s2050 + $0xc] sm:$0xf]
    %s2055 = scalar_lea.vmem %s11, 1
    %v2056 = vld [vmem:[%s2055] sm:$0x1]
    %s2057 = scalar_lea.vmem %s13, 16
    %v2058 = vld [vmem:[%s2057] sm:$0xf]
    %v2059 = vld [vmem:[%s2057 + $0x4] sm:$0xf]
    %v2060 = vld [vmem:[%s2057 + $0x8] sm:$0xf]
    %v2061 = vld [vmem:[%s2057 + $0xc] sm:$0xf]
    %s2062 = scalar_lea.vmem [#allocation2], 1
    %v2063 = vld [vmem:[%s2062] sm:$0x1]
    %v2064 = vpack.c.bf16 %v2049, %v2048
    %v2066 = vlaneseq
    %v2067 = vshrl.u32 %v2066, 7
    %v2068 = vsub.s32 0, %v2067
    %v2069 = vrot.slane %v2056, %v2068
    %v2075 = vunpack.c.l.b16 %v2051
    %v2076 = vunpack.c.l.b16 %v2052
    %v2077 = vunpack.c.l.b16 %v2053
    %v2078 = vunpack.c.l.b16 %v2054
    %v2079 = vpack.c.b16 %v2076, %v2075
    %v2080 = vpack.c.b16 %v2078, %v2077
    %v2084 = vsel %vm446, %v2064, 0
    %2086 = vmatprep.subr.bf16.mxu0 0
    %2087 = vmatpush1.bf16.msra.mxu0 %v2079
    %2088 = vmatprep.subr.bf16.mxu0 0
    %2089 = vmatpush1.bf16.msra.mxu0 %v2080
    %2090 = vmatprep.subr.bf16.mxu0 0
    %2091 = vmatpush1.bf16.msra.mxu0 0
    %2092 = vmatprep.subr.bf16.mxu0 0
    %2093 = vmatpush1.bf16.msra.mxu0 0
    %2094 = vmatprep.subr.bf16.mxu0 0
    %2095 = vmatpush1.bf16.msra.mxu0 0
    %2096 = vmatprep.subr.bf16.mxu0 0
    %2097 = vmatpush1.bf16.msra.mxu0 0
    %2098 = vmatprep.subr.bf16.mxu0 0
    %2099 = vmatpush1.bf16.msra.mxu0 0
    %2100 = vmatprep.subr.bf16.mxu0 0
    %2101 = vmatpush1.bf16.msra.mxu0 0
    %2102 = vmatprep.subr.bf16.mxu0 0
    %2103 = vmatpush1.bf16.msra.mxu0 0
    %2104 = vmatprep.subr.bf16.mxu0 0
    %2105 = vmatpush1.bf16.msra.mxu0 0
    %2106 = vmatprep.subr.bf16.mxu0 0
    %2107 = vmatpush1.bf16.msra.mxu0 0
    %2108 = vmatprep.subr.bf16.mxu0 0
    %2109 = vmatpush1.bf16.msra.mxu0 0
    %2110 = vmatprep.subr.bf16.mxu0 0
    %2111 = vmatpush1.bf16.msra.mxu0 0
    %2112 = vmatprep.subr.bf16.mxu0 0
    %2113 = vmatpush1.bf16.msra.mxu0 0
    %2114 = vmatprep.subr.bf16.mxu0 0
    %2115 = vmatpush1.bf16.msra.mxu0 0
    %2116 = vmatprep.subr.bf16.mxu0 0
    %2117 = vmatpush1.bf16.msra.mxu0 0
    %2118 = vmatprep.mubr.bf16.mxu0 0
    %2119 = vmatmul.mubr.bf16.gmra.mrb[0].mxu0 %v2084
    %v2120 = vpop.f32.mrb[0].mxu0
    %v2121 = vadd.f32 %v2069, %v2120
    %v2122 = vpop.f32.mrb[0].mxu0
    %v2123 = vpop.f32.mrb[0].mxu0
    %v2124 = vadd.f32 %v2069, %v2123
    %v2125 = vpop.f32.mrb[0].mxu0
    %2126 = vdwg.mxu0
    %v2127 = vmul.f32 %v2121, 0.35355338
    %v2128 = vmul.f32 %v2124, 0.35355338
    %2129 = vxpose.xlu0.b32.start [1/16] %v2127, 128
    %2130 = vxpose.xlu0.b32.cont [2/16] 0.0, 128
    %2131 = vxpose.xlu0.b32.cont [3/16] 0.0, 128
    %2132 = vxpose.xlu0.b32.cont [4/16] 0.0, 128
    %2133 = vxpose.xlu0.b32.cont [5/16] 0.0, 128
    %2134 = vxpose.xlu0.b32.cont [6/16] 0.0, 128
    %2135 = vxpose.xlu0.b32.cont [7/16] 0.0, 128
    %2136 = vxpose.xlu0.b32.cont [8/16] 0.0, 128
    %2137 = vxpose.xlu0.b32.cont [9/16] 0.0, 128
    %2138 = vxpose.xlu0.b32.cont [10/16] 0.0, 128
    %2139 = vxpose.xlu0.b32.cont [11/16] 0.0, 128
    %2140 = vxpose.xlu0.b32.cont [12/16] 0.0, 128
    %2141 = vxpose.xlu0.b32.cont [13/16] 0.0, 128
    %2142 = vxpose.xlu0.b32.cont [14/16] 0.0, 128
    %2143 = vxpose.xlu0.b32.cont [15/16] 0.0, 128
    %2144 = vxpose.xlu0.b32.end [16/16] 0.0, 128
    %v2145 = vpop.trf.xlu0
    %v2146 = vpop.trf.xlu0
    %v2147 = vpop.trf.xlu0
    %v2148 = vpop.trf.xlu0
    %v2149 = vpop.trf.xlu0
    %v2150 = vpop.trf.xlu0
    %v2151 = vpop.trf.xlu0
    %v2152 = vpop.trf.xlu0
    %v2153 = vpop.trf.xlu0
    %v2154 = vpop.trf.xlu0
    %v2155 = vpop.trf.xlu0
    %v2156 = vpop.trf.xlu0
    %v2157 = vpop.trf.xlu0
    %v2158 = vpop.trf.xlu0
    %v2159 = vpop.trf.xlu0
    %v2160 = vpop.trf.xlu0
    %2161 = vxpose.xlu0.b32.start [1/16] %v2128, 128
    %2162 = vxpose.xlu0.b32.cont [2/16] 0.0, 128
    %2163 = vxpose.xlu0.b32.cont [3/16] 0.0, 128
    %2164 = vxpose.xlu0.b32.cont [4/16] 0.0, 128
    %2165 = vxpose.xlu0.b32.cont [5/16] 0.0, 128
    %2166 = vxpose.xlu0.b32.cont [6/16] 0.0, 128
    %2167 = vxpose.xlu0.b32.cont [7/16] 0.0, 128
    %2168 = vxpose.xlu0.b32.cont [8/16] 0.0, 128
    %2169 = vxpose.xlu0.b32.cont [9/16] 0.0, 128
    %2170 = vxpose.xlu0.b32.cont [10/16] 0.0, 128
    %2171 = vxpose.xlu0.b32.cont [11/16] 0.0, 128
    %2172 = vxpose.xlu0.b32.cont [12/16] 0.0, 128
    %2173 = vxpose.xlu0.b32.cont [13/16] 0.0, 128
    %2174 = vxpose.xlu0.b32.cont [14/16] 0.0, 128
    %2175 = vxpose.xlu0.b32.cont [15/16] 0.0, 128
    %2176 = vxpose.xlu0.b32.end [16/16] 0.0, 128
    %v2177 = vpop.trf.xlu0
    %v2178 = vpop.trf.xlu0
    %v2179 = vpop.trf.xlu0
    %v2180 = vpop.trf.xlu0
    %v2181 = vpop.trf.xlu0
    %v2182 = vpop.trf.xlu0
    %v2183 = vpop.trf.xlu0
    %v2184 = vpop.trf.xlu0
    %v2185 = vpop.trf.xlu0
    %v2186 = vpop.trf.xlu0
    %v2187 = vpop.trf.xlu0
    %v2188 = vpop.trf.xlu0
    %v2189 = vpop.trf.xlu0
    %v2190 = vpop.trf.xlu0
    %v2191 = vpop.trf.xlu0
    %v2192 = vpop.trf.xlu0
    %v2193 = vpack.c.bf16 %v2145, %v2145
    %v2194 = vpack.c.bf16 %v2146, %v2146
    %v2195 = vpack.c.bf16 %v2147, %v2147
    %v2196 = vpack.c.bf16 %v2148, %v2148
    %v2197 = vpack.c.bf16 %v2177, %v2177
    %v2198 = vpack.c.bf16 %v2178, %v2178
    %v2199 = vpack.c.bf16 %v2179, %v2179
    %v2200 = vpack.c.bf16 %v2180, %v2180
    %2203 = vrot.lane.b32.xlu0 %v2121, 96
    %v2204 = vpop.permute.xlu0 %2203
    %2205 = vrot.lane.b32.xlu0 %v2124, 96
    %v2206 = vpop.permute.xlu0 %2205
    %2209 = vxpose.xlu0.b32.start [1/16] %v2204, 128
    %2210 = vxpose.xlu0.b32.cont [2/16] 0.0, 128
    %2211 = vxpose.xlu0.b32.cont [3/16] 0.0, 128
    %2212 = vxpose.xlu0.b32.cont [4/16] 0.0, 128
    %2213 = vxpose.xlu0.b32.cont [5/16] 0.0, 128
    %2214 = vxpose.xlu0.b32.cont [6/16] 0.0, 128
    %2215 = vxpose.xlu0.b32.cont [7/16] 0.0, 128
    %2216 = vxpose.xlu0.b32.cont [8/16] 0.0, 128
    %2217 = vxpose.xlu0.b32.cont [9/16] 0.0, 128
    %2218 = vxpose.xlu0.b32.cont [10/16] 0.0, 128
    %2219 = vxpose.xlu0.b32.cont [11/16] 0.0, 128
    %2220 = vxpose.xlu0.b32.cont [12/16] 0.0, 128
    %2221 = vxpose.xlu0.b32.cont [13/16] 0.0, 128
    %2222 = vxpose.xlu0.b32.cont [14/16] 0.0, 128
    %2223 = vxpose.xlu0.b32.cont [15/16] 0.0, 128
    %2224 = vxpose.xlu0.b32.end [16/16] 0.0, 128
    %v2225 = vpop.trf.xlu0
    %v2226 = vpop.trf.xlu0
    %v2227 = vpop.trf.xlu0
    %v2228 = vpop.trf.xlu0
    %v2229 = vpop.trf.xlu0
    %v2230 = vpop.trf.xlu0
    %v2231 = vpop.trf.xlu0
    %v2232 = vpop.trf.xlu0
    %v2233 = vpop.trf.xlu0
    %v2234 = vpop.trf.xlu0
    %v2235 = vpop.trf.xlu0
    %v2236 = vpop.trf.xlu0
    %v2237 = vpop.trf.xlu0
    %v2238 = vpop.trf.xlu0
    %v2239 = vpop.trf.xlu0
    %v2240 = vpop.trf.xlu0
    %2241 = vxpose.xlu0.b32.start [1/16] %v2206, 128
    %2242 = vxpose.xlu0.b32.cont [2/16] 0.0, 128
    %2243 = vxpose.xlu0.b32.cont [3/16] 0.0, 128
    %2244 = vxpose.xlu0.b32.cont [4/16] 0.0, 128
    %2245 = vxpose.xlu0.b32.cont [5/16] 0.0, 128
    %2246 = vxpose.xlu0.b32.cont [6/16] 0.0, 128
    %2247 = vxpose.xlu0.b32.cont [7/16] 0.0, 128
    %2248 = vxpose.xlu0.b32.cont [8/16] 0.0, 128
    %2249 = vxpose.xlu0.b32.cont [9/16] 0.0, 128
    %2250 = vxpose.xlu0.b32.cont [10/16] 0.0, 128
    %2251 = vxpose.xlu0.b32.cont [11/16] 0.0, 128
    %2252 = vxpose.xlu0.b32.cont [12/16] 0.0, 128
    %2253 = vxpose.xlu0.b32.cont [13/16] 0.0, 128
    %2254 = vxpose.xlu0.b32.cont [14/16] 0.0, 128
    %2255 = vxpose.xlu0.b32.cont [15/16] 0.0, 128
    %2256 = vxpose.xlu0.b32.end [16/16] 0.0, 128
    %v2257 = vpop.trf.xlu0
    %v2258 = vpop.trf.xlu0
    %v2259 = vpop.trf.xlu0
    %v2260 = vpop.trf.xlu0
    %v2261 = vpop.trf.xlu0
    %v2262 = vpop.trf.xlu0
    %v2263 = vpop.trf.xlu0
    %v2264 = vpop.trf.xlu0
    %v2265 = vpop.trf.xlu0
    %v2266 = vpop.trf.xlu0
    %v2267 = vpop.trf.xlu0
    %v2268 = vpop.trf.xlu0
    %v2269 = vpop.trf.xlu0
    %v2270 = vpop.trf.xlu0
    %v2271 = vpop.trf.xlu0
    %v2272 = vpop.trf.xlu0
    %v2273 = vpack.c.bf16 %v2225, %v2225
    %v2274 = vpack.c.bf16 %v2226, %v2226
    %v2275 = vpack.c.bf16 %v2227, %v2227
    %v2276 = vpack.c.bf16 %v2228, %v2228
    %v2277 = vpack.c.bf16 %v2257, %v2257
    %v2278 = vpack.c.bf16 %v2258, %v2258
    %v2279 = vpack.c.bf16 %v2259, %v2259
    %v2280 = vpack.c.bf16 %v2260, %v2260
    %2281 = vrot.lane.b32.xlu0 %v2121, 64
    %v2282 = vpop.permute.xlu0 %2281
    %2283 = vrot.lane.b32.xlu0 %v2124, 64
    %v2284 = vpop.permute.xlu0 %2283
    %2287 = vxpose.xlu0.b32.start [1/16] %v2282, 128
    %2288 = vxpose.xlu0.b32.cont [2/16] 0.0, 128
    %2289 = vxpose.xlu0.b32.cont [3/16] 0.0, 128
    %2290 = vxpose.xlu0.b32.cont [4/16] 0.0, 128
    %2291 = vxpose.xlu0.b32.cont [5/16] 0.0, 128
    %2292 = vxpose.xlu0.b32.cont [6/16] 0.0, 128
    %2293 = vxpose.xlu0.b32.cont [7/16] 0.0, 128
    %2294 = vxpose.xlu0.b32.cont [8/16] 0.0, 128
    %2295 = vxpose.xlu0.b32.cont [9/16] 0.0, 128
    %2296 = vxpose.xlu0.b32.cont [10/16] 0.0, 128
    %2297 = vxpose.xlu0.b32.cont [11/16] 0.0, 128
    %2298 = vxpose.xlu0.b32.cont [12/16] 0.0, 128
    %2299 = vxpose.xlu0.b32.cont [13/16] 0.0, 128
    %2300 = vxpose.xlu0.b32.cont [14/16] 0.0, 128
    %2301 = vxpose.xlu0.b32.cont [15/16] 0.0, 128
    %2302 = vxpose.xlu0.b32.end [16/16] 0.0, 128
    %v2303 = vpop.trf.xlu0
    %v2304 = vpop.trf.xlu0
    %v2305 = vpop.trf.xlu0
    %v2306 = vpop.trf.xlu0
    %v2307 = vpop.trf.xlu0
    %v2308 = vpop.trf.xlu0
    %v2309 = vpop.trf.xlu0
    %v2310 = vpop.trf.xlu0
    %v2311 = vpop.trf.xlu0
    %v2312 = vpop.trf.xlu0
    %v2313 = vpop.trf.xlu0
    %v2314 = vpop.trf.xlu0
    %v2315 = vpop.trf.xlu0
    %v2316 = vpop.trf.xlu0
    %v2317 = vpop.trf.xlu0
    %v2318 = vpop.trf.xlu0
    %2319 = vxpose.xlu0.b32.start [1/16] %v2284, 128
    %2320 = vxpose.xlu0.b32.cont [2/16] 0.0, 128
    %2321 = vxpose.xlu0.b32.cont [3/16] 0.0, 128
    %2322 = vxpose.xlu0.b32.cont [4/16] 0.0, 128
    %2323 = vxpose.xlu0.b32.cont [5/16] 0.0, 128
    %2324 = vxpose.xlu0.b32.cont [6/16] 0.0, 128
    %2325 = vxpose.xlu0.b32.cont [7/16] 0.0, 128
    %2326 = vxpose.xlu0.b32.cont [8/16] 0.0, 128
    %2327 = vxpose.xlu0.b32.cont [9/16] 0.0, 128
    %2328 = vxpose.xlu0.b32.cont [10/16] 0.0, 128
    %2329 = vxpose.xlu0.b32.cont [11/16] 0.0, 128
    %2330 = vxpose.xlu0.b32.cont [12/16] 0.0, 128
    %2331 = vxpose.xlu0.b32.cont [13/16] 0.0, 128
    %2332 = vxpose.xlu0.b32.cont [14/16] 0.0, 128
    %2333 = vxpose.xlu0.b32.cont [15/16] 0.0, 128
    %2334 = vxpose.xlu0.b32.end [16/16] 0.0, 128
    %v2335 = vpop.trf.xlu0
    %v2336 = vpop.trf.xlu0
    %v2337 = vpop.trf.xlu0
    %v2338 = vpop.trf.xlu0
    %v2339 = vpop.trf.xlu0
    %v2340 = vpop.trf.xlu0
    %v2341 = vpop.trf.xlu0
    %v2342 = vpop.trf.xlu0
    %v2343 = vpop.trf.xlu0
    %v2344 = vpop.trf.xlu0
    %v2345 = vpop.trf.xlu0
    %v2346 = vpop.trf.xlu0
    %v2347 = vpop.trf.xlu0
    %v2348 = vpop.trf.xlu0
    %v2349 = vpop.trf.xlu0
    %v2350 = vpop.trf.xlu0
    %v2351 = vpack.c.bf16 %v2303, %v2303
    %v2352 = vpack.c.bf16 %v2304, %v2304
    %v2353 = vpack.c.bf16 %v2305, %v2305
    %v2354 = vpack.c.bf16 %v2306, %v2306
    %v2355 = vpack.c.bf16 %v2335, %v2335
    %v2356 = vpack.c.bf16 %v2336, %v2336
    %v2357 = vpack.c.bf16 %v2337, %v2337
    %v2358 = vpack.c.bf16 %v2338, %v2338
    %2359 = vxpose.xlu0.c.b16.start [1/8] %v2193, 128
    %2360 = vxpose.xlu0.c.b16.cont [2/8] 0, 128
    %2361 = vxpose.xlu0.c.b16.cont [3/8] 0, 128
    %2362 = vxpose.xlu0.c.b16.cont [4/8] 0, 128
    %2363 = vxpose.xlu0.c.b16.cont [5/8] 0, 128
    %2364 = vxpose.xlu0.c.b16.cont [6/8] 0, 128
    %2365 = vxpose.xlu0.c.b16.cont [7/8] 0, 128
    %2366 = vxpose.xlu0.c.b16.end [8/8] 0, 128
    %v2367 = vpop.trf.xlu0
    %v2368 = vpop.trf.xlu0
    %v2369 = vpop.trf.xlu0
    %v2370 = vpop.trf.xlu0
    %v2371 = vpop.trf.xlu0
    %v2372 = vpop.trf.xlu0
    %v2373 = vpop.trf.xlu0
    %v2374 = vpop.trf.xlu0
    %v2376 = vsel %vm739, %v2367, 0
    %v2379 = vsel %vm333, %v2273, 0
    %2381 = vmatprep.subr.bf16.mxu0 0
    %2382 = vmatpush1.bf16.msra.mxu0 %v2379
    %2383 = vmatprep.subr.bf16.mxu0 0
    %2384 = vmatpush1.bf16.msra.mxu0 0
    %2385 = vmatprep.subr.bf16.mxu0 0
    %2386 = vmatpush1.bf16.msra.mxu0 0
    %2387 = vmatprep.subr.bf16.mxu0 0
    %2388 = vmatpush1.bf16.msra.mxu0 0
    %2389 = vmatprep.subr.bf16.mxu0 0
    %2390 = vmatpush1.bf16.msra.mxu0 0
    %2391 = vmatprep.subr.bf16.mxu0 0
    %2392 = vmatpush1.bf16.msra.mxu0 0
    %2393 = vmatprep.subr.bf16.mxu0 0
    %2394 = vmatpush1.bf16.msra.mxu0 0
    %2395 = vmatprep.subr.bf16.mxu0 0
    %2396 = vmatpush1.bf16.msra.mxu0 0
    %2397 = vmatprep.subr.bf16.mxu0 0
    %2398 = vmatpush1.bf16.msra.mxu0 0
    %2399 = vmatprep.subr.bf16.mxu0 0
    %2400 = vmatpush1.bf16.msra.mxu0 0
    %2401 = vmatprep.subr.bf16.mxu0 0
    %2402 = vmatpush1.bf16.msra.mxu0 0
    %2403 = vmatprep.subr.bf16.mxu0 0
    %2404 = vmatpush1.bf16.msra.mxu0 0
    %2405 = vmatprep.subr.bf16.mxu0 0
    %2406 = vmatpush1.bf16.msra.mxu0 0
    %2407 = vmatprep.subr.bf16.mxu0 0
    %2408 = vmatpush1.bf16.msra.mxu0 0
    %2409 = vmatprep.subr.bf16.mxu0 0
    %2410 = vmatpush1.bf16.msra.mxu0 0
    %2411 = vmatprep.subr.bf16.mxu0 0
    %2412 = vmatpush1.bf16.msra.mxu0 0
    %2413 = vmatprep.mubr.bf16.mxu0 0
    %2414 = vmatmul.mubr.bf16.gmra.mrb[0].mxu0 %v2376
    %v2415 = vpop.f32.mrb[0].mxu0
    %v2416 = vadd.f32 0.0, %v2415
    %v2417 = vpop.f32.mrb[0].mxu0
    %v2418 = vpop.f32.mrb[0].mxu0
    %v2419 = vpop.f32.mrb[0].mxu0
    %2420 = vdwg.mxu0
    %2421 = vxpose.xlu0.c.b16.start [1/8] %v2194, 128
    %2422 = vxpose.xlu0.c.b16.cont [2/8] 0, 128
    %2423 = vxpose.xlu0.c.b16.cont [3/8] 0, 128
    %2424 = vxpose.xlu0.c.b16.cont [4/8] 0, 128
    %2425 = vxpose.xlu0.c.b16.cont [5/8] 0, 128
    %2426 = vxpose.xlu0.c.b16.cont [6/8] 0, 128
    %2427 = vxpose.xlu0.c.b16.cont [7/8] 0, 128
    %2428 = vxpose.xlu0.c.b16.end [8/8] 0, 128
    %v2429 = vpop.trf.xlu0
    %v2430 = vpop.trf.xlu0
    %v2431 = vpop.trf.xlu0
    %v2432 = vpop.trf.xlu0
    %v2433 = vpop.trf.xlu0
    %v2434 = vpop.trf.xlu0
    %v2435 = vpop.trf.xlu0
    %v2436 = vpop.trf.xlu0
    %v2438 = vsel %vm739, %v2429, 0
    %v2441 = vsel %vm333, %v2274, 0
    %2443 = vmatprep.subr.bf16.mxu0 0
    %2444 = vmatpush1.bf16.msra.mxu0 %v2441
    %2445 = vmatprep.subr.bf16.mxu0 0
    %2446 = vmatpush1.bf16.msra.mxu0 0
    %2447 = vmatprep.subr.bf16.mxu0 0
    %2448 = vmatpush1.bf16.msra.mxu0 0
    %2449 = vmatprep.subr.bf16.mxu0 0
    %2450 = vmatpush1.bf16.msra.mxu0 0
    %2451 = vmatprep.subr.bf16.mxu0 0
    %2452 = vmatpush1.bf16.msra.mxu0 0
    %2453 = vmatprep.subr.bf16.mxu0 0
    %2454 = vmatpush1.bf16.msra.mxu0 0
    %2455 = vmatprep.subr.bf16.mxu0 0
    %2456 = vmatpush1.bf16.msra.mxu0 0
    %2457 = vmatprep.subr.bf16.mxu0 0
    %2458 = vmatpush1.bf16.msra.mxu0 0
    %2459 = vmatprep.subr.bf16.mxu0 0
    %2460 = vmatpush1.bf16.msra.mxu0 0
    %2461 = vmatprep.subr.bf16.mxu0 0
    %2462 = vmatpush1.bf16.msra.mxu0 0
    %2463 = vmatprep.subr.bf16.mxu0 0
    %2464 = vmatpush1.bf16.msra.mxu0 0
    %2465 = vmatprep.subr.bf16.mxu0 0
    %2466 = vmatpush1.bf16.msra.mxu0 0
    %2467 = vmatprep.subr.bf16.mxu0 0
    %2468 = vmatpush1.bf16.msra.mxu0 0
    %2469 = vmatprep.subr.bf16.mxu0 0
    %2470 = vmatpush1.bf16.msra.mxu0 0
    %2471 = vmatprep.subr.bf16.mxu0 0
    %2472 = vmatpush1.bf16.msra.mxu0 0
    %2473 = vmatprep.subr.bf16.mxu0 0
    %2474 = vmatpush1.bf16.msra.mxu0 0
    %2475 = vmatprep.mubr.bf16.mxu0 0
    %2476 = vmatmul.mubr.bf16.gmra.mrb[0].mxu0 %v2438
    %v2477 = vpop.f32.mrb[0].mxu0
    %v2478 = vadd.f32 0.0, %v2477
    %v2479 = vpop.f32.mrb[0].mxu0
    %v2480 = vpop.f32.mrb[0].mxu0
    %v2481 = vpop.f32.mrb[0].mxu0
    %2482 = vdwg.mxu0
    %2483 = vxpose.xlu0.c.b16.start [1/8] %v2195, 128
    %2484 = vxpose.xlu0.c.b16.cont [2/8] 0, 128
    %2485 = vxpose.xlu0.c.b16.cont [3/8] 0, 128
    %2486 = vxpose.xlu0.c.b16.cont [4/8] 0, 128
    %2487 = vxpose.xlu0.c.b16.cont [5/8] 0, 128
    %2488 = vxpose.xlu0.c.b16.cont [6/8] 0, 128
    %2489 = vxpose.xlu0.c.b16.cont [7/8] 0, 128
    %2490 = vxpose.xlu0.c.b16.end [8/8] 0, 128
    %v2491 = vpop.trf.xlu0
    %v2492 = vpop.trf.xlu0
    %v2493 = vpop.trf.xlu0
    %v2494 = vpop.trf.xlu0
    %v2495 = vpop.trf.xlu0
    %v2496 = vpop.trf.xlu0
    %v2497 = vpop.trf.xlu0
    %v2498 = vpop.trf.xlu0
    %v2500 = vsel %vm739, %v2491, 0
    %v2503 = vsel %vm333, %v2275, 0
    %2505 = vmatprep.subr.bf16.mxu0 0
    %2506 = vmatpush1.bf16.msra.mxu0 %v2503
    %2507 = vmatprep.subr.bf16.mxu0 0
    %2508 = vmatpush1.bf16.msra.mxu0 0
    %2509 = vmatprep.subr.bf16.mxu0 0
    %2510 = vmatpush1.bf16.msra.mxu0 0
    %2511 = vmatprep.subr.bf16.mxu0 0
    %2512 = vmatpush1.bf16.msra.mxu0 0
    %2513 = vmatprep.subr.bf16.mxu0 0
    %2514 = vmatpush1.bf16.msra.mxu0 0
    %2515 = vmatprep.subr.bf16.mxu0 0
    %2516 = vmatpush1.bf16.msra.mxu0 0
    %2517 = vmatprep.subr.bf16.mxu0 0
    %2518 = vmatpush1.bf16.msra.mxu0 0
    %2519 = vmatprep.subr.bf16.mxu0 0
    %2520 = vmatpush1.bf16.msra.mxu0 0
    %2521 = vmatprep.subr.bf16.mxu0 0
    %2522 = vmatpush1.bf16.msra.mxu0 0
    %2523 = vmatprep.subr.bf16.mxu0 0
    %2524 = vmatpush1.bf16.msra.mxu0 0
    %2525 = vmatprep.subr.bf16.mxu0 0
    %2526 = vmatpush1.bf16.msra.mxu0 0
    %2527 = vmatprep.subr.bf16.mxu0 0
    %2528 = vmatpush1.bf16.msra.mxu0 0
    %2529 = vmatprep.subr.bf16.mxu0 0
    %2530 = vmatpush1.bf16.msra.mxu0 0
    %2531 = vmatprep.subr.bf16.mxu0 0
    %2532 = vmatpush1.bf16.msra.mxu0 0
    %2533 = vmatprep.subr.bf16.mxu0 0
    %2534 = vmatpush1.bf16.msra.mxu0 0
    %2535 = vmatprep.subr.bf16.mxu0 0
    %2536 = vmatpush1.bf16.msra.mxu0 0
    %2537 = vmatprep.mubr.bf16.mxu0 0
    %2538 = vmatmul.mubr.bf16.gmra.mrb[0].mxu0 %v2500
    %v2539 = vpop.f32.mrb[0].mxu0
    %v2540 = vadd.f32 0.0, %v2539
    %v2541 = vpop.f32.mrb[0].mxu0
    %v2542 = vpop.f32.mrb[0].mxu0
    %v2543 = vpop.f32.mrb[0].mxu0
    %2544 = vdwg.mxu0
    %2545 = vxpose.xlu0.c.b16.start [1/8] %v2196, 128
    %2546 = vxpose.xlu0.c.b16.cont [2/8] 0, 128
    %2547 = vxpose.xlu0.c.b16.cont [3/8] 0, 128
    %2548 = vxpose.xlu0.c.b16.cont [4/8] 0, 128
    %2549 = vxpose.xlu0.c.b16.cont [5/8] 0, 128
    %2550 = vxpose.xlu0.c.b16.cont [6/8] 0, 128
    %2551 = vxpose.xlu0.c.b16.cont [7/8] 0, 128
    %2552 = vxpose.xlu0.c.b16.end [8/8] 0, 128
    %v2553 = vpop.trf.xlu0
    %v2554 = vpop.trf.xlu0
    %v2555 = vpop.trf.xlu0
    %v2556 = vpop.trf.xlu0
    %v2557 = vpop.trf.xlu0
    %v2558 = vpop.trf.xlu0
    %v2559 = vpop.trf.xlu0
    %v2560 = vpop.trf.xlu0
    %v2562 = vsel %vm739, %v2553, 0
    %v2565 = vsel %vm333, %v2276, 0
    %2567 = vmatprep.subr.bf16.mxu0 0
    %2568 = vmatpush1.bf16.msra.mxu0 %v2565
    %2569 = vmatprep.subr.bf16.mxu0 0
    %2570 = vmatpush1.bf16.msra.mxu0 0
    %2571 = vmatprep.subr.bf16.mxu0 0
    %2572 = vmatpush1.bf16.msra.mxu0 0
    %2573 = vmatprep.subr.bf16.mxu0 0
    %2574 = vmatpush1.bf16.msra.mxu0 0
    %2575 = vmatprep.subr.bf16.mxu0 0
    %2576 = vmatpush1.bf16.msra.mxu0 0
    %2577 = vmatprep.subr.bf16.mxu0 0
    %2578 = vmatpush1.bf16.msra.mxu0 0
    %2579 = vmatprep.subr.bf16.mxu0 0
    %2580 = vmatpush1.bf16.msra.mxu0 0
    %2581 = vmatprep.subr.bf16.mxu0 0
    %2582 = vmatpush1.bf16.msra.mxu0 0
    %2583 = vmatprep.subr.bf16.mxu0 0
    %2584 = vmatpush1.bf16.msra.mxu0 0
    %2585 = vmatprep.subr.bf16.mxu0 0
    %2586 = vmatpush1.bf16.msra.mxu0 0
    %2587 = vmatprep.subr.bf16.mxu0 0
    %2588 = vmatpush1.bf16.msra.mxu0 0
    %2589 = vmatprep.subr.bf16.mxu0 0
    %2590 = vmatpush1.bf16.msra.mxu0 0
    %2591 = vmatprep.subr.bf16.mxu0 0
    %2592 = vmatpush1.bf16.msra.mxu0 0
    %2593 = vmatprep.subr.bf16.mxu0 0
    %2594 = vmatpush1.bf16.msra.mxu0 0
    %2595 = vmatprep.subr.bf16.mxu0 0
    %2596 = vmatpush1.bf16.msra.mxu0 0
    %2597 = vmatprep.subr.bf16.mxu0 0
    %2598 = vmatpush1.bf16.msra.mxu0 0
    %2599 = vmatprep.mubr.bf16.mxu0 0
    %2600 = vmatmul.mubr.bf16.gmra.mrb[0].mxu0 %v2562
    %v2601 = vpop.f32.mrb[0].mxu0
    %v2602 = vadd.f32 0.0, %v2601
    %v2603 = vpop.f32.mrb[0].mxu0
    %v2604 = vpop.f32.mrb[0].mxu0
    %v2605 = vpop.f32.mrb[0].mxu0
    %2606 = vdwg.mxu0
    %2607 = vxpose.xlu0.c.b16.start [1/8] %v2197, 128
    %2608 = vxpose.xlu0.c.b16.cont [2/8] 0, 128
    %2609 = vxpose.xlu0.c.b16.cont [3/8] 0, 128
    %2610 = vxpose.xlu0.c.b16.cont [4/8] 0, 128
    %2611 = vxpose.xlu0.c.b16.cont [5/8] 0, 128
    %2612 = vxpose.xlu0.c.b16.cont [6/8] 0, 128
    %2613 = vxpose.xlu0.c.b16.cont [7/8] 0, 128
    %2614 = vxpose.xlu0.c.b16.end [8/8] 0, 128
    %v2615 = vpop.trf.xlu0
    %v2616 = vpop.trf.xlu0
    %v2617 = vpop.trf.xlu0
    %v2618 = vpop.trf.xlu0
    %v2619 = vpop.trf.xlu0
    %v2620 = vpop.trf.xlu0
    %v2621 = vpop.trf.xlu0
    %v2622 = vpop.trf.xlu0
    %v2624 = vsel %vm739, %v2615, 0
    %v2627 = vsel %vm333, %v2277, 0
    %2629 = vmatprep.subr.bf16.mxu0 0
    %2630 = vmatpush1.bf16.msra.mxu0 %v2627
    %2631 = vmatprep.subr.bf16.mxu0 0
    %2632 = vmatpush1.bf16.msra.mxu0 0
    %2633 = vmatprep.subr.bf16.mxu0 0
    %2634 = vmatpush1.bf16.msra.mxu0 0
    %2635 = vmatprep.subr.bf16.mxu0 0
    %2636 = vmatpush1.bf16.msra.mxu0 0
    %2637 = vmatprep.subr.bf16.mxu0 0
    %2638 = vmatpush1.bf16.msra.mxu0 0
    %2639 = vmatprep.subr.bf16.mxu0 0
    %2640 = vmatpush1.bf16.msra.mxu0 0
    %2641 = vmatprep.subr.bf16.mxu0 0
    %2642 = vmatpush1.bf16.msra.mxu0 0
    %2643 = vmatprep.subr.bf16.mxu0 0
    %2644 = vmatpush1.bf16.msra.mxu0 0
    %2645 = vmatprep.subr.bf16.mxu0 0
    %2646 = vmatpush1.bf16.msra.mxu0 0
    %2647 = vmatprep.subr.bf16.mxu0 0
    %2648 = vmatpush1.bf16.msra.mxu0 0
    %2649 = vmatprep.subr.bf16.mxu0 0
    %2650 = vmatpush1.bf16.msra.mxu0 0
    %2651 = vmatprep.subr.bf16.mxu0 0
    %2652 = vmatpush1.bf16.msra.mxu0 0
    %2653 = vmatprep.subr.bf16.mxu0 0
    %2654 = vmatpush1.bf16.msra.mxu0 0
    %2655 = vmatprep.subr.bf16.mxu0 0
    %2656 = vmatpush1.bf16.msra.mxu0 0
    %2657 = vmatprep.subr.bf16.mxu0 0
    %2658 = vmatpush1.bf16.msra.mxu0 0
    %2659 = vmatprep.subr.bf16.mxu0 0
    %2660 = vmatpush1.bf16.msra.mxu0 0
    %2661 = vmatprep.mubr.bf16.mxu0 0
    %2662 = vmatmul.mubr.bf16.gmra.mrb[0].mxu0 %v2624
    %v2663 = vpop.f32.mrb[0].mxu0
    %v2664 = vadd.f32 0.0, %v2663
    %v2665 = vpop.f32.mrb[0].mxu0
    %v2666 = vpop.f32.mrb[0].mxu0
    %v2667 = vpop.f32.mrb[0].mxu0
    %2668 = vdwg.mxu0
    %2669 = vxpose.xlu0.c.b16.start [1/8] %v2198, 128
    %2670 = vxpose.xlu0.c.b16.cont [2/8] 0, 128
    %2671 = vxpose.xlu0.c.b16.cont [3/8] 0, 128
    %2672 = vxpose.xlu0.c.b16.cont [4/8] 0, 128
    %2673 = vxpose.xlu0.c.b16.cont [5/8] 0, 128
    %2674 = vxpose.xlu0.c.b16.cont [6/8] 0, 128
    %2675 = vxpose.xlu0.c.b16.cont [7/8] 0, 128
    %2676 = vxpose.xlu0.c.b16.end [8/8] 0, 128
    %v2677 = vpop.trf.xlu0
    %v2678 = vpop.trf.xlu0
    %v2679 = vpop.trf.xlu0
    %v2680 = vpop.trf.xlu0
    %v2681 = vpop.trf.xlu0
    %v2682 = vpop.trf.xlu0
    %v2683 = vpop.trf.xlu0
    %v2684 = vpop.trf.xlu0
    %v2686 = vsel %vm739, %v2677, 0
    %v2689 = vsel %vm333, %v2278, 0
    %2691 = vmatprep.subr.bf16.mxu0 0
    %2692 = vmatpush1.bf16.msra.mxu0 %v2689
    %2693 = vmatprep.subr.bf16.mxu0 0
    %2694 = vmatpush1.bf16.msra.mxu0 0
    %2695 = vmatprep.subr.bf16.mxu0 0
    %2696 = vmatpush1.bf16.msra.mxu0 0
    %2697 = vmatprep.subr.bf16.mxu0 0
    %2698 = vmatpush1.bf16.msra.mxu0 0
    %2699 = vmatprep.subr.bf16.mxu0 0
    %2700 = vmatpush1.bf16.msra.mxu0 0
    %2701 = vmatprep.subr.bf16.mxu0 0
    %2702 = vmatpush1.bf16.msra.mxu0 0
    %2703 = vmatprep.subr.bf16.mxu0 0
    %2704 = vmatpush1.bf16.msra.mxu0 0
    %2705 = vmatprep.subr.bf16.mxu0 0
    %2706 = vmatpush1.bf16.msra.mxu0 0
    %2707 = vmatprep.subr.bf16.mxu0 0
    %2708 = vmatpush1.bf16.msra.mxu0 0
    %2709 = vmatprep.subr.bf16.mxu0 0
    %2710 = vmatpush1.bf16.msra.mxu0 0
    %2711 = vmatprep.subr.bf16.mxu0 0
    %2712 = vmatpush1.bf16.msra.mxu0 0
    %2713 = vmatprep.subr.bf16.mxu0 0
    %2714 = vmatpush1.bf16.msra.mxu0 0
    %2715 = vmatprep.subr.bf16.mxu0 0
    %2716 = vmatpush1.bf16.msra.mxu0 0
    %2717 = vmatprep.subr.bf16.mxu0 0
    %2718 = vmatpush1.bf16.msra.mxu0 0
    %2719 = vmatprep.subr.bf16.mxu0 0
    %2720 = vmatpush1.bf16.msra.mxu0 0
    %2721 = vmatprep.subr.bf16.mxu0 0
    %2722 = vmatpush1.bf16.msra.mxu0 0
    %2723 = vmatprep.mubr.bf16.mxu0 0
    %2724 = vmatmul.mubr.bf16.gmra.mrb[0].mxu0 %v2686
    %v2725 = vpop.f32.mrb[0].mxu0
    %v2726 = vadd.f32 0.0, %v2725
    %v2727 = vpop.f32.mrb[0].mxu0
    %v2728 = vpop.f32.mrb[0].mxu0
    %v2729 = vpop.f32.mrb[0].mxu0
    %2730 = vdwg.mxu0
    %2731 = vxpose.xlu0.c.b16.start [1/8] %v2199, 128
    %2732 = vxpose.xlu0.c.b16.cont [2/8] 0, 128
    %2733 = vxpose.xlu0.c.b16.cont [3/8] 0, 128
    %2734 = vxpose.xlu0.c.b16.cont [4/8] 0, 128
    %2735 = vxpose.xlu0.c.b16.cont [5/8] 0, 128
    %2736 = vxpose.xlu0.c.b16.cont [6/8] 0, 128
    %2737 = vxpose.xlu0.c.b16.cont [7/8] 0, 128
    %2738 = vxpose.xlu0.c.b16.end [8/8] 0, 128
    %v2739 = vpop.trf.xlu0
    %v2740 = vpop.trf.xlu0
    %v2741 = vpop.trf.xlu0
    %v2742 = vpop.trf.xlu0
    %v2743 = vpop.trf.xlu0
    %v2744 = vpop.trf.xlu0
    %v2745 = vpop.trf.xlu0
    %v2746 = vpop.trf.xlu0
    %v2748 = vsel %vm739, %v2739, 0
    %v2751 = vsel %vm333, %v2279, 0
    %2753 = vmatprep.subr.bf16.mxu0 0
    %2754 = vmatpush1.bf16.msra.mxu0 %v2751
    %2755 = vmatprep.subr.bf16.mxu0 0
    %2756 = vmatpush1.bf16.msra.mxu0 0
    %2757 = vmatprep.subr.bf16.mxu0 0
    %2758 = vmatpush1.bf16.msra.mxu0 0
    %2759 = vmatprep.subr.bf16.mxu0 0
    %2760 = vmatpush1.bf16.msra.mxu0 0
    %2761 = vmatprep.subr.bf16.mxu0 0
    %2762 = vmatpush1.bf16.msra.mxu0 0
    %2763 = vmatprep.subr.bf16.mxu0 0
    %2764 = vmatpush1.bf16.msra.mxu0 0
    %2765 = vmatprep.subr.bf16.mxu0 0
    %2766 = vmatpush1.bf16.msra.mxu0 0
    %2767 = vmatprep.subr.bf16.mxu0 0
    %2768 = vmatpush1.bf16.msra.mxu0 0
    %2769 = vmatprep.subr.bf16.mxu0 0
    %2770 = vmatpush1.bf16.msra.mxu0 0
    %2771 = vmatprep.subr.bf16.mxu0 0
    %2772 = vmatpush1.bf16.msra.mxu0 0
    %2773 = vmatprep.subr.bf16.mxu0 0
    %2774 = vmatpush1.bf16.msra.mxu0 0
    %2775 = vmatprep.subr.bf16.mxu0 0
    %2776 = vmatpush1.bf16.msra.mxu0 0
    %2777 = vmatprep.subr.bf16.mxu0 0
    %2778 = vmatpush1.bf16.msra.mxu0 0
    %2779 = vmatprep.subr.bf16.mxu0 0
    %2780 = vmatpush1.bf16.msra.mxu0 0
    %2781 = vmatprep.subr.bf16.mxu0 0
    %2782 = vmatpush1.bf16.msra.mxu0 0
    %2783 = vmatprep.subr.bf16.mxu0 0
    %2784 = vmatpush1.bf16.msra.mxu0 0
    %2785 = vmatprep.mubr.bf16.mxu0 0
    %2786 = vmatmul.mubr.bf16.gmra.mrb[0].mxu0 %v2748
    %v2787 = vpop.f32.mrb[0].mxu0
    %v2788 = vadd.f32 0.0, %v2787
    %v2789 = vpop.f32.mrb[0].mxu0
    %v2790 = vpop.f32.mrb[0].mxu0
    %v2791 = vpop.f32.mrb[0].mxu0
    %2792 = vdwg.mxu0
    %2793 = vxpose.xlu0.c.b16.start [1/8] %v2200, 128
    %2794 = vxpose.xlu0.c.b16.cont [2/8] 0, 128
    %2795 = vxpose.xlu0.c.b16.cont [3/8] 0, 128
    %2796 = vxpose.xlu0.c.b16.cont [4/8] 0, 128
    %2797 = vxpose.xlu0.c.b16.cont [5/8] 0, 128
    %2798 = vxpose.xlu0.c.b16.cont [6/8] 0, 128
    %2799 = vxpose.xlu0.c.b16.cont [7/8] 0, 128
    %2800 = vxpose.xlu0.c.b16.end [8/8] 0, 128
    %v2801 = vpop.trf.xlu0
    %v2802 = vpop.trf.xlu0
    %v2803 = vpop.trf.xlu0
    %v2804 = vpop.trf.xlu0
    %v2805 = vpop.trf.xlu0
    %v2806 = vpop.trf.xlu0
    %v2807 = vpop.trf.xlu0
    %v2808 = vpop.trf.xlu0
    %v2810 = vsel %vm739, %v2801, 0
    %v2813 = vsel %vm333, %v2280, 0
    %2815 = vmatprep.subr.bf16.mxu0 0
    %2816 = vmatpush1.bf16.msra.mxu0 %v2813
    %2817 = vmatprep.subr.bf16.mxu0 0
    %2818 = vmatpush1.bf16.msra.mxu0 0
    %2819 = vmatprep.subr.bf16.mxu0 0
    %2820 = vmatpush1.bf16.msra.mxu0 0
    %2821 = vmatprep.subr.bf16.mxu0 0
    %2822 = vmatpush1.bf16.msra.mxu0 0
    %2823 = vmatprep.subr.bf16.mxu0 0
    %2824 = vmatpush1.bf16.msra.mxu0 0
    %2825 = vmatprep.subr.bf16.mxu0 0
    %2826 = vmatpush1.bf16.msra.mxu0 0
    %2827 = vmatprep.subr.bf16.mxu0 0
    %2828 = vmatpush1.bf16.msra.mxu0 0
    %2829 = vmatprep.subr.bf16.mxu0 0
    %2830 = vmatpush1.bf16.msra.mxu0 0
    %2831 = vmatprep.subr.bf16.mxu0 0
    %2832 = vmatpush1.bf16.msra.mxu0 0
    %2833 = vmatprep.subr.bf16.mxu0 0
    %2834 = vmatpush1.bf16.msra.mxu0 0
    %2835 = vmatprep.subr.bf16.mxu0 0
    %2836 = vmatpush1.bf16.msra.mxu0 0
    %2837 = vmatprep.subr.bf16.mxu0 0
    %2838 = vmatpush1.bf16.msra.mxu0 0
    %2839 = vmatprep.subr.bf16.mxu0 0
    %2840 = vmatpush1.bf16.msra.mxu0 0
    %2841 = vmatprep.subr.bf16.mxu0 0
    %2842 = vmatpush1.bf16.msra.mxu0 0
    %2843 = vmatprep.subr.bf16.mxu0 0
    %2844 = vmatpush1.bf16.msra.mxu0 0
    %2845 = vmatprep.subr.bf16.mxu0 0
    %2846 = vmatpush1.bf16.msra.mxu0 0
    %2847 = vmatprep.mubr.bf16.mxu0 0
    %2848 = vmatmul.mubr.bf16.gmra.mrb[0].mxu0 %v2810
    %v2849 = vpop.f32.mrb[0].mxu0
    %v2850 = vadd.f32 0.0, %v2849
    %v2851 = vpop.f32.mrb[0].mxu0
    %v2852 = vpop.f32.mrb[0].mxu0
    %v2853 = vpop.f32.mrb[0].mxu0
    %2854 = vdwg.mxu0
    %v2855 = vsel %vm739, %v2416, -inf
    %2856 = vmax.xlane.f32.xlu0 %v2855
    %v2857 = vpop.xlane.xlu0 %2856
    %v2858 = vsel %vm739, %v2478, -inf
    %2859 = vmax.xlane.f32.xlu0 %v2858
    %v2860 = vpop.xlane.xlu0 %2859
    %v2861 = vsel %vm739, %v2540, -inf
    %2862 = vmax.xlane.f32.xlu0 %v2861
    %v2863 = vpop.xlane.xlu0 %2862
    %v2864 = vsel %vm739, %v2602, -inf
    %2865 = vmax.xlane.f32.xlu0 %v2864
    %v2866 = vpop.xlane.xlu0 %2865
    %v2867 = vsel %vm739, %v2664, -inf
    %2868 = vmax.xlane.f32.xlu0 %v2867
    %v2869 = vpop.xlane.xlu0 %2868
    %v2870 = vsel %vm739, %v2726, -inf
    %2871 = vmax.xlane.f32.xlu0 %v2870
    %v2872 = vpop.xlane.xlu0 %2871
    %v2873 = vsel %vm739, %v2788, -inf
    %2874 = vmax.xlane.f32.xlu0 %v2873
    %v2875 = vpop.xlane.xlu0 %2874
    %v2876 = vsel %vm739, %v2850, -inf
    %2877 = vmax.xlane.f32.xlu0 %v2876
    %v2878 = vpop.xlane.xlu0 %2877
    %v2879 = vsub.f32 %v2416, %v2857
    %v2880 = vsub.f32 %v2478, %v2860
    %v2881 = vsub.f32 %v2540, %v2863
    %v2882 = vsub.f32 %v2602, %v2866
    %v2883 = vsub.f32 %v2664, %v2869
    %v2884 = vsub.f32 %v2726, %v2872
    %v2885 = vsub.f32 %v2788, %v2875
    %v2886 = vsub.f32 %v2850, %v2878
    %v2887 = vmul.f32 %v2879, 1.442695
    %v2888 = vpow.pop %v2887
    %v2889 = vmul.f32 %v2880, 1.442695
    %v2890 = vpow.pop %v2889
    %v2891 = vmul.f32 %v2881, 1.442695
    %v2892 = vpow.pop %v2891
    %v2893 = vmul.f32 %v2882, 1.442695
    %v2894 = vpow.pop %v2893
    %v2895 = vmul.f32 %v2883, 1.442695
    %v2896 = vpow.pop %v2895
    %v2897 = vmul.f32 %v2884, 1.442695
    %v2898 = vpow.pop %v2897
    %v2899 = vmul.f32 %v2885, 1.442695
    %v2900 = vpow.pop %v2899
    %v2901 = vmul.f32 %v2886, 1.442695
    %v2902 = vpow.pop %v2901
    %v2903 = vsel %vm739, %v2888, 0.0
    %2904 = vadd.xlane.f32.xlu0 %v2903
    %v2905 = vpop.xlane.xlu0 %2904
    %v2906 = vsel %vm739, %v2890, 0.0
    %2907 = vadd.xlane.f32.xlu0 %v2906
    %v2908 = vpop.xlane.xlu0 %2907
    %v2909 = vsel %vm739, %v2892, 0.0
    %2910 = vadd.xlane.f32.xlu0 %v2909
    %v2911 = vpop.xlane.xlu0 %2910
    %v2912 = vsel %vm739, %v2894, 0.0
    %2913 = vadd.xlane.f32.xlu0 %v2912
    %v2914 = vpop.xlane.xlu0 %2913
    %v2915 = vsel %vm739, %v2896, 0.0
    %2916 = vadd.xlane.f32.xlu0 %v2915
    %v2917 = vpop.xlane.xlu0 %2916
    %v2918 = vsel %vm739, %v2898, 0.0
    %2919 = vadd.xlane.f32.xlu0 %v2918
    %v2920 = vpop.xlane.xlu0 %2919
    %v2921 = vsel %vm739, %v2900, 0.0
    %2922 = vadd.xlane.f32.xlu0 %v2921
    %v2923 = vpop.xlane.xlu0 %2922
    %v2924 = vsel %vm739, %v2902, 0.0
    %2925 = vadd.xlane.f32.xlu0 %v2924
    %v2926 = vpop.xlane.xlu0 %2925
    %v2927 = vrcp.pop %v2905
    %v2928 = vmul.f32 %v2888, %v2927
    %v2929 = vrcp.pop %v2908
    %v2930 = vmul.f32 %v2890, %v2929
    %v2931 = vrcp.pop %v2911
    %v2932 = vmul.f32 %v2892, %v2931
    %v2933 = vrcp.pop %v2914
    %v2934 = vmul.f32 %v2894, %v2933
    %v2935 = vrcp.pop %v2917
    %v2936 = vmul.f32 %v2896, %v2935
    %v2937 = vrcp.pop %v2920
    %v2938 = vmul.f32 %v2898, %v2937
    %v2939 = vrcp.pop %v2923
    %v2940 = vmul.f32 %v2900, %v2939
    %v2941 = vrcp.pop %v2926
    %v2942 = vmul.f32 %v2902, %v2941
    %v2943 = vpack.c.bf16 %v2928, %v2928
    %v2944 = vpack.c.bf16 %v2930, %v2930
    %v2945 = vpack.c.bf16 %v2932, %v2932
    %v2946 = vpack.c.bf16 %v2934, %v2934
    %v2947 = vpack.c.bf16 %v2936, %v2936
    %v2948 = vpack.c.bf16 %v2938, %v2938
    %v2949 = vpack.c.bf16 %v2940, %v2940
    %v2950 = vpack.c.bf16 %v2942, %v2942
    %v2952 = vsel %vm739, %v2351, 0
    %v2955 = vsel %vm739, %v2943, 0
    %2957 = vmatprep.subr.bf16.mxu0 0
    %2958 = vmatpush1.bf16.xpose.msra.mxu0 %v2955
    %2959 = vmatprep.subr.bf16.mxu0 0
    %2960 = vmatpush1.bf16.xpose.msra.mxu0 0
    %2961 = vmatprep.subr.bf16.mxu0 0
    %2962 = vmatpush1.bf16.xpose.msra.mxu0 0
    %2963 = vmatprep.subr.bf16.mxu0 0
    %2964 = vmatpush1.bf16.xpose.msra.mxu0 0
    %2965 = vmatprep.subr.bf16.mxu0 0
    %2966 = vmatpush1.bf16.xpose.msra.mxu0 0
    %2967 = vmatprep.subr.bf16.mxu0 0
    %2968 = vmatpush1.bf16.xpose.msra.mxu0 0
    %2969 = vmatprep.subr.bf16.mxu0 0
    %2970 = vmatpush1.bf16.xpose.msra.mxu0 0
    %2971 = vmatprep.subr.bf16.mxu0 0
    %2972 = vmatpush1.bf16.xpose.msra.mxu0 0
    %2973 = vmatprep.subr.bf16.mxu0 0
    %2974 = vmatpush1.bf16.xpose.msra.mxu0 0
    %2975 = vmatprep.subr.bf16.mxu0 0
    %2976 = vmatpush1.bf16.xpose.msra.mxu0 0
    %2977 = vmatprep.subr.bf16.mxu0 0
    %2978 = vmatpush1.bf16.xpose.msra.mxu0 0
    %2979 = vmatprep.subr.bf16.mxu0 0
    %2980 = vmatpush1.bf16.xpose.msra.mxu0 0
    %2981 = vmatprep.subr.bf16.mxu0 0
    %2982 = vmatpush1.bf16.xpose.msra.mxu0 0
    %2983 = vmatprep.subr.bf16.mxu0 0
    %2984 = vmatpush1.bf16.xpose.msra.mxu0 0
    %2985 = vmatprep.subr.bf16.mxu0 0
    %2986 = vmatpush1.bf16.xpose.msra.mxu0 0
    %2987 = vmatprep.subr.bf16.mxu0 0
    %2988 = vmatpush1.bf16.xpose.msra.mxu0 0
    %2989 = vmatprep.mubr.bf16.mxu0 0
    %2990 = vmatmul.mubr.bf16.gmra.mrb[0].mxu0 %v2952
    %v2991 = vpop.f32.mrb[0].mxu0
    %v2992 = vadd.f32 0.0, %v2991
    %v2993 = vpop.f32.mrb[0].mxu0
    %v2994 = vpop.f32.mrb[0].mxu0
    %v2995 = vpop.f32.mrb[0].mxu0
    %2996 = vdwg.mxu0
    %v2998 = vsel %vm739, %v2352, 0
    %v3001 = vsel %vm739, %v2944, 0
    %3003 = vmatprep.subr.bf16.mxu0 0
    %3004 = vmatpush1.bf16.xpose.msra.mxu0 %v3001
    %3005 = vmatprep.subr.bf16.mxu0 0
    %3006 = vmatpush1.bf16.xpose.msra.mxu0 0
    %3007 = vmatprep.subr.bf16.mxu0 0
    %3008 = vmatpush1.bf16.xpose.msra.mxu0 0
    %3009 = vmatprep.subr.bf16.mxu0 0
    %3010 = vmatpush1.bf16.xpose.msra.mxu0 0
    %3011 = vmatprep.subr.bf16.mxu0 0
    %3012 = vmatpush1.bf16.xpose.msra.mxu0 0
    %3013 = vmatprep.subr.bf16.mxu0 0
    %3014 = vmatpush1.bf16.xpose.msra.mxu0 0
    %3015 = vmatprep.subr.bf16.mxu0 0
    %3016 = vmatpush1.bf16.xpose.msra.mxu0 0
    %3017 = vmatprep.subr.bf16.mxu0 0
    %3018 = vmatpush1.bf16.xpose.msra.mxu0 0
    %3019 = vmatprep.subr.bf16.mxu0 0
    %3020 = vmatpush1.bf16.xpose.msra.mxu0 0
    %3021 = vmatprep.subr.bf16.mxu0 0
    %3022 = vmatpush1.bf16.xpose.msra.mxu0 0
    %3023 = vmatprep.subr.bf16.mxu0 0
    %3024 = vmatpush1.bf16.xpose.msra.mxu0 0
    %3025 = vmatprep.subr.bf16.mxu0 0
    %3026 = vmatpush1.bf16.xpose.msra.mxu0 0
    %3027 = vmatprep.subr.bf16.mxu0 0
    %3028 = vmatpush1.bf16.xpose.msra.mxu0 0
    %3029 = vmatprep.subr.bf16.mxu0 0
    %3030 = vmatpush1.bf16.xpose.msra.mxu0 0
    %3031 = vmatprep.subr.bf16.mxu0 0
    %3032 = vmatpush1.bf16.xpose.msra.mxu0 0
    %3033 = vmatprep.subr.bf16.mxu0 0
    %3034 = vmatpush1.bf16.xpose.msra.mxu0 0
    %3035 = vmatprep.mubr.bf16.mxu0 0
    %3036 = vmatmul.mubr.bf16.gmra.mrb[0].mxu0 %v2998
    %v3037 = vpop.f32.mrb[0].mxu0
    %v3038 = vadd.f32 0.0, %v3037
    %v3039 = vpop.f32.mrb[0].mxu0
    %v3040 = vpop.f32.mrb[0].mxu0
    %v3041 = vpop.f32.mrb[0].mxu0
    %3042 = vdwg.mxu0
    %v3044 = vsel %vm739, %v2353, 0
    %v3047 = vsel %vm739, %v2945, 0
    %3049 = vmatprep.subr.bf16.mxu0 0
    %3050 = vmatpush1.bf16.xpose.msra.mxu0 %v3047
    %3051 = vmatprep.subr.bf16.mxu0 0
    %3052 = vmatpush1.bf16.xpose.msra.mxu0 0
    %3053 = vmatprep.subr.bf16.mxu0 0
    %3054 = vmatpush1.bf16.xpose.msra.mxu0 0
    %3055 = vmatprep.subr.bf16.mxu0 0
    %3056 = vmatpush1.bf16.xpose.msra.mxu0 0
    %3057 = vmatprep.subr.bf16.mxu0 0
    %3058 = vmatpush1.bf16.xpose.msra.mxu0 0
    %3059 = vmatprep.subr.bf16.mxu0 0
    %3060 = vmatpush1.bf16.xpose.msra.mxu0 0
    %3061 = vmatprep.subr.bf16.mxu0 0
    %3062 = vmatpush1.bf16.xpose.msra.mxu0 0
    %3063 = vmatprep.subr.bf16.mxu0 0
    %3064 = vmatpush1.bf16.xpose.msra.mxu0 0
    %3065 = vmatprep.subr.bf16.mxu0 0
    %3066 = vmatpush1.bf16.xpose.msra.mxu0 0
    %3067 = vmatprep.subr.bf16.mxu0 0
    %3068 = vmatpush1.bf16.xpose.msra.mxu0 0
    %3069 = vmatprep.subr.bf16.mxu0 0
    %3070 = vmatpush1.bf16.xpose.msra.mxu0 0
    %3071 = vmatprep.subr.bf16.mxu0 0
    %3072 = vmatpush1.bf16.xpose.msra.mxu0 0
    %3073 = vmatprep.subr.bf16.mxu0 0
    %3074 = vmatpush1.bf16.xpose.msra.mxu0 0
    %3075 = vmatprep.subr.bf16.mxu0 0
    %3076 = vmatpush1.bf16.xpose.msra.mxu0 0
    %3077 = vmatprep.subr.bf16.mxu0 0
    %3078 = vmatpush1.bf16.xpose.msra.mxu0 0
    %3079 = vmatprep.subr.bf16.mxu0 0
    %3080 = vmatpush1.bf16.xpose.msra.mxu0 0
    %3081 = vmatprep.mubr.bf16.mxu0 0
    %3082 = vmatmul.mubr.bf16.gmra.mrb[0].mxu0 %v3044
    %v3083 = vpop.f32.mrb[0].mxu0
    %v3084 = vadd.f32 0.0, %v3083
    %v3085 = vpop.f32.mrb[0].mxu0
    %v3086 = vpop.f32.mrb[0].mxu0
    %v3087 = vpop.f32.mrb[0].mxu0
    %3088 = vdwg.mxu0
    %v3090 = vsel %vm739, %v2354, 0
    %v3093 = vsel %vm739, %v2946, 0
    %3095 = vmatprep.subr.bf16.mxu0 0
    %3096 = vmatpush1.bf16.xpose.msra.mxu0 %v3093
    %3097 = vmatprep.subr.bf16.mxu0 0
    %3098 = vmatpush1.bf16.xpose.msra.mxu0 0
    %3099 = vmatprep.subr.bf16.mxu0 0
    %3100 = vmatpush1.bf16.xpose.msra.mxu0 0
    %3101 = vmatprep.subr.bf16.mxu0 0
    %3102 = vmatpush1.bf16.xpose.msra.mxu0 0
    %3103 = vmatprep.subr.bf16.mxu0 0
    %3104 = vmatpush1.bf16.xpose.msra.mxu0 0
    %3105 = vmatprep.subr.bf16.mxu0 0
    %3106 = vmatpush1.bf16.xpose.msra.mxu0 0
    %3107 = vmatprep.subr.bf16.mxu0 0
    %3108 = vmatpush1.bf16.xpose.msra.mxu0 0
    %3109 = vmatprep.subr.bf16.mxu0 0
    %3110 = vmatpush1.bf16.xpose.msra.mxu0 0
    %3111 = vmatprep.subr.bf16.mxu0 0
    %3112 = vmatpush1.bf16.xpose.msra.mxu0 0
    %3113 = vmatprep.subr.bf16.mxu0 0
    %3114 = vmatpush1.bf16.xpose.msra.mxu0 0
    %3115 = vmatprep.subr.bf16.mxu0 0
    %3116 = vmatpush1.bf16.xpose.msra.mxu0 0
    %3117 = vmatprep.subr.bf16.mxu0 0
    %3118 = vmatpush1.bf16.xpose.msra.mxu0 0
    %3119 = vmatprep.subr.bf16.mxu0 0
    %3120 = vmatpush1.bf16.xpose.msra.mxu0 0
    %3121 = vmatprep.subr.bf16.mxu0 0
    %3122 = vmatpush1.bf16.xpose.msra.mxu0 0
    %3123 = vmatprep.subr.bf16.mxu0 0
    %3124 = vmatpush1.bf16.xpose.msra.mxu0 0
    %3125 = vmatprep.subr.bf16.mxu0 0
    %3126 = vmatpush1.bf16.xpose.msra.mxu0 0
    %3127 = vmatprep.mubr.bf16.mxu0 0
    %3128 = vmatmul.mubr.bf16.gmra.mrb[0].mxu0 %v3090
    %v3129 = vpop.f32.mrb[0].mxu0
    %v3130 = vadd.f32 0.0, %v3129
    %v3131 = vpop.f32.mrb[0].mxu0
    %v3132 = vpop.f32.mrb[0].mxu0
    %v3133 = vpop.f32.mrb[0].mxu0
    %3134 = vdwg.mxu0
    %v3136 = vsel %vm739, %v2355, 0
    %v3139 = vsel %vm739, %v2947, 0
    %3141 = vmatprep.subr.bf16.mxu0 0
    %3142 = vmatpush1.bf16.xpose.msra.mxu0 %v3139
    %3143 = vmatprep.subr.bf16.mxu0 0
    %3144 = vmatpush1.bf16.xpose.msra.mxu0 0
    %3145 = vmatprep.subr.bf16.mxu0 0
    %3146 = vmatpush1.bf16.xpose.msra.mxu0 0
    %3147 = vmatprep.subr.bf16.mxu0 0
    %3148 = vmatpush1.bf16.xpose.msra.mxu0 0
    %3149 = vmatprep.subr.bf16.mxu0 0
    %3150 = vmatpush1.bf16.xpose.msra.mxu0 0
    %3151 = vmatprep.subr.bf16.mxu0 0
    %3152 = vmatpush1.bf16.xpose.msra.mxu0 0
    %3153 = vmatprep.subr.bf16.mxu0 0
    %3154 = vmatpush1.bf16.xpose.msra.mxu0 0
    %3155 = vmatprep.subr.bf16.mxu0 0
    %3156 = vmatpush1.bf16.xpose.msra.mxu0 0
    %3157 = vmatprep.subr.bf16.mxu0 0
    %3158 = vmatpush1.bf16.xpose.msra.mxu0 0
    %3159 = vmatprep.subr.bf16.mxu0 0
    %3160 = vmatpush1.bf16.xpose.msra.mxu0 0
    %3161 = vmatprep.subr.bf16.mxu0 0
    %3162 = vmatpush1.bf16.xpose.msra.mxu0 0
    %3163 = vmatprep.subr.bf16.mxu0 0
    %3164 = vmatpush1.bf16.xpose.msra.mxu0 0
    %3165 = vmatprep.subr.bf16.mxu0 0
    %3166 = vmatpush1.bf16.xpose.msra.mxu0 0
    %3167 = vmatprep.subr.bf16.mxu0 0
    %3168 = vmatpush1.bf16.xpose.msra.mxu0 0
    %3169 = vmatprep.subr.bf16.mxu0 0
    %3170 = vmatpush1.bf16.xpose.msra.mxu0 0
    %3171 = vmatprep.subr.bf16.mxu0 0
    %3172 = vmatpush1.bf16.xpose.msra.mxu0 0
    %3173 = vmatprep.mubr.bf16.mxu0 0
    %3174 = vmatmul.mubr.bf16.gmra.mrb[0].mxu0 %v3136
    %v3175 = vpop.f32.mrb[0].mxu0
    %v3176 = vadd.f32 0.0, %v3175
    %v3177 = vpop.f32.mrb[0].mxu0
    %v3178 = vpop.f32.mrb[0].mxu0
    %v3179 = vpop.f32.mrb[0].mxu0
    %3180 = vdwg.mxu0
    %v3182 = vsel %vm739, %v2356, 0
    %v3185 = vsel %vm739, %v2948, 0
    %3187 = vmatprep.subr.bf16.mxu0 0
    %3188 = vmatpush1.bf16.xpose.msra.mxu0 %v3185
    %3189 = vmatprep.subr.bf16.mxu0 0
    %3190 = vmatpush1.bf16.xpose.msra.mxu0 0
    %3191 = vmatprep.subr.bf16.mxu0 0
    %3192 = vmatpush1.bf16.xpose.msra.mxu0 0
    %3193 = vmatprep.subr.bf16.mxu0 0
    %3194 = vmatpush1.bf16.xpose.msra.mxu0 0
    %3195 = vmatprep.subr.bf16.mxu0 0
    %3196 = vmatpush1.bf16.xpose.msra.mxu0 0
    %3197 = vmatprep.subr.bf16.mxu0 0
    %3198 = vmatpush1.bf16.xpose.msra.mxu0 0
    %3199 = vmatprep.subr.bf16.mxu0 0
    %3200 = vmatpush1.bf16.xpose.msra.mxu0 0
    %3201 = vmatprep.subr.bf16.mxu0 0
    %3202 = vmatpush1.bf16.xpose.msra.mxu0 0
    %3203 = vmatprep.subr.bf16.mxu0 0
    %3204 = vmatpush1.bf16.xpose.msra.mxu0 0
    %3205 = vmatprep.subr.bf16.mxu0 0
    %3206 = vmatpush1.bf16.xpose.msra.mxu0 0
    %3207 = vmatprep.subr.bf16.mxu0 0
    %3208 = vmatpush1.bf16.xpose.msra.mxu0 0
    %3209 = vmatprep.subr.bf16.mxu0 0
    %3210 = vmatpush1.bf16.xpose.msra.mxu0 0
    %3211 = vmatprep.subr.bf16.mxu0 0
    %3212 = vmatpush1.bf16.xpose.msra.mxu0 0
    %3213 = vmatprep.subr.bf16.mxu0 0
    %3214 = vmatpush1.bf16.xpose.msra.mxu0 0
    %3215 = vmatprep.subr.bf16.mxu0 0
    %3216 = vmatpush1.bf16.xpose.msra.mxu0 0
    %3217 = vmatprep.subr.bf16.mxu0 0
    %3218 = vmatpush1.bf16.xpose.msra.mxu0 0
    %3219 = vmatprep.mubr.bf16.mxu0 0
    %3220 = vmatmul.mubr.bf16.gmra.mrb[0].mxu0 %v3182
    %v3221 = vpop.f32.mrb[0].mxu0
    %v3222 = vadd.f32 0.0, %v3221
    %v3223 = vpop.f32.mrb[0].mxu0
    %v3224 = vpop.f32.mrb[0].mxu0
    %v3225 = vpop.f32.mrb[0].mxu0
    %3226 = vdwg.mxu0
    %v3228 = vsel %vm739, %v2357, 0
    %v3231 = vsel %vm739, %v2949, 0
    %3233 = vmatprep.subr.bf16.mxu0 0
    %3234 = vmatpush1.bf16.xpose.msra.mxu0 %v3231
    %3235 = vmatprep.subr.bf16.mxu0 0
    %3236 = vmatpush1.bf16.xpose.msra.mxu0 0
    %3237 = vmatprep.subr.bf16.mxu0 0
    %3238 = vmatpush1.bf16.xpose.msra.mxu0 0
    %3239 = vmatprep.subr.bf16.mxu0 0
    %3240 = vmatpush1.bf16.xpose.msra.mxu0 0
    %3241 = vmatprep.subr.bf16.mxu0 0
    %3242 = vmatpush1.bf16.xpose.msra.mxu0 0
    %3243 = vmatprep.subr.bf16.mxu0 0
    %3244 = vmatpush1.bf16.xpose.msra.mxu0 0
    %3245 = vmatprep.subr.bf16.mxu0 0
    %3246 = vmatpush1.bf16.xpose.msra.mxu0 0
    %3247 = vmatprep.subr.bf16.mxu0 0
    %3248 = vmatpush1.bf16.xpose.msra.mxu0 0
    %3249 = vmatprep.subr.bf16.mxu0 0
    %3250 = vmatpush1.bf16.xpose.msra.mxu0 0
    %3251 = vmatprep.subr.bf16.mxu0 0
    %3252 = vmatpush1.bf16.xpose.msra.mxu0 0
    %3253 = vmatprep.subr.bf16.mxu0 0
    %3254 = vmatpush1.bf16.xpose.msra.mxu0 0
    %3255 = vmatprep.subr.bf16.mxu0 0
    %3256 = vmatpush1.bf16.xpose.msra.mxu0 0
    %3257 = vmatprep.subr.bf16.mxu0 0
    %3258 = vmatpush1.bf16.xpose.msra.mxu0 0
    %3259 = vmatprep.subr.bf16.mxu0 0
    %3260 = vmatpush1.bf16.xpose.msra.mxu0 0
    %3261 = vmatprep.subr.bf16.mxu0 0
    %3262 = vmatpush1.bf16.xpose.msra.mxu0 0
    %3263 = vmatprep.subr.bf16.mxu0 0
    %3264 = vmatpush1.bf16.xpose.msra.mxu0 0
    %3265 = vmatprep.mubr.bf16.mxu0 0
    %3266 = vmatmul.mubr.bf16.gmra.mrb[0].mxu0 %v3228
    %v3267 = vpop.f32.mrb[0].mxu0
    %v3268 = vadd.f32 0.0, %v3267
    %v3269 = vpop.f32.mrb[0].mxu0
    %v3270 = vpop.f32.mrb[0].mxu0
    %v3271 = vpop.f32.mrb[0].mxu0
    %3272 = vdwg.mxu0
    %v3274 = vsel %vm739, %v2358, 0
    %v3277 = vsel %vm739, %v2950, 0
    %3279 = vmatprep.subr.bf16.mxu0 0
    %3280 = vmatpush1.bf16.xpose.msra.mxu0 %v3277
    %3281 = vmatprep.subr.bf16.mxu0 0
    %3282 = vmatpush1.bf16.xpose.msra.mxu0 0
    %3283 = vmatprep.subr.bf16.mxu0 0
    %3284 = vmatpush1.bf16.xpose.msra.mxu0 0
    %3285 = vmatprep.subr.bf16.mxu0 0
    %3286 = vmatpush1.bf16.xpose.msra.mxu0 0
    %3287 = vmatprep.subr.bf16.mxu0 0
    %3288 = vmatpush1.bf16.xpose.msra.mxu0 0
    %3289 = vmatprep.subr.bf16.mxu0 0
    %3290 = vmatpush1.bf16.xpose.msra.mxu0 0
    %3291 = vmatprep.subr.bf16.mxu0 0
    %3292 = vmatpush1.bf16.xpose.msra.mxu0 0
    %3293 = vmatprep.subr.bf16.mxu0 0
    %3294 = vmatpush1.bf16.xpose.msra.mxu0 0
    %3295 = vmatprep.subr.bf16.mxu0 0
    %3296 = vmatpush1.bf16.xpose.msra.mxu0 0
    %3297 = vmatprep.subr.bf16.mxu0 0
    %3298 = vmatpush1.bf16.xpose.msra.mxu0 0
    %3299 = vmatprep.subr.bf16.mxu0 0
    %3300 = vmatpush1.bf16.xpose.msra.mxu0 0
    %3301 = vmatprep.subr.bf16.mxu0 0
    %3302 = vmatpush1.bf16.xpose.msra.mxu0 0
    %3303 = vmatprep.subr.bf16.mxu0 0
    %3304 = vmatpush1.bf16.xpose.msra.mxu0 0
    %3305 = vmatprep.subr.bf16.mxu0 0
    %3306 = vmatpush1.bf16.xpose.msra.mxu0 0
    %3307 = vmatprep.subr.bf16.mxu0 0
    %3308 = vmatpush1.bf16.xpose.msra.mxu0 0
    %3309 = vmatprep.subr.bf16.mxu0 0
    %3310 = vmatpush1.bf16.xpose.msra.mxu0 0
    %3311 = vmatprep.mubr.bf16.mxu0 0
    %3312 = vmatmul.mubr.bf16.gmra.mrb[0].mxu0 %v3274
    %v3313 = vpop.f32.mrb[0].mxu0
    %v3314 = vadd.f32 0.0, %v3313
    %v3315 = vpop.f32.mrb[0].mxu0
    %v3316 = vpop.f32.mrb[0].mxu0
    %v3317 = vpop.f32.mrb[0].mxu0
    %3318 = vdwg.mxu0
    %3319 = vxpose.xlu0.b32.start [1/16] %v2992, 128
    %3320 = vxpose.xlu0.b32.cont [2/16] %v3038, 128
    %3321 = vxpose.xlu0.b32.cont [3/16] %v3084, 128
    %3322 = vxpose.xlu0.b32.cont [4/16] %v3130, 128
    %3323 = vxpose.xlu0.b32.cont [5/16] 0.0, 128
    %3324 = vxpose.xlu0.b32.cont [6/16] 0.0, 128
    %3325 = vxpose.xlu0.b32.cont [7/16] 0.0, 128
    %3326 = vxpose.xlu0.b32.cont [8/16] 0.0, 128
    %3327 = vxpose.xlu0.b32.cont [9/16] 0.0, 128
    %3328 = vxpose.xlu0.b32.cont [10/16] 0.0, 128
    %3329 = vxpose.xlu0.b32.cont [11/16] 0.0, 128
    %3330 = vxpose.xlu0.b32.cont [12/16] 0.0, 128
    %3331 = vxpose.xlu0.b32.cont [13/16] 0.0, 128
    %3332 = vxpose.xlu0.b32.cont [14/16] 0.0, 128
    %3333 = vxpose.xlu0.b32.cont [15/16] 0.0, 128
    %3334 = vxpose.xlu0.b32.end [16/16] 0.0, 128
    %v3335 = vpop.trf.xlu0
    %v3336 = vpop.trf.xlu0
    %v3337 = vpop.trf.xlu0
    %v3338 = vpop.trf.xlu0
    %v3339 = vpop.trf.xlu0
    %v3340 = vpop.trf.xlu0
    %v3341 = vpop.trf.xlu0
    %v3342 = vpop.trf.xlu0
    %v3343 = vpop.trf.xlu0
    %v3344 = vpop.trf.xlu0
    %v3345 = vpop.trf.xlu0
    %v3346 = vpop.trf.xlu0
    %v3347 = vpop.trf.xlu0
    %v3348 = vpop.trf.xlu0
    %v3349 = vpop.trf.xlu0
    %v3350 = vpop.trf.xlu0
    %3351 = vxpose.xlu0.b32.start [1/16] %v3176, 128
    %3352 = vxpose.xlu0.b32.cont [2/16] %v3222, 128
    %3353 = vxpose.xlu0.b32.cont [3/16] %v3268, 128
    %3354 = vxpose.xlu0.b32.cont [4/16] %v3314, 128
    %3355 = vxpose.xlu0.b32.cont [5/16] 0.0, 128
    %3356 = vxpose.xlu0.b32.cont [6/16] 0.0, 128
    %3357 = vxpose.xlu0.b32.cont [7/16] 0.0, 128
    %3358 = vxpose.xlu0.b32.cont [8/16] 0.0, 128
    %3359 = vxpose.xlu0.b32.cont [9/16] 0.0, 128
    %3360 = vxpose.xlu0.b32.cont [10/16] 0.0, 128
    %3361 = vxpose.xlu0.b32.cont [11/16] 0.0, 128
    %3362 = vxpose.xlu0.b32.cont [12/16] 0.0, 128
    %3363 = vxpose.xlu0.b32.cont [13/16] 0.0, 128
    %3364 = vxpose.xlu0.b32.cont [14/16] 0.0, 128
    %3365 = vxpose.xlu0.b32.cont [15/16] 0.0, 128
    %3366 = vxpose.xlu0.b32.end [16/16] 0.0, 128
    %v3367 = vpop.trf.xlu0
    %v3368 = vpop.trf.xlu0
    %v3369 = vpop.trf.xlu0
    %v3370 = vpop.trf.xlu0
    %v3371 = vpop.trf.xlu0
    %v3372 = vpop.trf.xlu0
    %v3373 = vpop.trf.xlu0
    %v3374 = vpop.trf.xlu0
    %v3375 = vpop.trf.xlu0
    %v3376 = vpop.trf.xlu0
    %v3377 = vpop.trf.xlu0
    %v3378 = vpop.trf.xlu0
    %v3379 = vpop.trf.xlu0
    %v3380 = vpop.trf.xlu0
    %v3381 = vpop.trf.xlu0
    %v3382 = vpop.trf.xlu0
    %v3383 = vpack.c.bf16 %v3367, %v3335
    %v3385 = vlaneseq
    %v3386 = vshrl.u32 %v3385, 7
    %v3387 = vsub.s32 0, %v3386
    %v3388 = vrot.slane %v2063, %v3387
    %v3394 = vunpack.c.l.b16 %v2058
    %v3395 = vunpack.c.l.b16 %v2059
    %v3396 = vunpack.c.l.b16 %v2060
    %v3397 = vunpack.c.l.b16 %v2061
    %v3398 = vpack.c.b16 %v3395, %v3394
    %v3399 = vpack.c.b16 %v3397, %v3396
    %v3403 = vsel %vm446, %v3383, 0
    %3405 = vmatprep.subr.bf16.mxu0 0
    %3406 = vmatpush1.bf16.msra.mxu0 %v3398
    %3407 = vmatprep.subr.bf16.mxu0 0
    %3408 = vmatpush1.bf16.msra.mxu0 %v3399
    %3409 = vmatprep.subr.bf16.mxu0 0
    %3410 = vmatpush1.bf16.msra.mxu0 0
    %3411 = vmatprep.subr.bf16.mxu0 0
    %3412 = vmatpush1.bf16.msra.mxu0 0
    %3413 = vmatprep.subr.bf16.mxu0 0
    %3414 = vmatpush1.bf16.msra.mxu0 0
    %3415 = vmatprep.subr.bf16.mxu0 0
    %3416 = vmatpush1.bf16.msra.mxu0 0
    %3417 = vmatprep.subr.bf16.mxu0 0
    %3418 = vmatpush1.bf16.msra.mxu0 0
    %3419 = vmatprep.subr.bf16.mxu0 0
    %3420 = vmatpush1.bf16.msra.mxu0 0
    %3421 = vmatprep.subr.bf16.mxu0 0
    %3422 = vmatpush1.bf16.msra.mxu0 0
    %3423 = vmatprep.subr.bf16.mxu0 0
    %3424 = vmatpush1.bf16.msra.mxu0 0
    %3425 = vmatprep.subr.bf16.mxu0 0
    %3426 = vmatpush1.bf16.msra.mxu0 0
    %3427 = vmatprep.subr.bf16.mxu0 0
    %3428 = vmatpush1.bf16.msra.mxu0 0
    %3429 = vmatprep.subr.bf16.mxu0 0
    %3430 = vmatpush1.bf16.msra.mxu0 0
    %3431 = vmatprep.subr.bf16.mxu0 0
    %3432 = vmatpush1.bf16.msra.mxu0 0
    %3433 = vmatprep.subr.bf16.mxu0 0
    %3434 = vmatpush1.bf16.msra.mxu0 0
    %3435 = vmatprep.subr.bf16.mxu0 0
    %3436 = vmatpush1.bf16.msra.mxu0 0
    %3437 = vmatprep.mubr.bf16.mxu0 0
    %3438 = vmatmul.mubr.bf16.gmra.mrb[0].mxu0 %v3403
    %v3439 = vpop.f32.mrb[0].mxu0
    %v3440 = vadd.f32 %v3388, %v3439
    %v3441 = vpop.f32.mrb[0].mxu0
    %v3442 = vpop.f32.mrb[0].mxu0
    %v3443 = vadd.f32 %v3388, %v3442
    %v3444 = vpop.f32.mrb[0].mxu0
    %3445 = vdwg.mxu0
    %v3446 = vadd.f32 %v2048, %v3440
    %v3447 = vadd.f32 %v2049, %v3443
    %s3448 = scalar_lea.vmem [#allocation7], 4
    %v3449 = vld [vmem:[%s3448] sm:$0x3]
    %v3450 = vsel %vm446, %v3446, 0.0
    %3451 = vadd.xlane.f32.xlu0 %v3450
    %v3452 = vpop.xlane.xlu0 %3451
    %v3453 = vsel %vm446, %v3447, 0.0
    %3454 = vadd.xlane.f32.xlu0 %v3453
    %v3455 = vpop.xlane.xlu0 %3454
    %v3456 = vmul.f32 %v3452, %v1820
    %v3457 = vmul.f32 %v3455, %v1820
    %v3458 = vsub.f32 %v3446, %v3456
    %v3459 = vsub.f32 %v3447, %v3457
    %v3460 = vmul.f32 %v3458, %v3458
    %v3461 = vmul.f32 %v3459, %v3459
    %v3462 = vsel %vm446, %v3460, 0.0
    %3463 = vadd.xlane.f32.xlu0 %v3462
    %v3464 = vpop.xlane.xlu0 %3463
    %v3465 = vsel %vm446, %v3461, 0.0
    %3466 = vadd.xlane.f32.xlu0 %v3465
    %v3467 = vpop.xlane.xlu0 %3466
    %v3468 = vmul.f32 %v3464, %v1820
    %v3469 = vmul.f32 %v3467, %v1820
    %v3470 = vadd.f32 %v3468, 1e-05
    %v3471 = vadd.f32 %v3469, 1e-05
    %v3472 = vrsqrt.pop %v3470
    %v3473 = vrsqrt.pop %v3471
    %v3474 = vmul.f32 %v3458, %v3472
    %v3475 = vmul.f32 %v3459, %v3473
    %v3476 = vlaneseq
    %v3477 = vshrl.u32 %v3476, 7
    %v3478 = vsub.s32 0, %v3477
    %v3479 = vrot.slane %v3449, %v3478
    %v3480 = vmul.f32 %v3474, %v3479
    %v3481 = vmul.f32 %v3475, %v3479
    %v3482 = vlaneseq
    %v3483 = vshrl.u32 %v3482, 7
    %v3484 = vsub.s32 1, %v3483
    %v3485 = vrot.slane %v3449, %v3484
    %v3486 = vadd.f32 %v3480, %v3485
    %v3487 = vadd.f32 %v3481, %v3485
    %s3488 = scalar_lea.vmem %s17, 16
    %v3489 = vld [vmem:[%s3488] sm:$0xf]
    %v3490 = vld [vmem:[%s3488 + $0x4] sm:$0xf]
    %v3491 = vld [vmem:[%s3488 + $0x8] sm:$0xf]
    %v3492 = vld [vmem:[%s3488 + $0xc] sm:$0xf]
    %s3493 = scalar_lea.vmem [#allocation4], 1
    %v3494 = vld [vmem:[%s3493] sm:$0x1]
    %s3495 = scalar_lea.vmem %s21, 32
    %v3496 = vld [vmem:[%s3495] sm:$0xf]
    %v3497 = vld [vmem:[%s3495 + $0x4] sm:$0xf]
    %v3498 = vld [vmem:[%s3495 + $0x8] sm:$0xf]
    %v3499 = vld [vmem:[%s3495 + $0xc] sm:$0xf]
    %v3500 = vld [vmem:[%s3495 + $0x10] sm:$0xf]
    %v3501 = vld [vmem:[%s3495 + $0x14] sm:$0xf]
    %v3502 = vld [vmem:[%s3495 + $0x18] sm:$0xf]
    %v3503 = vld [vmem:[%s3495 + $0x1c] sm:$0xf]
    %s3504 = scalar_lea.vmem [#allocation6], 1
    %v3505 = vld [vmem:[%s3504] sm:$0x1]
    %v3506 = vpack.c.bf16 %v3487, %v3486
    %v3508 = vlaneseq
    %v3509 = vshrl.u32 %v3508, 7
    %v3510 = vsub.s32 0, %v3509
    %v3511 = vrot.slane %v3494, %v3510
    %v3517 = vunpack.c.l.b16 %v3489
    %v3518 = vunpack.c.l.b16 %v3490
    %v3519 = vunpack.c.l.b16 %v3491
    %v3520 = vunpack.c.l.b16 %v3492
    %v3521 = vpack.c.b16 %v3518, %v3517
    %v3522 = vpack.c.b16 %v3520, %v3519
    %v3526 = vsel %vm446, %v3506, 0
    %3528 = vmatprep.subr.bf16.mxu0 0
    %3529 = vmatpush1.bf16.msra.mxu0 %v3521
    %3530 = vmatprep.subr.bf16.mxu0 0
    %3531 = vmatpush1.bf16.msra.mxu0 %v3522
    %3532 = vmatprep.subr.bf16.mxu0 0
    %3533 = vmatpush1.bf16.msra.mxu0 0
    %3534 = vmatprep.subr.bf16.mxu0 0
    %3535 = vmatpush1.bf16.msra.mxu0 0
    %3536 = vmatprep.subr.bf16.mxu0 0
    %3537 = vmatpush1.bf16.msra.mxu0 0
    %3538 = vmatprep.subr.bf16.mxu0 0
    %3539 = vmatpush1.bf16.msra.mxu0 0
    %3540 = vmatprep.subr.bf16.mxu0 0
    %3541 = vmatpush1.bf16.msra.mxu0 0
    %3542 = vmatprep.subr.bf16.mxu0 0
    %3543 = vmatpush1.bf16.msra.mxu0 0
    %3544 = vmatprep.subr.bf16.mxu0 0
    %3545 = vmatpush1.bf16.msra.mxu0 0
    %3546 = vmatprep.subr.bf16.mxu0 0
    %3547 = vmatpush1.bf16.msra.mxu0 0
    %3548 = vmatprep.subr.bf16.mxu0 0
    %3549 = vmatpush1.bf16.msra.mxu0 0
    %3550 = vmatprep.subr.bf16.mxu0 0
    %3551 = vmatpush1.bf16.msra.mxu0 0
    %3552 = vmatprep.subr.bf16.mxu0 0
    %3553 = vmatpush1.bf16.msra.mxu0 0
    %3554 = vmatprep.subr.bf16.mxu0 0
    %3555 = vmatpush1.bf16.msra.mxu0 0
    %3556 = vmatprep.subr.bf16.mxu0 0
    %3557 = vmatpush1.bf16.msra.mxu0 0
    %3558 = vmatprep.subr.bf16.mxu0 0
    %3559 = vmatpush1.bf16.msra.mxu0 0
    %3560 = vmatprep.mubr.bf16.mxu0 0
    %3561 = vmatmul.mubr.bf16.gmra.mrb[0].mxu0 %v3526
    %v3562 = vpop.f32.mrb[0].mxu0
    %v3563 = vadd.f32 %v3511, %v3562
    %v3564 = vpop.f32.mrb[0].mxu0
    %v3565 = vpop.f32.mrb[0].mxu0
    %v3566 = vadd.f32 %v3511, %v3565
    %v3567 = vpop.f32.mrb[0].mxu0
    %3568 = vdwg.mxu0
    %v3569 = vmax.f32 %v3563, 0.0
    %v3570 = vmax.f32 %v3566, 0.0
    %v3571 = vpack.c.bf16 %v3570, %v3569
    %v3573 = vlaneseq
    %v3574 = vshrl.u32 %v3573, 7
    %v3575 = vsub.s32 0, %v3574
    %v3576 = vrot.slane %v3505, %v3575
    %v3586 = vunpack.c.l.b16 %v3496
    %v3587 = vunpack.c.l.b16 %v3497
    %v3588 = vunpack.c.l.b16 %v3498
    %v3589 = vunpack.c.l.b16 %v3499
    %v3590 = vunpack.c.l.b16 %v3500
    %v3591 = vunpack.c.l.b16 %v3501
    %v3592 = vunpack.c.l.b16 %v3502
    %v3593 = vunpack.c.l.b16 %v3503
    %v3594 = vpack.c.b16 %v3587, %v3586
    %v3595 = vpack.c.b16 %v3589, %v3588
    %v3596 = vpack.c.b16 %v3591, %v3590
    %v3597 = vpack.c.b16 %v3593, %v3592
    %v3603 = vsel %vm1963, %v3571, 0
    %3605 = vmatprep.subr.bf16.mxu0 0
    %3606 = vmatpush1.bf16.msra.mxu0 %v3594
    %3607 = vmatprep.subr.bf16.mxu0 0
    %3608 = vmatpush1.bf16.msra.mxu0 %v3595
    %3609 = vmatprep.subr.bf16.mxu0 0
    %3610 = vmatpush1.bf16.msra.mxu0 %v3596
    %3611 = vmatprep.subr.bf16.mxu0 0
    %3612 = vmatpush1.bf16.msra.mxu0 %v3597
    %3613 = vmatprep.subr.bf16.mxu0 0
    %3614 = vmatpush1.bf16.msra.mxu0 0
    %3615 = vmatprep.subr.bf16.mxu0 0
    %3616 = vmatpush1.bf16.msra.mxu0 0
    %3617 = vmatprep.subr.bf16.mxu0 0
    %3618 = vmatpush1.bf16.msra.mxu0 0
    %3619 = vmatprep.subr.bf16.mxu0 0
    %3620 = vmatpush1.bf16.msra.mxu0 0
    %3621 = vmatprep.subr.bf16.mxu0 0
    %3622 = vmatpush1.bf16.msra.mxu0 0
    %3623 = vmatprep.subr.bf16.mxu0 0
    %3624 = vmatpush1.bf16.msra.mxu0 0
    %3625 = vmatprep.subr.bf16.mxu0 0
    %3626 = vmatpush1.bf16.msra.mxu0 0
    %3627 = vmatprep.subr.bf16.mxu0 0
    %3628 = vmatpush1.bf16.msra.mxu0 0
    %3629 = vmatprep.subr.bf16.mxu0 0
    %3630 = vmatpush1.bf16.msra.mxu0 0
    %3631 = vmatprep.subr.bf16.mxu0 0
    %3632 = vmatpush1.bf16.msra.mxu0 0
    %3633 = vmatprep.subr.bf16.mxu0 0
    %3634 = vmatpush1.bf16.msra.mxu0 0
    %3635 = vmatprep.subr.bf16.mxu0 0
    %3636 = vmatpush1.bf16.msra.mxu0 0
    %3637 = vmatprep.mubr.bf16.mxu0 0
    %3638 = vmatmul.mubr.bf16.gmra.mrb[0].mxu0 %v3603
    %v3639 = vpop.f32.mrb[0].mxu0
    %v3640 = vadd.f32 %v3576, %v3639
    %v3641 = vpop.f32.mrb[0].mxu0
    %v3642 = vpop.f32.mrb[0].mxu0
    %v3643 = vadd.f32 %v3576, %v3642
    %v3644 = vpop.f32.mrb[0].mxu0
    %3645 = vdwg.mxu0
    %v3646 = vadd.f32 %v3486, %v3640
    %v3647 = vadd.f32 %v3487, %v3643
    %s3648 = scalar_lea.vmem [#allocation7], 6
    %v3649 = vld [vmem:[%s3648] sm:$0x3]
    %v3650 = vsel %vm446, %v3646, 0.0
    %3651 = vadd.xlane.f32.xlu0 %v3650
    %v3652 = vpop.xlane.xlu0 %3651
    %v3653 = vsel %vm446, %v3647, 0.0
    %3654 = vadd.xlane.f32.xlu0 %v3653
    %v3655 = vpop.xlane.xlu0 %3654
    %v3656 = vmul.f32 %v3652, %v1820
    %v3657 = vmul.f32 %v3655, %v1820
    %v3658 = vsub.f32 %v3646, %v3656
    %v3659 = vsub.f32 %v3647, %v3657
    %v3660 = vmul.f32 %v3658, %v3658
    %v3661 = vmul.f32 %v3659, %v3659
    %v3662 = vsel %vm446, %v3660, 0.0
    %3663 = vadd.xlane.f32.xlu0 %v3662
    %v3664 = vpop.xlane.xlu0 %3663
    %v3665 = vsel %vm446, %v3661, 0.0
    %3666 = vadd.xlane.f32.xlu0 %v3665
    %v3667 = vpop.xlane.xlu0 %3666
    %v3668 = vmul.f32 %v3664, %v1820
    %v3669 = vmul.f32 %v3667, %v1820
    %v3670 = vadd.f32 %v3668, 1e-05
    %v3671 = vadd.f32 %v3669, 1e-05
    %v3672 = vrsqrt.pop %v3670
    %v3673 = vrsqrt.pop %v3671
    %v3674 = vmul.f32 %v3658, %v3672
    %v3675 = vmul.f32 %v3659, %v3673
    %v3676 = vlaneseq
    %v3677 = vshrl.u32 %v3676, 7
    %v3678 = vsub.s32 0, %v3677
    %v3679 = vrot.slane %v3649, %v3678
    %v3680 = vmul.f32 %v3674, %v3679
    %v3681 = vmul.f32 %v3675, %v3679
    %v3682 = vlaneseq
    %v3683 = vshrl.u32 %v3682, 7
    %v3684 = vsub.s32 1, %v3683
    %v3685 = vrot.slane %v3649, %v3684
    %v3686 = vadd.f32 %v3680, %v3685
    %v3687 = vadd.f32 %v3681, %v3685
    %v3688 = vld [vmem:[%s57] sm:$0x3]
    %v3689 = vsel %vm446, %v3686, 0.0
    %3690 = vadd.xlane.f32.xlu0 %v3689
    %v3691 = vpop.xlane.xlu0 %3690
    %v3692 = vsel %vm446, %v3687, 0.0
    %3693 = vadd.xlane.f32.xlu0 %v3692
    %v3694 = vpop.xlane.xlu0 %3693
    %v3695 = vmul.f32 %v3691, %v1820
    %v3696 = vmul.f32 %v3694, %v1820
    %v3697 = vsub.f32 %v3686, %v3695
    %v3698 = vsub.f32 %v3687, %v3696
    %v3699 = vmul.f32 %v3697, %v3697
    %v3700 = vmul.f32 %v3698, %v3698
    %v3701 = vsel %vm446, %v3699, 0.0
    %3702 = vadd.xlane.f32.xlu0 %v3701
    %v3703 = vpop.xlane.xlu0 %3702
    %v3704 = vsel %vm446, %v3700, 0.0
    %3705 = vadd.xlane.f32.xlu0 %v3704
    %v3706 = vpop.xlane.xlu0 %3705
    %v3707 = vmul.f32 %v3703, %v1820
    %v3708 = vmul.f32 %v3706, %v1820
    %v3709 = vadd.f32 %v3707, 1e-05
    %v3710 = vadd.f32 %v3708, 1e-05
    %v3711 = vrsqrt.pop %v3709
    %v3712 = vrsqrt.pop %v3710
    %v3713 = vmul.f32 %v3697, %v3711
    %v3714 = vmul.f32 %v3698, %v3712
    %v3715 = vlaneseq
    %v3716 = vshrl.u32 %v3715, 7
    %v3717 = vsub.s32 0, %v3716
    %v3718 = vrot.slane %v3688, %v3717
    %v3719 = vmul.f32 %v3713, %v3718
    %v3720 = vmul.f32 %v3714, %v3718
    %v3721 = vlaneseq
    %v3722 = vshrl.u32 %v3721, 7
    %v3723 = vsub.s32 1, %v3722
    %v3724 = vrot.slane %v3688, %v3723
    %v3725 = vadd.f32 %v3719, %v3724
    %v3726 = vadd.f32 %v3720, %v3724
    %v3727 = vld [vmem:[%s3] sm:$0xff]
    %v3728 = vld [vmem:[%s3 + $0x8] sm:$0xff]
    %3729 = vset.pattern.permute.xlu0 0
    %3730 = vperm.xlu0 %3729, %v3727
    %v3731 = vpop.permute.xlu0 %3730
    %3732 = vset.pattern.permute.xlu0 0
    %3733 = vperm.xlu0 %3732, %v3728
    %v3734 = vpop.permute.xlu0 %3733
    %vm3735 = vcmp.eq.s32.totalorder %v3731, %v310
    %vm3736 = vcmp.eq.s32.totalorder %v3734, %v310
    %v3737 = vsel %vm3735, 1, 0
    %v3738 = vsel %vm3736, 1, 0
    %v3739 = vcvt.s32.f32 %v3737
    %v3740 = vcvt.s32.f32 %v3738
    %v3741 = vld [vmem:[%s5] sm:$0xff]
    %v3742 = vld [vmem:[%s5 + $0x8] sm:$0xff]
    %v3743 = vld [vmem:[%s5 + $0x10] sm:$0xf]
    %v3745 = vsel %vm326, %v3739, 0
    %v3748 = vsel %vm326, %v3740, 0
    %v3751 = vsel %vm333, %v3743, 0
    %3753 = vmatprep.subr.mxu0 0.0
    %3754 = vmatpush1.msra.mxu0 %v3741
    %3755 = vmatprep.subr.mxu0 0.0
    %3756 = vmatpush1.msra.mxu0 %v3742
    %3757 = vmatprep.subr.mxu0 0.0
    %3758 = vmatpush1.msra.mxu0 %v3751
    %3759 = vmatprep.subr.mxu0 0.0
    %3760 = vmatpush1.msra.mxu0 0.0
    %3761 = vmatprep.subr.mxu0 0.0
    %3762 = vmatpush1.msra.mxu0 0.0
    %3763 = vmatprep.subr.mxu0 0.0
    %3764 = vmatpush1.msra.mxu0 0.0
    %3765 = vmatprep.subr.mxu0 0.0
    %3766 = vmatpush1.msra.mxu0 0.0
    %3767 = vmatprep.subr.mxu0 0.0
    %3768 = vmatpush1.msra.mxu0 0.0
    %3769 = vmatprep.subr.mxu0 0.0
    %3770 = vmatpush1.msra.mxu0 0.0
    %3771 = vmatprep.subr.mxu0 0.0
    %3772 = vmatpush1.msra.mxu0 0.0
    %3773 = vmatprep.subr.mxu0 0.0
    %3774 = vmatpush1.msra.mxu0 0.0
    %3775 = vmatprep.subr.mxu0 0.0
    %3776 = vmatpush1.msra.mxu0 0.0
    %3777 = vmatprep.subr.mxu0 0.0
    %3778 = vmatpush1.msra.mxu0 0.0
    %3779 = vmatprep.subr.mxu0 0.0
    %3780 = vmatpush1.msra.mxu0 0.0
    %3781 = vmatprep.subr.mxu0 0.0
    %3782 = vmatpush1.msra.mxu0 0.0
    %3783 = vmatprep.subr.mxu0 0.0
    %3784 = vmatpush1.msra.mxu0 0.0
    %3785 = vmatprep.subr.mxu0 0.0
    %3786 = vmatpush1.msra.mxu0 0.0
    %3787 = vmatprep.subr.mxu0 0.0
    %3788 = vmatpush1.msra.mxu0 0.0
    %3789 = vmatprep.subr.mxu0 0.0
    %3790 = vmatpush1.msra.mxu0 0.0
    %3791 = vmatprep.subr.mxu0 0.0
    %3792 = vmatpush1.msra.mxu0 0.0
    %3793 = vmatprep.subr.mxu0 0.0
    %3794 = vmatpush1.msra.mxu0 0.0
    %3795 = vmatprep.subr.mxu0 0.0
    %3796 = vmatpush1.msra.mxu0 0.0
    %3797 = vmatprep.subr.mxu0 0.0
    %3798 = vmatpush1.msra.mxu0 0.0
    %3799 = vmatprep.subr.mxu0 0.0
    %3800 = vmatpush1.msra.mxu0 0.0
    %3801 = vmatprep.subr.mxu0 0.0
    %3802 = vmatpush1.msra.mxu0 0.0
    %3803 = vmatprep.subr.mxu0 0.0
    %3804 = vmatpush1.msra.mxu0 0.0
    %3805 = vmatprep.subr.mxu0 0.0
    %3806 = vmatpush1.msra.mxu0 0.0
    %3807 = vmatprep.subr.mxu0 0.0
    %3808 = vmatpush1.msra.mxu0 0.0
    %3809 = vmatprep.subr.mxu0 0.0
    %3810 = vmatpush1.msra.mxu0 0.0
    %3811 = vmatprep.subr.mxu0 0.0
    %3812 = vmatpush1.msra.mxu0 0.0
    %3813 = vmatprep.subr.mxu0 0.0
    %3814 = vmatpush1.msra.mxu0 0.0
    %3815 = vmatprep.subr.mxu0 0.0
    %3816 = vmatpush1.msra.mxu0 0.0
    %3817 = vmatprep.mubr.f32.mxu0 0.0
    %3818 = vmatmul.mubr.f32.gmra.mrb[0].mxu0 %v3745
    %v3819 = vpop.f32.mrb[0].mxu0
    %v3820 = vadd.f32 0.0, %v3819
    %v3821 = vpop.f32.mrb[0].mxu0
    %3822 = vmatprep.mubr.f32.mxu0 0.0
    %3823 = vmatmul.mubr.f32.gmra.mrb[0].mxu0 %v3748
    %v3824 = vpop.f32.mrb[0].mxu0
    %v3825 = vadd.f32 0.0, %v3824
    %v3826 = vpop.f32.mrb[0].mxu0
    %3827 = vdwg.mxu0
    %v3828 = vmul.f32 %v3820, 5.656854
    %v3829 = vmul.f32 %v3825, 5.656854
    %v3830 = vld [vmem:[%s7] sm:$0xff]
    %v3831 = vadd.f32 %v3828, %v3830
    %v3832 = vadd.f32 %v3829, %v3830
    %v3833 = vld [vmem:[%s27] sm:$0xf]
    %v3834 = vld [vmem:[%s27 + $0x4] sm:$0xf]
    %v3835 = vld [vmem:[%s27 + $0x8] sm:$0xf]
    %v3836 = vld [vmem:[%s27 + $0xc] sm:$0xf]
    %v3837 = vld [vmem:[#allocation9] sm:$0x1]
    %v3838 = vld [vmem:[%s31] sm:$0xf]
    %v3839 = vld [vmem:[%s31 + $0x4] sm:$0xf]
    %v3840 = vld [vmem:[%s31 + $0x8] sm:$0xf]
    %v3841 = vld [vmem:[%s31 + $0xc] sm:$0xf]
    %v3842 = vld [vmem:[#allocation10] sm:$0x1]
    %v3843 = vpack.c.bf16 %v3832, %v3831
    %v3845 = vlaneseq
    %v3846 = vshrl.u32 %v3845, 7
    %v3847 = vsub.s32 0, %v3846
    %v3848 = vrot.slane %v3837, %v3847
    %v3854 = vunpack.c.l.b16 %v3833
    %v3855 = vunpack.c.l.b16 %v3834
    %v3856 = vunpack.c.l.b16 %v3835
    %v3857 = vunpack.c.l.b16 %v3836
    %v3858 = vpack.c.b16 %v3855, %v3854
    %v3859 = vpack.c.b16 %v3857, %v3856
    %v3863 = vsel %vm446, %v3843, 0
    %3865 = vmatprep.subr.bf16.mxu0 0
    %3866 = vmatpush1.bf16.msra.mxu0 %v3858
    %3867 = vmatprep.subr.bf16.mxu0 0
    %3868 = vmatpush1.bf16.msra.mxu0 %v3859
    %3869 = vmatprep.subr.bf16.mxu0 0
    %3870 = vmatpush1.bf16.msra.mxu0 0
    %3871 = vmatprep.subr.bf16.mxu0 0
    %3872 = vmatpush1.bf16.msra.mxu0 0
    %3873 = vmatprep.subr.bf16.mxu0 0
    %3874 = vmatpush1.bf16.msra.mxu0 0
    %3875 = vmatprep.subr.bf16.mxu0 0
    %3876 = vmatpush1.bf16.msra.mxu0 0
    %3877 = vmatprep.subr.bf16.mxu0 0
    %3878 = vmatpush1.bf16.msra.mxu0 0
    %3879 = vmatprep.subr.bf16.mxu0 0
    %3880 = vmatpush1.bf16.msra.mxu0 0
    %3881 = vmatprep.subr.bf16.mxu0 0
    %3882 = vmatpush1.bf16.msra.mxu0 0
    %3883 = vmatprep.subr.bf16.mxu0 0
    %3884 = vmatpush1.bf16.msra.mxu0 0
    %3885 = vmatprep.subr.bf16.mxu0 0
    %3886 = vmatpush1.bf16.msra.mxu0 0
    %3887 = vmatprep.subr.bf16.mxu0 0
    %3888 = vmatpush1.bf16.msra.mxu0 0
    %3889 = vmatprep.subr.bf16.mxu0 0
    %3890 = vmatpush1.bf16.msra.mxu0 0
    %3891 = vmatprep.subr.bf16.mxu0 0
    %3892 = vmatpush1.bf16.msra.mxu0 0
    %3893 = vmatprep.subr.bf16.mxu0 0
    %3894 = vmatpush1.bf16.msra.mxu0 0
    %3895 = vmatprep.subr.bf16.mxu0 0
    %3896 = vmatpush1.bf16.msra.mxu0 0
    %3897 = vmatprep.mubr.bf16.mxu0 0
    %3898 = vmatmul.mubr.bf16.gmra.mrb[0].mxu0 %v3863
    %v3899 = vpop.f32.mrb[0].mxu0
    %v3900 = vadd.f32 %v3848, %v3899
    %v3901 = vpop.f32.mrb[0].mxu0
    %v3902 = vpop.f32.mrb[0].mxu0
    %v3903 = vadd.f32 %v3848, %v3902
    %v3904 = vpop.f32.mrb[0].mxu0
    %3905 = vdwg.mxu0
    %v3906 = vmul.f32 %v3900, 0.35355338
    %v3907 = vmul.f32 %v3903, 0.35355338
    %3908 = vxpose.xlu0.b32.start [1/16] %v3906, 128
    %3909 = vxpose.xlu0.b32.cont [2/16] 0.0, 128
    %3910 = vxpose.xlu0.b32.cont [3/16] 0.0, 128
    %3911 = vxpose.xlu0.b32.cont [4/16] 0.0, 128
    %3912 = vxpose.xlu0.b32.cont [5/16] 0.0, 128
    %3913 = vxpose.xlu0.b32.cont [6/16] 0.0, 128
    %3914 = vxpose.xlu0.b32.cont [7/16] 0.0, 128
    %3915 = vxpose.xlu0.b32.cont [8/16] 0.0, 128
    %3916 = vxpose.xlu0.b32.cont [9/16] 0.0, 128
    %3917 = vxpose.xlu0.b32.cont [10/16] 0.0, 128
    %3918 = vxpose.xlu0.b32.cont [11/16] 0.0, 128
    %3919 = vxpose.xlu0.b32.cont [12/16] 0.0, 128
    %3920 = vxpose.xlu0.b32.cont [13/16] 0.0, 128
    %3921 = vxpose.xlu0.b32.cont [14/16] 0.0, 128
    %3922 = vxpose.xlu0.b32.cont [15/16] 0.0, 128
    %3923 = vxpose.xlu0.b32.end [16/16] 0.0, 128
    %v3924 = vpop.trf.xlu0
    %v3925 = vpop.trf.xlu0
    %v3926 = vpop.trf.xlu0
    %v3927 = vpop.trf.xlu0
    %v3928 = vpop.trf.xlu0
    %v3929 = vpop.trf.xlu0
    %v3930 = vpop.trf.xlu0
    %v3931 = vpop.trf.xlu0
    %v3932 = vpop.trf.xlu0
    %v3933 = vpop.trf.xlu0
    %v3934 = vpop.trf.xlu0
    %v3935 = vpop.trf.xlu0
    %v3936 = vpop.trf.xlu0
    %v3937 = vpop.trf.xlu0
    %v3938 = vpop.trf.xlu0
    %v3939 = vpop.trf.xlu0
    %3940 = vxpose.xlu0.b32.start [1/16] %v3907, 128
    %3941 = vxpose.xlu0.b32.cont [2/16] 0.0, 128
    %3942 = vxpose.xlu0.b32.cont [3/16] 0.0, 128
    %3943 = vxpose.xlu0.b32.cont [4/16] 0.0, 128
    %3944 = vxpose.xlu0.b32.cont [5/16] 0.0, 128
    %3945 = vxpose.xlu0.b32.cont [6/16] 0.0, 128
    %3946 = vxpose.xlu0.b32.cont [7/16] 0.0, 128
    %3947 = vxpose.xlu0.b32.cont [8/16] 0.0, 128
    %3948 = vxpose.xlu0.b32.cont [9/16] 0.0, 128
    %3949 = vxpose.xlu0.b32.cont [10/16] 0.0, 128
    %3950 = vxpose.xlu0.b32.cont [11/16] 0.0, 128
    %3951 = vxpose.xlu0.b32.cont [12/16] 0.0, 128
    %3952 = vxpose.xlu0.b32.cont [13/16] 0.0, 128
    %3953 = vxpose.xlu0.b32.cont [14/16] 0.0, 128
    %3954 = vxpose.xlu0.b32.cont [15/16] 0.0, 128
    %3955 = vxpose.xlu0.b32.end [16/16] 0.0, 128
    %v3956 = vpop.trf.xlu0
    %v3957 = vpop.trf.xlu0
    %v3958 = vpop.trf.xlu0
    %v3959 = vpop.trf.xlu0
    %v3960 = vpop.trf.xlu0
    %v3961 = vpop.trf.xlu0
    %v3962 = vpop.trf.xlu0
    %v3963 = vpop.trf.xlu0
    %v3964 = vpop.trf.xlu0
    %v3965 = vpop.trf.xlu0
    %v3966 = vpop.trf.xlu0
    %v3967 = vpop.trf.xlu0
    %v3968 = vpop.trf.xlu0
    %v3969 = vpop.trf.xlu0
    %v3970 = vpop.trf.xlu0
    %v3971 = vpop.trf.xlu0
    %v3972 = vpack.c.bf16 %v3924, %v3924
    %v3973 = vpack.c.bf16 %v3925, %v3925
    %v3974 = vpack.c.bf16 %v3926, %v3926
    %v3975 = vpack.c.bf16 %v3927, %v3927
    %v3976 = vpack.c.bf16 %v3956, %v3956
    %v3977 = vpack.c.bf16 %v3957, %v3957
    %v3978 = vpack.c.bf16 %v3958, %v3958
    %v3979 = vpack.c.bf16 %v3959, %v3959
    %3982 = vrot.lane.b32.xlu0 %v3900, 96
    %v3983 = vpop.permute.xlu0 %3982
    %3984 = vrot.lane.b32.xlu0 %v3903, 96
    %v3985 = vpop.permute.xlu0 %3984
    %3988 = vxpose.xlu0.b32.start [1/16] %v3983, 128
    %3989 = vxpose.xlu0.b32.cont [2/16] 0.0, 128
    %3990 = vxpose.xlu0.b32.cont [3/16] 0.0, 128
    %3991 = vxpose.xlu0.b32.cont [4/16] 0.0, 128
    %3992 = vxpose.xlu0.b32.cont [5/16] 0.0, 128
    %3993 = vxpose.xlu0.b32.cont [6/16] 0.0, 128
    %3994 = vxpose.xlu0.b32.cont [7/16] 0.0, 128
    %3995 = vxpose.xlu0.b32.cont [8/16] 0.0, 128
    %3996 = vxpose.xlu0.b32.cont [9/16] 0.0, 128
    %3997 = vxpose.xlu0.b32.cont [10/16] 0.0, 128
    %3998 = vxpose.xlu0.b32.cont [11/16] 0.0, 128
    %3999 = vxpose.xlu0.b32.cont [12/16] 0.0, 128
    %4000 = vxpose.xlu0.b32.cont [13/16] 0.0, 128
    %4001 = vxpose.xlu0.b32.cont [14/16] 0.0, 128
    %4002 = vxpose.xlu0.b32.cont [15/16] 0.0, 128
    %4003 = vxpose.xlu0.b32.end [16/16] 0.0, 128
    %v4004 = vpop.trf.xlu0
    %v4005 = vpop.trf.xlu0
    %v4006 = vpop.trf.xlu0
    %v4007 = vpop.trf.xlu0
    %v4008 = vpop.trf.xlu0
    %v4009 = vpop.trf.xlu0
    %v4010 = vpop.trf.xlu0
    %v4011 = vpop.trf.xlu0
    %v4012 = vpop.trf.xlu0
    %v4013 = vpop.trf.xlu0
    %v4014 = vpop.trf.xlu0
    %v4015 = vpop.trf.xlu0
    %v4016 = vpop.trf.xlu0
    %v4017 = vpop.trf.xlu0
    %v4018 = vpop.trf.xlu0
    %v4019 = vpop.trf.xlu0
    %4020 = vxpose.xlu0.b32.start [1/16] %v3985, 128
    %4021 = vxpose.xlu0.b32.cont [2/16] 0.0, 128
    %4022 = vxpose.xlu0.b32.cont [3/16] 0.0, 128
    %4023 = vxpose.xlu0.b32.cont [4/16] 0.0, 128
    %4024 = vxpose.xlu0.b32.cont [5/16] 0.0, 128
    %4025 = vxpose.xlu0.b32.cont [6/16] 0.0, 128
    %4026 = vxpose.xlu0.b32.cont [7/16] 0.0, 128
    %4027 = vxpose.xlu0.b32.cont [8/16] 0.0, 128
    %4028 = vxpose.xlu0.b32.cont [9/16] 0.0, 128
    %4029 = vxpose.xlu0.b32.cont [10/16] 0.0, 128
    %4030 = vxpose.xlu0.b32.cont [11/16] 0.0, 128
    %4031 = vxpose.xlu0.b32.cont [12/16] 0.0, 128
    %4032 = vxpose.xlu0.b32.cont [13/16] 0.0, 128
    %4033 = vxpose.xlu0.b32.cont [14/16] 0.0, 128
    %4034 = vxpose.xlu0.b32.cont [15/16] 0.0, 128
    %4035 = vxpose.xlu0.b32.end [16/16] 0.0, 128
    %v4036 = vpop.trf.xlu0
    %v4037 = vpop.trf.xlu0
    %v4038 = vpop.trf.xlu0
    %v4039 = vpop.trf.xlu0
    %v4040 = vpop.trf.xlu0
    %v4041 = vpop.trf.xlu0
    %v4042 = vpop.trf.xlu0
    %v4043 = vpop.trf.xlu0
    %v4044 = vpop.trf.xlu0
    %v4045 = vpop.trf.xlu0
    %v4046 = vpop.trf.xlu0
    %v4047 = vpop.trf.xlu0
    %v4048 = vpop.trf.xlu0
    %v4049 = vpop.trf.xlu0
    %v4050 = vpop.trf.xlu0
    %v4051 = vpop.trf.xlu0
    %v4052 = vpack.c.bf16 %v4004, %v4004
    %v4053 = vpack.c.bf16 %v4005, %v4005
    %v4054 = vpack.c.bf16 %v4006, %v4006
    %v4055 = vpack.c.bf16 %v4007, %v4007
    %v4056 = vpack.c.bf16 %v4036, %v4036
    %v4057 = vpack.c.bf16 %v4037, %v4037
    %v4058 = vpack.c.bf16 %v4038, %v4038
    %v4059 = vpack.c.bf16 %v4039, %v4039
    %4060 = vrot.lane.b32.xlu0 %v3900, 64
    %v4061 = vpop.permute.xlu0 %4060
    %4062 = vrot.lane.b32.xlu0 %v3903, 64
    %v4063 = vpop.permute.xlu0 %4062
    %4066 = vxpose.xlu0.b32.start [1/16] %v4061, 128
    %4067 = vxpose.xlu0.b32.cont [2/16] 0.0, 128
    %4068 = vxpose.xlu0.b32.cont [3/16] 0.0, 128
    %4069 = vxpose.xlu0.b32.cont [4/16] 0.0, 128
    %4070 = vxpose.xlu0.b32.cont [5/16] 0.0, 128
    %4071 = vxpose.xlu0.b32.cont [6/16] 0.0, 128
    %4072 = vxpose.xlu0.b32.cont [7/16] 0.0, 128
    %4073 = vxpose.xlu0.b32.cont [8/16] 0.0, 128
    %4074 = vxpose.xlu0.b32.cont [9/16] 0.0, 128
    %4075 = vxpose.xlu0.b32.cont [10/16] 0.0, 128
    %4076 = vxpose.xlu0.b32.cont [11/16] 0.0, 128
    %4077 = vxpose.xlu0.b32.cont [12/16] 0.0, 128
    %4078 = vxpose.xlu0.b32.cont [13/16] 0.0, 128
    %4079 = vxpose.xlu0.b32.cont [14/16] 0.0, 128
    %4080 = vxpose.xlu0.b32.cont [15/16] 0.0, 128
    %4081 = vxpose.xlu0.b32.end [16/16] 0.0, 128
    %v4082 = vpop.trf.xlu0
    %v4083 = vpop.trf.xlu0
    %v4084 = vpop.trf.xlu0
    %v4085 = vpop.trf.xlu0
    %v4086 = vpop.trf.xlu0
    %v4087 = vpop.trf.xlu0
    %v4088 = vpop.trf.xlu0
    %v4089 = vpop.trf.xlu0
    %v4090 = vpop.trf.xlu0
    %v4091 = vpop.trf.xlu0
    %v4092 = vpop.trf.xlu0
    %v4093 = vpop.trf.xlu0
    %v4094 = vpop.trf.xlu0
    %v4095 = vpop.trf.xlu0
    %v4096 = vpop.trf.xlu0
    %v4097 = vpop.trf.xlu0
    %4098 = vxpose.xlu0.b32.start [1/16] %v4063, 128
    %4099 = vxpose.xlu0.b32.cont [2/16] 0.0, 128
    %4100 = vxpose.xlu0.b32.cont [3/16] 0.0, 128
    %4101 = vxpose.xlu0.b32.cont [4/16] 0.0, 128
    %4102 = vxpose.xlu0.b32.cont [5/16] 0.0, 128
    %4103 = vxpose.xlu0.b32.cont [6/16] 0.0, 128
    %4104 = vxpose.xlu0.b32.cont [7/16] 0.0, 128
    %4105 = vxpose.xlu0.b32.cont [8/16] 0.0, 128
    %4106 = vxpose.xlu0.b32.cont [9/16] 0.0, 128
    %4107 = vxpose.xlu0.b32.cont [10/16] 0.0, 128
    %4108 = vxpose.xlu0.b32.cont [11/16] 0.0, 128
    %4109 = vxpose.xlu0.b32.cont [12/16] 0.0, 128
    %4110 = vxpose.xlu0.b32.cont [13/16] 0.0, 128
    %4111 = vxpose.xlu0.b32.cont [14/16] 0.0, 128
    %4112 = vxpose.xlu0.b32.cont [15/16] 0.0, 128
    %4113 = vxpose.xlu0.b32.end [16/16] 0.0, 128
    %v4114 = vpop.trf.xlu0
    %v4115 = vpop.trf.xlu0
    %v4116 = vpop.trf.xlu0
    %v4117 = vpop.trf.xlu0
    %v4118 = vpop.trf.xlu0
    %v4119 = vpop.trf.xlu0
    %v4120 = vpop.trf.xlu0
    %v4121 = vpop.trf.xlu0
    %v4122 = vpop.trf.xlu0
    %v4123 = vpop.trf.xlu0
    %v4124 = vpop.trf.xlu0
    %v4125 = vpop.trf.xlu0
    %v4126 = vpop.trf.xlu0
    %v4127 = vpop.trf.xlu0
    %v4128 = vpop.trf.xlu0
    %v4129 = vpop.trf.xlu0
    %v4130 = vpack.c.bf16 %v4082, %v4082
    %v4131 = vpack.c.bf16 %v4083, %v4083
    %v4132 = vpack.c.bf16 %v4084, %v4084
    %v4133 = vpack.c.bf16 %v4085, %v4085
    %v4134 = vpack.c.bf16 %v4114, %v4114
    %v4135 = vpack.c.bf16 %v4115, %v4115
    %v4136 = vpack.c.bf16 %v4116, %v4116
    %v4137 = vpack.c.bf16 %v4117, %v4117
    %4138 = vxpose.xlu0.c.b16.start [1/8] %v3972, 128
    %4139 = vxpose.xlu0.c.b16.cont [2/8] 0, 128
    %4140 = vxpose.xlu0.c.b16.cont [3/8] 0, 128
    %4141 = vxpose.xlu0.c.b16.cont [4/8] 0, 128
    %4142 = vxpose.xlu0.c.b16.cont [5/8] 0, 128
    %4143 = vxpose.xlu0.c.b16.cont [6/8] 0, 128
    %4144 = vxpose.xlu0.c.b16.cont [7/8] 0, 128
    %4145 = vxpose.xlu0.c.b16.end [8/8] 0, 128
    %v4146 = vpop.trf.xlu0
    %v4147 = vpop.trf.xlu0
    %v4148 = vpop.trf.xlu0
    %v4149 = vpop.trf.xlu0
    %v4150 = vpop.trf.xlu0
    %v4151 = vpop.trf.xlu0
    %v4152 = vpop.trf.xlu0
    %v4153 = vpop.trf.xlu0
    %v4155 = vsel %vm739, %v4146, 0
    %v4158 = vsel %vm333, %v4052, 0
    %4160 = vmatprep.subr.bf16.mxu0 0
    %4161 = vmatpush1.bf16.msra.mxu0 %v4158
    %4162 = vmatprep.subr.bf16.mxu0 0
    %4163 = vmatpush1.bf16.msra.mxu0 0
    %4164 = vmatprep.subr.bf16.mxu0 0
    %4165 = vmatpush1.bf16.msra.mxu0 0
    %4166 = vmatprep.subr.bf16.mxu0 0
    %4167 = vmatpush1.bf16.msra.mxu0 0
    %4168 = vmatprep.subr.bf16.mxu0 0
    %4169 = vmatpush1.bf16.msra.mxu0 0
    %4170 = vmatprep.subr.bf16.mxu0 0
    %4171 = vmatpush1.bf16.msra.mxu0 0
    %4172 = vmatprep.subr.bf16.mxu0 0
    %4173 = vmatpush1.bf16.msra.mxu0 0
    %4174 = vmatprep.subr.bf16.mxu0 0
    %4175 = vmatpush1.bf16.msra.mxu0 0
    %4176 = vmatprep.subr.bf16.mxu0 0
    %4177 = vmatpush1.bf16.msra.mxu0 0
    %4178 = vmatprep.subr.bf16.mxu0 0
    %4179 = vmatpush1.bf16.msra.mxu0 0
    %4180 = vmatprep.subr.bf16.mxu0 0
    %4181 = vmatpush1.bf16.msra.mxu0 0
    %4182 = vmatprep.subr.bf16.mxu0 0
    %4183 = vmatpush1.bf16.msra.mxu0 0
    %4184 = vmatprep.subr.bf16.mxu0 0
    %4185 = vmatpush1.bf16.msra.mxu0 0
    %4186 = vmatprep.subr.bf16.mxu0 0
    %4187 = vmatpush1.bf16.msra.mxu0 0
    %4188 = vmatprep.subr.bf16.mxu0 0
    %4189 = vmatpush1.bf16.msra.mxu0 0
    %4190 = vmatprep.subr.bf16.mxu0 0
    %4191 = vmatpush1.bf16.msra.mxu0 0
    %4192 = vmatprep.mubr.bf16.mxu0 0
    %4193 = vmatmul.mubr.bf16.gmra.mrb[0].mxu0 %v4155
    %v4194 = vpop.f32.mrb[0].mxu0
    %v4195 = vadd.f32 0.0, %v4194
    %v4196 = vpop.f32.mrb[0].mxu0
    %v4197 = vpop.f32.mrb[0].mxu0
    %v4198 = vpop.f32.mrb[0].mxu0
    %4199 = vdwg.mxu0
    %4200 = vxpose.xlu0.c.b16.start [1/8] %v3973, 128
    %4201 = vxpose.xlu0.c.b16.cont [2/8] 0, 128
    %4202 = vxpose.xlu0.c.b16.cont [3/8] 0, 128
    %4203 = vxpose.xlu0.c.b16.cont [4/8] 0, 128
    %4204 = vxpose.xlu0.c.b16.cont [5/8] 0, 128
    %4205 = vxpose.xlu0.c.b16.cont [6/8] 0, 128
    %4206 = vxpose.xlu0.c.b16.cont [7/8] 0, 128
    %4207 = vxpose.xlu0.c.b16.end [8/8] 0, 128
    %v4208 = vpop.trf.xlu0
    %v4209 = vpop.trf.xlu0
    %v4210 = vpop.trf.xlu0
    %v4211 = vpop.trf.xlu0
    %v4212 = vpop.trf.xlu0
    %v4213 = vpop.trf.xlu0
    %v4214 = vpop.trf.xlu0
    %v4215 = vpop.trf.xlu0
    %v4217 = vsel %vm739, %v4208, 0
    %v4220 = vsel %vm333, %v4053, 0
    %4222 = vmatprep.subr.bf16.mxu0 0
    %4223 = vmatpush1.bf16.msra.mxu0 %v4220
    %4224 = vmatprep.subr.bf16.mxu0 0
    %4225 = vmatpush1.bf16.msra.mxu0 0
    %4226 = vmatprep.subr.bf16.mxu0 0
    %4227 = vmatpush1.bf16.msra.mxu0 0
    %4228 = vmatprep.subr.bf16.mxu0 0
    %4229 = vmatpush1.bf16.msra.mxu0 0
    %4230 = vmatprep.subr.bf16.mxu0 0
    %4231 = vmatpush1.bf16.msra.mxu0 0
    %4232 = vmatprep.subr.bf16.mxu0 0
    %4233 = vmatpush1.bf16.msra.mxu0 0
    %4234 = vmatprep.subr.bf16.mxu0 0
    %4235 = vmatpush1.bf16.msra.mxu0 0
    %4236 = vmatprep.subr.bf16.mxu0 0
    %4237 = vmatpush1.bf16.msra.mxu0 0
    %4238 = vmatprep.subr.bf16.mxu0 0
    %4239 = vmatpush1.bf16.msra.mxu0 0
    %4240 = vmatprep.subr.bf16.mxu0 0
    %4241 = vmatpush1.bf16.msra.mxu0 0
    %4242 = vmatprep.subr.bf16.mxu0 0
    %4243 = vmatpush1.bf16.msra.mxu0 0
    %4244 = vmatprep.subr.bf16.mxu0 0
    %4245 = vmatpush1.bf16.msra.mxu0 0
    %4246 = vmatprep.subr.bf16.mxu0 0
    %4247 = vmatpush1.bf16.msra.mxu0 0
    %4248 = vmatprep.subr.bf16.mxu0 0
    %4249 = vmatpush1.bf16.msra.mxu0 0
    %4250 = vmatprep.subr.bf16.mxu0 0
    %4251 = vmatpush1.bf16.msra.mxu0 0
    %4252 = vmatprep.subr.bf16.mxu0 0
    %4253 = vmatpush1.bf16.msra.mxu0 0
    %4254 = vmatprep.mubr.bf16.mxu0 0
    %4255 = vmatmul.mubr.bf16.gmra.mrb[0].mxu0 %v4217
    %v4256 = vpop.f32.mrb[0].mxu0
    %v4257 = vadd.f32 0.0, %v4256
    %v4258 = vpop.f32.mrb[0].mxu0
    %v4259 = vpop.f32.mrb[0].mxu0
    %v4260 = vpop.f32.mrb[0].mxu0
    %4261 = vdwg.mxu0
    %4262 = vxpose.xlu0.c.b16.start [1/8] %v3974, 128
    %4263 = vxpose.xlu0.c.b16.cont [2/8] 0, 128
    %4264 = vxpose.xlu0.c.b16.cont [3/8] 0, 128
    %4265 = vxpose.xlu0.c.b16.cont [4/8] 0, 128
    %4266 = vxpose.xlu0.c.b16.cont [5/8] 0, 128
    %4267 = vxpose.xlu0.c.b16.cont [6/8] 0, 128
    %4268 = vxpose.xlu0.c.b16.cont [7/8] 0, 128
    %4269 = vxpose.xlu0.c.b16.end [8/8] 0, 128
    %v4270 = vpop.trf.xlu0
    %v4271 = vpop.trf.xlu0
    %v4272 = vpop.trf.xlu0
    %v4273 = vpop.trf.xlu0
    %v4274 = vpop.trf.xlu0
    %v4275 = vpop.trf.xlu0
    %v4276 = vpop.trf.xlu0
    %v4277 = vpop.trf.xlu0
    %v4279 = vsel %vm739, %v4270, 0
    %v4282 = vsel %vm333, %v4054, 0
    %4284 = vmatprep.subr.bf16.mxu0 0
    %4285 = vmatpush1.bf16.msra.mxu0 %v4282
    %4286 = vmatprep.subr.bf16.mxu0 0
    %4287 = vmatpush1.bf16.msra.mxu0 0
    %4288 = vmatprep.subr.bf16.mxu0 0
    %4289 = vmatpush1.bf16.msra.mxu0 0
    %4290 = vmatprep.subr.bf16.mxu0 0
    %4291 = vmatpush1.bf16.msra.mxu0 0
    %4292 = vmatprep.subr.bf16.mxu0 0
    %4293 = vmatpush1.bf16.msra.mxu0 0
    %4294 = vmatprep.subr.bf16.mxu0 0
    %4295 = vmatpush1.bf16.msra.mxu0 0
    %4296 = vmatprep.subr.bf16.mxu0 0
    %4297 = vmatpush1.bf16.msra.mxu0 0
    %4298 = vmatprep.subr.bf16.mxu0 0
    %4299 = vmatpush1.bf16.msra.mxu0 0
    %4300 = vmatprep.subr.bf16.mxu0 0
    %4301 = vmatpush1.bf16.msra.mxu0 0
    %4302 = vmatprep.subr.bf16.mxu0 0
    %4303 = vmatpush1.bf16.msra.mxu0 0
    %4304 = vmatprep.subr.bf16.mxu0 0
    %4305 = vmatpush1.bf16.msra.mxu0 0
    %4306 = vmatprep.subr.bf16.mxu0 0
    %4307 = vmatpush1.bf16.msra.mxu0 0
    %4308 = vmatprep.subr.bf16.mxu0 0
    %4309 = vmatpush1.bf16.msra.mxu0 0
    %4310 = vmatprep.subr.bf16.mxu0 0
    %4311 = vmatpush1.bf16.msra.mxu0 0
    %4312 = vmatprep.subr.bf16.mxu0 0
    %4313 = vmatpush1.bf16.msra.mxu0 0
    %4314 = vmatprep.subr.bf16.mxu0 0
    %4315 = vmatpush1.bf16.msra.mxu0 0
    %4316 = vmatprep.mubr.bf16.mxu0 0
    %4317 = vmatmul.mubr.bf16.gmra.mrb[0].mxu0 %v4279
    %v4318 = vpop.f32.mrb[0].mxu0
    %v4319 = vadd.f32 0.0, %v4318
    %v4320 = vpop.f32.mrb[0].mxu0
    %v4321 = vpop.f32.mrb[0].mxu0
    %v4322 = vpop.f32.mrb[0].mxu0
    %4323 = vdwg.mxu0
    %4324 = vxpose.xlu0.c.b16.start [1/8] %v3975, 128
    %4325 = vxpose.xlu0.c.b16.cont [2/8] 0, 128
    %4326 = vxpose.xlu0.c.b16.cont [3/8] 0, 128
    %4327 = vxpose.xlu0.c.b16.cont [4/8] 0, 128
    %4328 = vxpose.xlu0.c.b16.cont [5/8] 0, 128
    %4329 = vxpose.xlu0.c.b16.cont [6/8] 0, 128
    %4330 = vxpose.xlu0.c.b16.cont [7/8] 0, 128
    %4331 = vxpose.xlu0.c.b16.end [8/8] 0, 128
    %v4332 = vpop.trf.xlu0
    %v4333 = vpop.trf.xlu0
    %v4334 = vpop.trf.xlu0
    %v4335 = vpop.trf.xlu0
    %v4336 = vpop.trf.xlu0
    %v4337 = vpop.trf.xlu0
    %v4338 = vpop.trf.xlu0
    %v4339 = vpop.trf.xlu0
    %v4341 = vsel %vm739, %v4332, 0
    %v4344 = vsel %vm333, %v4055, 0
    %4346 = vmatprep.subr.bf16.mxu0 0
    %4347 = vmatpush1.bf16.msra.mxu0 %v4344
    %4348 = vmatprep.subr.bf16.mxu0 0
    %4349 = vmatpush1.bf16.msra.mxu0 0
    %4350 = vmatprep.subr.bf16.mxu0 0
    %4351 = vmatpush1.bf16.msra.mxu0 0
    %4352 = vmatprep.subr.bf16.mxu0 0
    %4353 = vmatpush1.bf16.msra.mxu0 0
    %4354 = vmatprep.subr.bf16.mxu0 0
    %4355 = vmatpush1.bf16.msra.mxu0 0
    %4356 = vmatprep.subr.bf16.mxu0 0
    %4357 = vmatpush1.bf16.msra.mxu0 0
    %4358 = vmatprep.subr.bf16.mxu0 0
    %4359 = vmatpush1.bf16.msra.mxu0 0
    %4360 = vmatprep.subr.bf16.mxu0 0
    %4361 = vmatpush1.bf16.msra.mxu0 0
    %4362 = vmatprep.subr.bf16.mxu0 0
    %4363 = vmatpush1.bf16.msra.mxu0 0
    %4364 = vmatprep.subr.bf16.mxu0 0
    %4365 = vmatpush1.bf16.msra.mxu0 0
    %4366 = vmatprep.subr.bf16.mxu0 0
    %4367 = vmatpush1.bf16.msra.mxu0 0
    %4368 = vmatprep.subr.bf16.mxu0 0
    %4369 = vmatpush1.bf16.msra.mxu0 0
    %4370 = vmatprep.subr.bf16.mxu0 0
    %4371 = vmatpush1.bf16.msra.mxu0 0
    %4372 = vmatprep.subr.bf16.mxu0 0
    %4373 = vmatpush1.bf16.msra.mxu0 0
    %4374 = vmatprep.subr.bf16.mxu0 0
    %4375 = vmatpush1.bf16.msra.mxu0 0
    %4376 = vmatprep.subr.bf16.mxu0 0
    %4377 = vmatpush1.bf16.msra.mxu0 0
    %4378 = vmatprep.mubr.bf16.mxu0 0
    %4379 = vmatmul.mubr.bf16.gmra.mrb[0].mxu0 %v4341
    %v4380 = vpop.f32.mrb[0].mxu0
    %v4381 = vadd.f32 0.0, %v4380
    %v4382 = vpop.f32.mrb[0].mxu0
    %v4383 = vpop.f32.mrb[0].mxu0
    %v4384 = vpop.f32.mrb[0].mxu0
    %4385 = vdwg.mxu0
    %4386 = vxpose.xlu0.c.b16.start [1/8] %v3976, 128
    %4387 = vxpose.xlu0.c.b16.cont [2/8] 0, 128
    %4388 = vxpose.xlu0.c.b16.cont [3/8] 0, 128
    %4389 = vxpose.xlu0.c.b16.cont [4/8] 0, 128
    %4390 = vxpose.xlu0.c.b16.cont [5/8] 0, 128
    %4391 = vxpose.xlu0.c.b16.cont [6/8] 0, 128
    %4392 = vxpose.xlu0.c.b16.cont [7/8] 0, 128
    %4393 = vxpose.xlu0.c.b16.end [8/8] 0, 128
    %v4394 = vpop.trf.xlu0
    %v4395 = vpop.trf.xlu0
    %v4396 = vpop.trf.xlu0
    %v4397 = vpop.trf.xlu0
    %v4398 = vpop.trf.xlu0
    %v4399 = vpop.trf.xlu0
    %v4400 = vpop.trf.xlu0
    %v4401 = vpop.trf.xlu0
    %v4403 = vsel %vm739, %v4394, 0
    %v4406 = vsel %vm333, %v4056, 0
    %4408 = vmatprep.subr.bf16.mxu0 0
    %4409 = vmatpush1.bf16.msra.mxu0 %v4406
    %4410 = vmatprep.subr.bf16.mxu0 0
    %4411 = vmatpush1.bf16.msra.mxu0 0
    %4412 = vmatprep.subr.bf16.mxu0 0
    %4413 = vmatpush1.bf16.msra.mxu0 0
    %4414 = vmatprep.subr.bf16.mxu0 0
    %4415 = vmatpush1.bf16.msra.mxu0 0
    %4416 = vmatprep.subr.bf16.mxu0 0
    %4417 = vmatpush1.bf16.msra.mxu0 0
    %4418 = vmatprep.subr.bf16.mxu0 0
    %4419 = vmatpush1.bf16.msra.mxu0 0
    %4420 = vmatprep.subr.bf16.mxu0 0
    %4421 = vmatpush1.bf16.msra.mxu0 0
    %4422 = vmatprep.subr.bf16.mxu0 0
    %4423 = vmatpush1.bf16.msra.mxu0 0
    %4424 = vmatprep.subr.bf16.mxu0 0
    %4425 = vmatpush1.bf16.msra.mxu0 0
    %4426 = vmatprep.subr.bf16.mxu0 0
    %4427 = vmatpush1.bf16.msra.mxu0 0
    %4428 = vmatprep.subr.bf16.mxu0 0
    %4429 = vmatpush1.bf16.msra.mxu0 0
    %4430 = vmatprep.subr.bf16.mxu0 0
    %4431 = vmatpush1.bf16.msra.mxu0 0
    %4432 = vmatprep.subr.bf16.mxu0 0
    %4433 = vmatpush1.bf16.msra.mxu0 0
    %4434 = vmatprep.subr.bf16.mxu0 0
    %4435 = vmatpush1.bf16.msra.mxu0 0
    %4436 = vmatprep.subr.bf16.mxu0 0
    %4437 = vmatpush1.bf16.msra.mxu0 0
    %4438 = vmatprep.subr.bf16.mxu0 0
    %4439 = vmatpush1.bf16.msra.mxu0 0
    %4440 = vmatprep.mubr.bf16.mxu0 0
    %4441 = vmatmul.mubr.bf16.gmra.mrb[0].mxu0 %v4403
    %v4442 = vpop.f32.mrb[0].mxu0
    %v4443 = vadd.f32 0.0, %v4442
    %v4444 = vpop.f32.mrb[0].mxu0
    %v4445 = vpop.f32.mrb[0].mxu0
    %v4446 = vpop.f32.mrb[0].mxu0
    %4447 = vdwg.mxu0
    %4448 = vxpose.xlu0.c.b16.start [1/8] %v3977, 128
    %4449 = vxpose.xlu0.c.b16.cont [2/8] 0, 128
    %4450 = vxpose.xlu0.c.b16.cont [3/8] 0, 128
    %4451 = vxpose.xlu0.c.b16.cont [4/8] 0, 128
    %4452 = vxpose.xlu0.c.b16.cont [5/8] 0, 128
    %4453 = vxpose.xlu0.c.b16.cont [6/8] 0, 128
    %4454 = vxpose.xlu0.c.b16.cont [7/8] 0, 128
    %4455 = vxpose.xlu0.c.b16.end [8/8] 0, 128
    %v4456 = vpop.trf.xlu0
    %v4457 = vpop.trf.xlu0
    %v4458 = vpop.trf.xlu0
    %v4459 = vpop.trf.xlu0
    %v4460 = vpop.trf.xlu0
    %v4461 = vpop.trf.xlu0
    %v4462 = vpop.trf.xlu0
    %v4463 = vpop.trf.xlu0
    %v4465 = vsel %vm739, %v4456, 0
    %v4468 = vsel %vm333, %v4057, 0
    %4470 = vmatprep.subr.bf16.mxu0 0
    %4471 = vmatpush1.bf16.msra.mxu0 %v4468
    %4472 = vmatprep.subr.bf16.mxu0 0
    %4473 = vmatpush1.bf16.msra.mxu0 0
    %4474 = vmatprep.subr.bf16.mxu0 0
    %4475 = vmatpush1.bf16.msra.mxu0 0
    %4476 = vmatprep.subr.bf16.mxu0 0
    %4477 = vmatpush1.bf16.msra.mxu0 0
    %4478 = vmatprep.subr.bf16.mxu0 0
    %4479 = vmatpush1.bf16.msra.mxu0 0
    %4480 = vmatprep.subr.bf16.mxu0 0
    %4481 = vmatpush1.bf16.msra.mxu0 0
    %4482 = vmatprep.subr.bf16.mxu0 0
    %4483 = vmatpush1.bf16.msra.mxu0 0
    %4484 = vmatprep.subr.bf16.mxu0 0
    %4485 = vmatpush1.bf16.msra.mxu0 0
    %4486 = vmatprep.subr.bf16.mxu0 0
    %4487 = vmatpush1.bf16.msra.mxu0 0
    %4488 = vmatprep.subr.bf16.mxu0 0
    %4489 = vmatpush1.bf16.msra.mxu0 0
    %4490 = vmatprep.subr.bf16.mxu0 0
    %4491 = vmatpush1.bf16.msra.mxu0 0
    %4492 = vmatprep.subr.bf16.mxu0 0
    %4493 = vmatpush1.bf16.msra.mxu0 0
    %4494 = vmatprep.subr.bf16.mxu0 0
    %4495 = vmatpush1.bf16.msra.mxu0 0
    %4496 = vmatprep.subr.bf16.mxu0 0
    %4497 = vmatpush1.bf16.msra.mxu0 0
    %4498 = vmatprep.subr.bf16.mxu0 0
    %4499 = vmatpush1.bf16.msra.mxu0 0
    %4500 = vmatprep.subr.bf16.mxu0 0
    %4501 = vmatpush1.bf16.msra.mxu0 0
    %4502 = vmatprep.mubr.bf16.mxu0 0
    %4503 = vmatmul.mubr.bf16.gmra.mrb[0].mxu0 %v4465
    %v4504 = vpop.f32.mrb[0].mxu0
    %v4505 = vadd.f32 0.0, %v4504
    %v4506 = vpop.f32.mrb[0].mxu0
    %v4507 = vpop.f32.mrb[0].mxu0
    %v4508 = vpop.f32.mrb[0].mxu0
    %4509 = vdwg.mxu0
    %4510 = vxpose.xlu0.c.b16.start [1/8] %v3978, 128
    %4511 = vxpose.xlu0.c.b16.cont [2/8] 0, 128
    %4512 = vxpose.xlu0.c.b16.cont [3/8] 0, 128
    %4513 = vxpose.xlu0.c.b16.cont [4/8] 0, 128
    %4514 = vxpose.xlu0.c.b16.cont [5/8] 0, 128
    %4515 = vxpose.xlu0.c.b16.cont [6/8] 0, 128
    %4516 = vxpose.xlu0.c.b16.cont [7/8] 0, 128
    %4517 = vxpose.xlu0.c.b16.end [8/8] 0, 128
    %v4518 = vpop.trf.xlu0
    %v4519 = vpop.trf.xlu0
    %v4520 = vpop.trf.xlu0
    %v4521 = vpop.trf.xlu0
    %v4522 = vpop.trf.xlu0
    %v4523 = vpop.trf.xlu0
    %v4524 = vpop.trf.xlu0
    %v4525 = vpop.trf.xlu0
    %v4527 = vsel %vm739, %v4518, 0
    %v4530 = vsel %vm333, %v4058, 0
    %4532 = vmatprep.subr.bf16.mxu0 0
    %4533 = vmatpush1.bf16.msra.mxu0 %v4530
    %4534 = vmatprep.subr.bf16.mxu0 0
    %4535 = vmatpush1.bf16.msra.mxu0 0
    %4536 = vmatprep.subr.bf16.mxu0 0
    %4537 = vmatpush1.bf16.msra.mxu0 0
    %4538 = vmatprep.subr.bf16.mxu0 0
    %4539 = vmatpush1.bf16.msra.mxu0 0
    %4540 = vmatprep.subr.bf16.mxu0 0
    %4541 = vmatpush1.bf16.msra.mxu0 0
    %4542 = vmatprep.subr.bf16.mxu0 0
    %4543 = vmatpush1.bf16.msra.mxu0 0
    %4544 = vmatprep.subr.bf16.mxu0 0
    %4545 = vmatpush1.bf16.msra.mxu0 0
    %4546 = vmatprep.subr.bf16.mxu0 0
    %4547 = vmatpush1.bf16.msra.mxu0 0
    %4548 = vmatprep.subr.bf16.mxu0 0
    %4549 = vmatpush1.bf16.msra.mxu0 0
    %4550 = vmatprep.subr.bf16.mxu0 0
    %4551 = vmatpush1.bf16.msra.mxu0 0
    %4552 = vmatprep.subr.bf16.mxu0 0
    %4553 = vmatpush1.bf16.msra.mxu0 0
    %4554 = vmatprep.subr.bf16.mxu0 0
    %4555 = vmatpush1.bf16.msra.mxu0 0
    %4556 = vmatprep.subr.bf16.mxu0 0
    %4557 = vmatpush1.bf16.msra.mxu0 0
    %4558 = vmatprep.subr.bf16.mxu0 0
    %4559 = vmatpush1.bf16.msra.mxu0 0
    %4560 = vmatprep.subr.bf16.mxu0 0
    %4561 = vmatpush1.bf16.msra.mxu0 0
    %4562 = vmatprep.subr.bf16.mxu0 0
    %4563 = vmatpush1.bf16.msra.mxu0 0
    %4564 = vmatprep.mubr.bf16.mxu0 0
    %4565 = vmatmul.mubr.bf16.gmra.mrb[0].mxu0 %v4527
    %v4566 = vpop.f32.mrb[0].mxu0
    %v4567 = vadd.f32 0.0, %v4566
    %v4568 = vpop.f32.mrb[0].mxu0
    %v4569 = vpop.f32.mrb[0].mxu0
    %v4570 = vpop.f32.mrb[0].mxu0
    %4571 = vdwg.mxu0
    %4572 = vxpose.xlu0.c.b16.start [1/8] %v3979, 128
    %4573 = vxpose.xlu0.c.b16.cont [2/8] 0, 128
    %4574 = vxpose.xlu0.c.b16.cont [3/8] 0, 128
    %4575 = vxpose.xlu0.c.b16.cont [4/8] 0, 128
    %4576 = vxpose.xlu0.c.b16.cont [5/8] 0, 128
    %4577 = vxpose.xlu0.c.b16.cont [6/8] 0, 128
    %4578 = vxpose.xlu0.c.b16.cont [7/8] 0, 128
    %4579 = vxpose.xlu0.c.b16.end [8/8] 0, 128
    %v4580 = vpop.trf.xlu0
    %v4581 = vpop.trf.xlu0
    %v4582 = vpop.trf.xlu0
    %v4583 = vpop.trf.xlu0
    %v4584 = vpop.trf.xlu0
    %v4585 = vpop.trf.xlu0
    %v4586 = vpop.trf.xlu0
    %v4587 = vpop.trf.xlu0
    %v4589 = vsel %vm739, %v4580, 0
    %v4592 = vsel %vm333, %v4059, 0
    %4594 = vmatprep.subr.bf16.mxu0 0
    %4595 = vmatpush1.bf16.msra.mxu0 %v4592
    %4596 = vmatprep.subr.bf16.mxu0 0
    %4597 = vmatpush1.bf16.msra.mxu0 0
    %4598 = vmatprep.subr.bf16.mxu0 0
    %4599 = vmatpush1.bf16.msra.mxu0 0
    %4600 = vmatprep.subr.bf16.mxu0 0
    %4601 = vmatpush1.bf16.msra.mxu0 0
    %4602 = vmatprep.subr.bf16.mxu0 0
    %4603 = vmatpush1.bf16.msra.mxu0 0
    %4604 = vmatprep.subr.bf16.mxu0 0
    %4605 = vmatpush1.bf16.msra.mxu0 0
    %4606 = vmatprep.subr.bf16.mxu0 0
    %4607 = vmatpush1.bf16.msra.mxu0 0
    %4608 = vmatprep.subr.bf16.mxu0 0
    %4609 = vmatpush1.bf16.msra.mxu0 0
    %4610 = vmatprep.subr.bf16.mxu0 0
    %4611 = vmatpush1.bf16.msra.mxu0 0
    %4612 = vmatprep.subr.bf16.mxu0 0
    %4613 = vmatpush1.bf16.msra.mxu0 0
    %4614 = vmatprep.subr.bf16.mxu0 0
    %4615 = vmatpush1.bf16.msra.mxu0 0
    %4616 = vmatprep.subr.bf16.mxu0 0
    %4617 = vmatpush1.bf16.msra.mxu0 0
    %4618 = vmatprep.subr.bf16.mxu0 0
    %4619 = vmatpush1.bf16.msra.mxu0 0
    %4620 = vmatprep.subr.bf16.mxu0 0
    %4621 = vmatpush1.bf16.msra.mxu0 0
    %4622 = vmatprep.subr.bf16.mxu0 0
    %4623 = vmatpush1.bf16.msra.mxu0 0
    %4624 = vmatprep.subr.bf16.mxu0 0
    %4625 = vmatpush1.bf16.msra.mxu0 0
    %4626 = vmatprep.mubr.bf16.mxu0 0
    %4627 = vmatmul.mubr.bf16.gmra.mrb[0].mxu0 %v4589
    %v4628 = vpop.f32.mrb[0].mxu0
    %v4629 = vadd.f32 0.0, %v4628
    %v4630 = vpop.f32.mrb[0].mxu0
    %v4631 = vpop.f32.mrb[0].mxu0
    %v4632 = vpop.f32.mrb[0].mxu0
    %4633 = vdwg.mxu0
    %v4634 = vsel %vm739, %v4195, -inf
    %4635 = vmax.xlane.f32.xlu0 %v4634
    %v4636 = vpop.xlane.xlu0 %4635
    %v4637 = vsel %vm739, %v4257, -inf
    %4638 = vmax.xlane.f32.xlu0 %v4637
    %v4639 = vpop.xlane.xlu0 %4638
    %v4640 = vsel %vm739, %v4319, -inf
    %4641 = vmax.xlane.f32.xlu0 %v4640
    %v4642 = vpop.xlane.xlu0 %4641
    %v4643 = vsel %vm739, %v4381, -inf
    %4644 = vmax.xlane.f32.xlu0 %v4643
    %v4645 = vpop.xlane.xlu0 %4644
    %v4646 = vsel %vm739, %v4443, -inf
    %4647 = vmax.xlane.f32.xlu0 %v4646
    %v4648 = vpop.xlane.xlu0 %4647
    %v4649 = vsel %vm739, %v4505, -inf
    %4650 = vmax.xlane.f32.xlu0 %v4649
    %v4651 = vpop.xlane.xlu0 %4650
    %v4652 = vsel %vm739, %v4567, -inf
    %4653 = vmax.xlane.f32.xlu0 %v4652
    %v4654 = vpop.xlane.xlu0 %4653
    %v4655 = vsel %vm739, %v4629, -inf
    %4656 = vmax.xlane.f32.xlu0 %v4655
    %v4657 = vpop.xlane.xlu0 %4656
    %v4658 = vsub.f32 %v4195, %v4636
    %v4659 = vsub.f32 %v4257, %v4639
    %v4660 = vsub.f32 %v4319, %v4642
    %v4661 = vsub.f32 %v4381, %v4645
    %v4662 = vsub.f32 %v4443, %v4648
    %v4663 = vsub.f32 %v4505, %v4651
    %v4664 = vsub.f32 %v4567, %v4654
    %v4665 = vsub.f32 %v4629, %v4657
    %v4666 = vmul.f32 %v4658, 1.442695
    %v4667 = vpow.pop %v4666
    %v4668 = vmul.f32 %v4659, 1.442695
    %v4669 = vpow.pop %v4668
    %v4670 = vmul.f32 %v4660, 1.442695
    %v4671 = vpow.pop %v4670
    %v4672 = vmul.f32 %v4661, 1.442695
    %v4673 = vpow.pop %v4672
    %v4674 = vmul.f32 %v4662, 1.442695
    %v4675 = vpow.pop %v4674
    %v4676 = vmul.f32 %v4663, 1.442695
    %v4677 = vpow.pop %v4676
    %v4678 = vmul.f32 %v4664, 1.442695
    %v4679 = vpow.pop %v4678
    %v4680 = vmul.f32 %v4665, 1.442695
    %v4681 = vpow.pop %v4680
    %v4682 = vsel %vm739, %v4667, 0.0
    %4683 = vadd.xlane.f32.xlu0 %v4682
    %v4684 = vpop.xlane.xlu0 %4683
    %v4685 = vsel %vm739, %v4669, 0.0
    %4686 = vadd.xlane.f32.xlu0 %v4685
    %v4687 = vpop.xlane.xlu0 %4686
    %v4688 = vsel %vm739, %v4671, 0.0
    %4689 = vadd.xlane.f32.xlu0 %v4688
    %v4690 = vpop.xlane.xlu0 %4689
    %v4691 = vsel %vm739, %v4673, 0.0
    %4692 = vadd.xlane.f32.xlu0 %v4691
    %v4693 = vpop.xlane.xlu0 %4692
    %v4694 = vsel %vm739, %v4675, 0.0
    %4695 = vadd.xlane.f32.xlu0 %v4694
    %v4696 = vpop.xlane.xlu0 %4695
    %v4697 = vsel %vm739, %v4677, 0.0
    %4698 = vadd.xlane.f32.xlu0 %v4697
    %v4699 = vpop.xlane.xlu0 %4698
    %v4700 = vsel %vm739, %v4679, 0.0
    %4701 = vadd.xlane.f32.xlu0 %v4700
    %v4702 = vpop.xlane.xlu0 %4701
    %v4703 = vsel %vm739, %v4681, 0.0
    %4704 = vadd.xlane.f32.xlu0 %v4703
    %v4705 = vpop.xlane.xlu0 %4704
    %v4706 = vrcp.pop %v4684
    %v4707 = vmul.f32 %v4667, %v4706
    %v4708 = vrcp.pop %v4687
    %v4709 = vmul.f32 %v4669, %v4708
    %v4710 = vrcp.pop %v4690
    %v4711 = vmul.f32 %v4671, %v4710
    %v4712 = vrcp.pop %v4693
    %v4713 = vmul.f32 %v4673, %v4712
    %v4714 = vrcp.pop %v4696
    %v4715 = vmul.f32 %v4675, %v4714
    %v4716 = vrcp.pop %v4699
    %v4717 = vmul.f32 %v4677, %v4716
    %v4718 = vrcp.pop %v4702
    %v4719 = vmul.f32 %v4679, %v4718
    %v4720 = vrcp.pop %v4705
    %v4721 = vmul.f32 %v4681, %v4720
    %v4722 = vpack.c.bf16 %v4707, %v4707
    %v4723 = vpack.c.bf16 %v4709, %v4709
    %v4724 = vpack.c.bf16 %v4711, %v4711
    %v4725 = vpack.c.bf16 %v4713, %v4713
    %v4726 = vpack.c.bf16 %v4715, %v4715
    %v4727 = vpack.c.bf16 %v4717, %v4717
    %v4728 = vpack.c.bf16 %v4719, %v4719
    %v4729 = vpack.c.bf16 %v4721, %v4721
    %v4731 = vsel %vm739, %v4130, 0
    %v4734 = vsel %vm739, %v4722, 0
    %4736 = vmatprep.subr.bf16.mxu0 0
    %4737 = vmatpush1.bf16.xpose.msra.mxu0 %v4734
    %4738 = vmatprep.subr.bf16.mxu0 0
    %4739 = vmatpush1.bf16.xpose.msra.mxu0 0
    %4740 = vmatprep.subr.bf16.mxu0 0
    %4741 = vmatpush1.bf16.xpose.msra.mxu0 0
    %4742 = vmatprep.subr.bf16.mxu0 0
    %4743 = vmatpush1.bf16.xpose.msra.mxu0 0
    %4744 = vmatprep.subr.bf16.mxu0 0
    %4745 = vmatpush1.bf16.xpose.msra.mxu0 0
    %4746 = vmatprep.subr.bf16.mxu0 0
    %4747 = vmatpush1.bf16.xpose.msra.mxu0 0
    %4748 = vmatprep.subr.bf16.mxu0 0
    %4749 = vmatpush1.bf16.xpose.msra.mxu0 0
    %4750 = vmatprep.subr.bf16.mxu0 0
    %4751 = vmatpush1.bf16.xpose.msra.mxu0 0
    %4752 = vmatprep.subr.bf16.mxu0 0
    %4753 = vmatpush1.bf16.xpose.msra.mxu0 0
    %4754 = vmatprep.subr.bf16.mxu0 0
    %4755 = vmatpush1.bf16.xpose.msra.mxu0 0
    %4756 = vmatprep.subr.bf16.mxu0 0
    %4757 = vmatpush1.bf16.xpose.msra.mxu0 0
    %4758 = vmatprep.subr.bf16.mxu0 0
    %4759 = vmatpush1.bf16.xpose.msra.mxu0 0
    %4760 = vmatprep.subr.bf16.mxu0 0
    %4761 = vmatpush1.bf16.xpose.msra.mxu0 0
    %4762 = vmatprep.subr.bf16.mxu0 0
    %4763 = vmatpush1.bf16.xpose.msra.mxu0 0
    %4764 = vmatprep.subr.bf16.mxu0 0
    %4765 = vmatpush1.bf16.xpose.msra.mxu0 0
    %4766 = vmatprep.subr.bf16.mxu0 0
    %4767 = vmatpush1.bf16.xpose.msra.mxu0 0
    %4768 = vmatprep.mubr.bf16.mxu0 0
    %4769 = vmatmul.mubr.bf16.gmra.mrb[0].mxu0 %v4731
    %v4770 = vpop.f32.mrb[0].mxu0
    %v4771 = vadd.f32 0.0, %v4770
    %v4772 = vpop.f32.mrb[0].mxu0
    %v4773 = vpop.f32.mrb[0].mxu0
    %v4774 = vpop.f32.mrb[0].mxu0
    %4775 = vdwg.mxu0
    %v4777 = vsel %vm739, %v4131, 0
    %v4780 = vsel %vm739, %v4723, 0
    %4782 = vmatprep.subr.bf16.mxu0 0
    %4783 = vmatpush1.bf16.xpose.msra.mxu0 %v4780
    %4784 = vmatprep.subr.bf16.mxu0 0
    %4785 = vmatpush1.bf16.xpose.msra.mxu0 0
    %4786 = vmatprep.subr.bf16.mxu0 0
    %4787 = vmatpush1.bf16.xpose.msra.mxu0 0
    %4788 = vmatprep.subr.bf16.mxu0 0
    %4789 = vmatpush1.bf16.xpose.msra.mxu0 0
    %4790 = vmatprep.subr.bf16.mxu0 0
    %4791 = vmatpush1.bf16.xpose.msra.mxu0 0
    %4792 = vmatprep.subr.bf16.mxu0 0
    %4793 = vmatpush1.bf16.xpose.msra.mxu0 0
    %4794 = vmatprep.subr.bf16.mxu0 0
    %4795 = vmatpush1.bf16.xpose.msra.mxu0 0
    %4796 = vmatprep.subr.bf16.mxu0 0
    %4797 = vmatpush1.bf16.xpose.msra.mxu0 0
    %4798 = vmatprep.subr.bf16.mxu0 0
    %4799 = vmatpush1.bf16.xpose.msra.mxu0 0
    %4800 = vmatprep.subr.bf16.mxu0 0
    %4801 = vmatpush1.bf16.xpose.msra.mxu0 0
    %4802 = vmatprep.subr.bf16.mxu0 0
    %4803 = vmatpush1.bf16.xpose.msra.mxu0 0
    %4804 = vmatprep.subr.bf16.mxu0 0
    %4805 = vmatpush1.bf16.xpose.msra.mxu0 0
    %4806 = vmatprep.subr.bf16.mxu0 0
    %4807 = vmatpush1.bf16.xpose.msra.mxu0 0
    %4808 = vmatprep.subr.bf16.mxu0 0
    %4809 = vmatpush1.bf16.xpose.msra.mxu0 0
    %4810 = vmatprep.subr.bf16.mxu0 0
    %4811 = vmatpush1.bf16.xpose.msra.mxu0 0
    %4812 = vmatprep.subr.bf16.mxu0 0
    %4813 = vmatpush1.bf16.xpose.msra.mxu0 0
    %4814 = vmatprep.mubr.bf16.mxu0 0
    %4815 = vmatmul.mubr.bf16.gmra.mrb[0].mxu0 %v4777
    %v4816 = vpop.f32.mrb[0].mxu0
    %v4817 = vadd.f32 0.0, %v4816
    %v4818 = vpop.f32.mrb[0].mxu0
    %v4819 = vpop.f32.mrb[0].mxu0
    %v4820 = vpop.f32.mrb[0].mxu0
    %4821 = vdwg.mxu0
    %v4823 = vsel %vm739, %v4132, 0
    %v4826 = vsel %vm739, %v4724, 0
    %4828 = vmatprep.subr.bf16.mxu0 0
    %4829 = vmatpush1.bf16.xpose.msra.mxu0 %v4826
    %4830 = vmatprep.subr.bf16.mxu0 0
    %4831 = vmatpush1.bf16.xpose.msra.mxu0 0
    %4832 = vmatprep.subr.bf16.mxu0 0
    %4833 = vmatpush1.bf16.xpose.msra.mxu0 0
    %4834 = vmatprep.subr.bf16.mxu0 0
    %4835 = vmatpush1.bf16.xpose.msra.mxu0 0
    %4836 = vmatprep.subr.bf16.mxu0 0
    %4837 = vmatpush1.bf16.xpose.msra.mxu0 0
    %4838 = vmatprep.subr.bf16.mxu0 0
    %4839 = vmatpush1.bf16.xpose.msra.mxu0 0
    %4840 = vmatprep.subr.bf16.mxu0 0
    %4841 = vmatpush1.bf16.xpose.msra.mxu0 0
    %4842 = vmatprep.subr.bf16.mxu0 0
    %4843 = vmatpush1.bf16.xpose.msra.mxu0 0
    %4844 = vmatprep.subr.bf16.mxu0 0
    %4845 = vmatpush1.bf16.xpose.msra.mxu0 0
    %4846 = vmatprep.subr.bf16.mxu0 0
    %4847 = vmatpush1.bf16.xpose.msra.mxu0 0
    %4848 = vmatprep.subr.bf16.mxu0 0
    %4849 = vmatpush1.bf16.xpose.msra.mxu0 0
    %4850 = vmatprep.subr.bf16.mxu0 0
    %4851 = vmatpush1.bf16.xpose.msra.mxu0 0
    %4852 = vmatprep.subr.bf16.mxu0 0
    %4853 = vmatpush1.bf16.xpose.msra.mxu0 0
    %4854 = vmatprep.subr.bf16.mxu0 0
    %4855 = vmatpush1.bf16.xpose.msra.mxu0 0
    %4856 = vmatprep.subr.bf16.mxu0 0
    %4857 = vmatpush1.bf16.xpose.msra.mxu0 0
    %4858 = vmatprep.subr.bf16.mxu0 0
    %4859 = vmatpush1.bf16.xpose.msra.mxu0 0
    %4860 = vmatprep.mubr.bf16.mxu0 0
    %4861 = vmatmul.mubr.bf16.gmra.mrb[0].mxu0 %v4823
    %v4862 = vpop.f32.mrb[0].mxu0
    %v4863 = vadd.f32 0.0, %v4862
    %v4864 = vpop.f32.mrb[0].mxu0
    %v4865 = vpop.f32.mrb[0].mxu0
    %v4866 = vpop.f32.mrb[0].mxu0
    %4867 = vdwg.mxu0
    %v4869 = vsel %vm739, %v4133, 0
    %v4872 = vsel %vm739, %v4725, 0
    %4874 = vmatprep.subr.bf16.mxu0 0
    %4875 = vmatpush1.bf16.xpose.msra.mxu0 %v4872
    %4876 = vmatprep.subr.bf16.mxu0 0
    %4877 = vmatpush1.bf16.xpose.msra.mxu0 0
    %4878 = vmatprep.subr.bf16.mxu0 0
    %4879 = vmatpush1.bf16.xpose.msra.mxu0 0
    %4880 = vmatprep.subr.bf16.mxu0 0
    %4881 = vmatpush1.bf16.xpose.msra.mxu0 0
    %4882 = vmatprep.subr.bf16.mxu0 0
    %4883 = vmatpush1.bf16.xpose.msra.mxu0 0
    %4884 = vmatprep.subr.bf16.mxu0 0
    %4885 = vmatpush1.bf16.xpose.msra.mxu0 0
    %4886 = vmatprep.subr.bf16.mxu0 0
    %4887 = vmatpush1.bf16.xpose.msra.mxu0 0
    %4888 = vmatprep.subr.bf16.mxu0 0
    %4889 = vmatpush1.bf16.xpose.msra.mxu0 0
    %4890 = vmatprep.subr.bf16.mxu0 0
    %4891 = vmatpush1.bf16.xpose.msra.mxu0 0
    %4892 = vmatprep.subr.bf16.mxu0 0
    %4893 = vmatpush1.bf16.xpose.msra.mxu0 0
    %4894 = vmatprep.subr.bf16.mxu0 0
    %4895 = vmatpush1.bf16.xpose.msra.mxu0 0
    %4896 = vmatprep.subr.bf16.mxu0 0
    %4897 = vmatpush1.bf16.xpose.msra.mxu0 0
    %4898 = vmatprep.subr.bf16.mxu0 0
    %4899 = vmatpush1.bf16.xpose.msra.mxu0 0
    %4900 = vmatprep.subr.bf16.mxu0 0
    %4901 = vmatpush1.bf16.xpose.msra.mxu0 0
    %4902 = vmatprep.subr.bf16.mxu0 0
    %4903 = vmatpush1.bf16.xpose.msra.mxu0 0
    %4904 = vmatprep.subr.bf16.mxu0 0
    %4905 = vmatpush1.bf16.xpose.msra.mxu0 0
    %4906 = vmatprep.mubr.bf16.mxu0 0
    %4907 = vmatmul.mubr.bf16.gmra.mrb[0].mxu0 %v4869
    %v4908 = vpop.f32.mrb[0].mxu0
    %v4909 = vadd.f32 0.0, %v4908
    %v4910 = vpop.f32.mrb[0].mxu0
    %v4911 = vpop.f32.mrb[0].mxu0
    %v4912 = vpop.f32.mrb[0].mxu0
    %4913 = vdwg.mxu0
    %v4915 = vsel %vm739, %v4134, 0
    %v4918 = vsel %vm739, %v4726, 0
    %4920 = vmatprep.subr.bf16.mxu0 0
    %4921 = vmatpush1.bf16.xpose.msra.mxu0 %v4918
    %4922 = vmatprep.subr.bf16.mxu0 0
    %4923 = vmatpush1.bf16.xpose.msra.mxu0 0
    %4924 = vmatprep.subr.bf16.mxu0 0
    %4925 = vmatpush1.bf16.xpose.msra.mxu0 0
    %4926 = vmatprep.subr.bf16.mxu0 0
    %4927 = vmatpush1.bf16.xpose.msra.mxu0 0
    %4928 = vmatprep.subr.bf16.mxu0 0
    %4929 = vmatpush1.bf16.xpose.msra.mxu0 0
    %4930 = vmatprep.subr.bf16.mxu0 0
    %4931 = vmatpush1.bf16.xpose.msra.mxu0 0
    %4932 = vmatprep.subr.bf16.mxu0 0
    %4933 = vmatpush1.bf16.xpose.msra.mxu0 0
    %4934 = vmatprep.subr.bf16.mxu0 0
    %4935 = vmatpush1.bf16.xpose.msra.mxu0 0
    %4936 = vmatprep.subr.bf16.mxu0 0
    %4937 = vmatpush1.bf16.xpose.msra.mxu0 0
    %4938 = vmatprep.subr.bf16.mxu0 0
    %4939 = vmatpush1.bf16.xpose.msra.mxu0 0
    %4940 = vmatprep.subr.bf16.mxu0 0
    %4941 = vmatpush1.bf16.xpose.msra.mxu0 0
    %4942 = vmatprep.subr.bf16.mxu0 0
    %4943 = vmatpush1.bf16.xpose.msra.mxu0 0
    %4944 = vmatprep.subr.bf16.mxu0 0
    %4945 = vmatpush1.bf16.xpose.msra.mxu0 0
    %4946 = vmatprep.subr.bf16.mxu0 0
    %4947 = vmatpush1.bf16.xpose.msra.mxu0 0
    %4948 = vmatprep.subr.bf16.mxu0 0
    %4949 = vmatpush1.bf16.xpose.msra.mxu0 0
    %4950 = vmatprep.subr.bf16.mxu0 0
    %4951 = vmatpush1.bf16.xpose.msra.mxu0 0
    %4952 = vmatprep.mubr.bf16.mxu0 0
    %4953 = vmatmul.mubr.bf16.gmra.mrb[0].mxu0 %v4915
    %v4954 = vpop.f32.mrb[0].mxu0
    %v4955 = vadd.f32 0.0, %v4954
    %v4956 = vpop.f32.mrb[0].mxu0
    %v4957 = vpop.f32.mrb[0].mxu0
    %v4958 = vpop.f32.mrb[0].mxu0
    %4959 = vdwg.mxu0
    %v4961 = vsel %vm739, %v4135, 0
    %v4964 = vsel %vm739, %v4727, 0
    %4966 = vmatprep.subr.bf16.mxu0 0
    %4967 = vmatpush1.bf16.xpose.msra.mxu0 %v4964
    %4968 = vmatprep.subr.bf16.mxu0 0
    %4969 = vmatpush1.bf16.xpose.msra.mxu0 0
    %4970 = vmatprep.subr.bf16.mxu0 0
    %4971 = vmatpush1.bf16.xpose.msra.mxu0 0
    %4972 = vmatprep.subr.bf16.mxu0 0
    %4973 = vmatpush1.bf16.xpose.msra.mxu0 0
    %4974 = vmatprep.subr.bf16.mxu0 0
    %4975 = vmatpush1.bf16.xpose.msra.mxu0 0
    %4976 = vmatprep.subr.bf16.mxu0 0
    %4977 = vmatpush1.bf16.xpose.msra.mxu0 0
    %4978 = vmatprep.subr.bf16.mxu0 0
    %4979 = vmatpush1.bf16.xpose.msra.mxu0 0
    %4980 = vmatprep.subr.bf16.mxu0 0
    %4981 = vmatpush1.bf16.xpose.msra.mxu0 0
    %4982 = vmatprep.subr.bf16.mxu0 0
    %4983 = vmatpush1.bf16.xpose.msra.mxu0 0
    %4984 = vmatprep.subr.bf16.mxu0 0
    %4985 = vmatpush1.bf16.xpose.msra.mxu0 0
    %4986 = vmatprep.subr.bf16.mxu0 0
    %4987 = vmatpush1.bf16.xpose.msra.mxu0 0
    %4988 = vmatprep.subr.bf16.mxu0 0
    %4989 = vmatpush1.bf16.xpose.msra.mxu0 0
    %4990 = vmatprep.subr.bf16.mxu0 0
    %4991 = vmatpush1.bf16.xpose.msra.mxu0 0
    %4992 = vmatprep.subr.bf16.mxu0 0
    %4993 = vmatpush1.bf16.xpose.msra.mxu0 0
    %4994 = vmatprep.subr.bf16.mxu0 0
    %4995 = vmatpush1.bf16.xpose.msra.mxu0 0
    %4996 = vmatprep.subr.bf16.mxu0 0
    %4997 = vmatpush1.bf16.xpose.msra.mxu0 0
    %4998 = vmatprep.mubr.bf16.mxu0 0
    %4999 = vmatmul.mubr.bf16.gmra.mrb[0].mxu0 %v4961
    %v5000 = vpop.f32.mrb[0].mxu0
    %v5001 = vadd.f32 0.0, %v5000
    %v5002 = vpop.f32.mrb[0].mxu0
    %v5003 = vpop.f32.mrb[0].mxu0
    %v5004 = vpop.f32.mrb[0].mxu0
    %5005 = vdwg.mxu0
    %v5007 = vsel %vm739, %v4136, 0
    %v5010 = vsel %vm739, %v4728, 0
    %5012 = vmatprep.subr.bf16.mxu0 0
    %5013 = vmatpush1.bf16.xpose.msra.mxu0 %v5010
    %5014 = vmatprep.subr.bf16.mxu0 0
    %5015 = vmatpush1.bf16.xpose.msra.mxu0 0
    %5016 = vmatprep.subr.bf16.mxu0 0
    %5017 = vmatpush1.bf16.xpose.msra.mxu0 0
    %5018 = vmatprep.subr.bf16.mxu0 0
    %5019 = vmatpush1.bf16.xpose.msra.mxu0 0
    %5020 = vmatprep.subr.bf16.mxu0 0
    %5021 = vmatpush1.bf16.xpose.msra.mxu0 0
    %5022 = vmatprep.subr.bf16.mxu0 0
    %5023 = vmatpush1.bf16.xpose.msra.mxu0 0
    %5024 = vmatprep.subr.bf16.mxu0 0
    %5025 = vmatpush1.bf16.xpose.msra.mxu0 0
    %5026 = vmatprep.subr.bf16.mxu0 0
    %5027 = vmatpush1.bf16.xpose.msra.mxu0 0
    %5028 = vmatprep.subr.bf16.mxu0 0
    %5029 = vmatpush1.bf16.xpose.msra.mxu0 0
    %5030 = vmatprep.subr.bf16.mxu0 0
    %5031 = vmatpush1.bf16.xpose.msra.mxu0 0
    %5032 = vmatprep.subr.bf16.mxu0 0
    %5033 = vmatpush1.bf16.xpose.msra.mxu0 0
    %5034 = vmatprep.subr.bf16.mxu0 0
    %5035 = vmatpush1.bf16.xpose.msra.mxu0 0
    %5036 = vmatprep.subr.bf16.mxu0 0
    %5037 = vmatpush1.bf16.xpose.msra.mxu0 0
    %5038 = vmatprep.subr.bf16.mxu0 0
    %5039 = vmatpush1.bf16.xpose.msra.mxu0 0
    %5040 = vmatprep.subr.bf16.mxu0 0
    %5041 = vmatpush1.bf16.xpose.msra.mxu0 0
    %5042 = vmatprep.subr.bf16.mxu0 0
    %5043 = vmatpush1.bf16.xpose.msra.mxu0 0
    %5044 = vmatprep.mubr.bf16.mxu0 0
    %5045 = vmatmul.mubr.bf16.gmra.mrb[0].mxu0 %v5007
    %v5046 = vpop.f32.mrb[0].mxu0
    %v5047 = vadd.f32 0.0, %v5046
    %v5048 = vpop.f32.mrb[0].mxu0
    %v5049 = vpop.f32.mrb[0].mxu0
    %v5050 = vpop.f32.mrb[0].mxu0
    %5051 = vdwg.mxu0
    %v5053 = vsel %vm739, %v4137, 0
    %v5056 = vsel %vm739, %v4729, 0
    %5058 = vmatprep.subr.bf16.mxu0 0
    %5059 = vmatpush1.bf16.xpose.msra.mxu0 %v5056
    %5060 = vmatprep.subr.bf16.mxu0 0
    %5061 = vmatpush1.bf16.xpose.msra.mxu0 0
    %5062 = vmatprep.subr.bf16.mxu0 0
    %5063 = vmatpush1.bf16.xpose.msra.mxu0 0
    %5064 = vmatprep.subr.bf16.mxu0 0
    %5065 = vmatpush1.bf16.xpose.msra.mxu0 0
    %5066 = vmatprep.subr.bf16.mxu0 0
    %5067 = vmatpush1.bf16.xpose.msra.mxu0 0
    %5068 = vmatprep.subr.bf16.mxu0 0
    %5069 = vmatpush1.bf16.xpose.msra.mxu0 0
    %5070 = vmatprep.subr.bf16.mxu0 0
    %5071 = vmatpush1.bf16.xpose.msra.mxu0 0
    %5072 = vmatprep.subr.bf16.mxu0 0
    %5073 = vmatpush1.bf16.xpose.msra.mxu0 0
    %5074 = vmatprep.subr.bf16.mxu0 0
    %5075 = vmatpush1.bf16.xpose.msra.mxu0 0
    %5076 = vmatprep.subr.bf16.mxu0 0
    %5077 = vmatpush1.bf16.xpose.msra.mxu0 0
    %5078 = vmatprep.subr.bf16.mxu0 0
    %5079 = vmatpush1.bf16.xpose.msra.mxu0 0
    %5080 = vmatprep.subr.bf16.mxu0 0
    %5081 = vmatpush1.bf16.xpose.msra.mxu0 0
    %5082 = vmatprep.subr.bf16.mxu0 0
    %5083 = vmatpush1.bf16.xpose.msra.mxu0 0
    %5084 = vmatprep.subr.bf16.mxu0 0
    %5085 = vmatpush1.bf16.xpose.msra.mxu0 0
    %5086 = vmatprep.subr.bf16.mxu0 0
    %5087 = vmatpush1.bf16.xpose.msra.mxu0 0
    %5088 = vmatprep.subr.bf16.mxu0 0
    %5089 = vmatpush1.bf16.xpose.msra.mxu0 0
    %5090 = vmatprep.mubr.bf16.mxu0 0
    %5091 = vmatmul.mubr.bf16.gmra.mrb[0].mxu0 %v5053
    %v5092 = vpop.f32.mrb[0].mxu0
    %v5093 = vadd.f32 0.0, %v5092
    %v5094 = vpop.f32.mrb[0].mxu0
    %v5095 = vpop.f32.mrb[0].mxu0
    %v5096 = vpop.f32.mrb[0].mxu0
    %5097 = vdwg.mxu0
    %5098 = vxpose.xlu0.b32.start [1/16] %v4771, 128
    %5099 = vxpose.xlu0.b32.cont [2/16] %v4817, 128
    %5100 = vxpose.xlu0.b32.cont [3/16] %v4863, 128
    %5101 = vxpose.xlu0.b32.cont [4/16] %v4909, 128
    %5102 = vxpose.xlu0.b32.cont [5/16] 0.0, 128
    %5103 = vxpose.xlu0.b32.cont [6/16] 0.0, 128
    %5104 = vxpose.xlu0.b32.cont [7/16] 0.0, 128
    %5105 = vxpose.xlu0.b32.cont [8/16] 0.0, 128
    %5106 = vxpose.xlu0.b32.cont [9/16] 0.0, 128
    %5107 = vxpose.xlu0.b32.cont [10/16] 0.0, 128
    %5108 = vxpose.xlu0.b32.cont [11/16] 0.0, 128
    %5109 = vxpose.xlu0.b32.cont [12/16] 0.0, 128
    %5110 = vxpose.xlu0.b32.cont [13/16] 0.0, 128
    %5111 = vxpose.xlu0.b32.cont [14/16] 0.0, 128
    %5112 = vxpose.xlu0.b32.cont [15/16] 0.0, 128
    %5113 = vxpose.xlu0.b32.end [16/16] 0.0, 128
    %v5114 = vpop.trf.xlu0
    %v5115 = vpop.trf.xlu0
    %v5116 = vpop.trf.xlu0
    %v5117 = vpop.trf.xlu0
    %v5118 = vpop.trf.xlu0
    %v5119 = vpop.trf.xlu0
    %v5120 = vpop.trf.xlu0
    %v5121 = vpop.trf.xlu0
    %v5122 = vpop.trf.xlu0
    %v5123 = vpop.trf.xlu0
    %v5124 = vpop.trf.xlu0
    %v5125 = vpop.trf.xlu0
    %v5126 = vpop.trf.xlu0
    %v5127 = vpop.trf.xlu0
    %v5128 = vpop.trf.xlu0
    %v5129 = vpop.trf.xlu0
    %5130 = vxpose.xlu0.b32.start [1/16] %v4955, 128
    %5131 = vxpose.xlu0.b32.cont [2/16] %v5001, 128
    %5132 = vxpose.xlu0.b32.cont [3/16] %v5047, 128
    %5133 = vxpose.xlu0.b32.cont [4/16] %v5093, 128
    %5134 = vxpose.xlu0.b32.cont [5/16] 0.0, 128
    %5135 = vxpose.xlu0.b32.cont [6/16] 0.0, 128
    %5136 = vxpose.xlu0.b32.cont [7/16] 0.0, 128
    %5137 = vxpose.xlu0.b32.cont [8/16] 0.0, 128
    %5138 = vxpose.xlu0.b32.cont [9/16] 0.0, 128
    %5139 = vxpose.xlu0.b32.cont [10/16] 0.0, 128
    %5140 = vxpose.xlu0.b32.cont [11/16] 0.0, 128
    %5141 = vxpose.xlu0.b32.cont [12/16] 0.0, 128
    %5142 = vxpose.xlu0.b32.cont [13/16] 0.0, 128
    %5143 = vxpose.xlu0.b32.cont [14/16] 0.0, 128
    %5144 = vxpose.xlu0.b32.cont [15/16] 0.0, 128
    %5145 = vxpose.xlu0.b32.end [16/16] 0.0, 128
    %v5146 = vpop.trf.xlu0
    %v5147 = vpop.trf.xlu0
    %v5148 = vpop.trf.xlu0
    %v5149 = vpop.trf.xlu0
    %v5150 = vpop.trf.xlu0
    %v5151 = vpop.trf.xlu0
    %v5152 = vpop.trf.xlu0
    %v5153 = vpop.trf.xlu0
    %v5154 = vpop.trf.xlu0
    %v5155 = vpop.trf.xlu0
    %v5156 = vpop.trf.xlu0
    %v5157 = vpop.trf.xlu0
    %v5158 = vpop.trf.xlu0
    %v5159 = vpop.trf.xlu0
    %v5160 = vpop.trf.xlu0
    %v5161 = vpop.trf.xlu0
    %v5162 = vpack.c.bf16 %v5146, %v5114
    %v5164 = vlaneseq
    %v5165 = vshrl.u32 %v5164, 7
    %v5166 = vsub.s32 0, %v5165
    %v5167 = vrot.slane %v3842, %v5166
    %v5173 = vunpack.c.l.b16 %v3838
    %v5174 = vunpack.c.l.b16 %v3839
    %v5175 = vunpack.c.l.b16 %v3840
    %v5176 = vunpack.c.l.b16 %v3841
    %v5177 = vpack.c.b16 %v5174, %v5173
    %v5178 = vpack.c.b16 %v5176, %v5175
    %v5182 = vsel %vm446, %v5162, 0
    %5184 = vmatprep.subr.bf16.mxu0 0
    %5185 = vmatpush1.bf16.msra.mxu0 %v5177
    %5186 = vmatprep.subr.bf16.mxu0 0
    %5187 = vmatpush1.bf16.msra.mxu0 %v5178
    %5188 = vmatprep.subr.bf16.mxu0 0
    %5189 = vmatpush1.bf16.msra.mxu0 0
    %5190 = vmatprep.subr.bf16.mxu0 0
    %5191 = vmatpush1.bf16.msra.mxu0 0
    %5192 = vmatprep.subr.bf16.mxu0 0
    %5193 = vmatpush1.bf16.msra.mxu0 0
    %5194 = vmatprep.subr.bf16.mxu0 0
    %5195 = vmatpush1.bf16.msra.mxu0 0
    %5196 = vmatprep.subr.bf16.mxu0 0
    %5197 = vmatpush1.bf16.msra.mxu0 0
    %5198 = vmatprep.subr.bf16.mxu0 0
    %5199 = vmatpush1.bf16.msra.mxu0 0
    %5200 = vmatprep.subr.bf16.mxu0 0
    %5201 = vmatpush1.bf16.msra.mxu0 0
    %5202 = vmatprep.subr.bf16.mxu0 0
    %5203 = vmatpush1.bf16.msra.mxu0 0
    %5204 = vmatprep.subr.bf16.mxu0 0
    %5205 = vmatpush1.bf16.msra.mxu0 0
    %5206 = vmatprep.subr.bf16.mxu0 0
    %5207 = vmatpush1.bf16.msra.mxu0 0
    %5208 = vmatprep.subr.bf16.mxu0 0
    %5209 = vmatpush1.bf16.msra.mxu0 0
    %5210 = vmatprep.subr.bf16.mxu0 0
    %5211 = vmatpush1.bf16.msra.mxu0 0
    %5212 = vmatprep.subr.bf16.mxu0 0
    %5213 = vmatpush1.bf16.msra.mxu0 0
    %5214 = vmatprep.subr.bf16.mxu0 0
    %5215 = vmatpush1.bf16.msra.mxu0 0
    %5216 = vmatprep.mubr.bf16.mxu0 0
    %5217 = vmatmul.mubr.bf16.gmra.mrb[0].mxu0 %v5182
    %v5218 = vpop.f32.mrb[0].mxu0
    %v5219 = vadd.f32 %v5167, %v5218
    %v5220 = vpop.f32.mrb[0].mxu0
    %v5221 = vpop.f32.mrb[0].mxu0
    %v5222 = vadd.f32 %v5167, %v5221
    %v5223 = vpop.f32.mrb[0].mxu0
    %5224 = vdwg.mxu0
    %v5225 = vadd.f32 %v3831, %v5219
    %v5226 = vadd.f32 %v3832, %v5222
    %v5227 = vld [vmem:[#allocation21] sm:$0x3]
    %v5228 = vsel %vm446, %v5225, 0.0
    %5229 = vadd.xlane.f32.xlu0 %v5228
    %v5230 = vpop.xlane.xlu0 %5229
    %v5231 = vsel %vm446, %v5226, 0.0
    %5232 = vadd.xlane.f32.xlu0 %v5231
    %v5233 = vpop.xlane.xlu0 %5232
    %v5234 = vmul.f32 %v5230, %v1820
    %v5235 = vmul.f32 %v5233, %v1820
    %v5236 = vsub.f32 %v5225, %v5234
    %v5237 = vsub.f32 %v5226, %v5235
    %v5238 = vmul.f32 %v5236, %v5236
    %v5239 = vmul.f32 %v5237, %v5237
    %v5240 = vsel %vm446, %v5238, 0.0
    %5241 = vadd.xlane.f32.xlu0 %v5240
    %v5242 = vpop.xlane.xlu0 %5241
    %v5243 = vsel %vm446, %v5239, 0.0
    %5244 = vadd.xlane.f32.xlu0 %v5243
    %v5245 = vpop.xlane.xlu0 %5244
    %v5246 = vmul.f32 %v5242, %v1820
    %v5247 = vmul.f32 %v5245, %v1820
    %v5248 = vadd.f32 %v5246, 1e-05
    %v5249 = vadd.f32 %v5247, 1e-05
    %v5250 = vrsqrt.pop %v5248
    %v5251 = vrsqrt.pop %v5249
    %v5252 = vmul.f32 %v5236, %v5250
    %v5253 = vmul.f32 %v5237, %v5251
    %v5254 = vlaneseq
    %v5255 = vshrl.u32 %v5254, 7
    %v5256 = vsub.s32 0, %v5255
    %v5257 = vrot.slane %v5227, %v5256
    %v5258 = vmul.f32 %v5252, %v5257
    %v5259 = vmul.f32 %v5253, %v5257
    %v5260 = vlaneseq
    %v5261 = vshrl.u32 %v5260, 7
    %v5262 = vsub.s32 1, %v5261
    %v5263 = vrot.slane %v5227, %v5262
    %v5264 = vadd.f32 %v5258, %v5263
    %v5265 = vadd.f32 %v5259, %v5263
    %v5266 = vld [vmem:[%s35] sm:$0xf]
    %v5267 = vld [vmem:[%s35 + $0x4] sm:$0xf]
    %v5268 = vld [vmem:[%s35 + $0x8] sm:$0xf]
    %v5269 = vld [vmem:[%s35 + $0xc] sm:$0xf]
    %v5270 = vld [vmem:[#allocation12] sm:$0x1]
    %v5271 = vld [vmem:[%s39] sm:$0xf]
    %v5272 = vld [vmem:[%s39 + $0x4] sm:$0xf]
    %v5273 = vld [vmem:[%s39 + $0x8] sm:$0xf]
    %v5274 = vld [vmem:[%s39 + $0xc] sm:$0xf]
    %v5275 = vld [vmem:[#allocation13] sm:$0x1]
    %v5276 = vld [vmem:[#allocation15] sm:$0xf]
    %v5277 = vld [vmem:[#allocation15 + $0x4] sm:$0xf]
    %v5278 = vld [vmem:[#allocation15 + $0x8] sm:$0xf]
    %v5279 = vld [vmem:[#allocation15 + $0xc] sm:$0xf]
    %v5280 = vld [vmem:[#allocation16] sm:$0x1]
    %v5281 = vpack.c.bf16 %v5265, %v5264
    %v5283 = vlaneseq
    %v5284 = vshrl.u32 %v5283, 7
    %v5285 = vsub.s32 0, %v5284
    %v5286 = vrot.slane %v5270, %v5285
    %v5292 = vunpack.c.l.b16 %v5266
    %v5293 = vunpack.c.l.b16 %v5267
    %v5294 = vunpack.c.l.b16 %v5268
    %v5295 = vunpack.c.l.b16 %v5269
    %v5296 = vpack.c.b16 %v5293, %v5292
    %v5297 = vpack.c.b16 %v5295, %v5294
    %v5301 = vsel %vm446, %v5281, 0
    %5303 = vmatprep.subr.bf16.mxu0 0
    %5304 = vmatpush1.bf16.msra.mxu0 %v5296
    %5305 = vmatprep.subr.bf16.mxu0 0
    %5306 = vmatpush1.bf16.msra.mxu0 %v5297
    %5307 = vmatprep.subr.bf16.mxu0 0
    %5308 = vmatpush1.bf16.msra.mxu0 0
    %5309 = vmatprep.subr.bf16.mxu0 0
    %5310 = vmatpush1.bf16.msra.mxu0 0
    %5311 = vmatprep.subr.bf16.mxu0 0
    %5312 = vmatpush1.bf16.msra.mxu0 0
    %5313 = vmatprep.subr.bf16.mxu0 0
    %5314 = vmatpush1.bf16.msra.mxu0 0
    %5315 = vmatprep.subr.bf16.mxu0 0
    %5316 = vmatpush1.bf16.msra.mxu0 0
    %5317 = vmatprep.subr.bf16.mxu0 0
    %5318 = vmatpush1.bf16.msra.mxu0 0
    %5319 = vmatprep.subr.bf16.mxu0 0
    %5320 = vmatpush1.bf16.msra.mxu0 0
    %5321 = vmatprep.subr.bf16.mxu0 0
    %5322 = vmatpush1.bf16.msra.mxu0 0
    %5323 = vmatprep.subr.bf16.mxu0 0
    %5324 = vmatpush1.bf16.msra.mxu0 0
    %5325 = vmatprep.subr.bf16.mxu0 0
    %5326 = vmatpush1.bf16.msra.mxu0 0
    %5327 = vmatprep.subr.bf16.mxu0 0
    %5328 = vmatpush1.bf16.msra.mxu0 0
    %5329 = vmatprep.subr.bf16.mxu0 0
    %5330 = vmatpush1.bf16.msra.mxu0 0
    %5331 = vmatprep.subr.bf16.mxu0 0
    %5332 = vmatpush1.bf16.msra.mxu0 0
    %5333 = vmatprep.subr.bf16.mxu0 0
    %5334 = vmatpush1.bf16.msra.mxu0 0
    %5335 = vmatprep.mubr.bf16.mxu0 0
    %5336 = vmatmul.mubr.bf16.gmra.mrb[0].mxu0 %v5301
    %v5337 = vpop.f32.mrb[0].mxu0
    %v5338 = vadd.f32 %v5286, %v5337
    %v5339 = vpop.f32.mrb[0].mxu0
    %v5340 = vpop.f32.mrb[0].mxu0
    %v5341 = vadd.f32 %v5286, %v5340
    %v5342 = vpop.f32.mrb[0].mxu0
    %5343 = vdwg.mxu0
    %v5344 = vmul.f32 %v5338, 0.35355338
    %v5345 = vmul.f32 %v5341, 0.35355338
    %v5346 = vpack.c.bf16 %v3726, %v3725
    %v5348 = vlaneseq
    %v5349 = vshrl.u32 %v5348, 7
    %v5350 = vsub.s32 0, %v5349
    %v5351 = vrot.slane %v5275, %v5350
    %v5357 = vunpack.c.l.b16 %v5271
    %v5358 = vunpack.c.l.b16 %v5272
    %v5359 = vunpack.c.l.b16 %v5273
    %v5360 = vunpack.c.l.b16 %v5274
    %v5361 = vpack.c.b16 %v5358, %v5357
    %v5362 = vpack.c.b16 %v5360, %v5359
    %v5366 = vsel %vm446, %v5346, 0
    %5368 = vmatprep.subr.bf16.mxu0 0
    %5369 = vmatpush1.bf16.msra.mxu0 %v5361
    %5370 = vmatprep.subr.bf16.mxu0 0
    %5371 = vmatpush1.bf16.msra.mxu0 %v5362
    %5372 = vmatprep.subr.bf16.mxu0 0
    %5373 = vmatpush1.bf16.msra.mxu0 0
    %5374 = vmatprep.subr.bf16.mxu0 0
    %5375 = vmatpush1.bf16.msra.mxu0 0
    %5376 = vmatprep.subr.bf16.mxu0 0
    %5377 = vmatpush1.bf16.msra.mxu0 0
    %5378 = vmatprep.subr.bf16.mxu0 0
    %5379 = vmatpush1.bf16.msra.mxu0 0
    %5380 = vmatprep.subr.bf16.mxu0 0
    %5381 = vmatpush1.bf16.msra.mxu0 0
    %5382 = vmatprep.subr.bf16.mxu0 0
    %5383 = vmatpush1.bf16.msra.mxu0 0
    %5384 = vmatprep.subr.bf16.mxu0 0
    %5385 = vmatpush1.bf16.msra.mxu0 0
    %5386 = vmatprep.subr.bf16.mxu0 0
    %5387 = vmatpush1.bf16.msra.mxu0 0
    %5388 = vmatprep.subr.bf16.mxu0 0
    %5389 = vmatpush1.bf16.msra.mxu0 0
    %5390 = vmatprep.subr.bf16.mxu0 0
    %5391 = vmatpush1.bf16.msra.mxu0 0
    %5392 = vmatprep.subr.bf16.mxu0 0
    %5393 = vmatpush1.bf16.msra.mxu0 0
    %5394 = vmatprep.subr.bf16.mxu0 0
    %5395 = vmatpush1.bf16.msra.mxu0 0
    %5396 = vmatprep.subr.bf16.mxu0 0
    %5397 = vmatpush1.bf16.msra.mxu0 0
    %5398 = vmatprep.subr.bf16.mxu0 0
    %5399 = vmatpush1.bf16.msra.mxu0 0
    %5400 = vmatprep.mubr.bf16.mxu0 0
    %5401 = vmatmul.mubr.bf16.gmra.mrb[0].mxu0 %v5366
    %v5402 = vpop.f32.mrb[0].mxu0
    %v5403 = vadd.f32 %v5351, %v5402
    %v5404 = vpop.f32.mrb[0].mxu0
    %v5405 = vpop.f32.mrb[0].mxu0
    %v5406 = vadd.f32 %v5351, %v5405
    %v5407 = vpop.f32.mrb[0].mxu0
    %5408 = vdwg.mxu0
    %5409 = vxpose.xlu0.b32.start [1/16] %v5344, 128
    %5410 = vxpose.xlu0.b32.cont [2/16] 0.0, 128
    %5411 = vxpose.xlu0.b32.cont [3/16] 0.0, 128
    %5412 = vxpose.xlu0.b32.cont [4/16] 0.0, 128
    %5413 = vxpose.xlu0.b32.cont [5/16] 0.0, 128
    %5414 = vxpose.xlu0.b32.cont [6/16] 0.0, 128
    %5415 = vxpose.xlu0.b32.cont [7/16] 0.0, 128
    %5416 = vxpose.xlu0.b32.cont [8/16] 0.0, 128
    %5417 = vxpose.xlu0.b32.cont [9/16] 0.0, 128
    %5418 = vxpose.xlu0.b32.cont [10/16] 0.0, 128
    %5419 = vxpose.xlu0.b32.cont [11/16] 0.0, 128
    %5420 = vxpose.xlu0.b32.cont [12/16] 0.0, 128
    %5421 = vxpose.xlu0.b32.cont [13/16] 0.0, 128
    %5422 = vxpose.xlu0.b32.cont [14/16] 0.0, 128
    %5423 = vxpose.xlu0.b32.cont [15/16] 0.0, 128
    %5424 = vxpose.xlu0.b32.end [16/16] 0.0, 128
    %v5425 = vpop.trf.xlu0
    %v5426 = vpop.trf.xlu0
    %v5427 = vpop.trf.xlu0
    %v5428 = vpop.trf.xlu0
    %v5429 = vpop.trf.xlu0
    %v5430 = vpop.trf.xlu0
    %v5431 = vpop.trf.xlu0
    %v5432 = vpop.trf.xlu0
    %v5433 = vpop.trf.xlu0
    %v5434 = vpop.trf.xlu0
    %v5435 = vpop.trf.xlu0
    %v5436 = vpop.trf.xlu0
    %v5437 = vpop.trf.xlu0
    %v5438 = vpop.trf.xlu0
    %v5439 = vpop.trf.xlu0
    %v5440 = vpop.trf.xlu0
    %5441 = vxpose.xlu0.b32.start [1/16] %v5345, 128
    %5442 = vxpose.xlu0.b32.cont [2/16] 0.0, 128
    %5443 = vxpose.xlu0.b32.cont [3/16] 0.0, 128
    %5444 = vxpose.xlu0.b32.cont [4/16] 0.0, 128
    %5445 = vxpose.xlu0.b32.cont [5/16] 0.0, 128
    %5446 = vxpose.xlu0.b32.cont [6/16] 0.0, 128
    %5447 = vxpose.xlu0.b32.cont [7/16] 0.0, 128
    %5448 = vxpose.xlu0.b32.cont [8/16] 0.0, 128
    %5449 = vxpose.xlu0.b32.cont [9/16] 0.0, 128
    %5450 = vxpose.xlu0.b32.cont [10/16] 0.0, 128
    %5451 = vxpose.xlu0.b32.cont [11/16] 0.0, 128
    %5452 = vxpose.xlu0.b32.cont [12/16] 0.0, 128
    %5453 = vxpose.xlu0.b32.cont [13/16] 0.0, 128
    %5454 = vxpose.xlu0.b32.cont [14/16] 0.0, 128
    %5455 = vxpose.xlu0.b32.cont [15/16] 0.0, 128
    %5456 = vxpose.xlu0.b32.end [16/16] 0.0, 128
    %v5457 = vpop.trf.xlu0
    %v5458 = vpop.trf.xlu0
    %v5459 = vpop.trf.xlu0
    %v5460 = vpop.trf.xlu0
    %v5461 = vpop.trf.xlu0
    %v5462 = vpop.trf.xlu0
    %v5463 = vpop.trf.xlu0
    %v5464 = vpop.trf.xlu0
    %v5465 = vpop.trf.xlu0
    %v5466 = vpop.trf.xlu0
    %v5467 = vpop.trf.xlu0
    %v5468 = vpop.trf.xlu0
    %v5469 = vpop.trf.xlu0
    %v5470 = vpop.trf.xlu0
    %v5471 = vpop.trf.xlu0
    %v5472 = vpop.trf.xlu0
    %v5473 = vpack.c.bf16 %v5425, %v5425
    %v5474 = vpack.c.bf16 %v5426, %v5426
    %v5475 = vpack.c.bf16 %v5427, %v5427
    %v5476 = vpack.c.bf16 %v5428, %v5428
    %v5477 = vpack.c.bf16 %v5457, %v5457
    %v5478 = vpack.c.bf16 %v5458, %v5458
    %v5479 = vpack.c.bf16 %v5459, %v5459
    %v5480 = vpack.c.bf16 %v5460, %v5460
    %5481 = vxpose.xlu0.b32.start [1/16] %v5403, 128
    %5482 = vxpose.xlu0.b32.cont [2/16] 0.0, 128
    %5483 = vxpose.xlu0.b32.cont [3/16] 0.0, 128
    %5484 = vxpose.xlu0.b32.cont [4/16] 0.0, 128
    %5485 = vxpose.xlu0.b32.cont [5/16] 0.0, 128
    %5486 = vxpose.xlu0.b32.cont [6/16] 0.0, 128
    %5487 = vxpose.xlu0.b32.cont [7/16] 0.0, 128
    %5488 = vxpose.xlu0.b32.cont [8/16] 0.0, 128
    %5489 = vxpose.xlu0.b32.cont [9/16] 0.0, 128
    %5490 = vxpose.xlu0.b32.cont [10/16] 0.0, 128
    %5491 = vxpose.xlu0.b32.cont [11/16] 0.0, 128
    %5492 = vxpose.xlu0.b32.cont [12/16] 0.0, 128
    %5493 = vxpose.xlu0.b32.cont [13/16] 0.0, 128
    %5494 = vxpose.xlu0.b32.cont [14/16] 0.0, 128
    %5495 = vxpose.xlu0.b32.cont [15/16] 0.0, 128
    %5496 = vxpose.xlu0.b32.end [16/16] 0.0, 128
    %v5497 = vpop.trf.xlu0
    %v5498 = vpop.trf.xlu0
    %v5499 = vpop.trf.xlu0
    %v5500 = vpop.trf.xlu0
    %v5501 = vpop.trf.xlu0
    %v5502 = vpop.trf.xlu0
    %v5503 = vpop.trf.xlu0
    %v5504 = vpop.trf.xlu0
    %v5505 = vpop.trf.xlu0
    %v5506 = vpop.trf.xlu0
    %v5507 = vpop.trf.xlu0
    %v5508 = vpop.trf.xlu0
    %v5509 = vpop.trf.xlu0
    %v5510 = vpop.trf.xlu0
    %v5511 = vpop.trf.xlu0
    %v5512 = vpop.trf.xlu0
    %5513 = vxpose.xlu0.b32.start [1/16] %v5406, 128
    %5514 = vxpose.xlu0.b32.cont [2/16] 0.0, 128
    %5515 = vxpose.xlu0.b32.cont [3/16] 0.0, 128
    %5516 = vxpose.xlu0.b32.cont [4/16] 0.0, 128
    %5517 = vxpose.xlu0.b32.cont [5/16] 0.0, 128
    %5518 = vxpose.xlu0.b32.cont [6/16] 0.0, 128
    %5519 = vxpose.xlu0.b32.cont [7/16] 0.0, 128
    %5520 = vxpose.xlu0.b32.cont [8/16] 0.0, 128
    %5521 = vxpose.xlu0.b32.cont [9/16] 0.0, 128
    %5522 = vxpose.xlu0.b32.cont [10/16] 0.0, 128
    %5523 = vxpose.xlu0.b32.cont [11/16] 0.0, 128
    %5524 = vxpose.xlu0.b32.cont [12/16] 0.0, 128
    %5525 = vxpose.xlu0.b32.cont [13/16] 0.0, 128
    %5526 = vxpose.xlu0.b32.cont [14/16] 0.0, 128
    %5527 = vxpose.xlu0.b32.cont [15/16] 0.0, 128
    %5528 = vxpose.xlu0.b32.end [16/16] 0.0, 128
    %v5529 = vpop.trf.xlu0
    %v5530 = vpop.trf.xlu0
    %v5531 = vpop.trf.xlu0
    %v5532 = vpop.trf.xlu0
    %v5533 = vpop.trf.xlu0
    %v5534 = vpop.trf.xlu0
    %v5535 = vpop.trf.xlu0
    %v5536 = vpop.trf.xlu0
    %v5537 = vpop.trf.xlu0
    %v5538 = vpop.trf.xlu0
    %v5539 = vpop.trf.xlu0
    %v5540 = vpop.trf.xlu0
    %v5541 = vpop.trf.xlu0
    %v5542 = vpop.trf.xlu0
    %v5543 = vpop.trf.xlu0
    %v5544 = vpop.trf.xlu0
    %v5545 = vpack.c.bf16 %v5497, %v5497
    %v5546 = vpack.c.bf16 %v5498, %v5498
    %v5547 = vpack.c.bf16 %v5499, %v5499
    %v5548 = vpack.c.bf16 %v5500, %v5500
    %v5549 = vpack.c.bf16 %v5529, %v5529
    %v5550 = vpack.c.bf16 %v5530, %v5530
    %v5551 = vpack.c.bf16 %v5531, %v5531
    %v5552 = vpack.c.bf16 %v5532, %v5532
    %5555 = vrot.lane.b32.xlu0 %v5403, 96
    %v5556 = vpop.permute.xlu0 %5555
    %5557 = vrot.lane.b32.xlu0 %v5406, 96
    %v5558 = vpop.permute.xlu0 %5557
    %5561 = vxpose.xlu0.b32.start [1/16] %v5556, 128
    %5562 = vxpose.xlu0.b32.cont [2/16] 0.0, 128
    %5563 = vxpose.xlu0.b32.cont [3/16] 0.0, 128
    %5564 = vxpose.xlu0.b32.cont [4/16] 0.0, 128
    %5565 = vxpose.xlu0.b32.cont [5/16] 0.0, 128
    %5566 = vxpose.xlu0.b32.cont [6/16] 0.0, 128
    %5567 = vxpose.xlu0.b32.cont [7/16] 0.0, 128
    %5568 = vxpose.xlu0.b32.cont [8/16] 0.0, 128
    %5569 = vxpose.xlu0.b32.cont [9/16] 0.0, 128
    %5570 = vxpose.xlu0.b32.cont [10/16] 0.0, 128
    %5571 = vxpose.xlu0.b32.cont [11/16] 0.0, 128
    %5572 = vxpose.xlu0.b32.cont [12/16] 0.0, 128
    %5573 = vxpose.xlu0.b32.cont [13/16] 0.0, 128
    %5574 = vxpose.xlu0.b32.cont [14/16] 0.0, 128
    %5575 = vxpose.xlu0.b32.cont [15/16] 0.0, 128
    %5576 = vxpose.xlu0.b32.end [16/16] 0.0, 128
    %v5577 = vpop.trf.xlu0
    %v5578 = vpop.trf.xlu0
    %v5579 = vpop.trf.xlu0
    %v5580 = vpop.trf.xlu0
    %v5581 = vpop.trf.xlu0
    %v5582 = vpop.trf.xlu0
    %v5583 = vpop.trf.xlu0
    %v5584 = vpop.trf.xlu0
    %v5585 = vpop.trf.xlu0
    %v5586 = vpop.trf.xlu0
    %v5587 = vpop.trf.xlu0
    %v5588 = vpop.trf.xlu0
    %v5589 = vpop.trf.xlu0
    %v5590 = vpop.trf.xlu0
    %v5591 = vpop.trf.xlu0
    %v5592 = vpop.trf.xlu0
    %5593 = vxpose.xlu0.b32.start [1/16] %v5558, 128
    %5594 = vxpose.xlu0.b32.cont [2/16] 0.0, 128
    %5595 = vxpose.xlu0.b32.cont [3/16] 0.0, 128
    %5596 = vxpose.xlu0.b32.cont [4/16] 0.0, 128
    %5597 = vxpose.xlu0.b32.cont [5/16] 0.0, 128
    %5598 = vxpose.xlu0.b32.cont [6/16] 0.0, 128
    %5599 = vxpose.xlu0.b32.cont [7/16] 0.0, 128
    %5600 = vxpose.xlu0.b32.cont [8/16] 0.0, 128
    %5601 = vxpose.xlu0.b32.cont [9/16] 0.0, 128
    %5602 = vxpose.xlu0.b32.cont [10/16] 0.0, 128
    %5603 = vxpose.xlu0.b32.cont [11/16] 0.0, 128
    %5604 = vxpose.xlu0.b32.cont [12/16] 0.0, 128
    %5605 = vxpose.xlu0.b32.cont [13/16] 0.0, 128
    %5606 = vxpose.xlu0.b32.cont [14/16] 0.0, 128
    %5607 = vxpose.xlu0.b32.cont [15/16] 0.0, 128
    %5608 = vxpose.xlu0.b32.end [16/16] 0.0, 128
    %v5609 = vpop.trf.xlu0
    %v5610 = vpop.trf.xlu0
    %v5611 = vpop.trf.xlu0
    %v5612 = vpop.trf.xlu0
    %v5613 = vpop.trf.xlu0
    %v5614 = vpop.trf.xlu0
    %v5615 = vpop.trf.xlu0
    %v5616 = vpop.trf.xlu0
    %v5617 = vpop.trf.xlu0
    %v5618 = vpop.trf.xlu0
    %v5619 = vpop.trf.xlu0
    %v5620 = vpop.trf.xlu0
    %v5621 = vpop.trf.xlu0
    %v5622 = vpop.trf.xlu0
    %v5623 = vpop.trf.xlu0
    %v5624 = vpop.trf.xlu0
    %v5625 = vpack.c.bf16 %v5577, %v5577
    %v5626 = vpack.c.bf16 %v5578, %v5578
    %v5627 = vpack.c.bf16 %v5579, %v5579
    %v5628 = vpack.c.bf16 %v5580, %v5580
    %v5629 = vpack.c.bf16 %v5609, %v5609
    %v5630 = vpack.c.bf16 %v5610, %v5610
    %v5631 = vpack.c.bf16 %v5611, %v5611
    %v5632 = vpack.c.bf16 %v5612, %v5612
    %5633 = vxpose.xlu0.c.b16.start [1/8] %v5473, 128
    %5634 = vxpose.xlu0.c.b16.cont [2/8] 0, 128
    %5635 = vxpose.xlu0.c.b16.cont [3/8] 0, 128
    %5636 = vxpose.xlu0.c.b16.cont [4/8] 0, 128
    %5637 = vxpose.xlu0.c.b16.cont [5/8] 0, 128
    %5638 = vxpose.xlu0.c.b16.cont [6/8] 0, 128
    %5639 = vxpose.xlu0.c.b16.cont [7/8] 0, 128
    %5640 = vxpose.xlu0.c.b16.end [8/8] 0, 128
    %v5641 = vpop.trf.xlu0
    %v5642 = vpop.trf.xlu0
    %v5643 = vpop.trf.xlu0
    %v5644 = vpop.trf.xlu0
    %v5645 = vpop.trf.xlu0
    %v5646 = vpop.trf.xlu0
    %v5647 = vpop.trf.xlu0
    %v5648 = vpop.trf.xlu0
    %v5650 = vsel %vm739, %v5641, 0
    %v5653 = vsel %vm333, %v5545, 0
    %5655 = vmatprep.subr.bf16.mxu0 0
    %5656 = vmatpush1.bf16.msra.mxu0 %v5653
    %5657 = vmatprep.subr.bf16.mxu0 0
    %5658 = vmatpush1.bf16.msra.mxu0 0
    %5659 = vmatprep.subr.bf16.mxu0 0
    %5660 = vmatpush1.bf16.msra.mxu0 0
    %5661 = vmatprep.subr.bf16.mxu0 0
    %5662 = vmatpush1.bf16.msra.mxu0 0
    %5663 = vmatprep.subr.bf16.mxu0 0
    %5664 = vmatpush1.bf16.msra.mxu0 0
    %5665 = vmatprep.subr.bf16.mxu0 0
    %5666 = vmatpush1.bf16.msra.mxu0 0
    %5667 = vmatprep.subr.bf16.mxu0 0
    %5668 = vmatpush1.bf16.msra.mxu0 0
    %5669 = vmatprep.subr.bf16.mxu0 0
    %5670 = vmatpush1.bf16.msra.mxu0 0
    %5671 = vmatprep.subr.bf16.mxu0 0
    %5672 = vmatpush1.bf16.msra.mxu0 0
    %5673 = vmatprep.subr.bf16.mxu0 0
    %5674 = vmatpush1.bf16.msra.mxu0 0
    %5675 = vmatprep.subr.bf16.mxu0 0
    %5676 = vmatpush1.bf16.msra.mxu0 0
    %5677 = vmatprep.subr.bf16.mxu0 0
    %5678 = vmatpush1.bf16.msra.mxu0 0
    %5679 = vmatprep.subr.bf16.mxu0 0
    %5680 = vmatpush1.bf16.msra.mxu0 0
    %5681 = vmatprep.subr.bf16.mxu0 0
    %5682 = vmatpush1.bf16.msra.mxu0 0
    %5683 = vmatprep.subr.bf16.mxu0 0
    %5684 = vmatpush1.bf16.msra.mxu0 0
    %5685 = vmatprep.subr.bf16.mxu0 0
    %5686 = vmatpush1.bf16.msra.mxu0 0
    %5687 = vmatprep.mubr.bf16.mxu0 0
    %5688 = vmatmul.mubr.bf16.gmra.mrb[0].mxu0 %v5650
    %v5689 = vpop.f32.mrb[0].mxu0
    %v5690 = vadd.f32 0.0, %v5689
    %v5691 = vpop.f32.mrb[0].mxu0
    %v5692 = vpop.f32.mrb[0].mxu0
    %v5693 = vpop.f32.mrb[0].mxu0
    %5694 = vdwg.mxu0
    %5695 = vxpose.xlu0.c.b16.start [1/8] %v5474, 128
    %5696 = vxpose.xlu0.c.b16.cont [2/8] 0, 128
    %5697 = vxpose.xlu0.c.b16.cont [3/8] 0, 128
    %5698 = vxpose.xlu0.c.b16.cont [4/8] 0, 128
    %5699 = vxpose.xlu0.c.b16.cont [5/8] 0, 128
    %5700 = vxpose.xlu0.c.b16.cont [6/8] 0, 128
    %5701 = vxpose.xlu0.c.b16.cont [7/8] 0, 128
    %5702 = vxpose.xlu0.c.b16.end [8/8] 0, 128
    %v5703 = vpop.trf.xlu0
    %v5704 = vpop.trf.xlu0
    %v5705 = vpop.trf.xlu0
    %v5706 = vpop.trf.xlu0
    %v5707 = vpop.trf.xlu0
    %v5708 = vpop.trf.xlu0
    %v5709 = vpop.trf.xlu0
    %v5710 = vpop.trf.xlu0
    %v5712 = vsel %vm739, %v5703, 0
    %v5715 = vsel %vm333, %v5546, 0
    %5717 = vmatprep.subr.bf16.mxu0 0
    %5718 = vmatpush1.bf16.msra.mxu0 %v5715
    %5719 = vmatprep.subr.bf16.mxu0 0
    %5720 = vmatpush1.bf16.msra.mxu0 0
    %5721 = vmatprep.subr.bf16.mxu0 0
    %5722 = vmatpush1.bf16.msra.mxu0 0
    %5723 = vmatprep.subr.bf16.mxu0 0
    %5724 = vmatpush1.bf16.msra.mxu0 0
    %5725 = vmatprep.subr.bf16.mxu0 0
    %5726 = vmatpush1.bf16.msra.mxu0 0
    %5727 = vmatprep.subr.bf16.mxu0 0
    %5728 = vmatpush1.bf16.msra.mxu0 0
    %5729 = vmatprep.subr.bf16.mxu0 0
    %5730 = vmatpush1.bf16.msra.mxu0 0
    %5731 = vmatprep.subr.bf16.mxu0 0
    %5732 = vmatpush1.bf16.msra.mxu0 0
    %5733 = vmatprep.subr.bf16.mxu0 0
    %5734 = vmatpush1.bf16.msra.mxu0 0
    %5735 = vmatprep.subr.bf16.mxu0 0
    %5736 = vmatpush1.bf16.msra.mxu0 0
    %5737 = vmatprep.subr.bf16.mxu0 0
    %5738 = vmatpush1.bf16.msra.mxu0 0
    %5739 = vmatprep.subr.bf16.mxu0 0
    %5740 = vmatpush1.bf16.msra.mxu0 0
    %5741 = vmatprep.subr.bf16.mxu0 0
    %5742 = vmatpush1.bf16.msra.mxu0 0
    %5743 = vmatprep.subr.bf16.mxu0 0
    %5744 = vmatpush1.bf16.msra.mxu0 0
    %5745 = vmatprep.subr.bf16.mxu0 0
    %5746 = vmatpush1.bf16.msra.mxu0 0
    %5747 = vmatprep.subr.bf16.mxu0 0
    %5748 = vmatpush1.bf16.msra.mxu0 0
    %5749 = vmatprep.mubr.bf16.mxu0 0
    %5750 = vmatmul.mubr.bf16.gmra.mrb[0].mxu0 %v5712
    %v5751 = vpop.f32.mrb[0].mxu0
    %v5752 = vadd.f32 0.0, %v5751
    %v5753 = vpop.f32.mrb[0].mxu0
    %v5754 = vpop.f32.mrb[0].mxu0
    %v5755 = vpop.f32.mrb[0].mxu0
    %5756 = vdwg.mxu0
    %5757 = vxpose.xlu0.c.b16.start [1/8] %v5475, 128
    %5758 = vxpose.xlu0.c.b16.cont [2/8] 0, 128
    %5759 = vxpose.xlu0.c.b16.cont [3/8] 0, 128
    %5760 = vxpose.xlu0.c.b16.cont [4/8] 0, 128
    %5761 = vxpose.xlu0.c.b16.cont [5/8] 0, 128
    %5762 = vxpose.xlu0.c.b16.cont [6/8] 0, 128
    %5763 = vxpose.xlu0.c.b16.cont [7/8] 0, 128
    %5764 = vxpose.xlu0.c.b16.end [8/8] 0, 128
    %v5765 = vpop.trf.xlu0
    %v5766 = vpop.trf.xlu0
    %v5767 = vpop.trf.xlu0
    %v5768 = vpop.trf.xlu0
    %v5769 = vpop.trf.xlu0
    %v5770 = vpop.trf.xlu0
    %v5771 = vpop.trf.xlu0
    %v5772 = vpop.trf.xlu0
    %v5774 = vsel %vm739, %v5765, 0
    %v5777 = vsel %vm333, %v5547, 0
    %5779 = vmatprep.subr.bf16.mxu0 0
    %5780 = vmatpush1.bf16.msra.mxu0 %v5777
    %5781 = vmatprep.subr.bf16.mxu0 0
    %5782 = vmatpush1.bf16.msra.mxu0 0
    %5783 = vmatprep.subr.bf16.mxu0 0
    %5784 = vmatpush1.bf16.msra.mxu0 0
    %5785 = vmatprep.subr.bf16.mxu0 0
    %5786 = vmatpush1.bf16.msra.mxu0 0
    %5787 = vmatprep.subr.bf16.mxu0 0
    %5788 = vmatpush1.bf16.msra.mxu0 0
    %5789 = vmatprep.subr.bf16.mxu0 0
    %5790 = vmatpush1.bf16.msra.mxu0 0
    %5791 = vmatprep.subr.bf16.mxu0 0
    %5792 = vmatpush1.bf16.msra.mxu0 0
    %5793 = vmatprep.subr.bf16.mxu0 0
    %5794 = vmatpush1.bf16.msra.mxu0 0
    %5795 = vmatprep.subr.bf16.mxu0 0
    %5796 = vmatpush1.bf16.msra.mxu0 0
    %5797 = vmatprep.subr.bf16.mxu0 0
    %5798 = vmatpush1.bf16.msra.mxu0 0
    %5799 = vmatprep.subr.bf16.mxu0 0
    %5800 = vmatpush1.bf16.msra.mxu0 0
    %5801 = vmatprep.subr.bf16.mxu0 0
    %5802 = vmatpush1.bf16.msra.mxu0 0
    %5803 = vmatprep.subr.bf16.mxu0 0
    %5804 = vmatpush1.bf16.msra.mxu0 0
    %5805 = vmatprep.subr.bf16.mxu0 0
    %5806 = vmatpush1.bf16.msra.mxu0 0
    %5807 = vmatprep.subr.bf16.mxu0 0
    %5808 = vmatpush1.bf16.msra.mxu0 0
    %5809 = vmatprep.subr.bf16.mxu0 0
    %5810 = vmatpush1.bf16.msra.mxu0 0
    %5811 = vmatprep.mubr.bf16.mxu0 0
    %5812 = vmatmul.mubr.bf16.gmra.mrb[0].mxu0 %v5774
    %v5813 = vpop.f32.mrb[0].mxu0
    %v5814 = vadd.f32 0.0, %v5813
    %v5815 = vpop.f32.mrb[0].mxu0
    %v5816 = vpop.f32.mrb[0].mxu0
    %v5817 = vpop.f32.mrb[0].mxu0
    %5818 = vdwg.mxu0
    %5819 = vxpose.xlu0.c.b16.start [1/8] %v5476, 128
    %5820 = vxpose.xlu0.c.b16.cont [2/8] 0, 128
    %5821 = vxpose.xlu0.c.b16.cont [3/8] 0, 128
    %5822 = vxpose.xlu0.c.b16.cont [4/8] 0, 128
    %5823 = vxpose.xlu0.c.b16.cont [5/8] 0, 128
    %5824 = vxpose.xlu0.c.b16.cont [6/8] 0, 128
    %5825 = vxpose.xlu0.c.b16.cont [7/8] 0, 128
    %5826 = vxpose.xlu0.c.b16.end [8/8] 0, 128
    %v5827 = vpop.trf.xlu0
    %v5828 = vpop.trf.xlu0
    %v5829 = vpop.trf.xlu0
    %v5830 = vpop.trf.xlu0
    %v5831 = vpop.trf.xlu0
    %v5832 = vpop.trf.xlu0
    %v5833 = vpop.trf.xlu0
    %v5834 = vpop.trf.xlu0
    %v5836 = vsel %vm739, %v5827, 0
    %v5839 = vsel %vm333, %v5548, 0
    %5841 = vmatprep.subr.bf16.mxu0 0
    %5842 = vmatpush1.bf16.msra.mxu0 %v5839
    %5843 = vmatprep.subr.bf16.mxu0 0
    %5844 = vmatpush1.bf16.msra.mxu0 0
    %5845 = vmatprep.subr.bf16.mxu0 0
    %5846 = vmatpush1.bf16.msra.mxu0 0
    %5847 = vmatprep.subr.bf16.mxu0 0
    %5848 = vmatpush1.bf16.msra.mxu0 0
    %5849 = vmatprep.subr.bf16.mxu0 0
    %5850 = vmatpush1.bf16.msra.mxu0 0
    %5851 = vmatprep.subr.bf16.mxu0 0
    %5852 = vmatpush1.bf16.msra.mxu0 0
    %5853 = vmatprep.subr.bf16.mxu0 0
    %5854 = vmatpush1.bf16.msra.mxu0 0
    %5855 = vmatprep.subr.bf16.mxu0 0
    %5856 = vmatpush1.bf16.msra.mxu0 0
    %5857 = vmatprep.subr.bf16.mxu0 0
    %5858 = vmatpush1.bf16.msra.mxu0 0
    %5859 = vmatprep.subr.bf16.mxu0 0
    %5860 = vmatpush1.bf16.msra.mxu0 0
    %5861 = vmatprep.subr.bf16.mxu0 0
    %5862 = vmatpush1.bf16.msra.mxu0 0
    %5863 = vmatprep.subr.bf16.mxu0 0
    %5864 = vmatpush1.bf16.msra.mxu0 0
    %5865 = vmatprep.subr.bf16.mxu0 0
    %5866 = vmatpush1.bf16.msra.mxu0 0
    %5867 = vmatprep.subr.bf16.mxu0 0
    %5868 = vmatpush1.bf16.msra.mxu0 0
    %5869 = vmatprep.subr.bf16.mxu0 0
    %5870 = vmatpush1.bf16.msra.mxu0 0
    %5871 = vmatprep.subr.bf16.mxu0 0
    %5872 = vmatpush1.bf16.msra.mxu0 0
    %5873 = vmatprep.mubr.bf16.mxu0 0
    %5874 = vmatmul.mubr.bf16.gmra.mrb[0].mxu0 %v5836
    %v5875 = vpop.f32.mrb[0].mxu0
    %v5876 = vadd.f32 0.0, %v5875
    %v5877 = vpop.f32.mrb[0].mxu0
    %v5878 = vpop.f32.mrb[0].mxu0
    %v5879 = vpop.f32.mrb[0].mxu0
    %5880 = vdwg.mxu0
    %5881 = vxpose.xlu0.c.b16.start [1/8] %v5477, 128
    %5882 = vxpose.xlu0.c.b16.cont [2/8] 0, 128
    %5883 = vxpose.xlu0.c.b16.cont [3/8] 0, 128
    %5884 = vxpose.xlu0.c.b16.cont [4/8] 0, 128
    %5885 = vxpose.xlu0.c.b16.cont [5/8] 0, 128
    %5886 = vxpose.xlu0.c.b16.cont [6/8] 0, 128
    %5887 = vxpose.xlu0.c.b16.cont [7/8] 0, 128
    %5888 = vxpose.xlu0.c.b16.end [8/8] 0, 128
    %v5889 = vpop.trf.xlu0
    %v5890 = vpop.trf.xlu0
    %v5891 = vpop.trf.xlu0
    %v5892 = vpop.trf.xlu0
    %v5893 = vpop.trf.xlu0
    %v5894 = vpop.trf.xlu0
    %v5895 = vpop.trf.xlu0
    %v5896 = vpop.trf.xlu0
    %v5898 = vsel %vm739, %v5889, 0
    %v5901 = vsel %vm333, %v5549, 0
    %5903 = vmatprep.subr.bf16.mxu0 0
    %5904 = vmatpush1.bf16.msra.mxu0 %v5901
    %5905 = vmatprep.subr.bf16.mxu0 0
    %5906 = vmatpush1.bf16.msra.mxu0 0
    %5907 = vmatprep.subr.bf16.mxu0 0
    %5908 = vmatpush1.bf16.msra.mxu0 0
    %5909 = vmatprep.subr.bf16.mxu0 0
    %5910 = vmatpush1.bf16.msra.mxu0 0
    %5911 = vmatprep.subr.bf16.mxu0 0
    %5912 = vmatpush1.bf16.msra.mxu0 0
    %5913 = vmatprep.subr.bf16.mxu0 0
    %5914 = vmatpush1.bf16.msra.mxu0 0
    %5915 = vmatprep.subr.bf16.mxu0 0
    %5916 = vmatpush1.bf16.msra.mxu0 0
    %5917 = vmatprep.subr.bf16.mxu0 0
    %5918 = vmatpush1.bf16.msra.mxu0 0
    %5919 = vmatprep.subr.bf16.mxu0 0
    %5920 = vmatpush1.bf16.msra.mxu0 0
    %5921 = vmatprep.subr.bf16.mxu0 0
    %5922 = vmatpush1.bf16.msra.mxu0 0
    %5923 = vmatprep.subr.bf16.mxu0 0
    %5924 = vmatpush1.bf16.msra.mxu0 0
    %5925 = vmatprep.subr.bf16.mxu0 0
    %5926 = vmatpush1.bf16.msra.mxu0 0
    %5927 = vmatprep.subr.bf16.mxu0 0
    %5928 = vmatpush1.bf16.msra.mxu0 0
    %5929 = vmatprep.subr.bf16.mxu0 0
    %5930 = vmatpush1.bf16.msra.mxu0 0
    %5931 = vmatprep.subr.bf16.mxu0 0
    %5932 = vmatpush1.bf16.msra.mxu0 0
    %5933 = vmatprep.subr.bf16.mxu0 0
    %5934 = vmatpush1.bf16.msra.mxu0 0
    %5935 = vmatprep.mubr.bf16.mxu0 0
    %5936 = vmatmul.mubr.bf16.gmra.mrb[0].mxu0 %v5898
    %v5937 = vpop.f32.mrb[0].mxu0
    %v5938 = vadd.f32 0.0, %v5937
    %v5939 = vpop.f32.mrb[0].mxu0
    %v5940 = vpop.f32.mrb[0].mxu0
    %v5941 = vpop.f32.mrb[0].mxu0
    %5942 = vdwg.mxu0
    %5943 = vxpose.xlu0.c.b16.start [1/8] %v5478, 128
    %5944 = vxpose.xlu0.c.b16.cont [2/8] 0, 128
    %5945 = vxpose.xlu0.c.b16.cont [3/8] 0, 128
    %5946 = vxpose.xlu0.c.b16.cont [4/8] 0, 128
    %5947 = vxpose.xlu0.c.b16.cont [5/8] 0, 128
    %5948 = vxpose.xlu0.c.b16.cont [6/8] 0, 128
    %5949 = vxpose.xlu0.c.b16.cont [7/8] 0, 128
    %5950 = vxpose.xlu0.c.b16.end [8/8] 0, 128
    %v5951 = vpop.trf.xlu0
    %v5952 = vpop.trf.xlu0
    %v5953 = vpop.trf.xlu0
    %v5954 = vpop.trf.xlu0
    %v5955 = vpop.trf.xlu0
    %v5956 = vpop.trf.xlu0
    %v5957 = vpop.trf.xlu0
    %v5958 = vpop.trf.xlu0
    %v5960 = vsel %vm739, %v5951, 0
    %v5963 = vsel %vm333, %v5550, 0
    %5965 = vmatprep.subr.bf16.mxu0 0
    %5966 = vmatpush1.bf16.msra.mxu0 %v5963
    %5967 = vmatprep.subr.bf16.mxu0 0
    %5968 = vmatpush1.bf16.msra.mxu0 0
    %5969 = vmatprep.subr.bf16.mxu0 0
    %5970 = vmatpush1.bf16.msra.mxu0 0
    %5971 = vmatprep.subr.bf16.mxu0 0
    %5972 = vmatpush1.bf16.msra.mxu0 0
    %5973 = vmatprep.subr.bf16.mxu0 0
    %5974 = vmatpush1.bf16.msra.mxu0 0
    %5975 = vmatprep.subr.bf16.mxu0 0
    %5976 = vmatpush1.bf16.msra.mxu0 0
    %5977 = vmatprep.subr.bf16.mxu0 0
    %5978 = vmatpush1.bf16.msra.mxu0 0
    %5979 = vmatprep.subr.bf16.mxu0 0
    %5980 = vmatpush1.bf16.msra.mxu0 0
    %5981 = vmatprep.subr.bf16.mxu0 0
    %5982 = vmatpush1.bf16.msra.mxu0 0
    %5983 = vmatprep.subr.bf16.mxu0 0
    %5984 = vmatpush1.bf16.msra.mxu0 0
    %5985 = vmatprep.subr.bf16.mxu0 0
    %5986 = vmatpush1.bf16.msra.mxu0 0
    %5987 = vmatprep.subr.bf16.mxu0 0
    %5988 = vmatpush1.bf16.msra.mxu0 0
    %5989 = vmatprep.subr.bf16.mxu0 0
    %5990 = vmatpush1.bf16.msra.mxu0 0
    %5991 = vmatprep.subr.bf16.mxu0 0
    %5992 = vmatpush1.bf16.msra.mxu0 0
    %5993 = vmatprep.subr.bf16.mxu0 0
    %5994 = vmatpush1.bf16.msra.mxu0 0
    %5995 = vmatprep.subr.bf16.mxu0 0
    %5996 = vmatpush1.bf16.msra.mxu0 0
    %5997 = vmatprep.mubr.bf16.mxu0 0
    %5998 = vmatmul.mubr.bf16.gmra.mrb[0].mxu0 %v5960
    %v5999 = vpop.f32.mrb[0].mxu0
    %v6000 = vadd.f32 0.0, %v5999
    %v6001 = vpop.f32.mrb[0].mxu0
    %v6002 = vpop.f32.mrb[0].mxu0
    %v6003 = vpop.f32.mrb[0].mxu0
    %6004 = vdwg.mxu0
    %6005 = vxpose.xlu0.c.b16.start [1/8] %v5479, 128
    %6006 = vxpose.xlu0.c.b16.cont [2/8] 0, 128
    %6007 = vxpose.xlu0.c.b16.cont [3/8] 0, 128
    %6008 = vxpose.xlu0.c.b16.cont [4/8] 0, 128
    %6009 = vxpose.xlu0.c.b16.cont [5/8] 0, 128
    %6010 = vxpose.xlu0.c.b16.cont [6/8] 0, 128
    %6011 = vxpose.xlu0.c.b16.cont [7/8] 0, 128
    %6012 = vxpose.xlu0.c.b16.end [8/8] 0, 128
    %v6013 = vpop.trf.xlu0
    %v6014 = vpop.trf.xlu0
    %v6015 = vpop.trf.xlu0
    %v6016 = vpop.trf.xlu0
    %v6017 = vpop.trf.xlu0
    %v6018 = vpop.trf.xlu0
    %v6019 = vpop.trf.xlu0
    %v6020 = vpop.trf.xlu0
    %v6022 = vsel %vm739, %v6013, 0
    %v6025 = vsel %vm333, %v5551, 0
    %6027 = vmatprep.subr.bf16.mxu0 0
    %6028 = vmatpush1.bf16.msra.mxu0 %v6025
    %6029 = vmatprep.subr.bf16.mxu0 0
    %6030 = vmatpush1.bf16.msra.mxu0 0
    %6031 = vmatprep.subr.bf16.mxu0 0
    %6032 = vmatpush1.bf16.msra.mxu0 0
    %6033 = vmatprep.subr.bf16.mxu0 0
    %6034 = vmatpush1.bf16.msra.mxu0 0
    %6035 = vmatprep.subr.bf16.mxu0 0
    %6036 = vmatpush1.bf16.msra.mxu0 0
    %6037 = vmatprep.subr.bf16.mxu0 0
    %6038 = vmatpush1.bf16.msra.mxu0 0
    %6039 = vmatprep.subr.bf16.mxu0 0
    %6040 = vmatpush1.bf16.msra.mxu0 0
    %6041 = vmatprep.subr.bf16.mxu0 0
    %6042 = vmatpush1.bf16.msra.mxu0 0
    %6043 = vmatprep.subr.bf16.mxu0 0
    %6044 = vmatpush1.bf16.msra.mxu0 0
    %6045 = vmatprep.subr.bf16.mxu0 0
    %6046 = vmatpush1.bf16.msra.mxu0 0
    %6047 = vmatprep.subr.bf16.mxu0 0
    %6048 = vmatpush1.bf16.msra.mxu0 0
    %6049 = vmatprep.subr.bf16.mxu0 0
    %6050 = vmatpush1.bf16.msra.mxu0 0
    %6051 = vmatprep.subr.bf16.mxu0 0
    %6052 = vmatpush1.bf16.msra.mxu0 0
    %6053 = vmatprep.subr.bf16.mxu0 0
    %6054 = vmatpush1.bf16.msra.mxu0 0
    %6055 = vmatprep.subr.bf16.mxu0 0
    %6056 = vmatpush1.bf16.msra.mxu0 0
    %6057 = vmatprep.subr.bf16.mxu0 0
    %6058 = vmatpush1.bf16.msra.mxu0 0
    %6059 = vmatprep.mubr.bf16.mxu0 0
    %6060 = vmatmul.mubr.bf16.gmra.mrb[0].mxu0 %v6022
    %v6061 = vpop.f32.mrb[0].mxu0
    %v6062 = vadd.f32 0.0, %v6061
    %v6063 = vpop.f32.mrb[0].mxu0
    %v6064 = vpop.f32.mrb[0].mxu0
    %v6065 = vpop.f32.mrb[0].mxu0
    %6066 = vdwg.mxu0
    %6067 = vxpose.xlu0.c.b16.start [1/8] %v5480, 128
    %6068 = vxpose.xlu0.c.b16.cont [2/8] 0, 128
    %6069 = vxpose.xlu0.c.b16.cont [3/8] 0, 128
    %6070 = vxpose.xlu0.c.b16.cont [4/8] 0, 128
    %6071 = vxpose.xlu0.c.b16.cont [5/8] 0, 128
    %6072 = vxpose.xlu0.c.b16.cont [6/8] 0, 128
    %6073 = vxpose.xlu0.c.b16.cont [7/8] 0, 128
    %6074 = vxpose.xlu0.c.b16.end [8/8] 0, 128
    %v6075 = vpop.trf.xlu0
    %v6076 = vpop.trf.xlu0
    %v6077 = vpop.trf.xlu0
    %v6078 = vpop.trf.xlu0
    %v6079 = vpop.trf.xlu0
    %v6080 = vpop.trf.xlu0
    %v6081 = vpop.trf.xlu0
    %v6082 = vpop.trf.xlu0
    %v6084 = vsel %vm739, %v6075, 0
    %v6087 = vsel %vm333, %v5552, 0
    %6089 = vmatprep.subr.bf16.mxu0 0
    %6090 = vmatpush1.bf16.msra.mxu0 %v6087
    %6091 = vmatprep.subr.bf16.mxu0 0
    %6092 = vmatpush1.bf16.msra.mxu0 0
    %6093 = vmatprep.subr.bf16.mxu0 0
    %6094 = vmatpush1.bf16.msra.mxu0 0
    %6095 = vmatprep.subr.bf16.mxu0 0
    %6096 = vmatpush1.bf16.msra.mxu0 0
    %6097 = vmatprep.subr.bf16.mxu0 0
    %6098 = vmatpush1.bf16.msra.mxu0 0
    %6099 = vmatprep.subr.bf16.mxu0 0
    %6100 = vmatpush1.bf16.msra.mxu0 0
    %6101 = vmatprep.subr.bf16.mxu0 0
    %6102 = vmatpush1.bf16.msra.mxu0 0
    %6103 = vmatprep.subr.bf16.mxu0 0
    %6104 = vmatpush1.bf16.msra.mxu0 0
    %6105 = vmatprep.subr.bf16.mxu0 0
    %6106 = vmatpush1.bf16.msra.mxu0 0
    %6107 = vmatprep.subr.bf16.mxu0 0
    %6108 = vmatpush1.bf16.msra.mxu0 0
    %6109 = vmatprep.subr.bf16.mxu0 0
    %6110 = vmatpush1.bf16.msra.mxu0 0
    %6111 = vmatprep.subr.bf16.mxu0 0
    %6112 = vmatpush1.bf16.msra.mxu0 0
    %6113 = vmatprep.subr.bf16.mxu0 0
    %6114 = vmatpush1.bf16.msra.mxu0 0
    %6115 = vmatprep.subr.bf16.mxu0 0
    %6116 = vmatpush1.bf16.msra.mxu0 0
    %6117 = vmatprep.subr.bf16.mxu0 0
    %6118 = vmatpush1.bf16.msra.mxu0 0
    %6119 = vmatprep.subr.bf16.mxu0 0
    %6120 = vmatpush1.bf16.msra.mxu0 0
    %6121 = vmatprep.mubr.bf16.mxu0 0
    %6122 = vmatmul.mubr.bf16.gmra.mrb[0].mxu0 %v6084
    %v6123 = vpop.f32.mrb[0].mxu0
    %v6124 = vadd.f32 0.0, %v6123
    %v6125 = vpop.f32.mrb[0].mxu0
    %v6126 = vpop.f32.mrb[0].mxu0
    %v6127 = vpop.f32.mrb[0].mxu0
    %6128 = vdwg.mxu0
    %v6129 = vsel %vm739, %v5690, -inf
    %6130 = vmax.xlane.f32.xlu0 %v6129
    %v6131 = vpop.xlane.xlu0 %6130
    %v6132 = vsel %vm739, %v5752, -inf
    %6133 = vmax.xlane.f32.xlu0 %v6132
    %v6134 = vpop.xlane.xlu0 %6133
    %v6135 = vsel %vm739, %v5814, -inf
    %6136 = vmax.xlane.f32.xlu0 %v6135
    %v6137 = vpop.xlane.xlu0 %6136
    %v6138 = vsel %vm739, %v5876, -inf
    %6139 = vmax.xlane.f32.xlu0 %v6138
    %v6140 = vpop.xlane.xlu0 %6139
    %v6141 = vsel %vm739, %v5938, -inf
    %6142 = vmax.xlane.f32.xlu0 %v6141
    %v6143 = vpop.xlane.xlu0 %6142
    %v6144 = vsel %vm739, %v6000, -inf
    %6145 = vmax.xlane.f32.xlu0 %v6144
    %v6146 = vpop.xlane.xlu0 %6145
    %v6147 = vsel %vm739, %v6062, -inf
    %6148 = vmax.xlane.f32.xlu0 %v6147
    %v6149 = vpop.xlane.xlu0 %6148
    %v6150 = vsel %vm739, %v6124, -inf
    %6151 = vmax.xlane.f32.xlu0 %v6150
    %v6152 = vpop.xlane.xlu0 %6151
    %v6153 = vsub.f32 %v5690, %v6131
    %v6154 = vsub.f32 %v5752, %v6134
    %v6155 = vsub.f32 %v5814, %v6137
    %v6156 = vsub.f32 %v5876, %v6140
    %v6157 = vsub.f32 %v5938, %v6143
    %v6158 = vsub.f32 %v6000, %v6146
    %v6159 = vsub.f32 %v6062, %v6149
    %v6160 = vsub.f32 %v6124, %v6152
    %v6161 = vmul.f32 %v6153, 1.442695
    %v6162 = vpow.pop %v6161
    %v6163 = vmul.f32 %v6154, 1.442695
    %v6164 = vpow.pop %v6163
    %v6165 = vmul.f32 %v6155, 1.442695
    %v6166 = vpow.pop %v6165
    %v6167 = vmul.f32 %v6156, 1.442695
    %v6168 = vpow.pop %v6167
    %v6169 = vmul.f32 %v6157, 1.442695
    %v6170 = vpow.pop %v6169
    %v6171 = vmul.f32 %v6158, 1.442695
    %v6172 = vpow.pop %v6171
    %v6173 = vmul.f32 %v6159, 1.442695
    %v6174 = vpow.pop %v6173
    %v6175 = vmul.f32 %v6160, 1.442695
    %v6176 = vpow.pop %v6175
    %v6177 = vsel %vm739, %v6162, 0.0
    %6178 = vadd.xlane.f32.xlu0 %v6177
    %v6179 = vpop.xlane.xlu0 %6178
    %v6180 = vsel %vm739, %v6164, 0.0
    %6181 = vadd.xlane.f32.xlu0 %v6180
    %v6182 = vpop.xlane.xlu0 %6181
    %v6183 = vsel %vm739, %v6166, 0.0
    %6184 = vadd.xlane.f32.xlu0 %v6183
    %v6185 = vpop.xlane.xlu0 %6184
    %v6186 = vsel %vm739, %v6168, 0.0
    %6187 = vadd.xlane.f32.xlu0 %v6186
    %v6188 = vpop.xlane.xlu0 %6187
    %v6189 = vsel %vm739, %v6170, 0.0
    %6190 = vadd.xlane.f32.xlu0 %v6189
    %v6191 = vpop.xlane.xlu0 %6190
    %v6192 = vsel %vm739, %v6172, 0.0
    %6193 = vadd.xlane.f32.xlu0 %v6192
    %v6194 = vpop.xlane.xlu0 %6193
    %v6195 = vsel %vm739, %v6174, 0.0
    %6196 = vadd.xlane.f32.xlu0 %v6195
    %v6197 = vpop.xlane.xlu0 %6196
    %v6198 = vsel %vm739, %v6176, 0.0
    %6199 = vadd.xlane.f32.xlu0 %v6198
    %v6200 = vpop.xlane.xlu0 %6199
    %v6201 = vrcp.pop %v6179
    %v6202 = vmul.f32 %v6162, %v6201
    %v6203 = vrcp.pop %v6182
    %v6204 = vmul.f32 %v6164, %v6203
    %v6205 = vrcp.pop %v6185
    %v6206 = vmul.f32 %v6166, %v6205
    %v6207 = vrcp.pop %v6188
    %v6208 = vmul.f32 %v6168, %v6207
    %v6209 = vrcp.pop %v6191
    %v6210 = vmul.f32 %v6170, %v6209
    %v6211 = vrcp.pop %v6194
    %v6212 = vmul.f32 %v6172, %v6211
    %v6213 = vrcp.pop %v6197
    %v6214 = vmul.f32 %v6174, %v6213
    %v6215 = vrcp.pop %v6200
    %v6216 = vmul.f32 %v6176, %v6215
    %v6217 = vpack.c.bf16 %v6202, %v6202
    %v6218 = vpack.c.bf16 %v6204, %v6204
    %v6219 = vpack.c.bf16 %v6206, %v6206
    %v6220 = vpack.c.bf16 %v6208, %v6208
    %v6221 = vpack.c.bf16 %v6210, %v6210
    %v6222 = vpack.c.bf16 %v6212, %v6212
    %v6223 = vpack.c.bf16 %v6214, %v6214
    %v6224 = vpack.c.bf16 %v6216, %v6216
    %v6226 = vsel %vm739, %v5625, 0
    %v6229 = vsel %vm739, %v6217, 0
    %6231 = vmatprep.subr.bf16.mxu0 0
    %6232 = vmatpush1.bf16.xpose.msra.mxu0 %v6229
    %6233 = vmatprep.subr.bf16.mxu0 0
    %6234 = vmatpush1.bf16.xpose.msra.mxu0 0
    %6235 = vmatprep.subr.bf16.mxu0 0
    %6236 = vmatpush1.bf16.xpose.msra.mxu0 0
    %6237 = vmatprep.subr.bf16.mxu0 0
    %6238 = vmatpush1.bf16.xpose.msra.mxu0 0
    %6239 = vmatprep.subr.bf16.mxu0 0
    %6240 = vmatpush1.bf16.xpose.msra.mxu0 0
    %6241 = vmatprep.subr.bf16.mxu0 0
    %6242 = vmatpush1.bf16.xpose.msra.mxu0 0
    %6243 = vmatprep.subr.bf16.mxu0 0
    %6244 = vmatpush1.bf16.xpose.msra.mxu0 0
    %6245 = vmatprep.subr.bf16.mxu0 0
    %6246 = vmatpush1.bf16.xpose.msra.mxu0 0
    %6247 = vmatprep.subr.bf16.mxu0 0
    %6248 = vmatpush1.bf16.xpose.msra.mxu0 0
    %6249 = vmatprep.subr.bf16.mxu0 0
    %6250 = vmatpush1.bf16.xpose.msra.mxu0 0
    %6251 = vmatprep.subr.bf16.mxu0 0
    %6252 = vmatpush1.bf16.xpose.msra.mxu0 0
    %6253 = vmatprep.subr.bf16.mxu0 0
    %6254 = vmatpush1.bf16.xpose.msra.mxu0 0
    %6255 = vmatprep.subr.bf16.mxu0 0
    %6256 = vmatpush1.bf16.xpose.msra.mxu0 0
    %6257 = vmatprep.subr.bf16.mxu0 0
    %6258 = vmatpush1.bf16.xpose.msra.mxu0 0
    %6259 = vmatprep.subr.bf16.mxu0 0
    %6260 = vmatpush1.bf16.xpose.msra.mxu0 0
    %6261 = vmatprep.subr.bf16.mxu0 0
    %6262 = vmatpush1.bf16.xpose.msra.mxu0 0
    %6263 = vmatprep.mubr.bf16.mxu0 0
    %6264 = vmatmul.mubr.bf16.gmra.mrb[0].mxu0 %v6226
    %v6265 = vpop.f32.mrb[0].mxu0
    %v6266 = vadd.f32 0.0, %v6265
    %v6267 = vpop.f32.mrb[0].mxu0
    %v6268 = vpop.f32.mrb[0].mxu0
    %v6269 = vpop.f32.mrb[0].mxu0
    %6270 = vdwg.mxu0
    %v6272 = vsel %vm739, %v5626, 0
    %v6275 = vsel %vm739, %v6218, 0
    %6277 = vmatprep.subr.bf16.mxu0 0
    %6278 = vmatpush1.bf16.xpose.msra.mxu0 %v6275
    %6279 = vmatprep.subr.bf16.mxu0 0
    %6280 = vmatpush1.bf16.xpose.msra.mxu0 0
    %6281 = vmatprep.subr.bf16.mxu0 0
    %6282 = vmatpush1.bf16.xpose.msra.mxu0 0
    %6283 = vmatprep.subr.bf16.mxu0 0
    %6284 = vmatpush1.bf16.xpose.msra.mxu0 0
    %6285 = vmatprep.subr.bf16.mxu0 0
    %6286 = vmatpush1.bf16.xpose.msra.mxu0 0
    %6287 = vmatprep.subr.bf16.mxu0 0
    %6288 = vmatpush1.bf16.xpose.msra.mxu0 0
    %6289 = vmatprep.subr.bf16.mxu0 0
    %6290 = vmatpush1.bf16.xpose.msra.mxu0 0
    %6291 = vmatprep.subr.bf16.mxu0 0
    %6292 = vmatpush1.bf16.xpose.msra.mxu0 0
    %6293 = vmatprep.subr.bf16.mxu0 0
    %6294 = vmatpush1.bf16.xpose.msra.mxu0 0
    %6295 = vmatprep.subr.bf16.mxu0 0
    %6296 = vmatpush1.bf16.xpose.msra.mxu0 0
    %6297 = vmatprep.subr.bf16.mxu0 0
    %6298 = vmatpush1.bf16.xpose.msra.mxu0 0
    %6299 = vmatprep.subr.bf16.mxu0 0
    %6300 = vmatpush1.bf16.xpose.msra.mxu0 0
    %6301 = vmatprep.subr.bf16.mxu0 0
    %6302 = vmatpush1.bf16.xpose.msra.mxu0 0
    %6303 = vmatprep.subr.bf16.mxu0 0
    %6304 = vmatpush1.bf16.xpose.msra.mxu0 0
    %6305 = vmatprep.subr.bf16.mxu0 0
    %6306 = vmatpush1.bf16.xpose.msra.mxu0 0
    %6307 = vmatprep.subr.bf16.mxu0 0
    %6308 = vmatpush1.bf16.xpose.msra.mxu0 0
    %6309 = vmatprep.mubr.bf16.mxu0 0
    %6310 = vmatmul.mubr.bf16.gmra.mrb[0].mxu0 %v6272
    %v6311 = vpop.f32.mrb[0].mxu0
    %v6312 = vadd.f32 0.0, %v6311
    %v6313 = vpop.f32.mrb[0].mxu0
    %v6314 = vpop.f32.mrb[0].mxu0
    %v6315 = vpop.f32.mrb[0].mxu0
    %6316 = vdwg.mxu0
    %v6318 = vsel %vm739, %v5627, 0
    %v6321 = vsel %vm739, %v6219, 0
    %6323 = vmatprep.subr.bf16.mxu0 0
    %6324 = vmatpush1.bf16.xpose.msra.mxu0 %v6321
    %6325 = vmatprep.subr.bf16.mxu0 0
    %6326 = vmatpush1.bf16.xpose.msra.mxu0 0
    %6327 = vmatprep.subr.bf16.mxu0 0
    %6328 = vmatpush1.bf16.xpose.msra.mxu0 0
    %6329 = vmatprep.subr.bf16.mxu0 0
    %6330 = vmatpush1.bf16.xpose.msra.mxu0 0
    %6331 = vmatprep.subr.bf16.mxu0 0
    %6332 = vmatpush1.bf16.xpose.msra.mxu0 0
    %6333 = vmatprep.subr.bf16.mxu0 0
    %6334 = vmatpush1.bf16.xpose.msra.mxu0 0
    %6335 = vmatprep.subr.bf16.mxu0 0
    %6336 = vmatpush1.bf16.xpose.msra.mxu0 0
    %6337 = vmatprep.subr.bf16.mxu0 0
    %6338 = vmatpush1.bf16.xpose.msra.mxu0 0
    %6339 = vmatprep.subr.bf16.mxu0 0
    %6340 = vmatpush1.bf16.xpose.msra.mxu0 0
    %6341 = vmatprep.subr.bf16.mxu0 0
    %6342 = vmatpush1.bf16.xpose.msra.mxu0 0
    %6343 = vmatprep.subr.bf16.mxu0 0
    %6344 = vmatpush1.bf16.xpose.msra.mxu0 0
    %6345 = vmatprep.subr.bf16.mxu0 0
    %6346 = vmatpush1.bf16.xpose.msra.mxu0 0
    %6347 = vmatprep.subr.bf16.mxu0 0
    %6348 = vmatpush1.bf16.xpose.msra.mxu0 0
    %6349 = vmatprep.subr.bf16.mxu0 0
    %6350 = vmatpush1.bf16.xpose.msra.mxu0 0
    %6351 = vmatprep.subr.bf16.mxu0 0
    %6352 = vmatpush1.bf16.xpose.msra.mxu0 0
    %6353 = vmatprep.subr.bf16.mxu0 0
    %6354 = vmatpush1.bf16.xpose.msra.mxu0 0
    %6355 = vmatprep.mubr.bf16.mxu0 0
    %6356 = vmatmul.mubr.bf16.gmra.mrb[0].mxu0 %v6318
    %v6357 = vpop.f32.mrb[0].mxu0
    %v6358 = vadd.f32 0.0, %v6357
    %v6359 = vpop.f32.mrb[0].mxu0
    %v6360 = vpop.f32.mrb[0].mxu0
    %v6361 = vpop.f32.mrb[0].mxu0
    %6362 = vdwg.mxu0
    %v6364 = vsel %vm739, %v5628, 0
    %v6367 = vsel %vm739, %v6220, 0
    %6369 = vmatprep.subr.bf16.mxu0 0
    %6370 = vmatpush1.bf16.xpose.msra.mxu0 %v6367
    %6371 = vmatprep.subr.bf16.mxu0 0
    %6372 = vmatpush1.bf16.xpose.msra.mxu0 0
    %6373 = vmatprep.subr.bf16.mxu0 0
    %6374 = vmatpush1.bf16.xpose.msra.mxu0 0
    %6375 = vmatprep.subr.bf16.mxu0 0
    %6376 = vmatpush1.bf16.xpose.msra.mxu0 0
    %6377 = vmatprep.subr.bf16.mxu0 0
    %6378 = vmatpush1.bf16.xpose.msra.mxu0 0
    %6379 = vmatprep.subr.bf16.mxu0 0
    %6380 = vmatpush1.bf16.xpose.msra.mxu0 0
    %6381 = vmatprep.subr.bf16.mxu0 0
    %6382 = vmatpush1.bf16.xpose.msra.mxu0 0
    %6383 = vmatprep.subr.bf16.mxu0 0
    %6384 = vmatpush1.bf16.xpose.msra.mxu0 0
    %6385 = vmatprep.subr.bf16.mxu0 0
    %6386 = vmatpush1.bf16.xpose.msra.mxu0 0
    %6387 = vmatprep.subr.bf16.mxu0 0
    %6388 = vmatpush1.bf16.xpose.msra.mxu0 0
    %6389 = vmatprep.subr.bf16.mxu0 0
    %6390 = vmatpush1.bf16.xpose.msra.mxu0 0
    %6391 = vmatprep.subr.bf16.mxu0 0
    %6392 = vmatpush1.bf16.xpose.msra.mxu0 0
    %6393 = vmatprep.subr.bf16.mxu0 0
    %6394 = vmatpush1.bf16.xpose.msra.mxu0 0
    %6395 = vmatprep.subr.bf16.mxu0 0
    %6396 = vmatpush1.bf16.xpose.msra.mxu0 0
    %6397 = vmatprep.subr.bf16.mxu0 0
    %6398 = vmatpush1.bf16.xpose.msra.mxu0 0
    %6399 = vmatprep.subr.bf16.mxu0 0
    %6400 = vmatpush1.bf16.xpose.msra.mxu0 0
    %6401 = vmatprep.mubr.bf16.mxu0 0
    %6402 = vmatmul.mubr.bf16.gmra.mrb[0].mxu0 %v6364
    %v6403 = vpop.f32.mrb[0].mxu0
    %v6404 = vadd.f32 0.0, %v6403
    %v6405 = vpop.f32.mrb[0].mxu0
    %v6406 = vpop.f32.mrb[0].mxu0
    %v6407 = vpop.f32.mrb[0].mxu0
    %6408 = vdwg.mxu0
    %v6410 = vsel %vm739, %v5629, 0
    %v6413 = vsel %vm739, %v6221, 0
    %6415 = vmatprep.subr.bf16.mxu0 0
    %6416 = vmatpush1.bf16.xpose.msra.mxu0 %v6413
    %6417 = vmatprep.subr.bf16.mxu0 0
    %6418 = vmatpush1.bf16.xpose.msra.mxu0 0
    %6419 = vmatprep.subr.bf16.mxu0 0
    %6420 = vmatpush1.bf16.xpose.msra.mxu0 0
    %6421 = vmatprep.subr.bf16.mxu0 0
    %6422 = vmatpush1.bf16.xpose.msra.mxu0 0
    %6423 = vmatprep.subr.bf16.mxu0 0
    %6424 = vmatpush1.bf16.xpose.msra.mxu0 0
    %6425 = vmatprep.subr.bf16.mxu0 0
    %6426 = vmatpush1.bf16.xpose.msra.mxu0 0
    %6427 = vmatprep.subr.bf16.mxu0 0
    %6428 = vmatpush1.bf16.xpose.msra.mxu0 0
    %6429 = vmatprep.subr.bf16.mxu0 0
    %6430 = vmatpush1.bf16.xpose.msra.mxu0 0
    %6431 = vmatprep.subr.bf16.mxu0 0
    %6432 = vmatpush1.bf16.xpose.msra.mxu0 0
    %6433 = vmatprep.subr.bf16.mxu0 0
    %6434 = vmatpush1.bf16.xpose.msra.mxu0 0
    %6435 = vmatprep.subr.bf16.mxu0 0
    %6436 = vmatpush1.bf16.xpose.msra.mxu0 0
    %6437 = vmatprep.subr.bf16.mxu0 0
    %6438 = vmatpush1.bf16.xpose.msra.mxu0 0
    %6439 = vmatprep.subr.bf16.mxu0 0
    %6440 = vmatpush1.bf16.xpose.msra.mxu0 0
    %6441 = vmatprep.subr.bf16.mxu0 0
    %6442 = vmatpush1.bf16.xpose.msra.mxu0 0
    %6443 = vmatprep.subr.bf16.mxu0 0
    %6444 = vmatpush1.bf16.xpose.msra.mxu0 0
    %6445 = vmatprep.subr.bf16.mxu0 0
    %6446 = vmatpush1.bf16.xpose.msra.mxu0 0
    %6447 = vmatprep.mubr.bf16.mxu0 0
    %6448 = vmatmul.mubr.bf16.gmra.mrb[0].mxu0 %v6410
    %v6449 = vpop.f32.mrb[0].mxu0
    %v6450 = vadd.f32 0.0, %v6449
    %v6451 = vpop.f32.mrb[0].mxu0
    %v6452 = vpop.f32.mrb[0].mxu0
    %v6453 = vpop.f32.mrb[0].mxu0
    %6454 = vdwg.mxu0
    %v6456 = vsel %vm739, %v5630, 0
    %v6459 = vsel %vm739, %v6222, 0
    %6461 = vmatprep.subr.bf16.mxu0 0
    %6462 = vmatpush1.bf16.xpose.msra.mxu0 %v6459
    %6463 = vmatprep.subr.bf16.mxu0 0
    %6464 = vmatpush1.bf16.xpose.msra.mxu0 0
    %6465 = vmatprep.subr.bf16.mxu0 0
    %6466 = vmatpush1.bf16.xpose.msra.mxu0 0
    %6467 = vmatprep.subr.bf16.mxu0 0
    %6468 = vmatpush1.bf16.xpose.msra.mxu0 0
    %6469 = vmatprep.subr.bf16.mxu0 0
    %6470 = vmatpush1.bf16.xpose.msra.mxu0 0
    %6471 = vmatprep.subr.bf16.mxu0 0
    %6472 = vmatpush1.bf16.xpose.msra.mxu0 0
    %6473 = vmatprep.subr.bf16.mxu0 0
    %6474 = vmatpush1.bf16.xpose.msra.mxu0 0
    %6475 = vmatprep.subr.bf16.mxu0 0
    %6476 = vmatpush1.bf16.xpose.msra.mxu0 0
    %6477 = vmatprep.subr.bf16.mxu0 0
    %6478 = vmatpush1.bf16.xpose.msra.mxu0 0
    %6479 = vmatprep.subr.bf16.mxu0 0
    %6480 = vmatpush1.bf16.xpose.msra.mxu0 0
    %6481 = vmatprep.subr.bf16.mxu0 0
    %6482 = vmatpush1.bf16.xpose.msra.mxu0 0
    %6483 = vmatprep.subr.bf16.mxu0 0
    %6484 = vmatpush1.bf16.xpose.msra.mxu0 0
    %6485 = vmatprep.subr.bf16.mxu0 0
    %6486 = vmatpush1.bf16.xpose.msra.mxu0 0
    %6487 = vmatprep.subr.bf16.mxu0 0
    %6488 = vmatpush1.bf16.xpose.msra.mxu0 0
    %6489 = vmatprep.subr.bf16.mxu0 0
    %6490 = vmatpush1.bf16.xpose.msra.mxu0 0
    %6491 = vmatprep.subr.bf16.mxu0 0
    %6492 = vmatpush1.bf16.xpose.msra.mxu0 0
    %6493 = vmatprep.mubr.bf16.mxu0 0
    %6494 = vmatmul.mubr.bf16.gmra.mrb[0].mxu0 %v6456
    %v6495 = vpop.f32.mrb[0].mxu0
    %v6496 = vadd.f32 0.0, %v6495
    %v6497 = vpop.f32.mrb[0].mxu0
    %v6498 = vpop.f32.mrb[0].mxu0
    %v6499 = vpop.f32.mrb[0].mxu0
    %6500 = vdwg.mxu0
    %v6502 = vsel %vm739, %v5631, 0
    %v6505 = vsel %vm739, %v6223, 0
    %6507 = vmatprep.subr.bf16.mxu0 0
    %6508 = vmatpush1.bf16.xpose.msra.mxu0 %v6505
    %6509 = vmatprep.subr.bf16.mxu0 0
    %6510 = vmatpush1.bf16.xpose.msra.mxu0 0
    %6511 = vmatprep.subr.bf16.mxu0 0
    %6512 = vmatpush1.bf16.xpose.msra.mxu0 0
    %6513 = vmatprep.subr.bf16.mxu0 0
    %6514 = vmatpush1.bf16.xpose.msra.mxu0 0
    %6515 = vmatprep.subr.bf16.mxu0 0
    %6516 = vmatpush1.bf16.xpose.msra.mxu0 0
    %6517 = vmatprep.subr.bf16.mxu0 0
    %6518 = vmatpush1.bf16.xpose.msra.mxu0 0
    %6519 = vmatprep.subr.bf16.mxu0 0
    %6520 = vmatpush1.bf16.xpose.msra.mxu0 0
    %6521 = vmatprep.subr.bf16.mxu0 0
    %6522 = vmatpush1.bf16.xpose.msra.mxu0 0
    %6523 = vmatprep.subr.bf16.mxu0 0
    %6524 = vmatpush1.bf16.xpose.msra.mxu0 0
    %6525 = vmatprep.subr.bf16.mxu0 0
    %6526 = vmatpush1.bf16.xpose.msra.mxu0 0
    %6527 = vmatprep.subr.bf16.mxu0 0
    %6528 = vmatpush1.bf16.xpose.msra.mxu0 0
    %6529 = vmatprep.subr.bf16.mxu0 0
    %6530 = vmatpush1.bf16.xpose.msra.mxu0 0
    %6531 = vmatprep.subr.bf16.mxu0 0
    %6532 = vmatpush1.bf16.xpose.msra.mxu0 0
    %6533 = vmatprep.subr.bf16.mxu0 0
    %6534 = vmatpush1.bf16.xpose.msra.mxu0 0
    %6535 = vmatprep.subr.bf16.mxu0 0
    %6536 = vmatpush1.bf16.xpose.msra.mxu0 0
    %6537 = vmatprep.subr.bf16.mxu0 0
    %6538 = vmatpush1.bf16.xpose.msra.mxu0 0
    %6539 = vmatprep.mubr.bf16.mxu0 0
    %6540 = vmatmul.mubr.bf16.gmra.mrb[0].mxu0 %v6502
    %v6541 = vpop.f32.mrb[0].mxu0
    %v6542 = vadd.f32 0.0, %v6541
    %v6543 = vpop.f32.mrb[0].mxu0
    %v6544 = vpop.f32.mrb[0].mxu0
    %v6545 = vpop.f32.mrb[0].mxu0
    %6546 = vdwg.mxu0
    %v6548 = vsel %vm739, %v5632, 0
    %v6551 = vsel %vm739, %v6224, 0
    %6553 = vmatprep.subr.bf16.mxu0 0
    %6554 = vmatpush1.bf16.xpose.msra.mxu0 %v6551
    %6555 = vmatprep.subr.bf16.mxu0 0
    %6556 = vmatpush1.bf16.xpose.msra.mxu0 0
    %6557 = vmatprep.subr.bf16.mxu0 0
    %6558 = vmatpush1.bf16.xpose.msra.mxu0 0
    %6559 = vmatprep.subr.bf16.mxu0 0
    %6560 = vmatpush1.bf16.xpose.msra.mxu0 0
    %6561 = vmatprep.subr.bf16.mxu0 0
    %6562 = vmatpush1.bf16.xpose.msra.mxu0 0
    %6563 = vmatprep.subr.bf16.mxu0 0
    %6564 = vmatpush1.bf16.xpose.msra.mxu0 0
    %6565 = vmatprep.subr.bf16.mxu0 0
    %6566 = vmatpush1.bf16.xpose.msra.mxu0 0
    %6567 = vmatprep.subr.bf16.mxu0 0
    %6568 = vmatpush1.bf16.xpose.msra.mxu0 0
    %6569 = vmatprep.subr.bf16.mxu0 0
    %6570 = vmatpush1.bf16.xpose.msra.mxu0 0
    %6571 = vmatprep.subr.bf16.mxu0 0
    %6572 = vmatpush1.bf16.xpose.msra.mxu0 0
    %6573 = vmatprep.subr.bf16.mxu0 0
    %6574 = vmatpush1.bf16.xpose.msra.mxu0 0
    %6575 = vmatprep.subr.bf16.mxu0 0
    %6576 = vmatpush1.bf16.xpose.msra.mxu0 0
    %6577 = vmatprep.subr.bf16.mxu0 0
    %6578 = vmatpush1.bf16.xpose.msra.mxu0 0
    %6579 = vmatprep.subr.bf16.mxu0 0
    %6580 = vmatpush1.bf16.xpose.msra.mxu0 0
    %6581 = vmatprep.subr.bf16.mxu0 0
    %6582 = vmatpush1.bf16.xpose.msra.mxu0 0
    %6583 = vmatprep.subr.bf16.mxu0 0
    %6584 = vmatpush1.bf16.xpose.msra.mxu0 0
    %6585 = vmatprep.mubr.bf16.mxu0 0
    %6586 = vmatmul.mubr.bf16.gmra.mrb[0].mxu0 %v6548
    %v6587 = vpop.f32.mrb[0].mxu0
    %v6588 = vadd.f32 0.0, %v6587
    %v6589 = vpop.f32.mrb[0].mxu0
    %v6590 = vpop.f32.mrb[0].mxu0
    %v6591 = vpop.f32.mrb[0].mxu0
    %6592 = vdwg.mxu0
    %6593 = vxpose.xlu0.b32.start [1/16] %v6266, 128
    %6594 = vxpose.xlu0.b32.cont [2/16] %v6312, 128
    %6595 = vxpose.xlu0.b32.cont [3/16] %v6358, 128
    %6596 = vxpose.xlu0.b32.cont [4/16] %v6404, 128
    %6597 = vxpose.xlu0.b32.cont [5/16] 0.0, 128
    %6598 = vxpose.xlu0.b32.cont [6/16] 0.0, 128
    %6599 = vxpose.xlu0.b32.cont [7/16] 0.0, 128
    %6600 = vxpose.xlu0.b32.cont [8/16] 0.0, 128
    %6601 = vxpose.xlu0.b32.cont [9/16] 0.0, 128
    %6602 = vxpose.xlu0.b32.cont [10/16] 0.0, 128
    %6603 = vxpose.xlu0.b32.cont [11/16] 0.0, 128
    %6604 = vxpose.xlu0.b32.cont [12/16] 0.0, 128
    %6605 = vxpose.xlu0.b32.cont [13/16] 0.0, 128
    %6606 = vxpose.xlu0.b32.cont [14/16] 0.0, 128
    %6607 = vxpose.xlu0.b32.cont [15/16] 0.0, 128
    %6608 = vxpose.xlu0.b32.end [16/16] 0.0, 128
    %v6609 = vpop.trf.xlu0
    %v6610 = vpop.trf.xlu0
    %v6611 = vpop.trf.xlu0
    %v6612 = vpop.trf.xlu0
    %v6613 = vpop.trf.xlu0
    %v6614 = vpop.trf.xlu0
    %v6615 = vpop.trf.xlu0
    %v6616 = vpop.trf.xlu0
    %v6617 = vpop.trf.xlu0
    %v6618 = vpop.trf.xlu0
    %v6619 = vpop.trf.xlu0
    %v6620 = vpop.trf.xlu0
    %v6621 = vpop.trf.xlu0
    %v6622 = vpop.trf.xlu0
    %v6623 = vpop.trf.xlu0
    %v6624 = vpop.trf.xlu0
    %6625 = vxpose.xlu0.b32.start [1/16] %v6450, 128
    %6626 = vxpose.xlu0.b32.cont [2/16] %v6496, 128
    %6627 = vxpose.xlu0.b32.cont [3/16] %v6542, 128
    %6628 = vxpose.xlu0.b32.cont [4/16] %v6588, 128
    %6629 = vxpose.xlu0.b32.cont [5/16] 0.0, 128
    %6630 = vxpose.xlu0.b32.cont [6/16] 0.0, 128
    %6631 = vxpose.xlu0.b32.cont [7/16] 0.0, 128
    %6632 = vxpose.xlu0.b32.cont [8/16] 0.0, 128
    %6633 = vxpose.xlu0.b32.cont [9/16] 0.0, 128
    %6634 = vxpose.xlu0.b32.cont [10/16] 0.0, 128
    %6635 = vxpose.xlu0.b32.cont [11/16] 0.0, 128
    %6636 = vxpose.xlu0.b32.cont [12/16] 0.0, 128
    %6637 = vxpose.xlu0.b32.cont [13/16] 0.0, 128
    %6638 = vxpose.xlu0.b32.cont [14/16] 0.0, 128
    %6639 = vxpose.xlu0.b32.cont [15/16] 0.0, 128
    %6640 = vxpose.xlu0.b32.end [16/16] 0.0, 128
    %v6641 = vpop.trf.xlu0
    %v6642 = vpop.trf.xlu0
    %v6643 = vpop.trf.xlu0
    %v6644 = vpop.trf.xlu0
    %v6645 = vpop.trf.xlu0
    %v6646 = vpop.trf.xlu0
    %v6647 = vpop.trf.xlu0
    %v6648 = vpop.trf.xlu0
    %v6649 = vpop.trf.xlu0
    %v6650 = vpop.trf.xlu0
    %v6651 = vpop.trf.xlu0
    %v6652 = vpop.trf.xlu0
    %v6653 = vpop.trf.xlu0
    %v6654 = vpop.trf.xlu0
    %v6655 = vpop.trf.xlu0
    %v6656 = vpop.trf.xlu0
    %v6657 = vpack.c.bf16 %v6641, %v6609
    %v6659 = vlaneseq
    %v6660 = vshrl.u32 %v6659, 7
    %v6661 = vsub.s32 0, %v6660
    %v6662 = vrot.slane %v5280, %v6661
    %v6668 = vunpack.c.l.b16 %v5276
    %v6669 = vunpack.c.l.b16 %v5277
    %v6670 = vunpack.c.l.b16 %v5278
    %v6671 = vunpack.c.l.b16 %v5279
    %v6672 = vpack.c.b16 %v6669, %v6668
    %v6673 = vpack.c.b16 %v6671, %v6670
    %v6677 = vsel %vm446, %v6657, 0
    %6679 = vmatprep.subr.bf16.mxu0 0
    %6680 = vmatpush1.bf16.msra.mxu0 %v6672
    %6681 = vmatprep.subr.bf16.mxu0 0
    %6682 = vmatpush1.bf16.msra.mxu0 %v6673
    %6683 = vmatprep.subr.bf16.mxu0 0
    %6684 = vmatpush1.bf16.msra.mxu0 0
    %6685 = vmatprep.subr.bf16.mxu0 0
    %6686 = vmatpush1.bf16.msra.mxu0 0
    %6687 = vmatprep.subr.bf16.mxu0 0
    %6688 = vmatpush1.bf16.msra.mxu0 0
    %6689 = vmatprep.subr.bf16.mxu0 0
    %6690 = vmatpush1.bf16.msra.mxu0 0
    %6691 = vmatprep.subr.bf16.mxu0 0
    %6692 = vmatpush1.bf16.msra.mxu0 0
    %6693 = vmatprep.subr.bf16.mxu0 0
    %6694 = vmatpush1.bf16.msra.mxu0 0
    %6695 = vmatprep.subr.bf16.mxu0 0
    %6696 = vmatpush1.bf16.msra.mxu0 0
    %6697 = vmatprep.subr.bf16.mxu0 0
    %6698 = vmatpush1.bf16.msra.mxu0 0
    %6699 = vmatprep.subr.bf16.mxu0 0
    %6700 = vmatpush1.bf16.msra.mxu0 0
    %6701 = vmatprep.subr.bf16.mxu0 0
    %6702 = vmatpush1.bf16.msra.mxu0 0
    %6703 = vmatprep.subr.bf16.mxu0 0
    %6704 = vmatpush1.bf16.msra.mxu0 0
    %6705 = vmatprep.subr.bf16.mxu0 0
    %6706 = vmatpush1.bf16.msra.mxu0 0
    %6707 = vmatprep.subr.bf16.mxu0 0
    %6708 = vmatpush1.bf16.msra.mxu0 0
    %6709 = vmatprep.subr.bf16.mxu0 0
    %6710 = vmatpush1.bf16.msra.mxu0 0
    %6711 = vmatprep.mubr.bf16.mxu0 0
    %6712 = vmatmul.mubr.bf16.gmra.mrb[0].mxu0 %v6677
    %v6713 = vpop.f32.mrb[0].mxu0
    %v6714 = vadd.f32 %v6662, %v6713
    %v6715 = vpop.f32.mrb[0].mxu0
    %v6716 = vpop.f32.mrb[0].mxu0
    %v6717 = vadd.f32 %v6662, %v6716
    %v6718 = vpop.f32.mrb[0].mxu0
    %6719 = vdwg.mxu0
    %v6720 = vadd.f32 %v5264, %v6714
    %v6721 = vadd.f32 %v5265, %v6717
    %s6722 = scalar_lea.vmem [#allocation21], 2
    %v6723 = vld [vmem:[%s6722] sm:$0x3]
    %v6724 = vsel %vm446, %v6720, 0.0
    %6725 = vadd.xlane.f32.xlu0 %v6724
    %v6726 = vpop.xlane.xlu0 %6725
    %v6727 = vsel %vm446, %v6721, 0.0
    %6728 = vadd.xlane.f32.xlu0 %v6727
    %v6729 = vpop.xlane.xlu0 %6728
    %v6730 = vmul.f32 %v6726, %v1820
    %v6731 = vmul.f32 %v6729, %v1820
    %v6732 = vsub.f32 %v6720, %v6730
    %v6733 = vsub.f32 %v6721, %v6731
    %v6734 = vmul.f32 %v6732, %v6732
    %v6735 = vmul.f32 %v6733, %v6733
    %v6736 = vsel %vm446, %v6734, 0.0
    %6737 = vadd.xlane.f32.xlu0 %v6736
    %v6738 = vpop.xlane.xlu0 %6737
    %v6739 = vsel %vm446, %v6735, 0.0
    %6740 = vadd.xlane.f32.xlu0 %v6739
    %v6741 = vpop.xlane.xlu0 %6740
    %v6742 = vmul.f32 %v6738, %v1820
    %v6743 = vmul.f32 %v6741, %v1820
    %v6744 = vadd.f32 %v6742, 1e-05
    %v6745 = vadd.f32 %v6743, 1e-05
    %v6746 = vrsqrt.pop %v6744
    %v6747 = vrsqrt.pop %v6745
    %v6748 = vmul.f32 %v6732, %v6746
    %v6749 = vmul.f32 %v6733, %v6747
    %v6750 = vlaneseq
    %v6751 = vshrl.u32 %v6750, 7
    %v6752 = vsub.s32 0, %v6751
    %v6753 = vrot.slane %v6723, %v6752
    %v6754 = vmul.f32 %v6748, %v6753
    %v6755 = vmul.f32 %v6749, %v6753
    %v6756 = vlaneseq
    %v6757 = vshrl.u32 %v6756, 7
    %v6758 = vsub.s32 1, %v6757
    %v6759 = vrot.slane %v6723, %v6758
    %v6760 = vadd.f32 %v6754, %v6759
    %v6761 = vadd.f32 %v6755, %v6759
    %v6762 = vld [vmem:[%s47] sm:$0xf]
    %v6763 = vld [vmem:[%s47 + $0x4] sm:$0xf]
    %v6764 = vld [vmem:[%s47 + $0x8] sm:$0xf]
    %v6765 = vld [vmem:[%s47 + $0xc] sm:$0xf]
    %v6766 = vld [vmem:[#allocation18] sm:$0x1]
    %v6767 = vld [vmem:[%s51] sm:$0xf]
    %v6768 = vld [vmem:[%s51 + $0x4] sm:$0xf]
    %v6769 = vld [vmem:[%s51 + $0x8] sm:$0xf]
    %v6770 = vld [vmem:[%s51 + $0xc] sm:$0xf]
    %v6771 = vld [vmem:[%s51 + $0x10] sm:$0xf]
    %v6772 = vld [vmem:[%s51 + $0x14] sm:$0xf]
    %v6773 = vld [vmem:[%s51 + $0x18] sm:$0xf]
    %v6774 = vld [vmem:[%s51 + $0x1c] sm:$0xf]
    %v6775 = vld [vmem:[#allocation19] sm:$0x1]
    %v6776 = vpack.c.bf16 %v6761, %v6760
    %v6778 = vlaneseq
    %v6779 = vshrl.u32 %v6778, 7
    %v6780 = vsub.s32 0, %v6779
    %v6781 = vrot.slane %v6766, %v6780
    %v6787 = vunpack.c.l.b16 %v6762
    %v6788 = vunpack.c.l.b16 %v6763
    %v6789 = vunpack.c.l.b16 %v6764
    %v6790 = vunpack.c.l.b16 %v6765
    %v6791 = vpack.c.b16 %v6788, %v6787
    %v6792 = vpack.c.b16 %v6790, %v6789
    %v6796 = vsel %vm446, %v6776, 0
    %6798 = vmatprep.subr.bf16.mxu0 0
    %6799 = vmatpush1.bf16.msra.mxu0 %v6791
    %6800 = vmatprep.subr.bf16.mxu0 0
    %6801 = vmatpush1.bf16.msra.mxu0 %v6792
    %6802 = vmatprep.subr.bf16.mxu0 0
    %6803 = vmatpush1.bf16.msra.mxu0 0
    %6804 = vmatprep.subr.bf16.mxu0 0
    %6805 = vmatpush1.bf16.msra.mxu0 0
    %6806 = vmatprep.subr.bf16.mxu0 0
    %6807 = vmatpush1.bf16.msra.mxu0 0
    %6808 = vmatprep.subr.bf16.mxu0 0
    %6809 = vmatpush1.bf16.msra.mxu0 0
    %6810 = vmatprep.subr.bf16.mxu0 0
    %6811 = vmatpush1.bf16.msra.mxu0 0
    %6812 = vmatprep.subr.bf16.mxu0 0
    %6813 = vmatpush1.bf16.msra.mxu0 0
    %6814 = vmatprep.subr.bf16.mxu0 0
    %6815 = vmatpush1.bf16.msra.mxu0 0
    %6816 = vmatprep.subr.bf16.mxu0 0
    %6817 = vmatpush1.bf16.msra.mxu0 0
    %6818 = vmatprep.subr.bf16.mxu0 0
    %6819 = vmatpush1.bf16.msra.mxu0 0
    %6820 = vmatprep.subr.bf16.mxu0 0
    %6821 = vmatpush1.bf16.msra.mxu0 0
    %6822 = vmatprep.subr.bf16.mxu0 0
    %6823 = vmatpush1.bf16.msra.mxu0 0
    %6824 = vmatprep.subr.bf16.mxu0 0
    %6825 = vmatpush1.bf16.msra.mxu0 0
    %6826 = vmatprep.subr.bf16.mxu0 0
    %6827 = vmatpush1.bf16.msra.mxu0 0
    %6828 = vmatprep.subr.bf16.mxu0 0
    %6829 = vmatpush1.bf16.msra.mxu0 0
    %6830 = vmatprep.mubr.bf16.mxu0 0
    %6831 = vmatmul.mubr.bf16.gmra.mrb[0].mxu0 %v6796
    %v6832 = vpop.f32.mrb[0].mxu0
    %v6833 = vadd.f32 %v6781, %v6832
    %v6834 = vpop.f32.mrb[0].mxu0
    %v6835 = vpop.f32.mrb[0].mxu0
    %v6836 = vadd.f32 %v6781, %v6835
    %v6837 = vpop.f32.mrb[0].mxu0
    %6838 = vdwg.mxu0
    %v6839 = vmax.f32 %v6833, 0.0
    %v6840 = vmax.f32 %v6836, 0.0
    %v6841 = vpack.c.bf16 %v6840, %v6839
    %v6843 = vlaneseq
    %v6844 = vshrl.u32 %v6843, 7
    %v6845 = vsub.s32 0, %v6844
    %v6846 = vrot.slane %v6775, %v6845
    %v6856 = vunpack.c.l.b16 %v6767
    %v6857 = vunpack.c.l.b16 %v6768
    %v6858 = vunpack.c.l.b16 %v6769
    %v6859 = vunpack.c.l.b16 %v6770
    %v6860 = vunpack.c.l.b16 %v6771
    %v6861 = vunpack.c.l.b16 %v6772
    %v6862 = vunpack.c.l.b16 %v6773
    %v6863 = vunpack.c.l.b16 %v6774
    %v6864 = vpack.c.b16 %v6857, %v6856
    %v6865 = vpack.c.b16 %v6859, %v6858
    %v6866 = vpack.c.b16 %v6861, %v6860
    %v6867 = vpack.c.b16 %v6863, %v6862
    %v6873 = vsel %vm1963, %v6841, 0
    %6875 = vmatprep.subr.bf16.mxu0 0
    %6876 = vmatpush1.bf16.msra.mxu0 %v6864
    %6877 = vmatprep.subr.bf16.mxu0 0
    %6878 = vmatpush1.bf16.msra.mxu0 %v6865
    %6879 = vmatprep.subr.bf16.mxu0 0
    %6880 = vmatpush1.bf16.msra.mxu0 %v6866
    %6881 = vmatprep.subr.bf16.mxu0 0
    %6882 = vmatpush1.bf16.msra.mxu0 %v6867
    %6883 = vmatprep.subr.bf16.mxu0 0
    %6884 = vmatpush1.bf16.msra.mxu0 0
    %6885 = vmatprep.subr.bf16.mxu0 0
    %6886 = vmatpush1.bf16.msra.mxu0 0
    %6887 = vmatprep.subr.bf16.mxu0 0
    %6888 = vmatpush1.bf16.msra.mxu0 0
    %6889 = vmatprep.subr.bf16.mxu0 0
    %6890 = vmatpush1.bf16.msra.mxu0 0
    %6891 = vmatprep.subr.bf16.mxu0 0
    %6892 = vmatpush1.bf16.msra.mxu0 0
    %6893 = vmatprep.subr.bf16.mxu0 0
    %6894 = vmatpush1.bf16.msra.mxu0 0
    %6895 = vmatprep.subr.bf16.mxu0 0
    %6896 = vmatpush1.bf16.msra.mxu0 0
    %6897 = vmatprep.subr.bf16.mxu0 0
    %6898 = vmatpush1.bf16.msra.mxu0 0
    %6899 = vmatprep.subr.bf16.mxu0 0
    %6900 = vmatpush1.bf16.msra.mxu0 0
    %6901 = vmatprep.subr.bf16.mxu0 0
    %6902 = vmatpush1.bf16.msra.mxu0 0
    %6903 = vmatprep.subr.bf16.mxu0 0
    %6904 = vmatpush1.bf16.msra.mxu0 0
    %6905 = vmatprep.subr.bf16.mxu0 0
    %6906 = vmatpush1.bf16.msra.mxu0 0
    %6907 = vmatprep.mubr.bf16.mxu0 0
    %6908 = vmatmul.mubr.bf16.gmra.mrb[0].mxu0 %v6873
    %v6909 = vpop.f32.mrb[0].mxu0
    %v6910 = vadd.f32 %v6846, %v6909
    %v6911 = vpop.f32.mrb[0].mxu0
    %v6912 = vpop.f32.mrb[0].mxu0
    %v6913 = vadd.f32 %v6846, %v6912
    %v6914 = vpop.f32.mrb[0].mxu0
    %6915 = vdwg.mxu0
    %v6916 = vadd.f32 %v6760, %v6910
    %v6917 = vadd.f32 %v6761, %v6913
    %s6918 = scalar_lea.vmem [#allocation21], 4
    %v6919 = vld [vmem:[%s6918] sm:$0x3]
    %v6920 = vsel %vm446, %v6916, 0.0
    %6921 = vadd.xlane.f32.xlu0 %v6920
    %v6922 = vpop.xlane.xlu0 %6921
    %v6923 = vsel %vm446, %v6917, 0.0
    %6924 = vadd.xlane.f32.xlu0 %v6923
    %v6925 = vpop.xlane.xlu0 %6924
    %v6926 = vmul.f32 %v6922, %v1820
    %v6927 = vmul.f32 %v6925, %v1820
    %v6928 = vsub.f32 %v6916, %v6926
    %v6929 = vsub.f32 %v6917, %v6927
    %v6930 = vmul.f32 %v6928, %v6928
    %v6931 = vmul.f32 %v6929, %v6929
    %v6932 = vsel %vm446, %v6930, 0.0
    %6933 = vadd.xlane.f32.xlu0 %v6932
    %v6934 = vpop.xlane.xlu0 %6933
    %v6935 = vsel %vm446, %v6931, 0.0
    %6936 = vadd.xlane.f32.xlu0 %v6935
    %v6937 = vpop.xlane.xlu0 %6936
    %v6938 = vmul.f32 %v6934, %v1820
    %v6939 = vmul.f32 %v6937, %v1820
    %v6940 = vadd.f32 %v6938, 1e-05
    %v6941 = vadd.f32 %v6939, 1e-05
    %v6942 = vrsqrt.pop %v6940
    %v6943 = vrsqrt.pop %v6941
    %v6944 = vmul.f32 %v6928, %v6942
    %v6945 = vmul.f32 %v6929, %v6943
    %v6946 = vlaneseq
    %v6947 = vshrl.u32 %v6946, 7
    %v6948 = vsub.s32 0, %v6947
    %v6949 = vrot.slane %v6919, %v6948
    %v6950 = vmul.f32 %v6944, %v6949
    %v6951 = vmul.f32 %v6945, %v6949
    %v6952 = vlaneseq
    %v6953 = vshrl.u32 %v6952, 7
    %v6954 = vsub.s32 1, %v6953
    %v6955 = vrot.slane %v6919, %v6954
    %v6956 = vadd.f32 %v6950, %v6955
    %v6957 = vadd.f32 %v6951, %v6955
    %s6958 = scalar_lea.vmem %s27, 16
    %v6959 = vld [vmem:[%s6958] sm:$0xf]
    %v6960 = vld [vmem:[%s6958 + $0x4] sm:$0xf]
    %v6961 = vld [vmem:[%s6958 + $0x8] sm:$0xf]
    %v6962 = vld [vmem:[%s6958 + $0xc] sm:$0xf]
    %s6963 = scalar_lea.vmem [#allocation9], 1
    %v6964 = vld [vmem:[%s6963] sm:$0x1]
    %s6965 = scalar_lea.vmem %s31, 16
    %v6966 = vld [vmem:[%s6965] sm:$0xf]
    %v6967 = vld [vmem:[%s6965 + $0x4] sm:$0xf]
    %v6968 = vld [vmem:[%s6965 + $0x8] sm:$0xf]
    %v6969 = vld [vmem:[%s6965 + $0xc] sm:$0xf]
    %s6970 = scalar_lea.vmem [#allocation10], 1
    %v6971 = vld [vmem:[%s6970] sm:$0x1]
    %v6972 = vpack.c.bf16 %v6957, %v6956
    %v6974 = vlaneseq
    %v6975 = vshrl.u32 %v6974, 7
    %v6976 = vsub.s32 0, %v6975
    %v6977 = vrot.slane %v6964, %v6976
    %v6983 = vunpack.c.l.b16 %v6959
    %v6984 = vunpack.c.l.b16 %v6960
    %v6985 = vunpack.c.l.b16 %v6961
    %v6986 = vunpack.c.l.b16 %v6962
    %v6987 = vpack.c.b16 %v6984, %v6983
    %v6988 = vpack.c.b16 %v6986, %v6985
    %v6992 = vsel %vm446, %v6972, 0
    %6994 = vmatprep.subr.bf16.mxu0 0
    %6995 = vmatpush1.bf16.msra.mxu0 %v6987
    %6996 = vmatprep.subr.bf16.mxu0 0
    %6997 = vmatpush1.bf16.msra.mxu0 %v6988
    %6998 = vmatprep.subr.bf16.mxu0 0
    %6999 = vmatpush1.bf16.msra.mxu0 0
    %7000 = vmatprep.subr.bf16.mxu0 0
    %7001 = vmatpush1.bf16.msra.mxu0 0
    %7002 = vmatprep.subr.bf16.mxu0 0
    %7003 = vmatpush1.bf16.msra.mxu0 0
    %7004 = vmatprep.subr.bf16.mxu0 0
    %7005 = vmatpush1.bf16.msra.mxu0 0
    %7006 = vmatprep.subr.bf16.mxu0 0
    %7007 = vmatpush1.bf16.msra.mxu0 0
    %7008 = vmatprep.subr.bf16.mxu0 0
    %7009 = vmatpush1.bf16.msra.mxu0 0
    %7010 = vmatprep.subr.bf16.mxu0 0
    %7011 = vmatpush1.bf16.msra.mxu0 0
    %7012 = vmatprep.subr.bf16.mxu0 0
    %7013 = vmatpush1.bf16.msra.mxu0 0
    %7014 = vmatprep.subr.bf16.mxu0 0
    %7015 = vmatpush1.bf16.msra.mxu0 0
    %7016 = vmatprep.subr.bf16.mxu0 0
    %7017 = vmatpush1.bf16.msra.mxu0 0
    %7018 = vmatprep.subr.bf16.mxu0 0
    %7019 = vmatpush1.bf16.msra.mxu0 0
    %7020 = vmatprep.subr.bf16.mxu0 0
    %7021 = vmatpush1.bf16.msra.mxu0 0
    %7022 = vmatprep.subr.bf16.mxu0 0
    %7023 = vmatpush1.bf16.msra.mxu0 0
    %7024 = vmatprep.subr.bf16.mxu0 0
    %7025 = vmatpush1.bf16.msra.mxu0 0
    %7026 = vmatprep.mubr.bf16.mxu0 0
    %7027 = vmatmul.mubr.bf16.gmra.mrb[0].mxu0 %v6992
    %v7028 = vpop.f32.mrb[0].mxu0
    %v7029 = vadd.f32 %v6977, %v7028
    %v7030 = vpop.f32.mrb[0].mxu0
    %v7031 = vpop.f32.mrb[0].mxu0
    %v7032 = vadd.f32 %v6977, %v7031
    %v7033 = vpop.f32.mrb[0].mxu0
    %7034 = vdwg.mxu0
    %v7035 = vmul.f32 %v7029, 0.35355338
    %v7036 = vmul.f32 %v7032, 0.35355338
    %7037 = vxpose.xlu0.b32.start [1/16] %v7035, 128
    %7038 = vxpose.xlu0.b32.cont [2/16] 0.0, 128
    %7039 = vxpose.xlu0.b32.cont [3/16] 0.0, 128
    %7040 = vxpose.xlu0.b32.cont [4/16] 0.0, 128
    %7041 = vxpose.xlu0.b32.cont [5/16] 0.0, 128
    %7042 = vxpose.xlu0.b32.cont [6/16] 0.0, 128
    %7043 = vxpose.xlu0.b32.cont [7/16] 0.0, 128
    %7044 = vxpose.xlu0.b32.cont [8/16] 0.0, 128
    %7045 = vxpose.xlu0.b32.cont [9/16] 0.0, 128
    %7046 = vxpose.xlu0.b32.cont [10/16] 0.0, 128
    %7047 = vxpose.xlu0.b32.cont [11/16] 0.0, 128
    %7048 = vxpose.xlu0.b32.cont [12/16] 0.0, 128
    %7049 = vxpose.xlu0.b32.cont [13/16] 0.0, 128
    %7050 = vxpose.xlu0.b32.cont [14/16] 0.0, 128
    %7051 = vxpose.xlu0.b32.cont [15/16] 0.0, 128
    %7052 = vxpose.xlu0.b32.end [16/16] 0.0, 128
    %v7053 = vpop.trf.xlu0
    %v7054 = vpop.trf.xlu0
    %v7055 = vpop.trf.xlu0
    %v7056 = vpop.trf.xlu0
    %v7057 = vpop.trf.xlu0
    %v7058 = vpop.trf.xlu0
    %v7059 = vpop.trf.xlu0
    %v7060 = vpop.trf.xlu0
    %v7061 = vpop.trf.xlu0
    %v7062 = vpop.trf.xlu0
    %v7063 = vpop.trf.xlu0
    %v7064 = vpop.trf.xlu0
    %v7065 = vpop.trf.xlu0
    %v7066 = vpop.trf.xlu0
    %v7067 = vpop.trf.xlu0
    %v7068 = vpop.trf.xlu0
    %7069 = vxpose.xlu0.b32.start [1/16] %v7036, 128
    %7070 = vxpose.xlu0.b32.cont [2/16] 0.0, 128
    %7071 = vxpose.xlu0.b32.cont [3/16] 0.0, 128
    %7072 = vxpose.xlu0.b32.cont [4/16] 0.0, 128
    %7073 = vxpose.xlu0.b32.cont [5/16] 0.0, 128
    %7074 = vxpose.xlu0.b32.cont [6/16] 0.0, 128
    %7075 = vxpose.xlu0.b32.cont [7/16] 0.0, 128
    %7076 = vxpose.xlu0.b32.cont [8/16] 0.0, 128
    %7077 = vxpose.xlu0.b32.cont [9/16] 0.0, 128
    %7078 = vxpose.xlu0.b32.cont [10/16] 0.0, 128
    %7079 = vxpose.xlu0.b32.cont [11/16] 0.0, 128
    %7080 = vxpose.xlu0.b32.cont [12/16] 0.0, 128
    %7081 = vxpose.xlu0.b32.cont [13/16] 0.0, 128
    %7082 = vxpose.xlu0.b32.cont [14/16] 0.0, 128
    %7083 = vxpose.xlu0.b32.cont [15/16] 0.0, 128
    %7084 = vxpose.xlu0.b32.end [16/16] 0.0, 128
    %v7085 = vpop.trf.xlu0
    %v7086 = vpop.trf.xlu0
    %v7087 = vpop.trf.xlu0
    %v7088 = vpop.trf.xlu0
    %v7089 = vpop.trf.xlu0
    %v7090 = vpop.trf.xlu0
    %v7091 = vpop.trf.xlu0
    %v7092 = vpop.trf.xlu0
    %v7093 = vpop.trf.xlu0
    %v7094 = vpop.trf.xlu0
    %v7095 = vpop.trf.xlu0
    %v7096 = vpop.trf.xlu0
    %v7097 = vpop.trf.xlu0
    %v7098 = vpop.trf.xlu0
    %v7099 = vpop.trf.xlu0
    %v7100 = vpop.trf.xlu0
    %v7101 = vpack.c.bf16 %v7053, %v7053
    %v7102 = vpack.c.bf16 %v7054, %v7054
    %v7103 = vpack.c.bf16 %v7055, %v7055
    %v7104 = vpack.c.bf16 %v7056, %v7056
    %v7105 = vpack.c.bf16 %v7085, %v7085
    %v7106 = vpack.c.bf16 %v7086, %v7086
    %v7107 = vpack.c.bf16 %v7087, %v7087
    %v7108 = vpack.c.bf16 %v7088, %v7088
    %7111 = vrot.lane.b32.xlu0 %v7029, 96
    %v7112 = vpop.permute.xlu0 %7111
    %7113 = vrot.lane.b32.xlu0 %v7032, 96
    %v7114 = vpop.permute.xlu0 %7113
    %7117 = vxpose.xlu0.b32.start [1/16] %v7112, 128
    %7118 = vxpose.xlu0.b32.cont [2/16] 0.0, 128
    %7119 = vxpose.xlu0.b32.cont [3/16] 0.0, 128
    %7120 = vxpose.xlu0.b32.cont [4/16] 0.0, 128
    %7121 = vxpose.xlu0.b32.cont [5/16] 0.0, 128
    %7122 = vxpose.xlu0.b32.cont [6/16] 0.0, 128
    %7123 = vxpose.xlu0.b32.cont [7/16] 0.0, 128
    %7124 = vxpose.xlu0.b32.cont [8/16] 0.0, 128
    %7125 = vxpose.xlu0.b32.cont [9/16] 0.0, 128
    %7126 = vxpose.xlu0.b32.cont [10/16] 0.0, 128
    %7127 = vxpose.xlu0.b32.cont [11/16] 0.0, 128
    %7128 = vxpose.xlu0.b32.cont [12/16] 0.0, 128
    %7129 = vxpose.xlu0.b32.cont [13/16] 0.0, 128
    %7130 = vxpose.xlu0.b32.cont [14/16] 0.0, 128
    %7131 = vxpose.xlu0.b32.cont [15/16] 0.0, 128
    %7132 = vxpose.xlu0.b32.end [16/16] 0.0, 128
    %v7133 = vpop.trf.xlu0
    %v7134 = vpop.trf.xlu0
    %v7135 = vpop.trf.xlu0
    %v7136 = vpop.trf.xlu0
    %v7137 = vpop.trf.xlu0
    %v7138 = vpop.trf.xlu0
    %v7139 = vpop.trf.xlu0
    %v7140 = vpop.trf.xlu0
    %v7141 = vpop.trf.xlu0
    %v7142 = vpop.trf.xlu0
    %v7143 = vpop.trf.xlu0
    %v7144 = vpop.trf.xlu0
    %v7145 = vpop.trf.xlu0
    %v7146 = vpop.trf.xlu0
    %v7147 = vpop.trf.xlu0
    %v7148 = vpop.trf.xlu0
    %7149 = vxpose.xlu0.b32.start [1/16] %v7114, 128
    %7150 = vxpose.xlu0.b32.cont [2/16] 0.0, 128
    %7151 = vxpose.xlu0.b32.cont [3/16] 0.0, 128
    %7152 = vxpose.xlu0.b32.cont [4/16] 0.0, 128
    %7153 = vxpose.xlu0.b32.cont [5/16] 0.0, 128
    %7154 = vxpose.xlu0.b32.cont [6/16] 0.0, 128
    %7155 = vxpose.xlu0.b32.cont [7/16] 0.0, 128
    %7156 = vxpose.xlu0.b32.cont [8/16] 0.0, 128
    %7157 = vxpose.xlu0.b32.cont [9/16] 0.0, 128
    %7158 = vxpose.xlu0.b32.cont [10/16] 0.0, 128
    %7159 = vxpose.xlu0.b32.cont [11/16] 0.0, 128
    %7160 = vxpose.xlu0.b32.cont [12/16] 0.0, 128
    %7161 = vxpose.xlu0.b32.cont [13/16] 0.0, 128
    %7162 = vxpose.xlu0.b32.cont [14/16] 0.0, 128
    %7163 = vxpose.xlu0.b32.cont [15/16] 0.0, 128
    %7164 = vxpose.xlu0.b32.end [16/16] 0.0, 128
    %v7165 = vpop.trf.xlu0
    %v7166 = vpop.trf.xlu0
    %v7167 = vpop.trf.xlu0
    %v7168 = vpop.trf.xlu0
    %v7169 = vpop.trf.xlu0
    %v7170 = vpop.trf.xlu0
    %v7171 = vpop.trf.xlu0
    %v7172 = vpop.trf.xlu0
    %v7173 = vpop.trf.xlu0
    %v7174 = vpop.trf.xlu0
    %v7175 = vpop.trf.xlu0
    %v7176 = vpop.trf.xlu0
    %v7177 = vpop.trf.xlu0
    %v7178 = vpop.trf.xlu0
    %v7179 = vpop.trf.xlu0
    %v7180 = vpop.trf.xlu0
    %v7181 = vpack.c.bf16 %v7133, %v7133
    %v7182 = vpack.c.bf16 %v7134, %v7134
    %v7183 = vpack.c.bf16 %v7135, %v7135
    %v7184 = vpack.c.bf16 %v7136, %v7136
    %v7185 = vpack.c.bf16 %v7165, %v7165
    %v7186 = vpack.c.bf16 %v7166, %v7166
    %v7187 = vpack.c.bf16 %v7167, %v7167
    %v7188 = vpack.c.bf16 %v7168, %v7168
    %7189 = vrot.lane.b32.xlu0 %v7029, 64
    %v7190 = vpop.permute.xlu0 %7189
    %7191 = vrot.lane.b32.xlu0 %v7032, 64
    %v7192 = vpop.permute.xlu0 %7191
    %7195 = vxpose.xlu0.b32.start [1/16] %v7190, 128
    %7196 = vxpose.xlu0.b32.cont [2/16] 0.0, 128
    %7197 = vxpose.xlu0.b32.cont [3/16] 0.0, 128
    %7198 = vxpose.xlu0.b32.cont [4/16] 0.0, 128
    %7199 = vxpose.xlu0.b32.cont [5/16] 0.0, 128
    %7200 = vxpose.xlu0.b32.cont [6/16] 0.0, 128
    %7201 = vxpose.xlu0.b32.cont [7/16] 0.0, 128
    %7202 = vxpose.xlu0.b32.cont [8/16] 0.0, 128
    %7203 = vxpose.xlu0.b32.cont [9/16] 0.0, 128
    %7204 = vxpose.xlu0.b32.cont [10/16] 0.0, 128
    %7205 = vxpose.xlu0.b32.cont [11/16] 0.0, 128
    %7206 = vxpose.xlu0.b32.cont [12/16] 0.0, 128
    %7207 = vxpose.xlu0.b32.cont [13/16] 0.0, 128
    %7208 = vxpose.xlu0.b32.cont [14/16] 0.0, 128
    %7209 = vxpose.xlu0.b32.cont [15/16] 0.0, 128
    %7210 = vxpose.xlu0.b32.end [16/16] 0.0, 128
    %v7211 = vpop.trf.xlu0
    %v7212 = vpop.trf.xlu0
    %v7213 = vpop.trf.xlu0
    %v7214 = vpop.trf.xlu0
    %v7215 = vpop.trf.xlu0
    %v7216 = vpop.trf.xlu0
    %v7217 = vpop.trf.xlu0
    %v7218 = vpop.trf.xlu0
    %v7219 = vpop.trf.xlu0
    %v7220 = vpop.trf.xlu0
    %v7221 = vpop.trf.xlu0
    %v7222 = vpop.trf.xlu0
    %v7223 = vpop.trf.xlu0
    %v7224 = vpop.trf.xlu0
    %v7225 = vpop.trf.xlu0
    %v7226 = vpop.trf.xlu0
    %7227 = vxpose.xlu0.b32.start [1/16] %v7192, 128
    %7228 = vxpose.xlu0.b32.cont [2/16] 0.0, 128
    %7229 = vxpose.xlu0.b32.cont [3/16] 0.0, 128
    %7230 = vxpose.xlu0.b32.cont [4/16] 0.0, 128
    %7231 = vxpose.xlu0.b32.cont [5/16] 0.0, 128
    %7232 = vxpose.xlu0.b32.cont [6/16] 0.0, 128
    %7233 = vxpose.xlu0.b32.cont [7/16] 0.0, 128
    %7234 = vxpose.xlu0.b32.cont [8/16] 0.0, 128
    %7235 = vxpose.xlu0.b32.cont [9/16] 0.0, 128
    %7236 = vxpose.xlu0.b32.cont [10/16] 0.0, 128
    %7237 = vxpose.xlu0.b32.cont [11/16] 0.0, 128
    %7238 = vxpose.xlu0.b32.cont [12/16] 0.0, 128
    %7239 = vxpose.xlu0.b32.cont [13/16] 0.0, 128
    %7240 = vxpose.xlu0.b32.cont [14/16] 0.0, 128
    %7241 = vxpose.xlu0.b32.cont [15/16] 0.0, 128
    %7242 = vxpose.xlu0.b32.end [16/16] 0.0, 128
    %v7243 = vpop.trf.xlu0
    %v7244 = vpop.trf.xlu0
    %v7245 = vpop.trf.xlu0
    %v7246 = vpop.trf.xlu0
    %v7247 = vpop.trf.xlu0
    %v7248 = vpop.trf.xlu0
    %v7249 = vpop.trf.xlu0
    %v7250 = vpop.trf.xlu0
    %v7251 = vpop.trf.xlu0
    %v7252 = vpop.trf.xlu0
    %v7253 = vpop.trf.xlu0
    %v7254 = vpop.trf.xlu0
    %v7255 = vpop.trf.xlu0
    %v7256 = vpop.trf.xlu0
    %v7257 = vpop.trf.xlu0
    %v7258 = vpop.trf.xlu0
    %v7259 = vpack.c.bf16 %v7211, %v7211
    %v7260 = vpack.c.bf16 %v7212, %v7212
    %v7261 = vpack.c.bf16 %v7213, %v7213
    %v7262 = vpack.c.bf16 %v7214, %v7214
    %v7263 = vpack.c.bf16 %v7243, %v7243
    %v7264 = vpack.c.bf16 %v7244, %v7244
    %v7265 = vpack.c.bf16 %v7245, %v7245
    %v7266 = vpack.c.bf16 %v7246, %v7246
    %7267 = vxpose.xlu0.c.b16.start [1/8] %v7101, 128
    %7268 = vxpose.xlu0.c.b16.cont [2/8] 0, 128
    %7269 = vxpose.xlu0.c.b16.cont [3/8] 0, 128
    %7270 = vxpose.xlu0.c.b16.cont [4/8] 0, 128
    %7271 = vxpose.xlu0.c.b16.cont [5/8] 0, 128
    %7272 = vxpose.xlu0.c.b16.cont [6/8] 0, 128
    %7273 = vxpose.xlu0.c.b16.cont [7/8] 0, 128
    %7274 = vxpose.xlu0.c.b16.end [8/8] 0, 128
    %v7275 = vpop.trf.xlu0
    %v7276 = vpop.trf.xlu0
    %v7277 = vpop.trf.xlu0
    %v7278 = vpop.trf.xlu0
    %v7279 = vpop.trf.xlu0
    %v7280 = vpop.trf.xlu0
    %v7281 = vpop.trf.xlu0
    %v7282 = vpop.trf.xlu0
    %v7284 = vsel %vm739, %v7275, 0
    %v7287 = vsel %vm333, %v7181, 0
    %7289 = vmatprep.subr.bf16.mxu0 0
    %7290 = vmatpush1.bf16.msra.mxu0 %v7287
    %7291 = vmatprep.subr.bf16.mxu0 0
    %7292 = vmatpush1.bf16.msra.mxu0 0
    %7293 = vmatprep.subr.bf16.mxu0 0
    %7294 = vmatpush1.bf16.msra.mxu0 0
    %7295 = vmatprep.subr.bf16.mxu0 0
    %7296 = vmatpush1.bf16.msra.mxu0 0
    %7297 = vmatprep.subr.bf16.mxu0 0
    %7298 = vmatpush1.bf16.msra.mxu0 0
    %7299 = vmatprep.subr.bf16.mxu0 0
    %7300 = vmatpush1.bf16.msra.mxu0 0
    %7301 = vmatprep.subr.bf16.mxu0 0
    %7302 = vmatpush1.bf16.msra.mxu0 0
    %7303 = vmatprep.subr.bf16.mxu0 0
    %7304 = vmatpush1.bf16.msra.mxu0 0
    %7305 = vmatprep.subr.bf16.mxu0 0
    %7306 = vmatpush1.bf16.msra.mxu0 0
    %7307 = vmatprep.subr.bf16.mxu0 0
    %7308 = vmatpush1.bf16.msra.mxu0 0
    %7309 = vmatprep.subr.bf16.mxu0 0
    %7310 = vmatpush1.bf16.msra.mxu0 0
    %7311 = vmatprep.subr.bf16.mxu0 0
    %7312 = vmatpush1.bf16.msra.mxu0 0
    %7313 = vmatprep.subr.bf16.mxu0 0
    %7314 = vmatpush1.bf16.msra.mxu0 0
    %7315 = vmatprep.subr.bf16.mxu0 0
    %7316 = vmatpush1.bf16.msra.mxu0 0
    %7317 = vmatprep.subr.bf16.mxu0 0
    %7318 = vmatpush1.bf16.msra.mxu0 0
    %7319 = vmatprep.subr.bf16.mxu0 0
    %7320 = vmatpush1.bf16.msra.mxu0 0
    %7321 = vmatprep.mubr.bf16.mxu0 0
    %7322 = vmatmul.mubr.bf16.gmra.mrb[0].mxu0 %v7284
    %v7323 = vpop.f32.mrb[0].mxu0
    %v7324 = vadd.f32 0.0, %v7323
    %v7325 = vpop.f32.mrb[0].mxu0
    %v7326 = vpop.f32.mrb[0].mxu0
    %v7327 = vpop.f32.mrb[0].mxu0
    %7328 = vdwg.mxu0
    %7329 = vxpose.xlu0.c.b16.start [1/8] %v7102, 128
    %7330 = vxpose.xlu0.c.b16.cont [2/8] 0, 128
    %7331 = vxpose.xlu0.c.b16.cont [3/8] 0, 128
    %7332 = vxpose.xlu0.c.b16.cont [4/8] 0, 128
    %7333 = vxpose.xlu0.c.b16.cont [5/8] 0, 128
    %7334 = vxpose.xlu0.c.b16.cont [6/8] 0, 128
    %7335 = vxpose.xlu0.c.b16.cont [7/8] 0, 128
    %7336 = vxpose.xlu0.c.b16.end [8/8] 0, 128
    %v7337 = vpop.trf.xlu0
    %v7338 = vpop.trf.xlu0
    %v7339 = vpop.trf.xlu0
    %v7340 = vpop.trf.xlu0
    %v7341 = vpop.trf.xlu0
    %v7342 = vpop.trf.xlu0
    %v7343 = vpop.trf.xlu0
    %v7344 = vpop.trf.xlu0
    %v7346 = vsel %vm739, %v7337, 0
    %v7349 = vsel %vm333, %v7182, 0
    %7351 = vmatprep.subr.bf16.mxu0 0
    %7352 = vmatpush1.bf16.msra.mxu0 %v7349
    %7353 = vmatprep.subr.bf16.mxu0 0
    %7354 = vmatpush1.bf16.msra.mxu0 0
    %7355 = vmatprep.subr.bf16.mxu0 0
    %7356 = vmatpush1.bf16.msra.mxu0 0
    %7357 = vmatprep.subr.bf16.mxu0 0
    %7358 = vmatpush1.bf16.msra.mxu0 0
    %7359 = vmatprep.subr.bf16.mxu0 0
    %7360 = vmatpush1.bf16.msra.mxu0 0
    %7361 = vmatprep.subr.bf16.mxu0 0
    %7362 = vmatpush1.bf16.msra.mxu0 0
    %7363 = vmatprep.subr.bf16.mxu0 0
    %7364 = vmatpush1.bf16.msra.mxu0 0
    %7365 = vmatprep.subr.bf16.mxu0 0
    %7366 = vmatpush1.bf16.msra.mxu0 0
    %7367 = vmatprep.subr.bf16.mxu0 0
    %7368 = vmatpush1.bf16.msra.mxu0 0
    %7369 = vmatprep.subr.bf16.mxu0 0
    %7370 = vmatpush1.bf16.msra.mxu0 0
    %7371 = vmatprep.subr.bf16.mxu0 0
    %7372 = vmatpush1.bf16.msra.mxu0 0
    %7373 = vmatprep.subr.bf16.mxu0 0
    %7374 = vmatpush1.bf16.msra.mxu0 0
    %7375 = vmatprep.subr.bf16.mxu0 0
    %7376 = vmatpush1.bf16.msra.mxu0 0
    %7377 = vmatprep.subr.bf16.mxu0 0
    %7378 = vmatpush1.bf16.msra.mxu0 0
    %7379 = vmatprep.subr.bf16.mxu0 0
    %7380 = vmatpush1.bf16.msra.mxu0 0
    %7381 = vmatprep.subr.bf16.mxu0 0
    %7382 = vmatpush1.bf16.msra.mxu0 0
    %7383 = vmatprep.mubr.bf16.mxu0 0
    %7384 = vmatmul.mubr.bf16.gmra.mrb[0].mxu0 %v7346
    %v7385 = vpop.f32.mrb[0].mxu0
    %v7386 = vadd.f32 0.0, %v7385
    %v7387 = vpop.f32.mrb[0].mxu0
    %v7388 = vpop.f32.mrb[0].mxu0
    %v7389 = vpop.f32.mrb[0].mxu0
    %7390 = vdwg.mxu0
    %7391 = vxpose.xlu0.c.b16.start [1/8] %v7103, 128
    %7392 = vxpose.xlu0.c.b16.cont [2/8] 0, 128
    %7393 = vxpose.xlu0.c.b16.cont [3/8] 0, 128
    %7394 = vxpose.xlu0.c.b16.cont [4/8] 0, 128
    %7395 = vxpose.xlu0.c.b16.cont [5/8] 0, 128
    %7396 = vxpose.xlu0.c.b16.cont [6/8] 0, 128
    %7397 = vxpose.xlu0.c.b16.cont [7/8] 0, 128
    %7398 = vxpose.xlu0.c.b16.end [8/8] 0, 128
    %v7399 = vpop.trf.xlu0
    %v7400 = vpop.trf.xlu0
    %v7401 = vpop.trf.xlu0
    %v7402 = vpop.trf.xlu0
    %v7403 = vpop.trf.xlu0
    %v7404 = vpop.trf.xlu0
    %v7405 = vpop.trf.xlu0
    %v7406 = vpop.trf.xlu0
    %v7408 = vsel %vm739, %v7399, 0
    %v7411 = vsel %vm333, %v7183, 0
    %7413 = vmatprep.subr.bf16.mxu0 0
    %7414 = vmatpush1.bf16.msra.mxu0 %v7411
    %7415 = vmatprep.subr.bf16.mxu0 0
    %7416 = vmatpush1.bf16.msra.mxu0 0
    %7417 = vmatprep.subr.bf16.mxu0 0
    %7418 = vmatpush1.bf16.msra.mxu0 0
    %7419 = vmatprep.subr.bf16.mxu0 0
    %7420 = vmatpush1.bf16.msra.mxu0 0
    %7421 = vmatprep.subr.bf16.mxu0 0
    %7422 = vmatpush1.bf16.msra.mxu0 0
    %7423 = vmatprep.subr.bf16.mxu0 0
    %7424 = vmatpush1.bf16.msra.mxu0 0
    %7425 = vmatprep.subr.bf16.mxu0 0
    %7426 = vmatpush1.bf16.msra.mxu0 0
    %7427 = vmatprep.subr.bf16.mxu0 0
    %7428 = vmatpush1.bf16.msra.mxu0 0
    %7429 = vmatprep.subr.bf16.mxu0 0
    %7430 = vmatpush1.bf16.msra.mxu0 0
    %7431 = vmatprep.subr.bf16.mxu0 0
    %7432 = vmatpush1.bf16.msra.mxu0 0
    %7433 = vmatprep.subr.bf16.mxu0 0
    %7434 = vmatpush1.bf16.msra.mxu0 0
    %7435 = vmatprep.subr.bf16.mxu0 0
    %7436 = vmatpush1.bf16.msra.mxu0 0
    %7437 = vmatprep.subr.bf16.mxu0 0
    %7438 = vmatpush1.bf16.msra.mxu0 0
    %7439 = vmatprep.subr.bf16.mxu0 0
    %7440 = vmatpush1.bf16.msra.mxu0 0
    %7441 = vmatprep.subr.bf16.mxu0 0
    %7442 = vmatpush1.bf16.msra.mxu0 0
    %7443 = vmatprep.subr.bf16.mxu0 0
    %7444 = vmatpush1.bf16.msra.mxu0 0
    %7445 = vmatprep.mubr.bf16.mxu0 0
    %7446 = vmatmul.mubr.bf16.gmra.mrb[0].mxu0 %v7408
    %v7447 = vpop.f32.mrb[0].mxu0
    %v7448 = vadd.f32 0.0, %v7447
    %v7449 = vpop.f32.mrb[0].mxu0
    %v7450 = vpop.f32.mrb[0].mxu0
    %v7451 = vpop.f32.mrb[0].mxu0
    %7452 = vdwg.mxu0
    %7453 = vxpose.xlu0.c.b16.start [1/8] %v7104, 128
    %7454 = vxpose.xlu0.c.b16.cont [2/8] 0, 128
    %7455 = vxpose.xlu0.c.b16.cont [3/8] 0, 128
    %7456 = vxpose.xlu0.c.b16.cont [4/8] 0, 128
    %7457 = vxpose.xlu0.c.b16.cont [5/8] 0, 128
    %7458 = vxpose.xlu0.c.b16.cont [6/8] 0, 128
    %7459 = vxpose.xlu0.c.b16.cont [7/8] 0, 128
    %7460 = vxpose.xlu0.c.b16.end [8/8] 0, 128
    %v7461 = vpop.trf.xlu0
    %v7462 = vpop.trf.xlu0
    %v7463 = vpop.trf.xlu0
    %v7464 = vpop.trf.xlu0
    %v7465 = vpop.trf.xlu0
    %v7466 = vpop.trf.xlu0
    %v7467 = vpop.trf.xlu0
    %v7468 = vpop.trf.xlu0
    %v7470 = vsel %vm739, %v7461, 0
    %v7473 = vsel %vm333, %v7184, 0
    %7475 = vmatprep.subr.bf16.mxu0 0
    %7476 = vmatpush1.bf16.msra.mxu0 %v7473
    %7477 = vmatprep.subr.bf16.mxu0 0
    %7478 = vmatpush1.bf16.msra.mxu0 0
    %7479 = vmatprep.subr.bf16.mxu0 0
    %7480 = vmatpush1.bf16.msra.mxu0 0
    %7481 = vmatprep.subr.bf16.mxu0 0
    %7482 = vmatpush1.bf16.msra.mxu0 0
    %7483 = vmatprep.subr.bf16.mxu0 0
    %7484 = vmatpush1.bf16.msra.mxu0 0
    %7485 = vmatprep.subr.bf16.mxu0 0
    %7486 = vmatpush1.bf16.msra.mxu0 0
    %7487 = vmatprep.subr.bf16.mxu0 0
    %7488 = vmatpush1.bf16.msra.mxu0 0
    %7489 = vmatprep.subr.bf16.mxu0 0
    %7490 = vmatpush1.bf16.msra.mxu0 0
    %7491 = vmatprep.subr.bf16.mxu0 0
    %7492 = vmatpush1.bf16.msra.mxu0 0
    %7493 = vmatprep.subr.bf16.mxu0 0
    %7494 = vmatpush1.bf16.msra.mxu0 0
    %7495 = vmatprep.subr.bf16.mxu0 0
    %7496 = vmatpush1.bf16.msra.mxu0 0
    %7497 = vmatprep.subr.bf16.mxu0 0
    %7498 = vmatpush1.bf16.msra.mxu0 0
    %7499 = vmatprep.subr.bf16.mxu0 0
    %7500 = vmatpush1.bf16.msra.mxu0 0
    %7501 = vmatprep.subr.bf16.mxu0 0
    %7502 = vmatpush1.bf16.msra.mxu0 0
    %7503 = vmatprep.subr.bf16.mxu0 0
    %7504 = vmatpush1.bf16.msra.mxu0 0
    %7505 = vmatprep.subr.bf16.mxu0 0
    %7506 = vmatpush1.bf16.msra.mxu0 0
    %7507 = vmatprep.mubr.bf16.mxu0 0
    %7508 = vmatmul.mubr.bf16.gmra.mrb[0].mxu0 %v7470
    %v7509 = vpop.f32.mrb[0].mxu0
    %v7510 = vadd.f32 0.0, %v7509
    %v7511 = vpop.f32.mrb[0].mxu0
    %v7512 = vpop.f32.mrb[0].mxu0
    %v7513 = vpop.f32.mrb[0].mxu0
    %7514 = vdwg.mxu0
    %7515 = vxpose.xlu0.c.b16.start [1/8] %v7105, 128
    %7516 = vxpose.xlu0.c.b16.cont [2/8] 0, 128
    %7517 = vxpose.xlu0.c.b16.cont [3/8] 0, 128
    %7518 = vxpose.xlu0.c.b16.cont [4/8] 0, 128
    %7519 = vxpose.xlu0.c.b16.cont [5/8] 0, 128
    %7520 = vxpose.xlu0.c.b16.cont [6/8] 0, 128
    %7521 = vxpose.xlu0.c.b16.cont [7/8] 0, 128
    %7522 = vxpose.xlu0.c.b16.end [8/8] 0, 128
    %v7523 = vpop.trf.xlu0
    %v7524 = vpop.trf.xlu0
    %v7525 = vpop.trf.xlu0
    %v7526 = vpop.trf.xlu0
    %v7527 = vpop.trf.xlu0
    %v7528 = vpop.trf.xlu0
    %v7529 = vpop.trf.xlu0
    %v7530 = vpop.trf.xlu0
    %v7532 = vsel %vm739, %v7523, 0
    %v7535 = vsel %vm333, %v7185, 0
    %7537 = vmatprep.subr.bf16.mxu0 0
    %7538 = vmatpush1.bf16.msra.mxu0 %v7535
    %7539 = vmatprep.subr.bf16.mxu0 0
    %7540 = vmatpush1.bf16.msra.mxu0 0
    %7541 = vmatprep.subr.bf16.mxu0 0
    %7542 = vmatpush1.bf16.msra.mxu0 0
    %7543 = vmatprep.subr.bf16.mxu0 0
    %7544 = vmatpush1.bf16.msra.mxu0 0
    %7545 = vmatprep.subr.bf16.mxu0 0
    %7546 = vmatpush1.bf16.msra.mxu0 0
    %7547 = vmatprep.subr.bf16.mxu0 0
    %7548 = vmatpush1.bf16.msra.mxu0 0
    %7549 = vmatprep.subr.bf16.mxu0 0
    %7550 = vmatpush1.bf16.msra.mxu0 0
    %7551 = vmatprep.subr.bf16.mxu0 0
    %7552 = vmatpush1.bf16.msra.mxu0 0
    %7553 = vmatprep.subr.bf16.mxu0 0
    %7554 = vmatpush1.bf16.msra.mxu0 0
    %7555 = vmatprep.subr.bf16.mxu0 0
    %7556 = vmatpush1.bf16.msra.mxu0 0
    %7557 = vmatprep.subr.bf16.mxu0 0
    %7558 = vmatpush1.bf16.msra.mxu0 0
    %7559 = vmatprep.subr.bf16.mxu0 0
    %7560 = vmatpush1.bf16.msra.mxu0 0
    %7561 = vmatprep.subr.bf16.mxu0 0
    %7562 = vmatpush1.bf16.msra.mxu0 0
    %7563 = vmatprep.subr.bf16.mxu0 0
    %7564 = vmatpush1.bf16.msra.mxu0 0
    %7565 = vmatprep.subr.bf16.mxu0 0
    %7566 = vmatpush1.bf16.msra.mxu0 0
    %7567 = vmatprep.subr.bf16.mxu0 0
    %7568 = vmatpush1.bf16.msra.mxu0 0
    %7569 = vmatprep.mubr.bf16.mxu0 0
    %7570 = vmatmul.mubr.bf16.gmra.mrb[0].mxu0 %v7532
    %v7571 = vpop.f32.mrb[0].mxu0
    %v7572 = vadd.f32 0.0, %v7571
    %v7573 = vpop.f32.mrb[0].mxu0
    %v7574 = vpop.f32.mrb[0].mxu0
    %v7575 = vpop.f32.mrb[0].mxu0
    %7576 = vdwg.mxu0
    %7577 = vxpose.xlu0.c.b16.start [1/8] %v7106, 128
    %7578 = vxpose.xlu0.c.b16.cont [2/8] 0, 128
    %7579 = vxpose.xlu0.c.b16.cont [3/8] 0, 128
    %7580 = vxpose.xlu0.c.b16.cont [4/8] 0, 128
    %7581 = vxpose.xlu0.c.b16.cont [5/8] 0, 128
    %7582 = vxpose.xlu0.c.b16.cont [6/8] 0, 128
    %7583 = vxpose.xlu0.c.b16.cont [7/8] 0, 128
    %7584 = vxpose.xlu0.c.b16.end [8/8] 0, 128
    %v7585 = vpop.trf.xlu0
    %v7586 = vpop.trf.xlu0
    %v7587 = vpop.trf.xlu0
    %v7588 = vpop.trf.xlu0
    %v7589 = vpop.trf.xlu0
    %v7590 = vpop.trf.xlu0
    %v7591 = vpop.trf.xlu0
    %v7592 = vpop.trf.xlu0
    %v7594 = vsel %vm739, %v7585, 0
    %v7597 = vsel %vm333, %v7186, 0
    %7599 = vmatprep.subr.bf16.mxu0 0
    %7600 = vmatpush1.bf16.msra.mxu0 %v7597
    %7601 = vmatprep.subr.bf16.mxu0 0
    %7602 = vmatpush1.bf16.msra.mxu0 0
    %7603 = vmatprep.subr.bf16.mxu0 0
    %7604 = vmatpush1.bf16.msra.mxu0 0
    %7605 = vmatprep.subr.bf16.mxu0 0
    %7606 = vmatpush1.bf16.msra.mxu0 0
    %7607 = vmatprep.subr.bf16.mxu0 0
    %7608 = vmatpush1.bf16.msra.mxu0 0
    %7609 = vmatprep.subr.bf16.mxu0 0
    %7610 = vmatpush1.bf16.msra.mxu0 0
    %7611 = vmatprep.subr.bf16.mxu0 0
    %7612 = vmatpush1.bf16.msra.mxu0 0
    %7613 = vmatprep.subr.bf16.mxu0 0
    %7614 = vmatpush1.bf16.msra.mxu0 0
    %7615 = vmatprep.subr.bf16.mxu0 0
    %7616 = vmatpush1.bf16.msra.mxu0 0
    %7617 = vmatprep.subr.bf16.mxu0 0
    %7618 = vmatpush1.bf16.msra.mxu0 0
    %7619 = vmatprep.subr.bf16.mxu0 0
    %7620 = vmatpush1.bf16.msra.mxu0 0
    %7621 = vmatprep.subr.bf16.mxu0 0
    %7622 = vmatpush1.bf16.msra.mxu0 0
    %7623 = vmatprep.subr.bf16.mxu0 0
    %7624 = vmatpush1.bf16.msra.mxu0 0
    %7625 = vmatprep.subr.bf16.mxu0 0
    %7626 = vmatpush1.bf16.msra.mxu0 0
    %7627 = vmatprep.subr.bf16.mxu0 0
    %7628 = vmatpush1.bf16.msra.mxu0 0
    %7629 = vmatprep.subr.bf16.mxu0 0
    %7630 = vmatpush1.bf16.msra.mxu0 0
    %7631 = vmatprep.mubr.bf16.mxu0 0
    %7632 = vmatmul.mubr.bf16.gmra.mrb[0].mxu0 %v7594
    %v7633 = vpop.f32.mrb[0].mxu0
    %v7634 = vadd.f32 0.0, %v7633
    %v7635 = vpop.f32.mrb[0].mxu0
    %v7636 = vpop.f32.mrb[0].mxu0
    %v7637 = vpop.f32.mrb[0].mxu0
    %7638 = vdwg.mxu0
    %7639 = vxpose.xlu0.c.b16.start [1/8] %v7107, 128
    %7640 = vxpose.xlu0.c.b16.cont [2/8] 0, 128
    %7641 = vxpose.xlu0.c.b16.cont [3/8] 0, 128
    %7642 = vxpose.xlu0.c.b16.cont [4/8] 0, 128
    %7643 = vxpose.xlu0.c.b16.cont [5/8] 0, 128
    %7644 = vxpose.xlu0.c.b16.cont [6/8] 0, 128
    %7645 = vxpose.xlu0.c.b16.cont [7/8] 0, 128
    %7646 = vxpose.xlu0.c.b16.end [8/8] 0, 128
    %v7647 = vpop.trf.xlu0
    %v7648 = vpop.trf.xlu0
    %v7649 = vpop.trf.xlu0
    %v7650 = vpop.trf.xlu0
    %v7651 = vpop.trf.xlu0
    %v7652 = vpop.trf.xlu0
    %v7653 = vpop.trf.xlu0
    %v7654 = vpop.trf.xlu0
    %v7656 = vsel %vm739, %v7647, 0
    %v7659 = vsel %vm333, %v7187, 0
    %7661 = vmatprep.subr.bf16.mxu0 0
    %7662 = vmatpush1.bf16.msra.mxu0 %v7659
    %7663 = vmatprep.subr.bf16.mxu0 0
    %7664 = vmatpush1.bf16.msra.mxu0 0
    %7665 = vmatprep.subr.bf16.mxu0 0
    %7666 = vmatpush1.bf16.msra.mxu0 0
    %7667 = vmatprep.subr.bf16.mxu0 0
    %7668 = vmatpush1.bf16.msra.mxu0 0
    %7669 = vmatprep.subr.bf16.mxu0 0
    %7670 = vmatpush1.bf16.msra.mxu0 0
    %7671 = vmatprep.subr.bf16.mxu0 0
    %7672 = vmatpush1.bf16.msra.mxu0 0
    %7673 = vmatprep.subr.bf16.mxu0 0
    %7674 = vmatpush1.bf16.msra.mxu0 0
    %7675 = vmatprep.subr.bf16.mxu0 0
    %7676 = vmatpush1.bf16.msra.mxu0 0
    %7677 = vmatprep.subr.bf16.mxu0 0
    %7678 = vmatpush1.bf16.msra.mxu0 0
    %7679 = vmatprep.subr.bf16.mxu0 0
    %7680 = vmatpush1.bf16.msra.mxu0 0
    %7681 = vmatprep.subr.bf16.mxu0 0
    %7682 = vmatpush1.bf16.msra.mxu0 0
    %7683 = vmatprep.subr.bf16.mxu0 0
    %7684 = vmatpush1.bf16.msra.mxu0 0
    %7685 = vmatprep.subr.bf16.mxu0 0
    %7686 = vmatpush1.bf16.msra.mxu0 0
    %7687 = vmatprep.subr.bf16.mxu0 0
    %7688 = vmatpush1.bf16.msra.mxu0 0
    %7689 = vmatprep.subr.bf16.mxu0 0
    %7690 = vmatpush1.bf16.msra.mxu0 0
    %7691 = vmatprep.subr.bf16.mxu0 0
    %7692 = vmatpush1.bf16.msra.mxu0 0
    %7693 = vmatprep.mubr.bf16.mxu0 0
    %7694 = vmatmul.mubr.bf16.gmra.mrb[0].mxu0 %v7656
    %v7695 = vpop.f32.mrb[0].mxu0
    %v7696 = vadd.f32 0.0, %v7695
    %v7697 = vpop.f32.mrb[0].mxu0
    %v7698 = vpop.f32.mrb[0].mxu0
    %v7699 = vpop.f32.mrb[0].mxu0
    %7700 = vdwg.mxu0
    %7701 = vxpose.xlu0.c.b16.start [1/8] %v7108, 128
    %7702 = vxpose.xlu0.c.b16.cont [2/8] 0, 128
    %7703 = vxpose.xlu0.c.b16.cont [3/8] 0, 128
    %7704 = vxpose.xlu0.c.b16.cont [4/8] 0, 128
    %7705 = vxpose.xlu0.c.b16.cont [5/8] 0, 128
    %7706 = vxpose.xlu0.c.b16.cont [6/8] 0, 128
    %7707 = vxpose.xlu0.c.b16.cont [7/8] 0, 128
    %7708 = vxpose.xlu0.c.b16.end [8/8] 0, 128
    %v7709 = vpop.trf.xlu0
    %v7710 = vpop.trf.xlu0
    %v7711 = vpop.trf.xlu0
    %v7712 = vpop.trf.xlu0
    %v7713 = vpop.trf.xlu0
    %v7714 = vpop.trf.xlu0
    %v7715 = vpop.trf.xlu0
    %v7716 = vpop.trf.xlu0
    %v7718 = vsel %vm739, %v7709, 0
    %v7721 = vsel %vm333, %v7188, 0
    %7723 = vmatprep.subr.bf16.mxu0 0
    %7724 = vmatpush1.bf16.msra.mxu0 %v7721
    %7725 = vmatprep.subr.bf16.mxu0 0
    %7726 = vmatpush1.bf16.msra.mxu0 0
    %7727 = vmatprep.subr.bf16.mxu0 0
    %7728 = vmatpush1.bf16.msra.mxu0 0
    %7729 = vmatprep.subr.bf16.mxu0 0
    %7730 = vmatpush1.bf16.msra.mxu0 0
    %7731 = vmatprep.subr.bf16.mxu0 0
    %7732 = vmatpush1.bf16.msra.mxu0 0
    %7733 = vmatprep.subr.bf16.mxu0 0
    %7734 = vmatpush1.bf16.msra.mxu0 0
    %7735 = vmatprep.subr.bf16.mxu0 0
    %7736 = vmatpush1.bf16.msra.mxu0 0
    %7737 = vmatprep.subr.bf16.mxu0 0
    %7738 = vmatpush1.bf16.msra.mxu0 0
    %7739 = vmatprep.subr.bf16.mxu0 0
    %7740 = vmatpush1.bf16.msra.mxu0 0
    %7741 = vmatprep.subr.bf16.mxu0 0
    %7742 = vmatpush1.bf16.msra.mxu0 0
    %7743 = vmatprep.subr.bf16.mxu0 0
    %7744 = vmatpush1.bf16.msra.mxu0 0
    %7745 = vmatprep.subr.bf16.mxu0 0
    %7746 = vmatpush1.bf16.msra.mxu0 0
    %7747 = vmatprep.subr.bf16.mxu0 0
    %7748 = vmatpush1.bf16.msra.mxu0 0
    %7749 = vmatprep.subr.bf16.mxu0 0
    %7750 = vmatpush1.bf16.msra.mxu0 0
    %7751 = vmatprep.subr.bf16.mxu0 0
    %7752 = vmatpush1.bf16.msra.mxu0 0
    %7753 = vmatprep.subr.bf16.mxu0 0
    %7754 = vmatpush1.bf16.msra.mxu0 0
    %7755 = vmatprep.mubr.bf16.mxu0 0
    %7756 = vmatmul.mubr.bf16.gmra.mrb[0].mxu0 %v7718
    %v7757 = vpop.f32.mrb[0].mxu0
    %v7758 = vadd.f32 0.0, %v7757
    %v7759 = vpop.f32.mrb[0].mxu0
    %v7760 = vpop.f32.mrb[0].mxu0
    %v7761 = vpop.f32.mrb[0].mxu0
    %7762 = vdwg.mxu0
    %v7763 = vsel %vm739, %v7324, -inf
    %7764 = vmax.xlane.f32.xlu0 %v7763
    %v7765 = vpop.xlane.xlu0 %7764
    %v7766 = vsel %vm739, %v7386, -inf
    %7767 = vmax.xlane.f32.xlu0 %v7766
    %v7768 = vpop.xlane.xlu0 %7767
    %v7769 = vsel %vm739, %v7448, -inf
    %7770 = vmax.xlane.f32.xlu0 %v7769
    %v7771 = vpop.xlane.xlu0 %7770
    %v7772 = vsel %vm739, %v7510, -inf
    %7773 = vmax.xlane.f32.xlu0 %v7772
    %v7774 = vpop.xlane.xlu0 %7773
    %v7775 = vsel %vm739, %v7572, -inf
    %7776 = vmax.xlane.f32.xlu0 %v7775
    %v7777 = vpop.xlane.xlu0 %7776
    %v7778 = vsel %vm739, %v7634, -inf
    %7779 = vmax.xlane.f32.xlu0 %v7778
    %v7780 = vpop.xlane.xlu0 %7779
    %v7781 = vsel %vm739, %v7696, -inf
    %7782 = vmax.xlane.f32.xlu0 %v7781
    %v7783 = vpop.xlane.xlu0 %7782
    %v7784 = vsel %vm739, %v7758, -inf
    %7785 = vmax.xlane.f32.xlu0 %v7784
    %v7786 = vpop.xlane.xlu0 %7785
    %v7787 = vsub.f32 %v7324, %v7765
    %v7788 = vsub.f32 %v7386, %v7768
    %v7789 = vsub.f32 %v7448, %v7771
    %v7790 = vsub.f32 %v7510, %v7774
    %v7791 = vsub.f32 %v7572, %v7777
    %v7792 = vsub.f32 %v7634, %v7780
    %v7793 = vsub.f32 %v7696, %v7783
    %v7794 = vsub.f32 %v7758, %v7786
    %v7795 = vmul.f32 %v7787, 1.442695
    %v7796 = vpow.pop %v7795
    %v7797 = vmul.f32 %v7788, 1.442695
    %v7798 = vpow.pop %v7797
    %v7799 = vmul.f32 %v7789, 1.442695
    %v7800 = vpow.pop %v7799
    %v7801 = vmul.f32 %v7790, 1.442695
    %v7802 = vpow.pop %v7801
    %v7803 = vmul.f32 %v7791, 1.442695
    %v7804 = vpow.pop %v7803
    %v7805 = vmul.f32 %v7792, 1.442695
    %v7806 = vpow.pop %v7805
    %v7807 = vmul.f32 %v7793, 1.442695
    %v7808 = vpow.pop %v7807
    %v7809 = vmul.f32 %v7794, 1.442695
    %v7810 = vpow.pop %v7809
    %v7811 = vsel %vm739, %v7796, 0.0
    %7812 = vadd.xlane.f32.xlu0 %v7811
    %v7813 = vpop.xlane.xlu0 %7812
    %v7814 = vsel %vm739, %v7798, 0.0
    %7815 = vadd.xlane.f32.xlu0 %v7814
    %v7816 = vpop.xlane.xlu0 %7815
    %v7817 = vsel %vm739, %v7800, 0.0
    %7818 = vadd.xlane.f32.xlu0 %v7817
    %v7819 = vpop.xlane.xlu0 %7818
    %v7820 = vsel %vm739, %v7802, 0.0
    %7821 = vadd.xlane.f32.xlu0 %v7820
    %v7822 = vpop.xlane.xlu0 %7821
    %v7823 = vsel %vm739, %v7804, 0.0
    %7824 = vadd.xlane.f32.xlu0 %v7823
    %v7825 = vpop.xlane.xlu0 %7824
    %v7826 = vsel %vm739, %v7806, 0.0
    %7827 = vadd.xlane.f32.xlu0 %v7826
    %v7828 = vpop.xlane.xlu0 %7827
    %v7829 = vsel %vm739, %v7808, 0.0
    %7830 = vadd.xlane.f32.xlu0 %v7829
    %v7831 = vpop.xlane.xlu0 %7830
    %v7832 = vsel %vm739, %v7810, 0.0
    %7833 = vadd.xlane.f32.xlu0 %v7832
    %v7834 = vpop.xlane.xlu0 %7833
    %v7835 = vrcp.pop %v7813
    %v7836 = vmul.f32 %v7796, %v7835
    %v7837 = vrcp.pop %v7816
    %v7838 = vmul.f32 %v7798, %v7837
    %v7839 = vrcp.pop %v7819
    %v7840 = vmul.f32 %v7800, %v7839
    %v7841 = vrcp.pop %v7822
    %v7842 = vmul.f32 %v7802, %v7841
    %v7843 = vrcp.pop %v7825
    %v7844 = vmul.f32 %v7804, %v7843
    %v7845 = vrcp.pop %v7828
    %v7846 = vmul.f32 %v7806, %v7845
    %v7847 = vrcp.pop %v7831
    %v7848 = vmul.f32 %v7808, %v7847
    %v7849 = vrcp.pop %v7834
    %v7850 = vmul.f32 %v7810, %v7849
    %v7851 = vpack.c.bf16 %v7836, %v7836
    %v7852 = vpack.c.bf16 %v7838, %v7838
    %v7853 = vpack.c.bf16 %v7840, %v7840
    %v7854 = vpack.c.bf16 %v7842, %v7842
    %v7855 = vpack.c.bf16 %v7844, %v7844
    %v7856 = vpack.c.bf16 %v7846, %v7846
    %v7857 = vpack.c.bf16 %v7848, %v7848
    %v7858 = vpack.c.bf16 %v7850, %v7850
    %v7860 = vsel %vm739, %v7259, 0
    %v7863 = vsel %vm739, %v7851, 0
    %7865 = vmatprep.subr.bf16.mxu0 0
    %7866 = vmatpush1.bf16.xpose.msra.mxu0 %v7863
    %7867 = vmatprep.subr.bf16.mxu0 0
    %7868 = vmatpush1.bf16.xpose.msra.mxu0 0
    %7869 = vmatprep.subr.bf16.mxu0 0
    %7870 = vmatpush1.bf16.xpose.msra.mxu0 0
    %7871 = vmatprep.subr.bf16.mxu0 0
    %7872 = vmatpush1.bf16.xpose.msra.mxu0 0
    %7873 = vmatprep.subr.bf16.mxu0 0
    %7874 = vmatpush1.bf16.xpose.msra.mxu0 0
    %7875 = vmatprep.subr.bf16.mxu0 0
    %7876 = vmatpush1.bf16.xpose.msra.mxu0 0
    %7877 = vmatprep.subr.bf16.mxu0 0
    %7878 = vmatpush1.bf16.xpose.msra.mxu0 0
    %7879 = vmatprep.subr.bf16.mxu0 0
    %7880 = vmatpush1.bf16.xpose.msra.mxu0 0
    %7881 = vmatprep.subr.bf16.mxu0 0
    %7882 = vmatpush1.bf16.xpose.msra.mxu0 0
    %7883 = vmatprep.subr.bf16.mxu0 0
    %7884 = vmatpush1.bf16.xpose.msra.mxu0 0
    %7885 = vmatprep.subr.bf16.mxu0 0
    %7886 = vmatpush1.bf16.xpose.msra.mxu0 0
    %7887 = vmatprep.subr.bf16.mxu0 0
    %7888 = vmatpush1.bf16.xpose.msra.mxu0 0
    %7889 = vmatprep.subr.bf16.mxu0 0
    %7890 = vmatpush1.bf16.xpose.msra.mxu0 0
    %7891 = vmatprep.subr.bf16.mxu0 0
    %7892 = vmatpush1.bf16.xpose.msra.mxu0 0
    %7893 = vmatprep.subr.bf16.mxu0 0
    %7894 = vmatpush1.bf16.xpose.msra.mxu0 0
    %7895 = vmatprep.subr.bf16.mxu0 0
    %7896 = vmatpush1.bf16.xpose.msra.mxu0 0
    %7897 = vmatprep.mubr.bf16.mxu0 0
    %7898 = vmatmul.mubr.bf16.gmra.mrb[0].mxu0 %v7860
    %v7899 = vpop.f32.mrb[0].mxu0
    %v7900 = vadd.f32 0.0, %v7899
    %v7901 = vpop.f32.mrb[0].mxu0
    %v7902 = vpop.f32.mrb[0].mxu0
    %v7903 = vpop.f32.mrb[0].mxu0
    %7904 = vdwg.mxu0
    %v7906 = vsel %vm739, %v7260, 0
    %v7909 = vsel %vm739, %v7852, 0
    %7911 = vmatprep.subr.bf16.mxu0 0
    %7912 = vmatpush1.bf16.xpose.msra.mxu0 %v7909
    %7913 = vmatprep.subr.bf16.mxu0 0
    %7914 = vmatpush1.bf16.xpose.msra.mxu0 0
    %7915 = vmatprep.subr.bf16.mxu0 0
    %7916 = vmatpush1.bf16.xpose.msra.mxu0 0
    %7917 = vmatprep.subr.bf16.mxu0 0
    %7918 = vmatpush1.bf16.xpose.msra.mxu0 0
    %7919 = vmatprep.subr.bf16.mxu0 0
    %7920 = vmatpush1.bf16.xpose.msra.mxu0 0
    %7921 = vmatprep.subr.bf16.mxu0 0
    %7922 = vmatpush1.bf16.xpose.msra.mxu0 0
    %7923 = vmatprep.subr.bf16.mxu0 0
    %7924 = vmatpush1.bf16.xpose.msra.mxu0 0
    %7925 = vmatprep.subr.bf16.mxu0 0
    %7926 = vmatpush1.bf16.xpose.msra.mxu0 0
    %7927 = vmatprep.subr.bf16.mxu0 0
    %7928 = vmatpush1.bf16.xpose.msra.mxu0 0
    %7929 = vmatprep.subr.bf16.mxu0 0
    %7930 = vmatpush1.bf16.xpose.msra.mxu0 0
    %7931 = vmatprep.subr.bf16.mxu0 0
    %7932 = vmatpush1.bf16.xpose.msra.mxu0 0
    %7933 = vmatprep.subr.bf16.mxu0 0
    %7934 = vmatpush1.bf16.xpose.msra.mxu0 0
    %7935 = vmatprep.subr.bf16.mxu0 0
    %7936 = vmatpush1.bf16.xpose.msra.mxu0 0
    %7937 = vmatprep.subr.bf16.mxu0 0
    %7938 = vmatpush1.bf16.xpose.msra.mxu0 0
    %7939 = vmatprep.subr.bf16.mxu0 0
    %7940 = vmatpush1.bf16.xpose.msra.mxu0 0
    %7941 = vmatprep.subr.bf16.mxu0 0
    %7942 = vmatpush1.bf16.xpose.msra.mxu0 0
    %7943 = vmatprep.mubr.bf16.mxu0 0
    %7944 = vmatmul.mubr.bf16.gmra.mrb[0].mxu0 %v7906
    %v7945 = vpop.f32.mrb[0].mxu0
    %v7946 = vadd.f32 0.0, %v7945
    %v7947 = vpop.f32.mrb[0].mxu0
    %v7948 = vpop.f32.mrb[0].mxu0
    %v7949 = vpop.f32.mrb[0].mxu0
    %7950 = vdwg.mxu0
    %v7952 = vsel %vm739, %v7261, 0
    %v7955 = vsel %vm739, %v7853, 0
    %7957 = vmatprep.subr.bf16.mxu0 0
    %7958 = vmatpush1.bf16.xpose.msra.mxu0 %v7955
    %7959 = vmatprep.subr.bf16.mxu0 0
    %7960 = vmatpush1.bf16.xpose.msra.mxu0 0
    %7961 = vmatprep.subr.bf16.mxu0 0
    %7962 = vmatpush1.bf16.xpose.msra.mxu0 0
    %7963 = vmatprep.subr.bf16.mxu0 0
    %7964 = vmatpush1.bf16.xpose.msra.mxu0 0
    %7965 = vmatprep.subr.bf16.mxu0 0
    %7966 = vmatpush1.bf16.xpose.msra.mxu0 0
    %7967 = vmatprep.subr.bf16.mxu0 0
    %7968 = vmatpush1.bf16.xpose.msra.mxu0 0
    %7969 = vmatprep.subr.bf16.mxu0 0
    %7970 = vmatpush1.bf16.xpose.msra.mxu0 0
    %7971 = vmatprep.subr.bf16.mxu0 0
    %7972 = vmatpush1.bf16.xpose.msra.mxu0 0
    %7973 = vmatprep.subr.bf16.mxu0 0
    %7974 = vmatpush1.bf16.xpose.msra.mxu0 0
    %7975 = vmatprep.subr.bf16.mxu0 0
    %7976 = vmatpush1.bf16.xpose.msra.mxu0 0
    %7977 = vmatprep.subr.bf16.mxu0 0
    %7978 = vmatpush1.bf16.xpose.msra.mxu0 0
    %7979 = vmatprep.subr.bf16.mxu0 0
    %7980 = vmatpush1.bf16.xpose.msra.mxu0 0
    %7981 = vmatprep.subr.bf16.mxu0 0
    %7982 = vmatpush1.bf16.xpose.msra.mxu0 0
    %7983 = vmatprep.subr.bf16.mxu0 0
    %7984 = vmatpush1.bf16.xpose.msra.mxu0 0
    %7985 = vmatprep.subr.bf16.mxu0 0
    %7986 = vmatpush1.bf16.xpose.msra.mxu0 0
    %7987 = vmatprep.subr.bf16.mxu0 0
    %7988 = vmatpush1.bf16.xpose.msra.mxu0 0
    %7989 = vmatprep.mubr.bf16.mxu0 0
    %7990 = vmatmul.mubr.bf16.gmra.mrb[0].mxu0 %v7952
    %v7991 = vpop.f32.mrb[0].mxu0
    %v7992 = vadd.f32 0.0, %v7991
    %v7993 = vpop.f32.mrb[0].mxu0
    %v7994 = vpop.f32.mrb[0].mxu0
    %v7995 = vpop.f32.mrb[0].mxu0
    %7996 = vdwg.mxu0
    %v7998 = vsel %vm739, %v7262, 0
    %v8001 = vsel %vm739, %v7854, 0
    %8003 = vmatprep.subr.bf16.mxu0 0
    %8004 = vmatpush1.bf16.xpose.msra.mxu0 %v8001
    %8005 = vmatprep.subr.bf16.mxu0 0
    %8006 = vmatpush1.bf16.xpose.msra.mxu0 0
    %8007 = vmatprep.subr.bf16.mxu0 0
    %8008 = vmatpush1.bf16.xpose.msra.mxu0 0
    %8009 = vmatprep.subr.bf16.mxu0 0
    %8010 = vmatpush1.bf16.xpose.msra.mxu0 0
    %8011 = vmatprep.subr.bf16.mxu0 0
    %8012 = vmatpush1.bf16.xpose.msra.mxu0 0
    %8013 = vmatprep.subr.bf16.mxu0 0
    %8014 = vmatpush1.bf16.xpose.msra.mxu0 0
    %8015 = vmatprep.subr.bf16.mxu0 0
    %8016 = vmatpush1.bf16.xpose.msra.mxu0 0
    %8017 = vmatprep.subr.bf16.mxu0 0
    %8018 = vmatpush1.bf16.xpose.msra.mxu0 0
    %8019 = vmatprep.subr.bf16.mxu0 0
    %8020 = vmatpush1.bf16.xpose.msra.mxu0 0
    %8021 = vmatprep.subr.bf16.mxu0 0
    %8022 = vmatpush1.bf16.xpose.msra.mxu0 0
    %8023 = vmatprep.subr.bf16.mxu0 0
    %8024 = vmatpush1.bf16.xpose.msra.mxu0 0
    %8025 = vmatprep.subr.bf16.mxu0 0
    %8026 = vmatpush1.bf16.xpose.msra.mxu0 0
    %8027 = vmatprep.subr.bf16.mxu0 0
    %8028 = vmatpush1.bf16.xpose.msra.mxu0 0
    %8029 = vmatprep.subr.bf16.mxu0 0
    %8030 = vmatpush1.bf16.xpose.msra.mxu0 0
    %8031 = vmatprep.subr.bf16.mxu0 0
    %8032 = vmatpush1.bf16.xpose.msra.mxu0 0
    %8033 = vmatprep.subr.bf16.mxu0 0
    %8034 = vmatpush1.bf16.xpose.msra.mxu0 0
    %8035 = vmatprep.mubr.bf16.mxu0 0
    %8036 = vmatmul.mubr.bf16.gmra.mrb[0].mxu0 %v7998
    %v8037 = vpop.f32.mrb[0].mxu0
    %v8038 = vadd.f32 0.0, %v8037
    %v8039 = vpop.f32.mrb[0].mxu0
    %v8040 = vpop.f32.mrb[0].mxu0
    %v8041 = vpop.f32.mrb[0].mxu0
    %8042 = vdwg.mxu0
    %v8044 = vsel %vm739, %v7263, 0
    %v8047 = vsel %vm739, %v7855, 0
    %8049 = vmatprep.subr.bf16.mxu0 0
    %8050 = vmatpush1.bf16.xpose.msra.mxu0 %v8047
    %8051 = vmatprep.subr.bf16.mxu0 0
    %8052 = vmatpush1.bf16.xpose.msra.mxu0 0
    %8053 = vmatprep.subr.bf16.mxu0 0
    %8054 = vmatpush1.bf16.xpose.msra.mxu0 0
    %8055 = vmatprep.subr.bf16.mxu0 0
    %8056 = vmatpush1.bf16.xpose.msra.mxu0 0
    %8057 = vmatprep.subr.bf16.mxu0 0
    %8058 = vmatpush1.bf16.xpose.msra.mxu0 0
    %8059 = vmatprep.subr.bf16.mxu0 0
    %8060 = vmatpush1.bf16.xpose.msra.mxu0 0
    %8061 = vmatprep.subr.bf16.mxu0 0
    %8062 = vmatpush1.bf16.xpose.msra.mxu0 0
    %8063 = vmatprep.subr.bf16.mxu0 0
    %8064 = vmatpush1.bf16.xpose.msra.mxu0 0
    %8065 = vmatprep.subr.bf16.mxu0 0
    %8066 = vmatpush1.bf16.xpose.msra.mxu0 0
    %8067 = vmatprep.subr.bf16.mxu0 0
    %8068 = vmatpush1.bf16.xpose.msra.mxu0 0
    %8069 = vmatprep.subr.bf16.mxu0 0
    %8070 = vmatpush1.bf16.xpose.msra.mxu0 0
    %8071 = vmatprep.subr.bf16.mxu0 0
    %8072 = vmatpush1.bf16.xpose.msra.mxu0 0
    %8073 = vmatprep.subr.bf16.mxu0 0
    %8074 = vmatpush1.bf16.xpose.msra.mxu0 0
    %8075 = vmatprep.subr.bf16.mxu0 0
    %8076 = vmatpush1.bf16.xpose.msra.mxu0 0
    %8077 = vmatprep.subr.bf16.mxu0 0
    %8078 = vmatpush1.bf16.xpose.msra.mxu0 0
    %8079 = vmatprep.subr.bf16.mxu0 0
    %8080 = vmatpush1.bf16.xpose.msra.mxu0 0
    %8081 = vmatprep.mubr.bf16.mxu0 0
    %8082 = vmatmul.mubr.bf16.gmra.mrb[0].mxu0 %v8044
    %v8083 = vpop.f32.mrb[0].mxu0
    %v8084 = vadd.f32 0.0, %v8083
    %v8085 = vpop.f32.mrb[0].mxu0
    %v8086 = vpop.f32.mrb[0].mxu0
    %v8087 = vpop.f32.mrb[0].mxu0
    %8088 = vdwg.mxu0
    %v8090 = vsel %vm739, %v7264, 0
    %v8093 = vsel %vm739, %v7856, 0
    %8095 = vmatprep.subr.bf16.mxu0 0
    %8096 = vmatpush1.bf16.xpose.msra.mxu0 %v8093
    %8097 = vmatprep.subr.bf16.mxu0 0
    %8098 = vmatpush1.bf16.xpose.msra.mxu0 0
    %8099 = vmatprep.subr.bf16.mxu0 0
    %8100 = vmatpush1.bf16.xpose.msra.mxu0 0
    %8101 = vmatprep.subr.bf16.mxu0 0
    %8102 = vmatpush1.bf16.xpose.msra.mxu0 0
    %8103 = vmatprep.subr.bf16.mxu0 0
    %8104 = vmatpush1.bf16.xpose.msra.mxu0 0
    %8105 = vmatprep.subr.bf16.mxu0 0
    %8106 = vmatpush1.bf16.xpose.msra.mxu0 0
    %8107 = vmatprep.subr.bf16.mxu0 0
    %8108 = vmatpush1.bf16.xpose.msra.mxu0 0
    %8109 = vmatprep.subr.bf16.mxu0 0
    %8110 = vmatpush1.bf16.xpose.msra.mxu0 0
    %8111 = vmatprep.subr.bf16.mxu0 0
    %8112 = vmatpush1.bf16.xpose.msra.mxu0 0
    %8113 = vmatprep.subr.bf16.mxu0 0
    %8114 = vmatpush1.bf16.xpose.msra.mxu0 0
    %8115 = vmatprep.subr.bf16.mxu0 0
    %8116 = vmatpush1.bf16.xpose.msra.mxu0 0
    %8117 = vmatprep.subr.bf16.mxu0 0
    %8118 = vmatpush1.bf16.xpose.msra.mxu0 0
    %8119 = vmatprep.subr.bf16.mxu0 0
    %8120 = vmatpush1.bf16.xpose.msra.mxu0 0
    %8121 = vmatprep.subr.bf16.mxu0 0
    %8122 = vmatpush1.bf16.xpose.msra.mxu0 0
    %8123 = vmatprep.subr.bf16.mxu0 0
    %8124 = vmatpush1.bf16.xpose.msra.mxu0 0
    %8125 = vmatprep.subr.bf16.mxu0 0
    %8126 = vmatpush1.bf16.xpose.msra.mxu0 0
    %8127 = vmatprep.mubr.bf16.mxu0 0
    %8128 = vmatmul.mubr.bf16.gmra.mrb[0].mxu0 %v8090
    %v8129 = vpop.f32.mrb[0].mxu0
    %v8130 = vadd.f32 0.0, %v8129
    %v8131 = vpop.f32.mrb[0].mxu0
    %v8132 = vpop.f32.mrb[0].mxu0
    %v8133 = vpop.f32.mrb[0].mxu0
    %8134 = vdwg.mxu0
    %v8136 = vsel %vm739, %v7265, 0
    %v8139 = vsel %vm739, %v7857, 0
    %8141 = vmatprep.subr.bf16.mxu0 0
    %8142 = vmatpush1.bf16.xpose.msra.mxu0 %v8139
    %8143 = vmatprep.subr.bf16.mxu0 0
    %8144 = vmatpush1.bf16.xpose.msra.mxu0 0
    %8145 = vmatprep.subr.bf16.mxu0 0
    %8146 = vmatpush1.bf16.xpose.msra.mxu0 0
    %8147 = vmatprep.subr.bf16.mxu0 0
    %8148 = vmatpush1.bf16.xpose.msra.mxu0 0
    %8149 = vmatprep.subr.bf16.mxu0 0
    %8150 = vmatpush1.bf16.xpose.msra.mxu0 0
    %8151 = vmatprep.subr.bf16.mxu0 0
    %8152 = vmatpush1.bf16.xpose.msra.mxu0 0
    %8153 = vmatprep.subr.bf16.mxu0 0
    %8154 = vmatpush1.bf16.xpose.msra.mxu0 0
    %8155 = vmatprep.subr.bf16.mxu0 0
    %8156 = vmatpush1.bf16.xpose.msra.mxu0 0
    %8157 = vmatprep.subr.bf16.mxu0 0
    %8158 = vmatpush1.bf16.xpose.msra.mxu0 0
    %8159 = vmatprep.subr.bf16.mxu0 0
    %8160 = vmatpush1.bf16.xpose.msra.mxu0 0
    %8161 = vmatprep.subr.bf16.mxu0 0
    %8162 = vmatpush1.bf16.xpose.msra.mxu0 0
    %8163 = vmatprep.subr.bf16.mxu0 0
    %8164 = vmatpush1.bf16.xpose.msra.mxu0 0
    %8165 = vmatprep.subr.bf16.mxu0 0
    %8166 = vmatpush1.bf16.xpose.msra.mxu0 0
    %8167 = vmatprep.subr.bf16.mxu0 0
    %8168 = vmatpush1.bf16.xpose.msra.mxu0 0
    %8169 = vmatprep.subr.bf16.mxu0 0
    %8170 = vmatpush1.bf16.xpose.msra.mxu0 0
    %8171 = vmatprep.subr.bf16.mxu0 0
    %8172 = vmatpush1.bf16.xpose.msra.mxu0 0
    %8173 = vmatprep.mubr.bf16.mxu0 0
    %8174 = vmatmul.mubr.bf16.gmra.mrb[0].mxu0 %v8136
    %v8175 = vpop.f32.mrb[0].mxu0
    %v8176 = vadd.f32 0.0, %v8175
    %v8177 = vpop.f32.mrb[0].mxu0
    %v8178 = vpop.f32.mrb[0].mxu0
    %v8179 = vpop.f32.mrb[0].mxu0
    %8180 = vdwg.mxu0
    %v8182 = vsel %vm739, %v7266, 0
    %v8185 = vsel %vm739, %v7858, 0
    %8187 = vmatprep.subr.bf16.mxu0 0
    %8188 = vmatpush1.bf16.xpose.msra.mxu0 %v8185
    %8189 = vmatprep.subr.bf16.mxu0 0
    %8190 = vmatpush1.bf16.xpose.msra.mxu0 0
    %8191 = vmatprep.subr.bf16.mxu0 0
    %8192 = vmatpush1.bf16.xpose.msra.mxu0 0
    %8193 = vmatprep.subr.bf16.mxu0 0
    %8194 = vmatpush1.bf16.xpose.msra.mxu0 0
    %8195 = vmatprep.subr.bf16.mxu0 0
    %8196 = vmatpush1.bf16.xpose.msra.mxu0 0
    %8197 = vmatprep.subr.bf16.mxu0 0
    %8198 = vmatpush1.bf16.xpose.msra.mxu0 0
    %8199 = vmatprep.subr.bf16.mxu0 0
    %8200 = vmatpush1.bf16.xpose.msra.mxu0 0
    %8201 = vmatprep.subr.bf16.mxu0 0
    %8202 = vmatpush1.bf16.xpose.msra.mxu0 0
    %8203 = vmatprep.subr.bf16.mxu0 0
    %8204 = vmatpush1.bf16.xpose.msra.mxu0 0
    %8205 = vmatprep.subr.bf16.mxu0 0
    %8206 = vmatpush1.bf16.xpose.msra.mxu0 0
    %8207 = vmatprep.subr.bf16.mxu0 0
    %8208 = vmatpush1.bf16.xpose.msra.mxu0 0
    %8209 = vmatprep.subr.bf16.mxu0 0
    %8210 = vmatpush1.bf16.xpose.msra.mxu0 0
    %8211 = vmatprep.subr.bf16.mxu0 0
    %8212 = vmatpush1.bf16.xpose.msra.mxu0 0
    %8213 = vmatprep.subr.bf16.mxu0 0
    %8214 = vmatpush1.bf16.xpose.msra.mxu0 0
    %8215 = vmatprep.subr.bf16.mxu0 0
    %8216 = vmatpush1.bf16.xpose.msra.mxu0 0
    %8217 = vmatprep.subr.bf16.mxu0 0
    %8218 = vmatpush1.bf16.xpose.msra.mxu0 0
    %8219 = vmatprep.mubr.bf16.mxu0 0
    %8220 = vmatmul.mubr.bf16.gmra.mrb[0].mxu0 %v8182
    %v8221 = vpop.f32.mrb[0].mxu0
    %v8222 = vadd.f32 0.0, %v8221
    %v8223 = vpop.f32.mrb[0].mxu0
    %v8224 = vpop.f32.mrb[0].mxu0
    %v8225 = vpop.f32.mrb[0].mxu0
    %8226 = vdwg.mxu0
    %8227 = vxpose.xlu0.b32.start [1/16] %v7900, 128
    %8228 = vxpose.xlu0.b32.cont [2/16] %v7946, 128
    %8229 = vxpose.xlu0.b32.cont [3/16] %v7992, 128
    %8230 = vxpose.xlu0.b32.cont [4/16] %v8038, 128
    %8231 = vxpose.xlu0.b32.cont [5/16] 0.0, 128
    %8232 = vxpose.xlu0.b32.cont [6/16] 0.0, 128
    %8233 = vxpose.xlu0.b32.cont [7/16] 0.0, 128
    %8234 = vxpose.xlu0.b32.cont [8/16] 0.0, 128
    %8235 = vxpose.xlu0.b32.cont [9/16] 0.0, 128
    %8236 = vxpose.xlu0.b32.cont [10/16] 0.0, 128
    %8237 = vxpose.xlu0.b32.cont [11/16] 0.0, 128
    %8238 = vxpose.xlu0.b32.cont [12/16] 0.0, 128
    %8239 = vxpose.xlu0.b32.cont [13/16] 0.0, 128
    %8240 = vxpose.xlu0.b32.cont [14/16] 0.0, 128
    %8241 = vxpose.xlu0.b32.cont [15/16] 0.0, 128
    %8242 = vxpose.xlu0.b32.end [16/16] 0.0, 128
    %v8243 = vpop.trf.xlu0
    %v8244 = vpop.trf.xlu0
    %v8245 = vpop.trf.xlu0
    %v8246 = vpop.trf.xlu0
    %v8247 = vpop.trf.xlu0
    %v8248 = vpop.trf.xlu0
    %v8249 = vpop.trf.xlu0
    %v8250 = vpop.trf.xlu0
    %v8251 = vpop.trf.xlu0
    %v8252 = vpop.trf.xlu0
    %v8253 = vpop.trf.xlu0
    %v8254 = vpop.trf.xlu0
    %v8255 = vpop.trf.xlu0
    %v8256 = vpop.trf.xlu0
    %v8257 = vpop.trf.xlu0
    %v8258 = vpop.trf.xlu0
    %8259 = vxpose.xlu0.b32.start [1/16] %v8084, 128
    %8260 = vxpose.xlu0.b32.cont [2/16] %v8130, 128
    %8261 = vxpose.xlu0.b32.cont [3/16] %v8176, 128
    %8262 = vxpose.xlu0.b32.cont [4/16] %v8222, 128
    %8263 = vxpose.xlu0.b32.cont [5/16] 0.0, 128
    %8264 = vxpose.xlu0.b32.cont [6/16] 0.0, 128
    %8265 = vxpose.xlu0.b32.cont [7/16] 0.0, 128
    %8266 = vxpose.xlu0.b32.cont [8/16] 0.0, 128
    %8267 = vxpose.xlu0.b32.cont [9/16] 0.0, 128
    %8268 = vxpose.xlu0.b32.cont [10/16] 0.0, 128
    %8269 = vxpose.xlu0.b32.cont [11/16] 0.0, 128
    %8270 = vxpose.xlu0.b32.cont [12/16] 0.0, 128
    %8271 = vxpose.xlu0.b32.cont [13/16] 0.0, 128
    %8272 = vxpose.xlu0.b32.cont [14/16] 0.0, 128
    %8273 = vxpose.xlu0.b32.cont [15/16] 0.0, 128
    %8274 = vxpose.xlu0.b32.end [16/16] 0.0, 128
    %v8275 = vpop.trf.xlu0
    %v8276 = vpop.trf.xlu0
    %v8277 = vpop.trf.xlu0
    %v8278 = vpop.trf.xlu0
    %v8279 = vpop.trf.xlu0
    %v8280 = vpop.trf.xlu0
    %v8281 = vpop.trf.xlu0
    %v8282 = vpop.trf.xlu0
    %v8283 = vpop.trf.xlu0
    %v8284 = vpop.trf.xlu0
    %v8285 = vpop.trf.xlu0
    %v8286 = vpop.trf.xlu0
    %v8287 = vpop.trf.xlu0
    %v8288 = vpop.trf.xlu0
    %v8289 = vpop.trf.xlu0
    %v8290 = vpop.trf.xlu0
    %v8291 = vpack.c.bf16 %v8275, %v8243
    %v8293 = vlaneseq
    %v8294 = vshrl.u32 %v8293, 7
    %v8295 = vsub.s32 0, %v8294
    %v8296 = vrot.slane %v6971, %v8295
    %v8302 = vunpack.c.l.b16 %v6966
    %v8303 = vunpack.c.l.b16 %v6967
    %v8304 = vunpack.c.l.b16 %v6968
    %v8305 = vunpack.c.l.b16 %v6969
    %v8306 = vpack.c.b16 %v8303, %v8302
    %v8307 = vpack.c.b16 %v8305, %v8304
    %v8311 = vsel %vm446, %v8291, 0
    %8313 = vmatprep.subr.bf16.mxu0 0
    %8314 = vmatpush1.bf16.msra.mxu0 %v8306
    %8315 = vmatprep.subr.bf16.mxu0 0
    %8316 = vmatpush1.bf16.msra.mxu0 %v8307
    %8317 = vmatprep.subr.bf16.mxu0 0
    %8318 = vmatpush1.bf16.msra.mxu0 0
    %8319 = vmatprep.subr.bf16.mxu0 0
    %8320 = vmatpush1.bf16.msra.mxu0 0
    %8321 = vmatprep.subr.bf16.mxu0 0
    %8322 = vmatpush1.bf16.msra.mxu0 0
    %8323 = vmatprep.subr.bf16.mxu0 0
    %8324 = vmatpush1.bf16.msra.mxu0 0
    %8325 = vmatprep.subr.bf16.mxu0 0
    %8326 = vmatpush1.bf16.msra.mxu0 0
    %8327 = vmatprep.subr.bf16.mxu0 0
    %8328 = vmatpush1.bf16.msra.mxu0 0
    %8329 = vmatprep.subr.bf16.mxu0 0
    %8330 = vmatpush1.bf16.msra.mxu0 0
    %8331 = vmatprep.subr.bf16.mxu0 0
    %8332 = vmatpush1.bf16.msra.mxu0 0
    %8333 = vmatprep.subr.bf16.mxu0 0
    %8334 = vmatpush1.bf16.msra.mxu0 0
    %8335 = vmatprep.subr.bf16.mxu0 0
    %8336 = vmatpush1.bf16.msra.mxu0 0
    %8337 = vmatprep.subr.bf16.mxu0 0
    %8338 = vmatpush1.bf16.msra.mxu0 0
    %8339 = vmatprep.subr.bf16.mxu0 0
    %8340 = vmatpush1.bf16.msra.mxu0 0
    %8341 = vmatprep.subr.bf16.mxu0 0
    %8342 = vmatpush1.bf16.msra.mxu0 0
    %8343 = vmatprep.subr.bf16.mxu0 0
    %8344 = vmatpush1.bf16.msra.mxu0 0
    %8345 = vmatprep.mubr.bf16.mxu0 0
    %8346 = vmatmul.mubr.bf16.gmra.mrb[0].mxu0 %v8311
    %v8347 = vpop.f32.mrb[0].mxu0
    %v8348 = vadd.f32 %v8296, %v8347
    %v8349 = vpop.f32.mrb[0].mxu0
    %v8350 = vpop.f32.mrb[0].mxu0
    %v8351 = vadd.f32 %v8296, %v8350
    %v8352 = vpop.f32.mrb[0].mxu0
    %8353 = vdwg.mxu0
    %v8354 = vadd.f32 %v6956, %v8348
    %v8355 = vadd.f32 %v6957, %v8351
    %s8356 = scalar_lea.vmem [#allocation21], 6
    %v8357 = vld [vmem:[%s8356] sm:$0x3]
    %v8358 = vsel %vm446, %v8354, 0.0
    %8359 = vadd.xlane.f32.xlu0 %v8358
    %v8360 = vpop.xlane.xlu0 %8359
    %v8361 = vsel %vm446, %v8355, 0.0
    %8362 = vadd.xlane.f32.xlu0 %v8361
    %v8363 = vpop.xlane.xlu0 %8362
    %v8364 = vmul.f32 %v8360, %v1820
    %v8365 = vmul.f32 %v8363, %v1820
    %v8366 = vsub.f32 %v8354, %v8364
    %v8367 = vsub.f32 %v8355, %v8365
    %v8368 = vmul.f32 %v8366, %v8366
    %v8369 = vmul.f32 %v8367, %v8367
    %v8370 = vsel %vm446, %v8368, 0.0
    %8371 = vadd.xlane.f32.xlu0 %v8370
    %v8372 = vpop.xlane.xlu0 %8371
    %v8373 = vsel %vm446, %v8369, 0.0
    %8374 = vadd.xlane.f32.xlu0 %v8373
    %v8375 = vpop.xlane.xlu0 %8374
    %v8376 = vmul.f32 %v8372, %v1820
    %v8377 = vmul.f32 %v8375, %v1820
    %v8378 = vadd.f32 %v8376, 1e-05
    %v8379 = vadd.f32 %v8377, 1e-05
    %v8380 = vrsqrt.pop %v8378
    %v8381 = vrsqrt.pop %v8379
    %v8382 = vmul.f32 %v8366, %v8380
    %v8383 = vmul.f32 %v8367, %v8381
    %v8384 = vlaneseq
    %v8385 = vshrl.u32 %v8384, 7
    %v8386 = vsub.s32 0, %v8385
    %v8387 = vrot.slane %v8357, %v8386
    %v8388 = vmul.f32 %v8382, %v8387
    %v8389 = vmul.f32 %v8383, %v8387
    %v8390 = vlaneseq
    %v8391 = vshrl.u32 %v8390, 7
    %v8392 = vsub.s32 1, %v8391
    %v8393 = vrot.slane %v8357, %v8392
    %v8394 = vadd.f32 %v8388, %v8393
    %v8395 = vadd.f32 %v8389, %v8393
    %s8396 = scalar_lea.vmem %s35, 16
    %v8397 = vld [vmem:[%s8396] sm:$0xf]
    %v8398 = vld [vmem:[%s8396 + $0x4] sm:$0xf]
    %v8399 = vld [vmem:[%s8396 + $0x8] sm:$0xf]
    %v8400 = vld [vmem:[%s8396 + $0xc] sm:$0xf]
    %s8401 = scalar_lea.vmem [#allocation12], 1
    %v8402 = vld [vmem:[%s8401] sm:$0x1]
    %s8403 = scalar_lea.vmem %s39, 16
    %v8404 = vld [vmem:[%s8403] sm:$0xf]
    %v8405 = vld [vmem:[%s8403 + $0x4] sm:$0xf]
    %v8406 = vld [vmem:[%s8403 + $0x8] sm:$0xf]
    %v8407 = vld [vmem:[%s8403 + $0xc] sm:$0xf]
    %s8408 = scalar_lea.vmem [#allocation13], 1
    %v8409 = vld [vmem:[%s8408] sm:$0x1]
    %s8410 = scalar_lea.vmem [#allocation15], 16
    %v8411 = vld [vmem:[%s8410] sm:$0xf]
    %v8412 = vld [vmem:[%s8410 + $0x4] sm:$0xf]
    %v8413 = vld [vmem:[%s8410 + $0x8] sm:$0xf]
    %v8414 = vld [vmem:[%s8410 + $0xc] sm:$0xf]
    %s8415 = scalar_lea.vmem [#allocation16], 1
    %v8416 = vld [vmem:[%s8415] sm:$0x1]
    %v8417 = vpack.c.bf16 %v8395, %v8394
    %v8419 = vlaneseq
    %v8420 = vshrl.u32 %v8419, 7
    %v8421 = vsub.s32 0, %v8420
    %v8422 = vrot.slane %v8402, %v8421
    %v8428 = vunpack.c.l.b16 %v8397
    %v8429 = vunpack.c.l.b16 %v8398
    %v8430 = vunpack.c.l.b16 %v8399
    %v8431 = vunpack.c.l.b16 %v8400
    %v8432 = vpack.c.b16 %v8429, %v8428
    %v8433 = vpack.c.b16 %v8431, %v8430
    %v8437 = vsel %vm446, %v8417, 0
    %8439 = vmatprep.subr.bf16.mxu0 0
    %8440 = vmatpush1.bf16.msra.mxu0 %v8432
    %8441 = vmatprep.subr.bf16.mxu0 0
    %8442 = vmatpush1.bf16.msra.mxu0 %v8433
    %8443 = vmatprep.subr.bf16.mxu0 0
    %8444 = vmatpush1.bf16.msra.mxu0 0
    %8445 = vmatprep.subr.bf16.mxu0 0
    %8446 = vmatpush1.bf16.msra.mxu0 0
    %8447 = vmatprep.subr.bf16.mxu0 0
    %8448 = vmatpush1.bf16.msra.mxu0 0
    %8449 = vmatprep.subr.bf16.mxu0 0
    %8450 = vmatpush1.bf16.msra.mxu0 0
    %8451 = vmatprep.subr.bf16.mxu0 0
    %8452 = vmatpush1.bf16.msra.mxu0 0
    %8453 = vmatprep.subr.bf16.mxu0 0
    %8454 = vmatpush1.bf16.msra.mxu0 0
    %8455 = vmatprep.subr.bf16.mxu0 0
    %8456 = vmatpush1.bf16.msra.mxu0 0
    %8457 = vmatprep.subr.bf16.mxu0 0
    %8458 = vmatpush1.bf16.msra.mxu0 0
    %8459 = vmatprep.subr.bf16.mxu0 0
    %8460 = vmatpush1.bf16.msra.mxu0 0
    %8461 = vmatprep.subr.bf16.mxu0 0
    %8462 = vmatpush1.bf16.msra.mxu0 0
    %8463 = vmatprep.subr.bf16.mxu0 0
    %8464 = vmatpush1.bf16.msra.mxu0 0
    %8465 = vmatprep.subr.bf16.mxu0 0
    %8466 = vmatpush1.bf16.msra.mxu0 0
    %8467 = vmatprep.subr.bf16.mxu0 0
    %8468 = vmatpush1.bf16.msra.mxu0 0
    %8469 = vmatprep.subr.bf16.mxu0 0
    %8470 = vmatpush1.bf16.msra.mxu0 0
    %8471 = vmatprep.mubr.bf16.mxu0 0
    %8472 = vmatmul.mubr.bf16.gmra.mrb[0].mxu0 %v8437
    %v8473 = vpop.f32.mrb[0].mxu0
    %v8474 = vadd.f32 %v8422, %v8473
    %v8475 = vpop.f32.mrb[0].mxu0
    %v8476 = vpop.f32.mrb[0].mxu0
    %v8477 = vadd.f32 %v8422, %v8476
    %v8478 = vpop.f32.mrb[0].mxu0
    %8479 = vdwg.mxu0
    %v8480 = vmul.f32 %v8474, 0.35355338
    %v8481 = vmul.f32 %v8477, 0.35355338
    %v8483 = vlaneseq
    %v8484 = vshrl.u32 %v8483, 7
    %v8485 = vsub.s32 0, %v8484
    %v8486 = vrot.slane %v8409, %v8485
    %v8492 = vunpack.c.l.b16 %v8404
    %v8493 = vunpack.c.l.b16 %v8405
    %v8494 = vunpack.c.l.b16 %v8406
    %v8495 = vunpack.c.l.b16 %v8407
    %v8496 = vpack.c.b16 %v8493, %v8492
    %v8497 = vpack.c.b16 %v8495, %v8494
    %8500 = vmatprep.subr.bf16.mxu0 0
    %8501 = vmatpush1.bf16.msra.mxu0 %v8496
    %8502 = vmatprep.subr.bf16.mxu0 0
    %8503 = vmatpush1.bf16.msra.mxu0 %v8497
    %8504 = vmatprep.subr.bf16.mxu0 0
    %8505 = vmatpush1.bf16.msra.mxu0 0
    %8506 = vmatprep.subr.bf16.mxu0 0
    %8507 = vmatpush1.bf16.msra.mxu0 0
    %8508 = vmatprep.subr.bf16.mxu0 0
    %8509 = vmatpush1.bf16.msra.mxu0 0
    %8510 = vmatprep.subr.bf16.mxu0 0
    %8511 = vmatpush1.bf16.msra.mxu0 0
    %8512 = vmatprep.subr.bf16.mxu0 0
    %8513 = vmatpush1.bf16.msra.mxu0 0
    %8514 = vmatprep.subr.bf16.mxu0 0
    %8515 = vmatpush1.bf16.msra.mxu0 0
    %8516 = vmatprep.subr.bf16.mxu0 0
    %8517 = vmatpush1.bf16.msra.mxu0 0
    %8518 = vmatprep.subr.bf16.mxu0 0
    %8519 = vmatpush1.bf16.msra.mxu0 0
    %8520 = vmatprep.subr.bf16.mxu0 0
    %8521 = vmatpush1.bf16.msra.mxu0 0
    %8522 = vmatprep.subr.bf16.mxu0 0
    %8523 = vmatpush1.bf16.msra.mxu0 0
    %8524 = vmatprep.subr.bf16.mxu0 0
    %8525 = vmatpush1.bf16.msra.mxu0 0
    %8526 = vmatprep.subr.bf16.mxu0 0
    %8527 = vmatpush1.bf16.msra.mxu0 0
    %8528 = vmatprep.subr.bf16.mxu0 0
    %8529 = vmatpush1.bf16.msra.mxu0 0
    %8530 = vmatprep.subr.bf16.mxu0 0
    %8531 = vmatpush1.bf16.msra.mxu0 0
    %8532 = vmatprep.mubr.bf16.mxu0 0
    %8533 = vmatmul.mubr.bf16.gmra.mrb[0].mxu0 %v5366
    %v8534 = vpop.f32.mrb[0].mxu0
    %v8535 = vadd.f32 %v8486, %v8534
    %v8536 = vpop.f32.mrb[0].mxu0
    %v8537 = vpop.f32.mrb[0].mxu0
    %v8538 = vadd.f32 %v8486, %v8537
    %v8539 = vpop.f32.mrb[0].mxu0
    %8540 = vdwg.mxu0
    %8541 = vxpose.xlu0.b32.start [1/16] %v8480, 128
    %8542 = vxpose.xlu0.b32.cont [2/16] 0.0, 128
    %8543 = vxpose.xlu0.b32.cont [3/16] 0.0, 128
    %8544 = vxpose.xlu0.b32.cont [4/16] 0.0, 128
    %8545 = vxpose.xlu0.b32.cont [5/16] 0.0, 128
    %8546 = vxpose.xlu0.b32.cont [6/16] 0.0, 128
    %8547 = vxpose.xlu0.b32.cont [7/16] 0.0, 128
    %8548 = vxpose.xlu0.b32.cont [8/16] 0.0, 128
    %8549 = vxpose.xlu0.b32.cont [9/16] 0.0, 128
    %8550 = vxpose.xlu0.b32.cont [10/16] 0.0, 128
    %8551 = vxpose.xlu0.b32.cont [11/16] 0.0, 128
    %8552 = vxpose.xlu0.b32.cont [12/16] 0.0, 128
    %8553 = vxpose.xlu0.b32.cont [13/16] 0.0, 128
    %8554 = vxpose.xlu0.b32.cont [14/16] 0.0, 128
    %8555 = vxpose.xlu0.b32.cont [15/16] 0.0, 128
    %8556 = vxpose.xlu0.b32.end [16/16] 0.0, 128
    %v8557 = vpop.trf.xlu0
    %v8558 = vpop.trf.xlu0
    %v8559 = vpop.trf.xlu0
    %v8560 = vpop.trf.xlu0
    %v8561 = vpop.trf.xlu0
    %v8562 = vpop.trf.xlu0
    %v8563 = vpop.trf.xlu0
    %v8564 = vpop.trf.xlu0
    %v8565 = vpop.trf.xlu0
    %v8566 = vpop.trf.xlu0
    %v8567 = vpop.trf.xlu0
    %v8568 = vpop.trf.xlu0
    %v8569 = vpop.trf.xlu0
    %v8570 = vpop.trf.xlu0
    %v8571 = vpop.trf.xlu0
    %v8572 = vpop.trf.xlu0
    %8573 = vxpose.xlu0.b32.start [1/16] %v8481, 128
    %8574 = vxpose.xlu0.b32.cont [2/16] 0.0, 128
    %8575 = vxpose.xlu0.b32.cont [3/16] 0.0, 128
    %8576 = vxpose.xlu0.b32.cont [4/16] 0.0, 128
    %8577 = vxpose.xlu0.b32.cont [5/16] 0.0, 128
    %8578 = vxpose.xlu0.b32.cont [6/16] 0.0, 128
    %8579 = vxpose.xlu0.b32.cont [7/16] 0.0, 128
    %8580 = vxpose.xlu0.b32.cont [8/16] 0.0, 128
    %8581 = vxpose.xlu0.b32.cont [9/16] 0.0, 128
    %8582 = vxpose.xlu0.b32.cont [10/16] 0.0, 128
    %8583 = vxpose.xlu0.b32.cont [11/16] 0.0, 128
    %8584 = vxpose.xlu0.b32.cont [12/16] 0.0, 128
    %8585 = vxpose.xlu0.b32.cont [13/16] 0.0, 128
    %8586 = vxpose.xlu0.b32.cont [14/16] 0.0, 128
    %8587 = vxpose.xlu0.b32.cont [15/16] 0.0, 128
    %8588 = vxpose.xlu0.b32.end [16/16] 0.0, 128
    %v8589 = vpop.trf.xlu0
    %v8590 = vpop.trf.xlu0
    %v8591 = vpop.trf.xlu0
    %v8592 = vpop.trf.xlu0
    %v8593 = vpop.trf.xlu0
    %v8594 = vpop.trf.xlu0
    %v8595 = vpop.trf.xlu0
    %v8596 = vpop.trf.xlu0
    %v8597 = vpop.trf.xlu0
    %v8598 = vpop.trf.xlu0
    %v8599 = vpop.trf.xlu0
    %v8600 = vpop.trf.xlu0
    %v8601 = vpop.trf.xlu0
    %v8602 = vpop.trf.xlu0
    %v8603 = vpop.trf.xlu0
    %v8604 = vpop.trf.xlu0
    %v8605 = vpack.c.bf16 %v8557, %v8557
    %v8606 = vpack.c.bf16 %v8558, %v8558
    %v8607 = vpack.c.bf16 %v8559, %v8559
    %v8608 = vpack.c.bf16 %v8560, %v8560
    %v8609 = vpack.c.bf16 %v8589, %v8589
    %v8610 = vpack.c.bf16 %v8590, %v8590
    %v8611 = vpack.c.bf16 %v8591, %v8591
    %v8612 = vpack.c.bf16 %v8592, %v8592
    %8613 = vxpose.xlu0.b32.start [1/16] %v8535, 128
    %8614 = vxpose.xlu0.b32.cont [2/16] 0.0, 128
    %8615 = vxpose.xlu0.b32.cont [3/16] 0.0, 128
    %8616 = vxpose.xlu0.b32.cont [4/16] 0.0, 128
    %8617 = vxpose.xlu0.b32.cont [5/16] 0.0, 128
    %8618 = vxpose.xlu0.b32.cont [6/16] 0.0, 128
    %8619 = vxpose.xlu0.b32.cont [7/16] 0.0, 128
    %8620 = vxpose.xlu0.b32.cont [8/16] 0.0, 128
    %8621 = vxpose.xlu0.b32.cont [9/16] 0.0, 128
    %8622 = vxpose.xlu0.b32.cont [10/16] 0.0, 128
    %8623 = vxpose.xlu0.b32.cont [11/16] 0.0, 128
    %8624 = vxpose.xlu0.b32.cont [12/16] 0.0, 128
    %8625 = vxpose.xlu0.b32.cont [13/16] 0.0, 128
    %8626 = vxpose.xlu0.b32.cont [14/16] 0.0, 128
    %8627 = vxpose.xlu0.b32.cont [15/16] 0.0, 128
    %8628 = vxpose.xlu0.b32.end [16/16] 0.0, 128
    %v8629 = vpop.trf.xlu0
    %v8630 = vpop.trf.xlu0
    %v8631 = vpop.trf.xlu0
    %v8632 = vpop.trf.xlu0
    %v8633 = vpop.trf.xlu0
    %v8634 = vpop.trf.xlu0
    %v8635 = vpop.trf.xlu0
    %v8636 = vpop.trf.xlu0
    %v8637 = vpop.trf.xlu0
    %v8638 = vpop.trf.xlu0
    %v8639 = vpop.trf.xlu0
    %v8640 = vpop.trf.xlu0
    %v8641 = vpop.trf.xlu0
    %v8642 = vpop.trf.xlu0
    %v8643 = vpop.trf.xlu0
    %v8644 = vpop.trf.xlu0
    %8645 = vxpose.xlu0.b32.start [1/16] %v8538, 128
    %8646 = vxpose.xlu0.b32.cont [2/16] 0.0, 128
    %8647 = vxpose.xlu0.b32.cont [3/16] 0.0, 128
    %8648 = vxpose.xlu0.b32.cont [4/16] 0.0, 128
    %8649 = vxpose.xlu0.b32.cont [5/16] 0.0, 128
    %8650 = vxpose.xlu0.b32.cont [6/16] 0.0, 128
    %8651 = vxpose.xlu0.b32.cont [7/16] 0.0, 128
    %8652 = vxpose.xlu0.b32.cont [8/16] 0.0, 128
    %8653 = vxpose.xlu0.b32.cont [9/16] 0.0, 128
    %8654 = vxpose.xlu0.b32.cont [10/16] 0.0, 128
    %8655 = vxpose.xlu0.b32.cont [11/16] 0.0, 128
    %8656 = vxpose.xlu0.b32.cont [12/16] 0.0, 128
    %8657 = vxpose.xlu0.b32.cont [13/16] 0.0, 128
    %8658 = vxpose.xlu0.b32.cont [14/16] 0.0, 128
    %8659 = vxpose.xlu0.b32.cont [15/16] 0.0, 128
    %8660 = vxpose.xlu0.b32.end [16/16] 0.0, 128
    %v8661 = vpop.trf.xlu0
    %v8662 = vpop.trf.xlu0
    %v8663 = vpop.trf.xlu0
    %v8664 = vpop.trf.xlu0
    %v8665 = vpop.trf.xlu0
    %v8666 = vpop.trf.xlu0
    %v8667 = vpop.trf.xlu0
    %v8668 = vpop.trf.xlu0
    %v8669 = vpop.trf.xlu0
    %v8670 = vpop.trf.xlu0
    %v8671 = vpop.trf.xlu0
    %v8672 = vpop.trf.xlu0
    %v8673 = vpop.trf.xlu0
    %v8674 = vpop.trf.xlu0
    %v8675 = vpop.trf.xlu0
    %v8676 = vpop.trf.xlu0
    %v8677 = vpack.c.bf16 %v8629, %v8629
    %v8678 = vpack.c.bf16 %v8630, %v8630
    %v8679 = vpack.c.bf16 %v8631, %v8631
    %v8680 = vpack.c.bf16 %v8632, %v8632
    %v8681 = vpack.c.bf16 %v8661, %v8661
    %v8682 = vpack.c.bf16 %v8662, %v8662
    %v8683 = vpack.c.bf16 %v8663, %v8663
    %v8684 = vpack.c.bf16 %v8664, %v8664
    %8687 = vrot.lane.b32.xlu0 %v8535, 96
    %v8688 = vpop.permute.xlu0 %8687
    %8689 = vrot.lane.b32.xlu0 %v8538, 96
    %v8690 = vpop.permute.xlu0 %8689
    %8693 = vxpose.xlu0.b32.start [1/16] %v8688, 128
    %8694 = vxpose.xlu0.b32.cont [2/16] 0.0, 128
    %8695 = vxpose.xlu0.b32.cont [3/16] 0.0, 128
    %8696 = vxpose.xlu0.b32.cont [4/16] 0.0, 128
    %8697 = vxpose.xlu0.b32.cont [5/16] 0.0, 128
    %8698 = vxpose.xlu0.b32.cont [6/16] 0.0, 128
    %8699 = vxpose.xlu0.b32.cont [7/16] 0.0, 128
    %8700 = vxpose.xlu0.b32.cont [8/16] 0.0, 128
    %8701 = vxpose.xlu0.b32.cont [9/16] 0.0, 128
    %8702 = vxpose.xlu0.b32.cont [10/16] 0.0, 128
    %8703 = vxpose.xlu0.b32.cont [11/16] 0.0, 128
    %8704 = vxpose.xlu0.b32.cont [12/16] 0.0, 128
    %8705 = vxpose.xlu0.b32.cont [13/16] 0.0, 128
    %8706 = vxpose.xlu0.b32.cont [14/16] 0.0, 128
    %8707 = vxpose.xlu0.b32.cont [15/16] 0.0, 128
    %8708 = vxpose.xlu0.b32.end [16/16] 0.0, 128
    %v8709 = vpop.trf.xlu0
    %v8710 = vpop.trf.xlu0
    %v8711 = vpop.trf.xlu0
    %v8712 = vpop.trf.xlu0
    %v8713 = vpop.trf.xlu0
    %v8714 = vpop.trf.xlu0
    %v8715 = vpop.trf.xlu0
    %v8716 = vpop.trf.xlu0
    %v8717 = vpop.trf.xlu0
    %v8718 = vpop.trf.xlu0
    %v8719 = vpop.trf.xlu0
    %v8720 = vpop.trf.xlu0
    %v8721 = vpop.trf.xlu0
    %v8722 = vpop.trf.xlu0
    %v8723 = vpop.trf.xlu0
    %v8724 = vpop.trf.xlu0
    %8725 = vxpose.xlu0.b32.start [1/16] %v8690, 128
    %8726 = vxpose.xlu0.b32.cont [2/16] 0.0, 128
    %8727 = vxpose.xlu0.b32.cont [3/16] 0.0, 128
    %8728 = vxpose.xlu0.b32.cont [4/16] 0.0, 128
    %8729 = vxpose.xlu0.b32.cont [5/16] 0.0, 128
    %8730 = vxpose.xlu0.b32.cont [6/16] 0.0, 128
    %8731 = vxpose.xlu0.b32.cont [7/16] 0.0, 128
    %8732 = vxpose.xlu0.b32.cont [8/16] 0.0, 128
    %8733 = vxpose.xlu0.b32.cont [9/16] 0.0, 128
    %8734 = vxpose.xlu0.b32.cont [10/16] 0.0, 128
    %8735 = vxpose.xlu0.b32.cont [11/16] 0.0, 128
    %8736 = vxpose.xlu0.b32.cont [12/16] 0.0, 128
    %8737 = vxpose.xlu0.b32.cont [13/16] 0.0, 128
    %8738 = vxpose.xlu0.b32.cont [14/16] 0.0, 128
    %8739 = vxpose.xlu0.b32.cont [15/16] 0.0, 128
    %8740 = vxpose.xlu0.b32.end [16/16] 0.0, 128
    %v8741 = vpop.trf.xlu0
    %v8742 = vpop.trf.xlu0
    %v8743 = vpop.trf.xlu0
    %v8744 = vpop.trf.xlu0
    %v8745 = vpop.trf.xlu0
    %v8746 = vpop.trf.xlu0
    %v8747 = vpop.trf.xlu0
    %v8748 = vpop.trf.xlu0
    %v8749 = vpop.trf.xlu0
    %v8750 = vpop.trf.xlu0
    %v8751 = vpop.trf.xlu0
    %v8752 = vpop.trf.xlu0
    %v8753 = vpop.trf.xlu0
    %v8754 = vpop.trf.xlu0
    %v8755 = vpop.trf.xlu0
    %v8756 = vpop.trf.xlu0
    %v8757 = vpack.c.bf16 %v8709, %v8709
    %v8758 = vpack.c.bf16 %v8710, %v8710
    %v8759 = vpack.c.bf16 %v8711, %v8711
    %v8760 = vpack.c.bf16 %v8712, %v8712
    %v8761 = vpack.c.bf16 %v8741, %v8741
    %v8762 = vpack.c.bf16 %v8742, %v8742
    %v8763 = vpack.c.bf16 %v8743, %v8743
    %v8764 = vpack.c.bf16 %v8744, %v8744
    %8765 = vxpose.xlu0.c.b16.start [1/8] %v8605, 128
    %8766 = vxpose.xlu0.c.b16.cont [2/8] 0, 128
    %8767 = vxpose.xlu0.c.b16.cont [3/8] 0, 128
    %8768 = vxpose.xlu0.c.b16.cont [4/8] 0, 128
    %8769 = vxpose.xlu0.c.b16.cont [5/8] 0, 128
    %8770 = vxpose.xlu0.c.b16.cont [6/8] 0, 128
    %8771 = vxpose.xlu0.c.b16.cont [7/8] 0, 128
    %8772 = vxpose.xlu0.c.b16.end [8/8] 0, 128
    %v8773 = vpop.trf.xlu0
    %v8774 = vpop.trf.xlu0
    %v8775 = vpop.trf.xlu0
    %v8776 = vpop.trf.xlu0
    %v8777 = vpop.trf.xlu0
    %v8778 = vpop.trf.xlu0
    %v8779 = vpop.trf.xlu0
    %v8780 = vpop.trf.xlu0
    %v8782 = vsel %vm739, %v8773, 0
    %v8785 = vsel %vm333, %v8677, 0
    %8787 = vmatprep.subr.bf16.mxu0 0
    %8788 = vmatpush1.bf16.msra.mxu0 %v8785
    %8789 = vmatprep.subr.bf16.mxu0 0
    %8790 = vmatpush1.bf16.msra.mxu0 0
    %8791 = vmatprep.subr.bf16.mxu0 0
    %8792 = vmatpush1.bf16.msra.mxu0 0
    %8793 = vmatprep.subr.bf16.mxu0 0
    %8794 = vmatpush1.bf16.msra.mxu0 0
    %8795 = vmatprep.subr.bf16.mxu0 0
    %8796 = vmatpush1.bf16.msra.mxu0 0
    %8797 = vmatprep.subr.bf16.mxu0 0
    %8798 = vmatpush1.bf16.msra.mxu0 0
    %8799 = vmatprep.subr.bf16.mxu0 0
    %8800 = vmatpush1.bf16.msra.mxu0 0
    %8801 = vmatprep.subr.bf16.mxu0 0
    %8802 = vmatpush1.bf16.msra.mxu0 0
    %8803 = vmatprep.subr.bf16.mxu0 0
    %8804 = vmatpush1.bf16.msra.mxu0 0
    %8805 = vmatprep.subr.bf16.mxu0 0
    %8806 = vmatpush1.bf16.msra.mxu0 0
    %8807 = vmatprep.subr.bf16.mxu0 0
    %8808 = vmatpush1.bf16.msra.mxu0 0
    %8809 = vmatprep.subr.bf16.mxu0 0
    %8810 = vmatpush1.bf16.msra.mxu0 0
    %8811 = vmatprep.subr.bf16.mxu0 0
    %8812 = vmatpush1.bf16.msra.mxu0 0
    %8813 = vmatprep.subr.bf16.mxu0 0
    %8814 = vmatpush1.bf16.msra.mxu0 0
    %8815 = vmatprep.subr.bf16.mxu0 0
    %8816 = vmatpush1.bf16.msra.mxu0 0
    %8817 = vmatprep.subr.bf16.mxu0 0
    %8818 = vmatpush1.bf16.msra.mxu0 0
    %8819 = vmatprep.mubr.bf16.mxu0 0
    %8820 = vmatmul.mubr.bf16.gmra.mrb[0].mxu0 %v8782
    %v8821 = vpop.f32.mrb[0].mxu0
    %v8822 = vadd.f32 0.0, %v8821
    %v8823 = vpop.f32.mrb[0].mxu0
    %v8824 = vpop.f32.mrb[0].mxu0
    %v8825 = vpop.f32.mrb[0].mxu0
    %8826 = vdwg.mxu0
    %8827 = vxpose.xlu0.c.b16.start [1/8] %v8606, 128
    %8828 = vxpose.xlu0.c.b16.cont [2/8] 0, 128
    %8829 = vxpose.xlu0.c.b16.cont [3/8] 0, 128
    %8830 = vxpose.xlu0.c.b16.cont [4/8] 0, 128
    %8831 = vxpose.xlu0.c.b16.cont [5/8] 0, 128
    %8832 = vxpose.xlu0.c.b16.cont [6/8] 0, 128
    %8833 = vxpose.xlu0.c.b16.cont [7/8] 0, 128
    %8834 = vxpose.xlu0.c.b16.end [8/8] 0, 128
    %v8835 = vpop.trf.xlu0
    %v8836 = vpop.trf.xlu0
    %v8837 = vpop.trf.xlu0
    %v8838 = vpop.trf.xlu0
    %v8839 = vpop.trf.xlu0
    %v8840 = vpop.trf.xlu0
    %v8841 = vpop.trf.xlu0
    %v8842 = vpop.trf.xlu0
    %v8844 = vsel %vm739, %v8835, 0
    %v8847 = vsel %vm333, %v8678, 0
    %8849 = vmatprep.subr.bf16.mxu0 0
    %8850 = vmatpush1.bf16.msra.mxu0 %v8847
    %8851 = vmatprep.subr.bf16.mxu0 0
    %8852 = vmatpush1.bf16.msra.mxu0 0
    %8853 = vmatprep.subr.bf16.mxu0 0
    %8854 = vmatpush1.bf16.msra.mxu0 0
    %8855 = vmatprep.subr.bf16.mxu0 0
    %8856 = vmatpush1.bf16.msra.mxu0 0
    %8857 = vmatprep.subr.bf16.mxu0 0
    %8858 = vmatpush1.bf16.msra.mxu0 0
    %8859 = vmatprep.subr.bf16.mxu0 0
    %8860 = vmatpush1.bf16.msra.mxu0 0
    %8861 = vmatprep.subr.bf16.mxu0 0
    %8862 = vmatpush1.bf16.msra.mxu0 0
    %8863 = vmatprep.subr.bf16.mxu0 0
    %8864 = vmatpush1.bf16.msra.mxu0 0
    %8865 = vmatprep.subr.bf16.mxu0 0
    %8866 = vmatpush1.bf16.msra.mxu0 0
    %8867 = vmatprep.subr.bf16.mxu0 0
    %8868 = vmatpush1.bf16.msra.mxu0 0
    %8869 = vmatprep.subr.bf16.mxu0 0
    %8870 = vmatpush1.bf16.msra.mxu0 0
    %8871 = vmatprep.subr.bf16.mxu0 0
    %8872 = vmatpush1.bf16.msra.mxu0 0
    %8873 = vmatprep.subr.bf16.mxu0 0
    %8874 = vmatpush1.bf16.msra.mxu0 0
    %8875 = vmatprep.subr.bf16.mxu0 0
    %8876 = vmatpush1.bf16.msra.mxu0 0
    %8877 = vmatprep.subr.bf16.mxu0 0
    %8878 = vmatpush1.bf16.msra.mxu0 0
    %8879 = vmatprep.subr.bf16.mxu0 0
    %8880 = vmatpush1.bf16.msra.mxu0 0
    %8881 = vmatprep.mubr.bf16.mxu0 0
    %8882 = vmatmul.mubr.bf16.gmra.mrb[0].mxu0 %v8844
    %v8883 = vpop.f32.mrb[0].mxu0
    %v8884 = vadd.f32 0.0, %v8883
    %v8885 = vpop.f32.mrb[0].mxu0
    %v8886 = vpop.f32.mrb[0].mxu0
    %v8887 = vpop.f32.mrb[0].mxu0
    %8888 = vdwg.mxu0
    %8889 = vxpose.xlu0.c.b16.start [1/8] %v8607, 128
    %8890 = vxpose.xlu0.c.b16.cont [2/8] 0, 128
    %8891 = vxpose.xlu0.c.b16.cont [3/8] 0, 128
    %8892 = vxpose.xlu0.c.b16.cont [4/8] 0, 128
    %8893 = vxpose.xlu0.c.b16.cont [5/8] 0, 128
    %8894 = vxpose.xlu0.c.b16.cont [6/8] 0, 128
    %8895 = vxpose.xlu0.c.b16.cont [7/8] 0, 128
    %8896 = vxpose.xlu0.c.b16.end [8/8] 0, 128
    %v8897 = vpop.trf.xlu0
    %v8898 = vpop.trf.xlu0
    %v8899 = vpop.trf.xlu0
    %v8900 = vpop.trf.xlu0
    %v8901 = vpop.trf.xlu0
    %v8902 = vpop.trf.xlu0
    %v8903 = vpop.trf.xlu0
    %v8904 = vpop.trf.xlu0
    %v8906 = vsel %vm739, %v8897, 0
    %v8909 = vsel %vm333, %v8679, 0
    %8911 = vmatprep.subr.bf16.mxu0 0
    %8912 = vmatpush1.bf16.msra.mxu0 %v8909
    %8913 = vmatprep.subr.bf16.mxu0 0
    %8914 = vmatpush1.bf16.msra.mxu0 0
    %8915 = vmatprep.subr.bf16.mxu0 0
    %8916 = vmatpush1.bf16.msra.mxu0 0
    %8917 = vmatprep.subr.bf16.mxu0 0
    %8918 = vmatpush1.bf16.msra.mxu0 0
    %8919 = vmatprep.subr.bf16.mxu0 0
    %8920 = vmatpush1.bf16.msra.mxu0 0
    %8921 = vmatprep.subr.bf16.mxu0 0
    %8922 = vmatpush1.bf16.msra.mxu0 0
    %8923 = vmatprep.subr.bf16.mxu0 0
    %8924 = vmatpush1.bf16.msra.mxu0 0
    %8925 = vmatprep.subr.bf16.mxu0 0
    %8926 = vmatpush1.bf16.msra.mxu0 0
    %8927 = vmatprep.subr.bf16.mxu0 0
    %8928 = vmatpush1.bf16.msra.mxu0 0
    %8929 = vmatprep.subr.bf16.mxu0 0
    %8930 = vmatpush1.bf16.msra.mxu0 0
    %8931 = vmatprep.subr.bf16.mxu0 0
    %8932 = vmatpush1.bf16.msra.mxu0 0
    %8933 = vmatprep.subr.bf16.mxu0 0
    %8934 = vmatpush1.bf16.msra.mxu0 0
    %8935 = vmatprep.subr.bf16.mxu0 0
    %8936 = vmatpush1.bf16.msra.mxu0 0
    %8937 = vmatprep.subr.bf16.mxu0 0
    %8938 = vmatpush1.bf16.msra.mxu0 0
    %8939 = vmatprep.subr.bf16.mxu0 0
    %8940 = vmatpush1.bf16.msra.mxu0 0
    %8941 = vmatprep.subr.bf16.mxu0 0
    %8942 = vmatpush1.bf16.msra.mxu0 0
    %8943 = vmatprep.mubr.bf16.mxu0 0
    %8944 = vmatmul.mubr.bf16.gmra.mrb[0].mxu0 %v8906
    %v8945 = vpop.f32.mrb[0].mxu0
    %v8946 = vadd.f32 0.0, %v8945
    %v8947 = vpop.f32.mrb[0].mxu0
    %v8948 = vpop.f32.mrb[0].mxu0
    %v8949 = vpop.f32.mrb[0].mxu0
    %8950 = vdwg.mxu0
    %8951 = vxpose.xlu0.c.b16.start [1/8] %v8608, 128
    %8952 = vxpose.xlu0.c.b16.cont [2/8] 0, 128
    %8953 = vxpose.xlu0.c.b16.cont [3/8] 0, 128
    %8954 = vxpose.xlu0.c.b16.cont [4/8] 0, 128
    %8955 = vxpose.xlu0.c.b16.cont [5/8] 0, 128
    %8956 = vxpose.xlu0.c.b16.cont [6/8] 0, 128
    %8957 = vxpose.xlu0.c.b16.cont [7/8] 0, 128
    %8958 = vxpose.xlu0.c.b16.end [8/8] 0, 128
    %v8959 = vpop.trf.xlu0
    %v8960 = vpop.trf.xlu0
    %v8961 = vpop.trf.xlu0
    %v8962 = vpop.trf.xlu0
    %v8963 = vpop.trf.xlu0
    %v8964 = vpop.trf.xlu0
    %v8965 = vpop.trf.xlu0
    %v8966 = vpop.trf.xlu0
    %v8968 = vsel %vm739, %v8959, 0
    %v8971 = vsel %vm333, %v8680, 0
    %8973 = vmatprep.subr.bf16.mxu0 0
    %8974 = vmatpush1.bf16.msra.mxu0 %v8971
    %8975 = vmatprep.subr.bf16.mxu0 0
    %8976 = vmatpush1.bf16.msra.mxu0 0
    %8977 = vmatprep.subr.bf16.mxu0 0
    %8978 = vmatpush1.bf16.msra.mxu0 0
    %8979 = vmatprep.subr.bf16.mxu0 0
    %8980 = vmatpush1.bf16.msra.mxu0 0
    %8981 = vmatprep.subr.bf16.mxu0 0
    %8982 = vmatpush1.bf16.msra.mxu0 0
    %8983 = vmatprep.subr.bf16.mxu0 0
    %8984 = vmatpush1.bf16.msra.mxu0 0
    %8985 = vmatprep.subr.bf16.mxu0 0
    %8986 = vmatpush1.bf16.msra.mxu0 0
    %8987 = vmatprep.subr.bf16.mxu0 0
    %8988 = vmatpush1.bf16.msra.mxu0 0
    %8989 = vmatprep.subr.bf16.mxu0 0
    %8990 = vmatpush1.bf16.msra.mxu0 0
    %8991 = vmatprep.subr.bf16.mxu0 0
    %8992 = vmatpush1.bf16.msra.mxu0 0
    %8993 = vmatprep.subr.bf16.mxu0 0
    %8994 = vmatpush1.bf16.msra.mxu0 0
    %8995 = vmatprep.subr.bf16.mxu0 0
    %8996 = vmatpush1.bf16.msra.mxu0 0
    %8997 = vmatprep.subr.bf16.mxu0 0
    %8998 = vmatpush1.bf16.msra.mxu0 0
    %8999 = vmatprep.subr.bf16.mxu0 0
    %9000 = vmatpush1.bf16.msra.mxu0 0
    %9001 = vmatprep.subr.bf16.mxu0 0
    %9002 = vmatpush1.bf16.msra.mxu0 0
    %9003 = vmatprep.subr.bf16.mxu0 0
    %9004 = vmatpush1.bf16.msra.mxu0 0
    %9005 = vmatprep.mubr.bf16.mxu0 0
    %9006 = vmatmul.mubr.bf16.gmra.mrb[0].mxu0 %v8968
    %v9007 = vpop.f32.mrb[0].mxu0
    %v9008 = vadd.f32 0.0, %v9007
    %v9009 = vpop.f32.mrb[0].mxu0
    %v9010 = vpop.f32.mrb[0].mxu0
    %v9011 = vpop.f32.mrb[0].mxu0
    %9012 = vdwg.mxu0
    %9013 = vxpose.xlu0.c.b16.start [1/8] %v8609, 128
    %9014 = vxpose.xlu0.c.b16.cont [2/8] 0, 128
    %9015 = vxpose.xlu0.c.b16.cont [3/8] 0, 128
    %9016 = vxpose.xlu0.c.b16.cont [4/8] 0, 128
    %9017 = vxpose.xlu0.c.b16.cont [5/8] 0, 128
    %9018 = vxpose.xlu0.c.b16.cont [6/8] 0, 128
    %9019 = vxpose.xlu0.c.b16.cont [7/8] 0, 128
    %9020 = vxpose.xlu0.c.b16.end [8/8] 0, 128
    %v9021 = vpop.trf.xlu0
    %v9022 = vpop.trf.xlu0
    %v9023 = vpop.trf.xlu0
    %v9024 = vpop.trf.xlu0
    %v9025 = vpop.trf.xlu0
    %v9026 = vpop.trf.xlu0
    %v9027 = vpop.trf.xlu0
    %v9028 = vpop.trf.xlu0
    %v9030 = vsel %vm739, %v9021, 0
    %v9033 = vsel %vm333, %v8681, 0
    %9035 = vmatprep.subr.bf16.mxu0 0
    %9036 = vmatpush1.bf16.msra.mxu0 %v9033
    %9037 = vmatprep.subr.bf16.mxu0 0
    %9038 = vmatpush1.bf16.msra.mxu0 0
    %9039 = vmatprep.subr.bf16.mxu0 0
    %9040 = vmatpush1.bf16.msra.mxu0 0
    %9041 = vmatprep.subr.bf16.mxu0 0
    %9042 = vmatpush1.bf16.msra.mxu0 0
    %9043 = vmatprep.subr.bf16.mxu0 0
    %9044 = vmatpush1.bf16.msra.mxu0 0
    %9045 = vmatprep.subr.bf16.mxu0 0
    %9046 = vmatpush1.bf16.msra.mxu0 0
    %9047 = vmatprep.subr.bf16.mxu0 0
    %9048 = vmatpush1.bf16.msra.mxu0 0
    %9049 = vmatprep.subr.bf16.mxu0 0
    %9050 = vmatpush1.bf16.msra.mxu0 0
    %9051 = vmatprep.subr.bf16.mxu0 0
    %9052 = vmatpush1.bf16.msra.mxu0 0
    %9053 = vmatprep.subr.bf16.mxu0 0
    %9054 = vmatpush1.bf16.msra.mxu0 0
    %9055 = vmatprep.subr.bf16.mxu0 0
    %9056 = vmatpush1.bf16.msra.mxu0 0
    %9057 = vmatprep.subr.bf16.mxu0 0
    %9058 = vmatpush1.bf16.msra.mxu0 0
    %9059 = vmatprep.subr.bf16.mxu0 0
    %9060 = vmatpush1.bf16.msra.mxu0 0
    %9061 = vmatprep.subr.bf16.mxu0 0
    %9062 = vmatpush1.bf16.msra.mxu0 0
    %9063 = vmatprep.subr.bf16.mxu0 0
    %9064 = vmatpush1.bf16.msra.mxu0 0
    %9065 = vmatprep.subr.bf16.mxu0 0
    %9066 = vmatpush1.bf16.msra.mxu0 0
    %9067 = vmatprep.mubr.bf16.mxu0 0
    %9068 = vmatmul.mubr.bf16.gmra.mrb[0].mxu0 %v9030
    %v9069 = vpop.f32.mrb[0].mxu0
    %v9070 = vadd.f32 0.0, %v9069
    %v9071 = vpop.f32.mrb[0].mxu0
    %v9072 = vpop.f32.mrb[0].mxu0
    %v9073 = vpop.f32.mrb[0].mxu0
    %9074 = vdwg.mxu0
    %9075 = vxpose.xlu0.c.b16.start [1/8] %v8610, 128
    %9076 = vxpose.xlu0.c.b16.cont [2/8] 0, 128
    %9077 = vxpose.xlu0.c.b16.cont [3/8] 0, 128
    %9078 = vxpose.xlu0.c.b16.cont [4/8] 0, 128
    %9079 = vxpose.xlu0.c.b16.cont [5/8] 0, 128
    %9080 = vxpose.xlu0.c.b16.cont [6/8] 0, 128
    %9081 = vxpose.xlu0.c.b16.cont [7/8] 0, 128
    %9082 = vxpose.xlu0.c.b16.end [8/8] 0, 128
    %v9083 = vpop.trf.xlu0
    %v9084 = vpop.trf.xlu0
    %v9085 = vpop.trf.xlu0
    %v9086 = vpop.trf.xlu0
    %v9087 = vpop.trf.xlu0
    %v9088 = vpop.trf.xlu0
    %v9089 = vpop.trf.xlu0
    %v9090 = vpop.trf.xlu0
    %v9092 = vsel %vm739, %v9083, 0
    %v9095 = vsel %vm333, %v8682, 0
    %9097 = vmatprep.subr.bf16.mxu0 0
    %9098 = vmatpush1.bf16.msra.mxu0 %v9095
    %9099 = vmatprep.subr.bf16.mxu0 0
    %9100 = vmatpush1.bf16.msra.mxu0 0
    %9101 = vmatprep.subr.bf16.mxu0 0
    %9102 = vmatpush1.bf16.msra.mxu0 0
    %9103 = vmatprep.subr.bf16.mxu0 0
    %9104 = vmatpush1.bf16.msra.mxu0 0
    %9105 = vmatprep.subr.bf16.mxu0 0
    %9106 = vmatpush1.bf16.msra.mxu0 0
    %9107 = vmatprep.subr.bf16.mxu0 0
    %9108 = vmatpush1.bf16.msra.mxu0 0
    %9109 = vmatprep.subr.bf16.mxu0 0
    %9110 = vmatpush1.bf16.msra.mxu0 0
    %9111 = vmatprep.subr.bf16.mxu0 0
    %9112 = vmatpush1.bf16.msra.mxu0 0
    %9113 = vmatprep.subr.bf16.mxu0 0
    %9114 = vmatpush1.bf16.msra.mxu0 0
    %9115 = vmatprep.subr.bf16.mxu0 0
    %9116 = vmatpush1.bf16.msra.mxu0 0
    %9117 = vmatprep.subr.bf16.mxu0 0
    %9118 = vmatpush1.bf16.msra.mxu0 0
    %9119 = vmatprep.subr.bf16.mxu0 0
    %9120 = vmatpush1.bf16.msra.mxu0 0
    %9121 = vmatprep.subr.bf16.mxu0 0
    %9122 = vmatpush1.bf16.msra.mxu0 0
    %9123 = vmatprep.subr.bf16.mxu0 0
    %9124 = vmatpush1.bf16.msra.mxu0 0
    %9125 = vmatprep.subr.bf16.mxu0 0
    %9126 = vmatpush1.bf16.msra.mxu0 0
    %9127 = vmatprep.subr.bf16.mxu0 0
    %9128 = vmatpush1.bf16.msra.mxu0 0
    %9129 = vmatprep.mubr.bf16.mxu0 0
    %9130 = vmatmul.mubr.bf16.gmra.mrb[0].mxu0 %v9092
    %v9131 = vpop.f32.mrb[0].mxu0
    %v9132 = vadd.f32 0.0, %v9131
    %v9133 = vpop.f32.mrb[0].mxu0
    %v9134 = vpop.f32.mrb[0].mxu0
    %v9135 = vpop.f32.mrb[0].mxu0
    %9136 = vdwg.mxu0
    %9137 = vxpose.xlu0.c.b16.start [1/8] %v8611, 128
    %9138 = vxpose.xlu0.c.b16.cont [2/8] 0, 128
    %9139 = vxpose.xlu0.c.b16.cont [3/8] 0, 128
    %9140 = vxpose.xlu0.c.b16.cont [4/8] 0, 128
    %9141 = vxpose.xlu0.c.b16.cont [5/8] 0, 128
    %9142 = vxpose.xlu0.c.b16.cont [6/8] 0, 128
    %9143 = vxpose.xlu0.c.b16.cont [7/8] 0, 128
    %9144 = vxpose.xlu0.c.b16.end [8/8] 0, 128
    %v9145 = vpop.trf.xlu0
    %v9146 = vpop.trf.xlu0
    %v9147 = vpop.trf.xlu0
    %v9148 = vpop.trf.xlu0
    %v9149 = vpop.trf.xlu0
    %v9150 = vpop.trf.xlu0
    %v9151 = vpop.trf.xlu0
    %v9152 = vpop.trf.xlu0
    %v9154 = vsel %vm739, %v9145, 0
    %v9157 = vsel %vm333, %v8683, 0
    %9159 = vmatprep.subr.bf16.mxu0 0
    %9160 = vmatpush1.bf16.msra.mxu0 %v9157
    %9161 = vmatprep.subr.bf16.mxu0 0
    %9162 = vmatpush1.bf16.msra.mxu0 0
    %9163 = vmatprep.subr.bf16.mxu0 0
    %9164 = vmatpush1.bf16.msra.mxu0 0
    %9165 = vmatprep.subr.bf16.mxu0 0
    %9166 = vmatpush1.bf16.msra.mxu0 0
    %9167 = vmatprep.subr.bf16.mxu0 0
    %9168 = vmatpush1.bf16.msra.mxu0 0
    %9169 = vmatprep.subr.bf16.mxu0 0
    %9170 = vmatpush1.bf16.msra.mxu0 0
    %9171 = vmatprep.subr.bf16.mxu0 0
    %9172 = vmatpush1.bf16.msra.mxu0 0
    %9173 = vmatprep.subr.bf16.mxu0 0
    %9174 = vmatpush1.bf16.msra.mxu0 0
    %9175 = vmatprep.subr.bf16.mxu0 0
    %9176 = vmatpush1.bf16.msra.mxu0 0
    %9177 = vmatprep.subr.bf16.mxu0 0
    %9178 = vmatpush1.bf16.msra.mxu0 0
    %9179 = vmatprep.subr.bf16.mxu0 0
    %9180 = vmatpush1.bf16.msra.mxu0 0
    %9181 = vmatprep.subr.bf16.mxu0 0
    %9182 = vmatpush1.bf16.msra.mxu0 0
    %9183 = vmatprep.subr.bf16.mxu0 0
    %9184 = vmatpush1.bf16.msra.mxu0 0
    %9185 = vmatprep.subr.bf16.mxu0 0
    %9186 = vmatpush1.bf16.msra.mxu0 0
    %9187 = vmatprep.subr.bf16.mxu0 0
    %9188 = vmatpush1.bf16.msra.mxu0 0
    %9189 = vmatprep.subr.bf16.mxu0 0
    %9190 = vmatpush1.bf16.msra.mxu0 0
    %9191 = vmatprep.mubr.bf16.mxu0 0
    %9192 = vmatmul.mubr.bf16.gmra.mrb[0].mxu0 %v9154
    %v9193 = vpop.f32.mrb[0].mxu0
    %v9194 = vadd.f32 0.0, %v9193
    %v9195 = vpop.f32.mrb[0].mxu0
    %v9196 = vpop.f32.mrb[0].mxu0
    %v9197 = vpop.f32.mrb[0].mxu0
    %9198 = vdwg.mxu0
    %9199 = vxpose.xlu0.c.b16.start [1/8] %v8612, 128
    %9200 = vxpose.xlu0.c.b16.cont [2/8] 0, 128
    %9201 = vxpose.xlu0.c.b16.cont [3/8] 0, 128
    %9202 = vxpose.xlu0.c.b16.cont [4/8] 0, 128
    %9203 = vxpose.xlu0.c.b16.cont [5/8] 0, 128
    %9204 = vxpose.xlu0.c.b16.cont [6/8] 0, 128
    %9205 = vxpose.xlu0.c.b16.cont [7/8] 0, 128
    %9206 = vxpose.xlu0.c.b16.end [8/8] 0, 128
    %v9207 = vpop.trf.xlu0
    %v9208 = vpop.trf.xlu0
    %v9209 = vpop.trf.xlu0
    %v9210 = vpop.trf.xlu0
    %v9211 = vpop.trf.xlu0
    %v9212 = vpop.trf.xlu0
    %v9213 = vpop.trf.xlu0
    %v9214 = vpop.trf.xlu0
    %v9216 = vsel %vm739, %v9207, 0
    %v9219 = vsel %vm333, %v8684, 0
    %9221 = vmatprep.subr.bf16.mxu0 0
    %9222 = vmatpush1.bf16.msra.mxu0 %v9219
    %9223 = vmatprep.subr.bf16.mxu0 0
    %9224 = vmatpush1.bf16.msra.mxu0 0
    %9225 = vmatprep.subr.bf16.mxu0 0
    %9226 = vmatpush1.bf16.msra.mxu0 0
    %9227 = vmatprep.subr.bf16.mxu0 0
    %9228 = vmatpush1.bf16.msra.mxu0 0
    %9229 = vmatprep.subr.bf16.mxu0 0
    %9230 = vmatpush1.bf16.msra.mxu0 0
    %9231 = vmatprep.subr.bf16.mxu0 0
    %9232 = vmatpush1.bf16.msra.mxu0 0
    %9233 = vmatprep.subr.bf16.mxu0 0
    %9234 = vmatpush1.bf16.msra.mxu0 0
    %9235 = vmatprep.subr.bf16.mxu0 0
    %9236 = vmatpush1.bf16.msra.mxu0 0
    %9237 = vmatprep.subr.bf16.mxu0 0
    %9238 = vmatpush1.bf16.msra.mxu0 0
    %9239 = vmatprep.subr.bf16.mxu0 0
    %9240 = vmatpush1.bf16.msra.mxu0 0
    %9241 = vmatprep.subr.bf16.mxu0 0
    %9242 = vmatpush1.bf16.msra.mxu0 0
    %9243 = vmatprep.subr.bf16.mxu0 0
    %9244 = vmatpush1.bf16.msra.mxu0 0
    %9245 = vmatprep.subr.bf16.mxu0 0
    %9246 = vmatpush1.bf16.msra.mxu0 0
    %9247 = vmatprep.subr.bf16.mxu0 0
    %9248 = vmatpush1.bf16.msra.mxu0 0
    %9249 = vmatprep.subr.bf16.mxu0 0
    %9250 = vmatpush1.bf16.msra.mxu0 0
    %9251 = vmatprep.subr.bf16.mxu0 0
    %9252 = vmatpush1.bf16.msra.mxu0 0
    %9253 = vmatprep.mubr.bf16.mxu0 0
    %9254 = vmatmul.mubr.bf16.gmra.mrb[0].mxu0 %v9216
    %v9255 = vpop.f32.mrb[0].mxu0
    %v9256 = vadd.f32 0.0, %v9255
    %v9257 = vpop.f32.mrb[0].mxu0
    %v9258 = vpop.f32.mrb[0].mxu0
    %v9259 = vpop.f32.mrb[0].mxu0
    %9260 = vdwg.mxu0
    %v9261 = vsel %vm739, %v8822, -inf
    %9262 = vmax.xlane.f32.xlu0 %v9261
    %v9263 = vpop.xlane.xlu0 %9262
    %v9264 = vsel %vm739, %v8884, -inf
    %9265 = vmax.xlane.f32.xlu0 %v9264
    %v9266 = vpop.xlane.xlu0 %9265
    %v9267 = vsel %vm739, %v8946, -inf
    %9268 = vmax.xlane.f32.xlu0 %v9267
    %v9269 = vpop.xlane.xlu0 %9268
    %v9270 = vsel %vm739, %v9008, -inf
    %9271 = vmax.xlane.f32.xlu0 %v9270
    %v9272 = vpop.xlane.xlu0 %9271
    %v9273 = vsel %vm739, %v9070, -inf
    %9274 = vmax.xlane.f32.xlu0 %v9273
    %v9275 = vpop.xlane.xlu0 %9274
    %v9276 = vsel %vm739, %v9132, -inf
    %9277 = vmax.xlane.f32.xlu0 %v9276
    %v9278 = vpop.xlane.xlu0 %9277
    %v9279 = vsel %vm739, %v9194, -inf
    %9280 = vmax.xlane.f32.xlu0 %v9279
    %v9281 = vpop.xlane.xlu0 %9280
    %v9282 = vsel %vm739, %v9256, -inf
    %9283 = vmax.xlane.f32.xlu0 %v9282
    %v9284 = vpop.xlane.xlu0 %9283
    %v9285 = vsub.f32 %v8822, %v9263
    %v9286 = vsub.f32 %v8884, %v9266
    %v9287 = vsub.f32 %v8946, %v9269
    %v9288 = vsub.f32 %v9008, %v9272
    %v9289 = vsub.f32 %v9070, %v9275
    %v9290 = vsub.f32 %v9132, %v9278
    %v9291 = vsub.f32 %v9194, %v9281
    %v9292 = vsub.f32 %v9256, %v9284
    %v9293 = vmul.f32 %v9285, 1.442695
    %v9294 = vpow.pop %v9293
    %v9295 = vmul.f32 %v9286, 1.442695
    %v9296 = vpow.pop %v9295
    %v9297 = vmul.f32 %v9287, 1.442695
    %v9298 = vpow.pop %v9297
    %v9299 = vmul.f32 %v9288, 1.442695
    %v9300 = vpow.pop %v9299
    %v9301 = vmul.f32 %v9289, 1.442695
    %v9302 = vpow.pop %v9301
    %v9303 = vmul.f32 %v9290, 1.442695
    %v9304 = vpow.pop %v9303
    %v9305 = vmul.f32 %v9291, 1.442695
    %v9306 = vpow.pop %v9305
    %v9307 = vmul.f32 %v9292, 1.442695
    %v9308 = vpow.pop %v9307
    %v9309 = vsel %vm739, %v9294, 0.0
    %9310 = vadd.xlane.f32.xlu0 %v9309
    %v9311 = vpop.xlane.xlu0 %9310
    %v9312 = vsel %vm739, %v9296, 0.0
    %9313 = vadd.xlane.f32.xlu0 %v9312
    %v9314 = vpop.xlane.xlu0 %9313
    %v9315 = vsel %vm739, %v9298, 0.0
    %9316 = vadd.xlane.f32.xlu0 %v9315
    %v9317 = vpop.xlane.xlu0 %9316
    %v9318 = vsel %vm739, %v9300, 0.0
    %9319 = vadd.xlane.f32.xlu0 %v9318
    %v9320 = vpop.xlane.xlu0 %9319
    %v9321 = vsel %vm739, %v9302, 0.0
    %9322 = vadd.xlane.f32.xlu0 %v9321
    %v9323 = vpop.xlane.xlu0 %9322
    %v9324 = vsel %vm739, %v9304, 0.0
    %9325 = vadd.xlane.f32.xlu0 %v9324
    %v9326 = vpop.xlane.xlu0 %9325
    %v9327 = vsel %vm739, %v9306, 0.0
    %9328 = vadd.xlane.f32.xlu0 %v9327
    %v9329 = vpop.xlane.xlu0 %9328
    %v9330 = vsel %vm739, %v9308, 0.0
    %9331 = vadd.xlane.f32.xlu0 %v9330
    %v9332 = vpop.xlane.xlu0 %9331
    %v9333 = vrcp.pop %v9311
    %v9334 = vmul.f32 %v9294, %v9333
    %v9335 = vrcp.pop %v9314
    %v9336 = vmul.f32 %v9296, %v9335
    %v9337 = vrcp.pop %v9317
    %v9338 = vmul.f32 %v9298, %v9337
    %v9339 = vrcp.pop %v9320
    %v9340 = vmul.f32 %v9300, %v9339
    %v9341 = vrcp.pop %v9323
    %v9342 = vmul.f32 %v9302, %v9341
    %v9343 = vrcp.pop %v9326
    %v9344 = vmul.f32 %v9304, %v9343
    %v9345 = vrcp.pop %v9329
    %v9346 = vmul.f32 %v9306, %v9345
    %v9347 = vrcp.pop %v9332
    %v9348 = vmul.f32 %v9308, %v9347
    %v9349 = vpack.c.bf16 %v9334, %v9334
    %v9350 = vpack.c.bf16 %v9336, %v9336
    %v9351 = vpack.c.bf16 %v9338, %v9338
    %v9352 = vpack.c.bf16 %v9340, %v9340
    %v9353 = vpack.c.bf16 %v9342, %v9342
    %v9354 = vpack.c.bf16 %v9344, %v9344
    %v9355 = vpack.c.bf16 %v9346, %v9346
    %v9356 = vpack.c.bf16 %v9348, %v9348
    %v9358 = vsel %vm739, %v8757, 0
    %v9361 = vsel %vm739, %v9349, 0
    %9363 = vmatprep.subr.bf16.mxu0 0
    %9364 = vmatpush1.bf16.xpose.msra.mxu0 %v9361
    %9365 = vmatprep.subr.bf16.mxu0 0
    %9366 = vmatpush1.bf16.xpose.msra.mxu0 0
    %9367 = vmatprep.subr.bf16.mxu0 0
    %9368 = vmatpush1.bf16.xpose.msra.mxu0 0
    %9369 = vmatprep.subr.bf16.mxu0 0
    %9370 = vmatpush1.bf16.xpose.msra.mxu0 0
    %9371 = vmatprep.subr.bf16.mxu0 0
    %9372 = vmatpush1.bf16.xpose.msra.mxu0 0
    %9373 = vmatprep.subr.bf16.mxu0 0
    %9374 = vmatpush1.bf16.xpose.msra.mxu0 0
    %9375 = vmatprep.subr.bf16.mxu0 0
    %9376 = vmatpush1.bf16.xpose.msra.mxu0 0
    %9377 = vmatprep.subr.bf16.mxu0 0
    %9378 = vmatpush1.bf16.xpose.msra.mxu0 0
    %9379 = vmatprep.subr.bf16.mxu0 0
    %9380 = vmatpush1.bf16.xpose.msra.mxu0 0
    %9381 = vmatprep.subr.bf16.mxu0 0
    %9382 = vmatpush1.bf16.xpose.msra.mxu0 0
    %9383 = vmatprep.subr.bf16.mxu0 0
    %9384 = vmatpush1.bf16.xpose.msra.mxu0 0
    %9385 = vmatprep.subr.bf16.mxu0 0
    %9386 = vmatpush1.bf16.xpose.msra.mxu0 0
    %9387 = vmatprep.subr.bf16.mxu0 0
    %9388 = vmatpush1.bf16.xpose.msra.mxu0 0
    %9389 = vmatprep.subr.bf16.mxu0 0
    %9390 = vmatpush1.bf16.xpose.msra.mxu0 0
    %9391 = vmatprep.subr.bf16.mxu0 0
    %9392 = vmatpush1.bf16.xpose.msra.mxu0 0
    %9393 = vmatprep.subr.bf16.mxu0 0
    %9394 = vmatpush1.bf16.xpose.msra.mxu0 0
    %9395 = vmatprep.mubr.bf16.mxu0 0
    %9396 = vmatmul.mubr.bf16.gmra.mrb[0].mxu0 %v9358
    %v9397 = vpop.f32.mrb[0].mxu0
    %v9398 = vadd.f32 0.0, %v9397
    %v9399 = vpop.f32.mrb[0].mxu0
    %v9400 = vpop.f32.mrb[0].mxu0
    %v9401 = vpop.f32.mrb[0].mxu0
    %9402 = vdwg.mxu0
    %v9404 = vsel %vm739, %v8758, 0
    %v9407 = vsel %vm739, %v9350, 0
    %9409 = vmatprep.subr.bf16.mxu0 0
    %9410 = vmatpush1.bf16.xpose.msra.mxu0 %v9407
    %9411 = vmatprep.subr.bf16.mxu0 0
    %9412 = vmatpush1.bf16.xpose.msra.mxu0 0
    %9413 = vmatprep.subr.bf16.mxu0 0
    %9414 = vmatpush1.bf16.xpose.msra.mxu0 0
    %9415 = vmatprep.subr.bf16.mxu0 0
    %9416 = vmatpush1.bf16.xpose.msra.mxu0 0
    %9417 = vmatprep.subr.bf16.mxu0 0
    %9418 = vmatpush1.bf16.xpose.msra.mxu0 0
    %9419 = vmatprep.subr.bf16.mxu0 0
    %9420 = vmatpush1.bf16.xpose.msra.mxu0 0
    %9421 = vmatprep.subr.bf16.mxu0 0
    %9422 = vmatpush1.bf16.xpose.msra.mxu0 0
    %9423 = vmatprep.subr.bf16.mxu0 0
    %9424 = vmatpush1.bf16.xpose.msra.mxu0 0
    %9425 = vmatprep.subr.bf16.mxu0 0
    %9426 = vmatpush1.bf16.xpose.msra.mxu0 0
    %9427 = vmatprep.subr.bf16.mxu0 0
    %9428 = vmatpush1.bf16.xpose.msra.mxu0 0
    %9429 = vmatprep.subr.bf16.mxu0 0
    %9430 = vmatpush1.bf16.xpose.msra.mxu0 0
    %9431 = vmatprep.subr.bf16.mxu0 0
    %9432 = vmatpush1.bf16.xpose.msra.mxu0 0
    %9433 = vmatprep.subr.bf16.mxu0 0
    %9434 = vmatpush1.bf16.xpose.msra.mxu0 0
    %9435 = vmatprep.subr.bf16.mxu0 0
    %9436 = vmatpush1.bf16.xpose.msra.mxu0 0
    %9437 = vmatprep.subr.bf16.mxu0 0
    %9438 = vmatpush1.bf16.xpose.msra.mxu0 0
    %9439 = vmatprep.subr.bf16.mxu0 0
    %9440 = vmatpush1.bf16.xpose.msra.mxu0 0
    %9441 = vmatprep.mubr.bf16.mxu0 0
    %9442 = vmatmul.mubr.bf16.gmra.mrb[0].mxu0 %v9404
    %v9443 = vpop.f32.mrb[0].mxu0
    %v9444 = vadd.f32 0.0, %v9443
    %v9445 = vpop.f32.mrb[0].mxu0
    %v9446 = vpop.f32.mrb[0].mxu0
    %v9447 = vpop.f32.mrb[0].mxu0
    %9448 = vdwg.mxu0
    %v9450 = vsel %vm739, %v8759, 0
    %v9453 = vsel %vm739, %v9351, 0
    %9455 = vmatprep.subr.bf16.mxu0 0
    %9456 = vmatpush1.bf16.xpose.msra.mxu0 %v9453
    %9457 = vmatprep.subr.bf16.mxu0 0
    %9458 = vmatpush1.bf16.xpose.msra.mxu0 0
    %9459 = vmatprep.subr.bf16.mxu0 0
    %9460 = vmatpush1.bf16.xpose.msra.mxu0 0
    %9461 = vmatprep.subr.bf16.mxu0 0
    %9462 = vmatpush1.bf16.xpose.msra.mxu0 0
    %9463 = vmatprep.subr.bf16.mxu0 0
    %9464 = vmatpush1.bf16.xpose.msra.mxu0 0
    %9465 = vmatprep.subr.bf16.mxu0 0
    %9466 = vmatpush1.bf16.xpose.msra.mxu0 0
    %9467 = vmatprep.subr.bf16.mxu0 0
    %9468 = vmatpush1.bf16.xpose.msra.mxu0 0
    %9469 = vmatprep.subr.bf16.mxu0 0
    %9470 = vmatpush1.bf16.xpose.msra.mxu0 0
    %9471 = vmatprep.subr.bf16.mxu0 0
    %9472 = vmatpush1.bf16.xpose.msra.mxu0 0
    %9473 = vmatprep.subr.bf16.mxu0 0
    %9474 = vmatpush1.bf16.xpose.msra.mxu0 0
    %9475 = vmatprep.subr.bf16.mxu0 0
    %9476 = vmatpush1.bf16.xpose.msra.mxu0 0
    %9477 = vmatprep.subr.bf16.mxu0 0
    %9478 = vmatpush1.bf16.xpose.msra.mxu0 0
    %9479 = vmatprep.subr.bf16.mxu0 0
    %9480 = vmatpush1.bf16.xpose.msra.mxu0 0
    %9481 = vmatprep.subr.bf16.mxu0 0
    %9482 = vmatpush1.bf16.xpose.msra.mxu0 0
    %9483 = vmatprep.subr.bf16.mxu0 0
    %9484 = vmatpush1.bf16.xpose.msra.mxu0 0
    %9485 = vmatprep.subr.bf16.mxu0 0
    %9486 = vmatpush1.bf16.xpose.msra.mxu0 0
    %9487 = vmatprep.mubr.bf16.mxu0 0
    %9488 = vmatmul.mubr.bf16.gmra.mrb[0].mxu0 %v9450
    %v9489 = vpop.f32.mrb[0].mxu0
    %v9490 = vadd.f32 0.0, %v9489
    %v9491 = vpop.f32.mrb[0].mxu0
    %v9492 = vpop.f32.mrb[0].mxu0
    %v9493 = vpop.f32.mrb[0].mxu0
    %9494 = vdwg.mxu0
    %v9496 = vsel %vm739, %v8760, 0
    %v9499 = vsel %vm739, %v9352, 0
    %9501 = vmatprep.subr.bf16.mxu0 0
    %9502 = vmatpush1.bf16.xpose.msra.mxu0 %v9499
    %9503 = vmatprep.subr.bf16.mxu0 0
    %9504 = vmatpush1.bf16.xpose.msra.mxu0 0
    %9505 = vmatprep.subr.bf16.mxu0 0
    %9506 = vmatpush1.bf16.xpose.msra.mxu0 0
    %9507 = vmatprep.subr.bf16.mxu0 0
    %9508 = vmatpush1.bf16.xpose.msra.mxu0 0
    %9509 = vmatprep.subr.bf16.mxu0 0
    %9510 = vmatpush1.bf16.xpose.msra.mxu0 0
    %9511 = vmatprep.subr.bf16.mxu0 0
    %9512 = vmatpush1.bf16.xpose.msra.mxu0 0
    %9513 = vmatprep.subr.bf16.mxu0 0
    %9514 = vmatpush1.bf16.xpose.msra.mxu0 0
    %9515 = vmatprep.subr.bf16.mxu0 0
    %9516 = vmatpush1.bf16.xpose.msra.mxu0 0
    %9517 = vmatprep.subr.bf16.mxu0 0
    %9518 = vmatpush1.bf16.xpose.msra.mxu0 0
    %9519 = vmatprep.subr.bf16.mxu0 0
    %9520 = vmatpush1.bf16.xpose.msra.mxu0 0
    %9521 = vmatprep.subr.bf16.mxu0 0
    %9522 = vmatpush1.bf16.xpose.msra.mxu0 0
    %9523 = vmatprep.subr.bf16.mxu0 0
    %9524 = vmatpush1.bf16.xpose.msra.mxu0 0
    %9525 = vmatprep.subr.bf16.mxu0 0
    %9526 = vmatpush1.bf16.xpose.msra.mxu0 0
    %9527 = vmatprep.subr.bf16.mxu0 0
    %9528 = vmatpush1.bf16.xpose.msra.mxu0 0
    %9529 = vmatprep.subr.bf16.mxu0 0
    %9530 = vmatpush1.bf16.xpose.msra.mxu0 0
    %9531 = vmatprep.subr.bf16.mxu0 0
    %9532 = vmatpush1.bf16.xpose.msra.mxu0 0
    %9533 = vmatprep.mubr.bf16.mxu0 0
    %9534 = vmatmul.mubr.bf16.gmra.mrb[0].mxu0 %v9496
    %v9535 = vpop.f32.mrb[0].mxu0
    %v9536 = vadd.f32 0.0, %v9535
    %v9537 = vpop.f32.mrb[0].mxu0
    %v9538 = vpop.f32.mrb[0].mxu0
    %v9539 = vpop.f32.mrb[0].mxu0
    %9540 = vdwg.mxu0
    %v9542 = vsel %vm739, %v8761, 0
    %v9545 = vsel %vm739, %v9353, 0
    %9547 = vmatprep.subr.bf16.mxu0 0
    %9548 = vmatpush1.bf16.xpose.msra.mxu0 %v9545
    %9549 = vmatprep.subr.bf16.mxu0 0
    %9550 = vmatpush1.bf16.xpose.msra.mxu0 0
    %9551 = vmatprep.subr.bf16.mxu0 0
    %9552 = vmatpush1.bf16.xpose.msra.mxu0 0
    %9553 = vmatprep.subr.bf16.mxu0 0
    %9554 = vmatpush1.bf16.xpose.msra.mxu0 0
    %9555 = vmatprep.subr.bf16.mxu0 0
    %9556 = vmatpush1.bf16.xpose.msra.mxu0 0
    %9557 = vmatprep.subr.bf16.mxu0 0
    %9558 = vmatpush1.bf16.xpose.msra.mxu0 0
    %9559 = vmatprep.subr.bf16.mxu0 0
    %9560 = vmatpush1.bf16.xpose.msra.mxu0 0
    %9561 = vmatprep.subr.bf16.mxu0 0
    %9562 = vmatpush1.bf16.xpose.msra.mxu0 0
    %9563 = vmatprep.subr.bf16.mxu0 0
    %9564 = vmatpush1.bf16.xpose.msra.mxu0 0
    %9565 = vmatprep.subr.bf16.mxu0 0
    %9566 = vmatpush1.bf16.xpose.msra.mxu0 0
    %9567 = vmatprep.subr.bf16.mxu0 0
    %9568 = vmatpush1.bf16.xpose.msra.mxu0 0
    %9569 = vmatprep.subr.bf16.mxu0 0
    %9570 = vmatpush1.bf16.xpose.msra.mxu0 0
    %9571 = vmatprep.subr.bf16.mxu0 0
    %9572 = vmatpush1.bf16.xpose.msra.mxu0 0
    %9573 = vmatprep.subr.bf16.mxu0 0
    %9574 = vmatpush1.bf16.xpose.msra.mxu0 0
    %9575 = vmatprep.subr.bf16.mxu0 0
    %9576 = vmatpush1.bf16.xpose.msra.mxu0 0
    %9577 = vmatprep.subr.bf16.mxu0 0
    %9578 = vmatpush1.bf16.xpose.msra.mxu0 0
    %9579 = vmatprep.mubr.bf16.mxu0 0
    %9580 = vmatmul.mubr.bf16.gmra.mrb[0].mxu0 %v9542
    %v9581 = vpop.f32.mrb[0].mxu0
    %v9582 = vadd.f32 0.0, %v9581
    %v9583 = vpop.f32.mrb[0].mxu0
    %v9584 = vpop.f32.mrb[0].mxu0
    %v9585 = vpop.f32.mrb[0].mxu0
    %9586 = vdwg.mxu0
    %v9588 = vsel %vm739, %v8762, 0
    %v9591 = vsel %vm739, %v9354, 0
    %9593 = vmatprep.subr.bf16.mxu0 0
    %9594 = vmatpush1.bf16.xpose.msra.mxu0 %v9591
    %9595 = vmatprep.subr.bf16.mxu0 0
    %9596 = vmatpush1.bf16.xpose.msra.mxu0 0
    %9597 = vmatprep.subr.bf16.mxu0 0
    %9598 = vmatpush1.bf16.xpose.msra.mxu0 0
    %9599 = vmatprep.subr.bf16.mxu0 0
    %9600 = vmatpush1.bf16.xpose.msra.mxu0 0
    %9601 = vmatprep.subr.bf16.mxu0 0
    %9602 = vmatpush1.bf16.xpose.msra.mxu0 0
    %9603 = vmatprep.subr.bf16.mxu0 0
    %9604 = vmatpush1.bf16.xpose.msra.mxu0 0
    %9605 = vmatprep.subr.bf16.mxu0 0
    %9606 = vmatpush1.bf16.xpose.msra.mxu0 0
    %9607 = vmatprep.subr.bf16.mxu0 0
    %9608 = vmatpush1.bf16.xpose.msra.mxu0 0
    %9609 = vmatprep.subr.bf16.mxu0 0
    %9610 = vmatpush1.bf16.xpose.msra.mxu0 0
    %9611 = vmatprep.subr.bf16.mxu0 0
    %9612 = vmatpush1.bf16.xpose.msra.mxu0 0
    %9613 = vmatprep.subr.bf16.mxu0 0
    %9614 = vmatpush1.bf16.xpose.msra.mxu0 0
    %9615 = vmatprep.subr.bf16.mxu0 0
    %9616 = vmatpush1.bf16.xpose.msra.mxu0 0
    %9617 = vmatprep.subr.bf16.mxu0 0
    %9618 = vmatpush1.bf16.xpose.msra.mxu0 0
    %9619 = vmatprep.subr.bf16.mxu0 0
    %9620 = vmatpush1.bf16.xpose.msra.mxu0 0
    %9621 = vmatprep.subr.bf16.mxu0 0
    %9622 = vmatpush1.bf16.xpose.msra.mxu0 0
    %9623 = vmatprep.subr.bf16.mxu0 0
    %9624 = vmatpush1.bf16.xpose.msra.mxu0 0
    %9625 = vmatprep.mubr.bf16.mxu0 0
    %9626 = vmatmul.mubr.bf16.gmra.mrb[0].mxu0 %v9588
    %v9627 = vpop.f32.mrb[0].mxu0
    %v9628 = vadd.f32 0.0, %v9627
    %v9629 = vpop.f32.mrb[0].mxu0
    %v9630 = vpop.f32.mrb[0].mxu0
    %v9631 = vpop.f32.mrb[0].mxu0
    %9632 = vdwg.mxu0
    %v9634 = vsel %vm739, %v8763, 0
    %v9637 = vsel %vm739, %v9355, 0
    %9639 = vmatprep.subr.bf16.mxu0 0
    %9640 = vmatpush1.bf16.xpose.msra.mxu0 %v9637
    %9641 = vmatprep.subr.bf16.mxu0 0
    %9642 = vmatpush1.bf16.xpose.msra.mxu0 0
    %9643 = vmatprep.subr.bf16.mxu0 0
    %9644 = vmatpush1.bf16.xpose.msra.mxu0 0
    %9645 = vmatprep.subr.bf16.mxu0 0
    %9646 = vmatpush1.bf16.xpose.msra.mxu0 0
    %9647 = vmatprep.subr.bf16.mxu0 0
    %9648 = vmatpush1.bf16.xpose.msra.mxu0 0
    %9649 = vmatprep.subr.bf16.mxu0 0
    %9650 = vmatpush1.bf16.xpose.msra.mxu0 0
    %9651 = vmatprep.subr.bf16.mxu0 0
    %9652 = vmatpush1.bf16.xpose.msra.mxu0 0
    %9653 = vmatprep.subr.bf16.mxu0 0
    %9654 = vmatpush1.bf16.xpose.msra.mxu0 0
    %9655 = vmatprep.subr.bf16.mxu0 0
    %9656 = vmatpush1.bf16.xpose.msra.mxu0 0
    %9657 = vmatprep.subr.bf16.mxu0 0
    %9658 = vmatpush1.bf16.xpose.msra.mxu0 0
    %9659 = vmatprep.subr.bf16.mxu0 0
    %9660 = vmatpush1.bf16.xpose.msra.mxu0 0
    %9661 = vmatprep.subr.bf16.mxu0 0
    %9662 = vmatpush1.bf16.xpose.msra.mxu0 0
    %9663 = vmatprep.subr.bf16.mxu0 0
    %9664 = vmatpush1.bf16.xpose.msra.mxu0 0
    %9665 = vmatprep.subr.bf16.mxu0 0
    %9666 = vmatpush1.bf16.xpose.msra.mxu0 0
    %9667 = vmatprep.subr.bf16.mxu0 0
    %9668 = vmatpush1.bf16.xpose.msra.mxu0 0
    %9669 = vmatprep.subr.bf16.mxu0 0
    %9670 = vmatpush1.bf16.xpose.msra.mxu0 0
    %9671 = vmatprep.mubr.bf16.mxu0 0
    %9672 = vmatmul.mubr.bf16.gmra.mrb[0].mxu0 %v9634
    %v9673 = vpop.f32.mrb[0].mxu0
    %v9674 = vadd.f32 0.0, %v9673
    %v9675 = vpop.f32.mrb[0].mxu0
    %v9676 = vpop.f32.mrb[0].mxu0
    %v9677 = vpop.f32.mrb[0].mxu0
    %9678 = vdwg.mxu0
    %v9680 = vsel %vm739, %v8764, 0
    %v9683 = vsel %vm739, %v9356, 0
    %9685 = vmatprep.subr.bf16.mxu0 0
    %9686 = vmatpush1.bf16.xpose.msra.mxu0 %v9683
    %9687 = vmatprep.subr.bf16.mxu0 0
    %9688 = vmatpush1.bf16.xpose.msra.mxu0 0
    %9689 = vmatprep.subr.bf16.mxu0 0
    %9690 = vmatpush1.bf16.xpose.msra.mxu0 0
    %9691 = vmatprep.subr.bf16.mxu0 0
    %9692 = vmatpush1.bf16.xpose.msra.mxu0 0
    %9693 = vmatprep.subr.bf16.mxu0 0
    %9694 = vmatpush1.bf16.xpose.msra.mxu0 0
    %9695 = vmatprep.subr.bf16.mxu0 0
    %9696 = vmatpush1.bf16.xpose.msra.mxu0 0
    %9697 = vmatprep.subr.bf16.mxu0 0
    %9698 = vmatpush1.bf16.xpose.msra.mxu0 0
    %9699 = vmatprep.subr.bf16.mxu0 0
    %9700 = vmatpush1.bf16.xpose.msra.mxu0 0
    %9701 = vmatprep.subr.bf16.mxu0 0
    %9702 = vmatpush1.bf16.xpose.msra.mxu0 0
    %9703 = vmatprep.subr.bf16.mxu0 0
    %9704 = vmatpush1.bf16.xpose.msra.mxu0 0
    %9705 = vmatprep.subr.bf16.mxu0 0
    %9706 = vmatpush1.bf16.xpose.msra.mxu0 0
    %9707 = vmatprep.subr.bf16.mxu0 0
    %9708 = vmatpush1.bf16.xpose.msra.mxu0 0
    %9709 = vmatprep.subr.bf16.mxu0 0
    %9710 = vmatpush1.bf16.xpose.msra.mxu0 0
    %9711 = vmatprep.subr.bf16.mxu0 0
    %9712 = vmatpush1.bf16.xpose.msra.mxu0 0
    %9713 = vmatprep.subr.bf16.mxu0 0
    %9714 = vmatpush1.bf16.xpose.msra.mxu0 0
    %9715 = vmatprep.subr.bf16.mxu0 0
    %9716 = vmatpush1.bf16.xpose.msra.mxu0 0
    %9717 = vmatprep.mubr.bf16.mxu0 0
    %9718 = vmatmul.mubr.bf16.gmra.mrb[0].mxu0 %v9680
    %v9719 = vpop.f32.mrb[0].mxu0
    %v9720 = vadd.f32 0.0, %v9719
    %v9721 = vpop.f32.mrb[0].mxu0
    %v9722 = vpop.f32.mrb[0].mxu0
    %v9723 = vpop.f32.mrb[0].mxu0
    %9724 = vdwg.mxu0
    %9725 = vxpose.xlu0.b32.start [1/16] %v9398, 128
    %9726 = vxpose.xlu0.b32.cont [2/16] %v9444, 128
    %9727 = vxpose.xlu0.b32.cont [3/16] %v9490, 128
    %9728 = vxpose.xlu0.b32.cont [4/16] %v9536, 128
    %9729 = vxpose.xlu0.b32.cont [5/16] 0.0, 128
    %9730 = vxpose.xlu0.b32.cont [6/16] 0.0, 128
    %9731 = vxpose.xlu0.b32.cont [7/16] 0.0, 128
    %9732 = vxpose.xlu0.b32.cont [8/16] 0.0, 128
    %9733 = vxpose.xlu0.b32.cont [9/16] 0.0, 128
    %9734 = vxpose.xlu0.b32.cont [10/16] 0.0, 128
    %9735 = vxpose.xlu0.b32.cont [11/16] 0.0, 128
    %9736 = vxpose.xlu0.b32.cont [12/16] 0.0, 128
    %9737 = vxpose.xlu0.b32.cont [13/16] 0.0, 128
    %9738 = vxpose.xlu0.b32.cont [14/16] 0.0, 128
    %9739 = vxpose.xlu0.b32.cont [15/16] 0.0, 128
    %9740 = vxpose.xlu0.b32.end [16/16] 0.0, 128
    %v9741 = vpop.trf.xlu0
    %v9742 = vpop.trf.xlu0
    %v9743 = vpop.trf.xlu0
    %v9744 = vpop.trf.xlu0
    %v9745 = vpop.trf.xlu0
    %v9746 = vpop.trf.xlu0
    %v9747 = vpop.trf.xlu0
    %v9748 = vpop.trf.xlu0
    %v9749 = vpop.trf.xlu0
    %v9750 = vpop.trf.xlu0
    %v9751 = vpop.trf.xlu0
    %v9752 = vpop.trf.xlu0
    %v9753 = vpop.trf.xlu0
    %v9754 = vpop.trf.xlu0
    %v9755 = vpop.trf.xlu0
    %v9756 = vpop.trf.xlu0
    %9757 = vxpose.xlu0.b32.start [1/16] %v9582, 128
    %9758 = vxpose.xlu0.b32.cont [2/16] %v9628, 128
    %9759 = vxpose.xlu0.b32.cont [3/16] %v9674, 128
    %9760 = vxpose.xlu0.b32.cont [4/16] %v9720, 128
    %9761 = vxpose.xlu0.b32.cont [5/16] 0.0, 128
    %9762 = vxpose.xlu0.b32.cont [6/16] 0.0, 128
    %9763 = vxpose.xlu0.b32.cont [7/16] 0.0, 128
    %9764 = vxpose.xlu0.b32.cont [8/16] 0.0, 128
    %9765 = vxpose.xlu0.b32.cont [9/16] 0.0, 128
    %9766 = vxpose.xlu0.b32.cont [10/16] 0.0, 128
    %9767 = vxpose.xlu0.b32.cont [11/16] 0.0, 128
    %9768 = vxpose.xlu0.b32.cont [12/16] 0.0, 128
    %9769 = vxpose.xlu0.b32.cont [13/16] 0.0, 128
    %9770 = vxpose.xlu0.b32.cont [14/16] 0.0, 128
    %9771 = vxpose.xlu0.b32.cont [15/16] 0.0, 128
    %9772 = vxpose.xlu0.b32.end [16/16] 0.0, 128
    %v9773 = vpop.trf.xlu0
    %v9774 = vpop.trf.xlu0
    %v9775 = vpop.trf.xlu0
    %v9776 = vpop.trf.xlu0
    %v9777 = vpop.trf.xlu0
    %v9778 = vpop.trf.xlu0
    %v9779 = vpop.trf.xlu0
    %v9780 = vpop.trf.xlu0
    %v9781 = vpop.trf.xlu0
    %v9782 = vpop.trf.xlu0
    %v9783 = vpop.trf.xlu0
    %v9784 = vpop.trf.xlu0
    %v9785 = vpop.trf.xlu0
    %v9786 = vpop.trf.xlu0
    %v9787 = vpop.trf.xlu0
    %v9788 = vpop.trf.xlu0
    %v9789 = vpack.c.bf16 %v9773, %v9741
    %v9791 = vlaneseq
    %v9792 = vshrl.u32 %v9791, 7
    %v9793 = vsub.s32 0, %v9792
    %v9794 = vrot.slane %v8416, %v9793
    %v9800 = vunpack.c.l.b16 %v8411
    %v9801 = vunpack.c.l.b16 %v8412
    %v9802 = vunpack.c.l.b16 %v8413
    %v9803 = vunpack.c.l.b16 %v8414
    %v9804 = vpack.c.b16 %v9801, %v9800
    %v9805 = vpack.c.b16 %v9803, %v9802
    %v9809 = vsel %vm446, %v9789, 0
    %9811 = vmatprep.subr.bf16.mxu0 0
    %9812 = vmatpush1.bf16.msra.mxu0 %v9804
    %9813 = vmatprep.subr.bf16.mxu0 0
    %9814 = vmatpush1.bf16.msra.mxu0 %v9805
    %9815 = vmatprep.subr.bf16.mxu0 0
    %9816 = vmatpush1.bf16.msra.mxu0 0
    %9817 = vmatprep.subr.bf16.mxu0 0
    %9818 = vmatpush1.bf16.msra.mxu0 0
    %9819 = vmatprep.subr.bf16.mxu0 0
    %9820 = vmatpush1.bf16.msra.mxu0 0
    %9821 = vmatprep.subr.bf16.mxu0 0
    %9822 = vmatpush1.bf16.msra.mxu0 0
    %9823 = vmatprep.subr.bf16.mxu0 0
    %9824 = vmatpush1.bf16.msra.mxu0 0
    %9825 = vmatprep.subr.bf16.mxu0 0
    %9826 = vmatpush1.bf16.msra.mxu0 0
    %9827 = vmatprep.subr.bf16.mxu0 0
    %9828 = vmatpush1.bf16.msra.mxu0 0
    %9829 = vmatprep.subr.bf16.mxu0 0
    %9830 = vmatpush1.bf16.msra.mxu0 0
    %9831 = vmatprep.subr.bf16.mxu0 0
    %9832 = vmatpush1.bf16.msra.mxu0 0
    %9833 = vmatprep.subr.bf16.mxu0 0
    %9834 = vmatpush1.bf16.msra.mxu0 0
    %9835 = vmatprep.subr.bf16.mxu0 0
    %9836 = vmatpush1.bf16.msra.mxu0 0
    %9837 = vmatprep.subr.bf16.mxu0 0
    %9838 = vmatpush1.bf16.msra.mxu0 0
    %9839 = vmatprep.subr.bf16.mxu0 0
    %9840 = vmatpush1.bf16.msra.mxu0 0
    %9841 = vmatprep.subr.bf16.mxu0 0
    %9842 = vmatpush1.bf16.msra.mxu0 0
    %9843 = vmatprep.mubr.bf16.mxu0 0
    %9844 = vmatmul.mubr.bf16.gmra.mrb[0].mxu0 %v9809
    %v9845 = vpop.f32.mrb[0].mxu0
    %v9846 = vadd.f32 %v9794, %v9845
    %v9847 = vpop.f32.mrb[0].mxu0
    %v9848 = vpop.f32.mrb[0].mxu0
    %v9849 = vadd.f32 %v9794, %v9848
    %v9850 = vpop.f32.mrb[0].mxu0
    %9851 = vdwg.mxu0
    %v9852 = vadd.f32 %v8394, %v9846
    %v9853 = vadd.f32 %v8395, %v9849
    %s9854 = scalar_lea.vmem [#allocation21], 8
    %v9855 = vld [vmem:[%s9854] sm:$0x3]
    %v9856 = vsel %vm446, %v9852, 0.0
    %9857 = vadd.xlane.f32.xlu0 %v9856
    %v9858 = vpop.xlane.xlu0 %9857
    %v9859 = vsel %vm446, %v9853, 0.0
    %9860 = vadd.xlane.f32.xlu0 %v9859
    %v9861 = vpop.xlane.xlu0 %9860
    %v9862 = vmul.f32 %v9858, %v1820
    %v9863 = vmul.f32 %v9861, %v1820
    %v9864 = vsub.f32 %v9852, %v9862
    %v9865 = vsub.f32 %v9853, %v9863
    %v9866 = vmul.f32 %v9864, %v9864
    %v9867 = vmul.f32 %v9865, %v9865
    %v9868 = vsel %vm446, %v9866, 0.0
    %9869 = vadd.xlane.f32.xlu0 %v9868
    %v9870 = vpop.xlane.xlu0 %9869
    %v9871 = vsel %vm446, %v9867, 0.0
    %9872 = vadd.xlane.f32.xlu0 %v9871
    %v9873 = vpop.xlane.xlu0 %9872
    %v9874 = vmul.f32 %v9870, %v1820
    %v9875 = vmul.f32 %v9873, %v1820
    %v9876 = vadd.f32 %v9874, 1e-05
    %v9877 = vadd.f32 %v9875, 1e-05
    %v9878 = vrsqrt.pop %v9876
    %v9879 = vrsqrt.pop %v9877
    %v9880 = vmul.f32 %v9864, %v9878
    %v9881 = vmul.f32 %v9865, %v9879
    %v9882 = vlaneseq
    %v9883 = vshrl.u32 %v9882, 7
    %v9884 = vsub.s32 0, %v9883
    %v9885 = vrot.slane %v9855, %v9884
    %v9886 = vmul.f32 %v9880, %v9885
    %v9887 = vmul.f32 %v9881, %v9885
    %v9888 = vlaneseq
    %v9889 = vshrl.u32 %v9888, 7
    %v9890 = vsub.s32 1, %v9889
    %v9891 = vrot.slane %v9855, %v9890
    %v9892 = vadd.f32 %v9886, %v9891
    %v9893 = vadd.f32 %v9887, %v9891
    %s9894 = scalar_lea.vmem %s47, 16
    %v9895 = vld [vmem:[%s9894] sm:$0xf]
    %v9896 = vld [vmem:[%s9894 + $0x4] sm:$0xf]
    %v9897 = vld [vmem:[%s9894 + $0x8] sm:$0xf]
    %v9898 = vld [vmem:[%s9894 + $0xc] sm:$0xf]
    %s9899 = scalar_lea.vmem [#allocation18], 1
    %v9900 = vld [vmem:[%s9899] sm:$0x1]
    %s9901 = scalar_lea.vmem %s51, 32
    %v9902 = vld [vmem:[%s9901] sm:$0xf]
    %v9903 = vld [vmem:[%s9901 + $0x4] sm:$0xf]
    %v9904 = vld [vmem:[%s9901 + $0x8] sm:$0xf]
    %v9905 = vld [vmem:[%s9901 + $0xc] sm:$0xf]
    %v9906 = vld [vmem:[%s9901 + $0x10] sm:$0xf]
    %v9907 = vld [vmem:[%s9901 + $0x14] sm:$0xf]
    %v9908 = vld [vmem:[%s9901 + $0x18] sm:$0xf]
    %v9909 = vld [vmem:[%s9901 + $0x1c] sm:$0xf]
    %s9910 = scalar_lea.vmem [#allocation19], 1
    %v9911 = vld [vmem:[%s9910] sm:$0x1]
    %v9912 = vpack.c.bf16 %v9893, %v9892
    %v9914 = vlaneseq
    %v9915 = vshrl.u32 %v9914, 7
    %v9916 = vsub.s32 0, %v9915
    %v9917 = vrot.slane %v9900, %v9916
    %v9923 = vunpack.c.l.b16 %v9895
    %v9924 = vunpack.c.l.b16 %v9896
    %v9925 = vunpack.c.l.b16 %v9897
    %v9926 = vunpack.c.l.b16 %v9898
    %v9927 = vpack.c.b16 %v9924, %v9923
    %v9928 = vpack.c.b16 %v9926, %v9925
    %v9932 = vsel %vm446, %v9912, 0
    %9934 = vmatprep.subr.bf16.mxu0 0
    %9935 = vmatpush1.bf16.msra.mxu0 %v9927
    %9936 = vmatprep.subr.bf16.mxu0 0
    %9937 = vmatpush1.bf16.msra.mxu0 %v9928
    %9938 = vmatprep.subr.bf16.mxu0 0
    %9939 = vmatpush1.bf16.msra.mxu0 0
    %9940 = vmatprep.subr.bf16.mxu0 0
    %9941 = vmatpush1.bf16.msra.mxu0 0
    %9942 = vmatprep.subr.bf16.mxu0 0
    %9943 = vmatpush1.bf16.msra.mxu0 0
    %9944 = vmatprep.subr.bf16.mxu0 0
    %9945 = vmatpush1.bf16.msra.mxu0 0
    %9946 = vmatprep.subr.bf16.mxu0 0
    %9947 = vmatpush1.bf16.msra.mxu0 0
    %9948 = vmatprep.subr.bf16.mxu0 0
    %9949 = vmatpush1.bf16.msra.mxu0 0
    %9950 = vmatprep.subr.bf16.mxu0 0
    %9951 = vmatpush1.bf16.msra.mxu0 0
    %9952 = vmatprep.subr.bf16.mxu0 0
    %9953 = vmatpush1.bf16.msra.mxu0 0
    %9954 = vmatprep.subr.bf16.mxu0 0
    %9955 = vmatpush1.bf16.msra.mxu0 0
    %9956 = vmatprep.subr.bf16.mxu0 0
    %9957 = vmatpush1.bf16.msra.mxu0 0
    %9958 = vmatprep.subr.bf16.mxu0 0
    %9959 = vmatpush1.bf16.msra.mxu0 0
    %9960 = vmatprep.subr.bf16.mxu0 0
    %9961 = vmatpush1.bf16.msra.mxu0 0
    %9962 = vmatprep.subr.bf16.mxu0 0
    %9963 = vmatpush1.bf16.msra.mxu0 0
    %9964 = vmatprep.subr.bf16.mxu0 0
    %9965 = vmatpush1.bf16.msra.mxu0 0
    %9966 = vmatprep.mubr.bf16.mxu0 0
    %9967 = vmatmul.mubr.bf16.gmra.mrb[0].mxu0 %v9932
    %v9968 = vpop.f32.mrb[0].mxu0
    %v9969 = vadd.f32 %v9917, %v9968
    %v9970 = vpop.f32.mrb[0].mxu0
    %v9971 = vpop.f32.mrb[0].mxu0
    %v9972 = vadd.f32 %v9917, %v9971
    %v9973 = vpop.f32.mrb[0].mxu0
    %9974 = vdwg.mxu0
    %v9975 = vmax.f32 %v9969, 0.0
    %v9976 = vmax.f32 %v9972, 0.0
    %v9977 = vpack.c.bf16 %v9976, %v9975
    %v9979 = vlaneseq
    %v9980 = vshrl.u32 %v9979, 7
    %v9981 = vsub.s32 0, %v9980
    %v9982 = vrot.slane %v9911, %v9981
    %v9992 = vunpack.c.l.b16 %v9902
    %v9993 = vunpack.c.l.b16 %v9903
    %v9994 = vunpack.c.l.b16 %v9904
    %v9995 = vunpack.c.l.b16 %v9905
    %v9996 = vunpack.c.l.b16 %v9906
    %v9997 = vunpack.c.l.b16 %v9907
    %v9998 = vunpack.c.l.b16 %v9908
    %v9999 = vunpack.c.l.b16 %v9909
    %v10000 = vpack.c.b16 %v9993, %v9992
    %v10001 = vpack.c.b16 %v9995, %v9994
    %v10002 = vpack.c.b16 %v9997, %v9996
    %v10003 = vpack.c.b16 %v9999, %v9998
    %v10009 = vsel %vm1963, %v9977, 0
    %10011 = vmatprep.subr.bf16.mxu0 0
    %10012 = vmatpush1.bf16.msra.mxu0 %v10000
    %10013 = vmatprep.subr.bf16.mxu0 0
    %10014 = vmatpush1.bf16.msra.mxu0 %v10001
    %10015 = vmatprep.subr.bf16.mxu0 0
    %10016 = vmatpush1.bf16.msra.mxu0 %v10002
    %10017 = vmatprep.subr.bf16.mxu0 0
    %10018 = vmatpush1.bf16.msra.mxu0 %v10003
    %10019 = vmatprep.subr.bf16.mxu0 0
    %10020 = vmatpush1.bf16.msra.mxu0 0
    %10021 = vmatprep.subr.bf16.mxu0 0
    %10022 = vmatpush1.bf16.msra.mxu0 0
    %10023 = vmatprep.subr.bf16.mxu0 0
    %10024 = vmatpush1.bf16.msra.mxu0 0
    %10025 = vmatprep.subr.bf16.mxu0 0
    %10026 = vmatpush1.bf16.msra.mxu0 0
    %10027 = vmatprep.subr.bf16.mxu0 0
    %10028 = vmatpush1.bf16.msra.mxu0 0
    %10029 = vmatprep.subr.bf16.mxu0 0
    %10030 = vmatpush1.bf16.msra.mxu0 0
    %10031 = vmatprep.subr.bf16.mxu0 0
    %10032 = vmatpush1.bf16.msra.mxu0 0
    %10033 = vmatprep.subr.bf16.mxu0 0
    %10034 = vmatpush1.bf16.msra.mxu0 0
    %10035 = vmatprep.subr.bf16.mxu0 0
    %10036 = vmatpush1.bf16.msra.mxu0 0
    %10037 = vmatprep.subr.bf16.mxu0 0
    %10038 = vmatpush1.bf16.msra.mxu0 0
    %10039 = vmatprep.subr.bf16.mxu0 0
    %10040 = vmatpush1.bf16.msra.mxu0 0
    %10041 = vmatprep.subr.bf16.mxu0 0
    %10042 = vmatpush1.bf16.msra.mxu0 0
    %10043 = vmatprep.mubr.bf16.mxu0 0
    %10044 = vmatmul.mubr.bf16.gmra.mrb[0].mxu0 %v10009
    %v10045 = vpop.f32.mrb[0].mxu0
    %v10046 = vadd.f32 %v9982, %v10045
    %v10047 = vpop.f32.mrb[0].mxu0
    %v10048 = vpop.f32.mrb[0].mxu0
    %v10049 = vadd.f32 %v9982, %v10048
    %v10050 = vpop.f32.mrb[0].mxu0
    %10051 = vdwg.mxu0
    %v10052 = vadd.f32 %v9892, %v10046
    %v10053 = vadd.f32 %v9893, %v10049
    %s10054 = scalar_lea.vmem [#allocation21], 10
    %v10055 = vld [vmem:[%s10054] sm:$0x3]
    %v10056 = vsel %vm446, %v10052, 0.0
    %10057 = vadd.xlane.f32.xlu0 %v10056
    %v10058 = vpop.xlane.xlu0 %10057
    %v10059 = vsel %vm446, %v10053, 0.0
    %10060 = vadd.xlane.f32.xlu0 %v10059
    %v10061 = vpop.xlane.xlu0 %10060
    %v10062 = vmul.f32 %v10058, %v1820
    %v10063 = vmul.f32 %v10061, %v1820
    %v10064 = vsub.f32 %v10052, %v10062
    %v10065 = vsub.f32 %v10053, %v10063
    %v10066 = vmul.f32 %v10064, %v10064
    %v10067 = vmul.f32 %v10065, %v10065
    %v10068 = vsel %vm446, %v10066, 0.0
    %10069 = vadd.xlane.f32.xlu0 %v10068
    %v10070 = vpop.xlane.xlu0 %10069
    %v10071 = vsel %vm446, %v10067, 0.0
    %10072 = vadd.xlane.f32.xlu0 %v10071
    %v10073 = vpop.xlane.xlu0 %10072
    %v10074 = vmul.f32 %v10070, %v1820
    %v10075 = vmul.f32 %v10073, %v1820
    %v10076 = vadd.f32 %v10074, 1e-05
    %v10077 = vadd.f32 %v10075, 1e-05
    %v10078 = vrsqrt.pop %v10076
    %v10079 = vrsqrt.pop %v10077
    %v10080 = vmul.f32 %v10064, %v10078
    %v10081 = vmul.f32 %v10065, %v10079
    %v10082 = vlaneseq
    %v10083 = vshrl.u32 %v10082, 7
    %v10084 = vsub.s32 0, %v10083
    %v10085 = vrot.slane %v10055, %v10084
    %v10086 = vmul.f32 %v10080, %v10085
    %v10087 = vmul.f32 %v10081, %v10085
    %v10088 = vlaneseq
    %v10089 = vshrl.u32 %v10088, 7
    %v10090 = vsub.s32 1, %v10089
    %v10091 = vrot.slane %v10055, %v10090
    %v10092 = vadd.f32 %v10086, %v10091
    %v10093 = vadd.f32 %v10087, %v10091
    %s10094 = scalar_lea.vmem %s57, 2
    %v10095 = vld [vmem:[%s10094] sm:$0x3]
    %v10096 = vsel %vm446, %v10092, 0.0
    %10097 = vadd.xlane.f32.xlu0 %v10096
    %v10098 = vpop.xlane.xlu0 %10097
    %v10099 = vsel %vm446, %v10093, 0.0
    %10100 = vadd.xlane.f32.xlu0 %v10099
    %v10101 = vpop.xlane.xlu0 %10100
    %v10102 = vmul.f32 %v10098, %v1820
    %v10103 = vmul.f32 %v10101, %v1820
    %v10104 = vsub.f32 %v10092, %v10102
    %v10105 = vsub.f32 %v10093, %v10103
    %v10106 = vmul.f32 %v10104, %v10104
    %v10107 = vmul.f32 %v10105, %v10105
    %v10108 = vsel %vm446, %v10106, 0.0
    %10109 = vadd.xlane.f32.xlu0 %v10108
    %v10110 = vpop.xlane.xlu0 %10109
    %v10111 = vsel %vm446, %v10107, 0.0
    %10112 = vadd.xlane.f32.xlu0 %v10111
    %v10113 = vpop.xlane.xlu0 %10112
    %v10114 = vmul.f32 %v10110, %v1820
    %v10115 = vmul.f32 %v10113, %v1820
    %v10116 = vadd.f32 %v10114, 1e-05
    %v10117 = vadd.f32 %v10115, 1e-05
    %v10118 = vrsqrt.pop %v10116
    %v10119 = vrsqrt.pop %v10117
    %v10120 = vmul.f32 %v10104, %v10118
    %v10121 = vmul.f32 %v10105, %v10119
    %v10122 = vlaneseq
    %v10123 = vshrl.u32 %v10122, 7
    %v10124 = vsub.s32 0, %v10123
    %v10125 = vrot.slane %v10095, %v10124
    %v10126 = vmul.f32 %v10120, %v10125
    %v10127 = vmul.f32 %v10121, %v10125
    %v10128 = vlaneseq
    %v10129 = vshrl.u32 %v10128, 7
    %v10130 = vsub.s32 1, %v10129
    %v10131 = vrot.slane %v10095, %v10130
    %v10132 = vadd.f32 %v10126, %v10131
    %v10133 = vadd.f32 %v10127, %v10131
    %v10134 = vld [vmem:[%s59] sm:$0xf]
    %v10135 = vld [vmem:[%s59 + $0x4] sm:$0xf]
    %v10136 = vld [vmem:[%s59 + $0x8] sm:$0xf]
    %v10137 = vld [vmem:[%s59 + $0xc] sm:$0xf]
    %v10138 = vpack.c.bf16 %v10133, %v10132
    %v10139 = vld [vmem:[%s61] sm:$0x1]
    %v10141 = vlaneseq
    %v10142 = vshrl.u32 %v10141, 7
    %v10143 = vsub.s32 0, %v10142
    %v10144 = vrot.slane %v10139, %v10143
    %v10150 = vunpack.c.l.b16 %v10134
    %v10151 = vunpack.c.l.b16 %v10135
    %v10152 = vunpack.c.l.b16 %v10136
    %v10153 = vunpack.c.l.b16 %v10137
    %v10154 = vpack.c.b16 %v10151, %v10150
    %v10155 = vpack.c.b16 %v10153, %v10152
    %v10159 = vsel %vm446, %v10138, 0
    %10161 = vmatprep.subr.bf16.mxu0 0
    %10162 = vmatpush1.bf16.msra.mxu0 %v10154
    %10163 = vmatprep.subr.bf16.mxu0 0
    %10164 = vmatpush1.bf16.msra.mxu0 %v10155
    %10165 = vmatprep.subr.bf16.mxu0 0
    %10166 = vmatpush1.bf16.msra.mxu0 0
    %10167 = vmatprep.subr.bf16.mxu0 0
    %10168 = vmatpush1.bf16.msra.mxu0 0
    %10169 = vmatprep.subr.bf16.mxu0 0
    %10170 = vmatpush1.bf16.msra.mxu0 0
    %10171 = vmatprep.subr.bf16.mxu0 0
    %10172 = vmatpush1.bf16.msra.mxu0 0
    %10173 = vmatprep.subr.bf16.mxu0 0
    %10174 = vmatpush1.bf16.msra.mxu0 0
    %10175 = vmatprep.subr.bf16.mxu0 0
    %10176 = vmatpush1.bf16.msra.mxu0 0
    %10177 = vmatprep.subr.bf16.mxu0 0
    %10178 = vmatpush1.bf16.msra.mxu0 0
    %10179 = vmatprep.subr.bf16.mxu0 0
    %10180 = vmatpush1.bf16.msra.mxu0 0
    %10181 = vmatprep.subr.bf16.mxu0 0
    %10182 = vmatpush1.bf16.msra.mxu0 0
    %10183 = vmatprep.subr.bf16.mxu0 0
    %10184 = vmatpush1.bf16.msra.mxu0 0
    %10185 = vmatprep.subr.bf16.mxu0 0
    %10186 = vmatpush1.bf16.msra.mxu0 0
    %10187 = vmatprep.subr.bf16.mxu0 0
    %10188 = vmatpush1.bf16.msra.mxu0 0
    %10189 = vmatprep.subr.bf16.mxu0 0
    %10190 = vmatpush1.bf16.msra.mxu0 0
    %10191 = vmatprep.subr.bf16.mxu0 0
    %10192 = vmatpush1.bf16.msra.mxu0 0
    %10193 = vmatprep.mubr.bf16.mxu0 0
    %10194 = vmatmul.mubr.bf16.gmra.mrb[0].mxu0 %v10159
    %v10195 = vpop.f32.mrb[0].mxu0
    %v10196 = vadd.f32 %v10144, %v10195
    %v10197 = vpop.f32.mrb[0].mxu0
    %v10198 = vpop.f32.mrb[0].mxu0
    %v10199 = vadd.f32 %v10144, %v10198
    %v10200 = vpop.f32.mrb[0].mxu0
    %10201 = vdwg.mxu0
    %10202 = vst [vmem:[%s63] sm:$0xff] %v10196
    %10203 = vst [vmem:[%s63 + $0x8] sm:$0xff] %v10199
    // Predicated region
    $region178: #{transformer_forward.1} parent=1 // pred_check
      _
    $region179: #{transformer_forward.1} parent=1 // pred_check_branch
      %10205 = sbr.rel (0) target = $region181
    $region180: #{transformer_forward.1} parent=1 // pred_region
      _
    $region181: #{transformer_forward.1} parent=1 // pred_fallthru
      _
    // Predicated region
    $region182: #{transformer_forward.1} parent=1 // pred_check
      _
    $region183: #{transformer_forward.1} parent=1 // pred_check_branch
      %10207 = sbr.rel (0) target = $region185
    $region184: #{transformer_forward.1} parent=1 // pred_region
      _
    $region185: #{transformer_forward.1} parent=1 // pred_fallthru
      _
    %10208 = vsyncpa [#allocation3], 1
    %10209 = vsyncpa [#allocation5], 1
    %10210 = vsyncpa [#allocation8], 1
    %10211 = vsyncpa [#allocation11], 1
    %10212 = vsyncpa [#allocation14], 1
    %10213 = vsyncpa [#allocation17], 1
    %10214 = vsyncpa [#allocation20], 1

</llo_original>
